<compile_context>
chip_gen: v6e
topology: v6e:2x2x1
jax: 0.10.0
libtpu: 0.0.40
codegen_flags: <defaults>
</compile_context>

<pallas_src>
import functools
import math

import numpy as np
import jax
import jax.numpy as jnp
from jax.experimental import pallas as pl
from jax.experimental.pallas import tpu as pltpu

LANE = 128                      # TPU lane width; channels padded to this
_VMEM_LIMIT = 32 * 1024 * 1024  # scoped-VMEM limit, safe on v5e/v6e/v7x


def _round_up(x, m):
    return ((x + m - 1) // m) * m


def _detect_num_tc():
    """2 TensorCores per chip on v7x, 1 on v5e/v6e (and on CPU/interpret)."""
    try:
        d = jax.devices()[0]
        if d.platform == "tpu":
            kind = str(getattr(d, "device_kind", "")).lower()
            if "v7" in kind or "7x" in kind:
                return 2
    except Exception:
        pass
    return 1


_NUM_TC = _detect_num_tc()


def _grid_steps(M):
    """conv1 tiling: >=2 'parallel' grid steps on a 2-TC chip (v7x) so both
    cores get a block; a single step on single-TC v5e/v6e (a split there only
    adds per-step overhead)."""
    if _NUM_TC > 1 and M % (_NUM_TC * 8) == 0 and (M // _NUM_TC) >= 256:
        return _NUM_TC
    return 1


# ----------------------------------------------------------------------------
# Pallas kernels
# ----------------------------------------------------------------------------
def _matmul_bias_kernel(x_ref, w_ref, b_ref, o_ref, *, relu):
    # (M, K) bf16 @ (K, Np) bf16 -> f32 acc + bias (+ ReLU).
    y = jnp.dot(x_ref[...], w_ref[...],
                preferred_element_type=jnp.float32) + b_ref[...]
    if relu:
        y = jnp.maximum(y, 0.0)
    o_ref[...] = y.astype(o_ref.dtype)


def _max_reduce_kernel(stk_ref, o_ref):
    # stk: (KK, R, C) stacked pooling windows -> elementwise max over KK.
    o_ref[...] = jnp.max(stk_ref[...], axis=0)


def _pool_matmul_kernel(stk_ref, w_ref, b_ref, o_ref):
    # max-pool (stacked windows) fused with the following 1x1 conv matmul.
    pooled = jnp.max(stk_ref[...], axis=0)
    y = jnp.dot(pooled, w_ref[...],
                preferred_element_type=jnp.float32) + b_ref[...]
    o_ref[...] = jnp.maximum(y, 0.0).astype(o_ref.dtype)


def _pool_matmul2_kernel(stk_ref, w_ref, b_ref, pooled_ref, o_ref):
    # Same as above but also writes the pooled map out (it is the inception
    # block input, reused by the branch-4 path).
    pooled = jnp.max(stk_ref[...], axis=0)
    pooled_ref[...] = pooled
    y = jnp.dot(pooled, w_ref[...],
                preferred_element_type=jnp.float32) + b_ref[...]
    o_ref[...] = jnp.maximum(y, 0.0).astype(o_ref.dtype)


def _conv33_pool11_kernel(p_ref, w33_ref, b33_ref, stk_ref, w4_ref, b4_ref,
                          z_ref, b4o_ref):
    # Fused inception 3x3 branches (block-diagonal weight) + branch4 pool/1x1.
    z = jnp.dot(p_ref[...], w33_ref[...],
                preferred_element_type=jnp.float32) + b33_ref[...]
    z_ref[...] = jnp.maximum(z, 0.0).astype(z_ref.dtype)
    pooled = jnp.max(stk_ref[...], axis=0)
    w = jnp.dot(pooled, w4_ref[...],
                preferred_element_type=jnp.float32) + b4_ref[...]
    b4o_ref[...] = jnp.maximum(w, 0.0).astype(b4o_ref.dtype)


def _inception_tail_fc_kernel(p_ref, w33_ref, b33_ref, stk_ref, w4_ref, b4_ref,
                              y_ref, pmat_ref, wy_ref, wz_ref, ww_ref, fcb_ref,
                              o_ref):
    # inception4 tail: fused 3x3 branches + branch4 pool/1x1, then
    # AdaptiveAvgPool2d((1,1)) (as a tiny averaging matmul) + flatten + fc.
    z = jnp.dot(p_ref[...], w33_ref[...],
                preferred_element_type=jnp.float32) + b33_ref[...]
    z = jnp.maximum(z, 0.0)
    pooled = jnp.max(stk_ref[...], axis=0)
    w4 = jnp.dot(pooled, w4_ref[...],
                 preferred_element_type=jnp.float32) + b4_ref[...]
    w4 = jnp.maximum(w4, 0.0)

    pm = pmat_ref[...]                                     # (N, R) averaging
    py = jnp.dot(pm, y_ref[...].astype(jnp.float32),
                 preferred_element_type=jnp.float32)
    pz = jnp.dot(pm, z, preferred_element_type=jnp.float32)
    pw = jnp.dot(pm, w4, preferred_element_type=jnp.float32)
    logits = (
        jnp.dot(py.astype(jnp.bfloat16), wy_ref[...],
                preferred_element_type=jnp.float32)
        + jnp.dot(pz.astype(jnp.bfloat16), wz_ref[...],
                  preferred_element_type=jnp.float32)
        + jnp.dot(pw.astype(jnp.bfloat16), ww_ref[...],
                  preferred_element_type=jnp.float32)
        + fcb_ref[...])
    o_ref[...] = logits


# ----------------------------------------------------------------------------
# pallas_call wrappers
# ----------------------------------------------------------------------------
def _full_spec(shape):
    nd = len(shape)
    return pl.BlockSpec(shape, lambda i, nd=nd: (0,) * nd)


def _call_whole(kernel, out_shapes, *args):
    """Single-step pallas_call with whole-array VMEM blocks."""
    multiple = isinstance(out_shapes, (tuple, list))
    out_shape = tuple(out_shapes) if multiple else out_shapes
    in_specs = [_full_spec(a.shape) for a in args]
    if multiple:
        out_specs = tuple(_full_spec(o.shape) for o in out_shape)
    else:
        out_specs = _full_spec(out_shape.shape)
    return pl.pallas_call(
        kernel,
        out_shape=out_shape,
        grid=(1,),
        in_specs=in_specs,
        out_specs=out_specs,
        compiler_params=pltpu.CompilerParams(
            dimension_semantics=("arbitrary",),
            vmem_limit_bytes=_VMEM_LIMIT),
    )(*args)


def _matmul_bias_act(x, w, b, relu=True, grid_m=1, out_dtype=jnp.bfloat16):
    """(M, K) @ (K, Np) + bias (+ReLU); optional M split across TCs."""
    M, K = x.shape
    Np = w.shape[1]
    if M % grid_m != 0:
        grid_m = 1
    TM = M // grid_m
    # Weight / bias blocks are grid-invariant -> single-buffer them when the
    # grid actually has more than one step.
    inv = {"pipeline_mode": pl.Buffered(1)} if grid_m > 1 else {}
    return pl.pallas_call(
        functools.partial(_matmul_bias_kernel, relu=relu),
        out_shape=jax.ShapeDtypeStruct((M, Np), out_dtype),
        grid=(grid_m,),
        in_specs=[
            pl.BlockSpec((TM, K), lambda i: (i, 0)),
            pl.BlockSpec((K, Np), lambda i: (0, 0), **inv),
            pl.BlockSpec((1, Np), lambda i: (0, 0), **inv),
        ],
        out_specs=pl.BlockSpec((TM, Np), lambda i: (i, 0)),
        compiler_params=pltpu.CompilerParams(
            dimension_semantics=("parallel",),
            vmem_limit_bytes=_VMEM_LIMIT),
    )(x, w, b)


# ----------------------------------------------------------------------------
# XLA glue: im2col patches and pooling-window stacks (small, <~1.2 MB each)
# ----------------------------------------------------------------------------
def _im2col(x, k, stride, padding):
    """x: (N,H,W,C) -> patches (N*Ho*Wo, k*k*C) with zero spatial padding."""
    N, H, W, C = x.shape
    Ho = (H + 2 * padding - k) // stride + 1
    Wo = (W + 2 * padding - k) // stride + 1
    xp = jnp.pad(x, ((0, 0), (padding, padding), (padding, padding), (0, 0)))
    cols = [xp[:, kh:kh + stride * Ho:stride, kw:kw + stride * Wo:stride, :]
            for kh in range(k) for kw in range(k)]
    patches = jnp.concatenate(cols, axis=-1).reshape(N * Ho * Wo, k * k * C)
    return patches, (Ho, Wo)


def _pool_windows(x, k, stride, padding, ceil_mode=True):
    """x: (N,H,W,C) -> stacked windows (k*k, N*Ho*Wo, C), -inf spatial pad.
    Matches PyTorch MaxPool2d ceil_mode semantics."""
    N, H, W, C = x.shape

    def out_size(size):
        if ceil_mode:
            o = -(-(size + 2 * padding - k) // stride) + 1
            if (o - 1) * stride >= size + padding:
                o -= 1
        else:
            o = (size + 2 * padding - k) // stride + 1
        return o

    Ho, Wo = out_size(H), out_size(W)
    pad_hr = max((Ho - 1) * stride + k - H - padding, 0)
    pad_wr = max((Wo - 1) * stride + k - W - padding, 0)
    xp = jnp.pad(x, ((0, 0), (padding, pad_hr), (padding, pad_wr), (0, 0)),
                 constant_values=-jnp.inf)
    views = [xp[:, kh:kh + stride * Ho:stride, kw:kw + stride * Wo:stride, :]
             for kh in range(k) for kw in range(k)]
    stacked = jnp.stack(views, axis=0).reshape(k * k, N * Ho * Wo, C)
    return stacked, (Ho, Wo)


# ----------------------------------------------------------------------------
# Parameter init: synthetic weights, BN folded, placed into padded layouts.
# All layout bookkeeping happens HERE (static Python) — never in the forward.
# ----------------------------------------------------------------------------
def _basic_conv_logical(key, cin, cout, k):
    """Conv(no bias)+BN(eps=1e-3) folded: returns (k*k, cin, cout) weight,
    (cout,) bias, both f32."""
    k1, k2, k3, k4, k5 = jax.random.split(key, 5)
    w = jax.random.normal(k1, (k, k, cin, cout), jnp.float32) / math.sqrt(k * k * cin)
    gamma = 1.0 + 0.1 * jax.random.normal(k2, (cout,), jnp.float32)
    beta = 0.05 * jax.random.normal(k3, (cout,), jnp.float32)
    mean = 0.01 * jax.random.normal(k4, (cout,), jnp.float32)
    var = 1.0 + 0.1 * jnp.abs(jax.random.normal(k5, (cout,), jnp.float32))
    scale = gamma / jnp.sqrt(var + 1e-3)
    bias = beta - mean * scale
    wf = (w * scale).reshape(k * k, cin, cout)
    return wf, bias


def _place_rows(w_kkc, in_idx, in_pad):
    """Scatter logical weight rows into the padded input-channel layout.
    w_kkc: (k*k, cin_real, cout) -> (k*k*in_pad, cout)."""
    kk, _, cout = w_kkc.shape
    wp = jnp.zeros((kk, in_pad, cout), jnp.float32)
    wp = wp.at[:, np.asarray(in_idx), :].set(w_kkc)
    return wp.reshape(kk * in_pad, cout)


def _finish(w2d, bias, n_pad=LANE):
    """Pad output channels to n_pad (lane-dense stores); bf16 weight, f32 bias."""
    _, n = w2d.shape
    wm = jnp.pad(w2d, ((0, 0), (0, n_pad - n))).astype(jnp.bfloat16)
    bm = jnp.pad(bias, (0, n_pad - n)).reshape(1, n_pad).astype(jnp.float32)
    return {"w": wm, "b": bm}


def _init_inception(key, in_idx, in_pad, c1, c3r, c3, c5r, c5, cp):
    """Inception block params.  Three shared 1x1 convs fused into one matmul,
    the two 3x3 branches fused via a block-diagonal weight, branch4 pool+1x1
    kept as one kernel.  Returns (params, out_idx) where out_idx maps the
    logical [b1|b2|b3|b4] channels into the 3*LANE-wide concat layout."""
    cin = len(in_idx)
    ks = jax.random.split(key, 6)
    w1, b1 = _basic_conv_logical(ks[0], cin, c1, 1)
    w2a, b2a = _basic_conv_logical(ks[1], cin, c3r, 1)
    w2b, b2b = _basic_conv_logical(ks[2], c3r, c3, 3)
    w3a, b3a = _basic_conv_logical(ks[3], cin, c5r, 1)
    w3b, b3b = _basic_conv_logical(ks[4], c5r, c5, 3)   # torchvision "5x5" uses 3x3
    w4, b4 = _basic_conv_logical(ks[5], cin, cp, 1)

    # Fused 1x1 over the shared block input: output columns [b1 | b2a | b3a].
    w1x1 = jnp.concatenate([w1, w2a, w3a], axis=-1)
    b1x1 = jnp.concatenate([b1, b2a, b3a])
    fused_1x1 = _finish(_place_rows(w1x1, in_idx, in_pad), b1x1)

    # Fused 3x3 (block-diagonal) over the full 128-wide y; only the b2a/b3a
    # column rows are non-zero, so the kernel never needs channel slicing.
    wbd = jnp.zeros((9, c3r + c5r, c3 + c5), jnp.float32)
    wbd = wbd.at[:, :c3r, :c3].set(w2b)
    wbd = wbd.at[:, c3r:, c3:].set(w3b)
    bbd = jnp.concatenate([b2b, b3b])
    fused_3x3 = _finish(_place_rows(wbd, np.arange(c1, c1 + c3r + c5r), LANE), bbd)

    # Branch 4: maxpool(3,1,1) then 1x1.
    branch4 = _finish(_place_rows(w4, in_idx, in_pad), b4)

    out_idx = np.concatenate([
        np.arange(0, c1),                 # b1 inside y
        LANE + np.arange(0, c3 + c5),     # b2, b3 inside z
        2 * LANE + np.arange(0, cp),      # b4 inside the branch-4 output
    ])
    params = {"fused_1x1": fused_1x1, "fused_3x3": fused_3x3, "branch4": branch4}
    return params, out_idx


def init_params(key, num_classes=10):
    ks = jax.random.split(key, 7)
    params = {}

    # conv1: 7x7/2, 3->16 (raw 3-channel input, K = 7*7*3)
    w, b = _basic_conv_logical(ks[0], 3, 16, 7)
    params["conv1"] = _finish(w.reshape(7 * 7 * 3, 16), b)

    # conv2: 1x1, 16->16; conv3: 3x3, 16->32 (inputs are 128-padded)
    w, b = _basic_conv_logical(ks[1], 16, 16, 1)
    params["conv2"] = _finish(_place_rows(w, np.arange(16), LANE), b)
    w, b = _basic_conv_logical(ks[2], 16, 32, 3)
    params["conv3"] = _finish(_place_rows(w, np.arange(16), LANE), b)

    # inception3: in 32ch -> (8, 8, 16, 4, 8, 8) -> 40 logical channels
    inc3, inc3_out_idx = _init_inception(ks[3], np.arange(32), LANE,
                                         8, 8, 16, 4, 8, 8)
    params["inception3"] = inc3

    # inception4: in 40ch (at inc3's padded layout / 384) -> (16,8,24,4,8,8) -> 56
    inc4, _ = _init_inception(ks[4], inc3_out_idx, 3 * LANE,
                              16, 8, 24, 4, 8, 8)
    params["inception4"] = inc4

    # fc: 56 -> num_classes, split into row blocks for (y4, z4, branch4) inputs.
    feat_dim = 16 + 24 + 8 + 8
    fcw = 0.05 * jax.random.normal(ks[5], (feat_dim, num_classes), jnp.float32)
    fcb = 0.05 * jax.random.normal(ks[6], (num_classes,), jnp.float32)
    ncp = _round_up(num_classes, LANE)
    wy = jnp.zeros((LANE, num_classes), jnp.float32).at[np.arange(16)].set(fcw[:16])
    wz = jnp.zeros((LANE, num_classes), jnp.float32).at[np.arange(32)].set(fcw[16:48])
    ww = jnp.zeros((LANE, num_classes), jnp.float32).at[np.arange(8)].set(fcw[48:56])
    params["fc"] = {
        "wy": jnp.pad(wy, ((0, 0), (0, ncp - num_classes))).astype(jnp.bfloat16),
        "wz": jnp.pad(wz, ((0, 0), (0, ncp - num_classes))).astype(jnp.bfloat16),
        "ww": jnp.pad(ww, ((0, 0), (0, ncp - num_classes))).astype(jnp.bfloat16),
        "b": jnp.pad(fcb, (0, ncp - num_classes)).reshape(1, ncp).astype(jnp.float32),
    }
    return params


# ----------------------------------------------------------------------------
# Model
# ----------------------------------------------------------------------------
def _pool_then_inception(x, p):
    """maxpool(3,2,ceil) fused with the inception block that follows it.
    Returns the (N, Ho, Wo, 3*LANE) padded-layout concat [y | z | branch4]."""
    N, _, _, C = x.shape
    stk, (Ho, Wo) = _pool_windows(x, 3, 2, 0, True)
    R = stk.shape[1]
    pooled, y = _call_whole(
        _pool_matmul2_kernel,
        (jax.ShapeDtypeStruct((R, C), x.dtype),
         jax.ShapeDtypeStruct((R, LANE), x.dtype)),
        stk, p["fused_1x1"]["w"], p["fused_1x1"]["b"])
    pooled4d = pooled.reshape(N, Ho, Wo, C)
    y4d = y.reshape(N, Ho, Wo, LANE)

    patches, _ = _im2col(y4d, 3, 1, 1)
    stk4, _ = _pool_windows(pooled4d, 3, 1, 1, True)
    z, b4 = _call_whole(
        _conv33_pool11_kernel,
        (jax.ShapeDtypeStruct((R, LANE), x.dtype),
         jax.ShapeDtypeStruct((R, LANE), x.dtype)),
        patches, p["fused_3x3"]["w"], p["fused_3x3"]["b"],
        stk4, p["branch4"]["w"], p["branch4"]["b"])
    out = jnp.concatenate([y, z, b4], axis=-1)          # lane-aligned concat
    return out.reshape(N, Ho, Wo, 3 * LANE)


def _pool_then_inception_fc(x, p, fc, num_classes):
    """maxpool4 + inception4 + AdaptiveAvgPool2d((1,1)) + flatten + fc."""
    N, _, _, C = x.shape
    stk, (Ho, Wo) = _pool_windows(x, 3, 2, 0, True)
    R = stk.shape[1]
    pooled, y = _call_whole(
        _pool_matmul2_kernel,
        (jax.ShapeDtypeStruct((R, C), x.dtype),
         jax.ShapeDtypeStruct((R, LANE), x.dtype)),
        stk, p["fused_1x1"]["w"], p["fused_1x1"]["b"])
    pooled4d = pooled.reshape(N, Ho, Wo, C)
    y4d = y.reshape(N, Ho, Wo, LANE)

    patches, _ = _im2col(y4d, 3, 1, 1)
    stk4, _ = _pool_windows(pooled4d, 3, 1, 1, True)
    hw = Ho * Wo
    # Per-sample spatial averaging as a tiny (N, R) matmul (avoids in-kernel
    # reshapes of the row-major activation tiles).
    pmat = jnp.repeat(jnp.eye(N, dtype=jnp.float32), hw, axis=1) / hw
    ncp = fc["b"].shape[1]
    logits = _call_whole(
        _inception_tail_fc_kernel,
        jax.ShapeDtypeStruct((N, ncp), jnp.float32),
        patches, p["fused_3x3"]["w"], p["fused_3x3"]["b"],
        stk4, p["branch4"]["w"], p["branch4"]["b"],
        y, pmat, fc["wy"], fc["wz"], fc["ww"], fc["b"])
    return logits[:, :num_classes]


def custom_googlenet_forward(x_nchw, params, num_classes=10):
    # NCHW in (PyTorch convention) -> NHWC bf16 with 128-padded channels inside.
    x = jnp.transpose(x_nchw, (0, 2, 3, 1)).astype(jnp.bfloat16)
    N = x.shape[0]

    # conv1: 7x7/2 pad 3 (+folded BN + ReLU)                       -> feat1
    patches, (Ho, Wo) = _im2col(x, 7, 2, 3)
    x = _matmul_bias_act(patches, params["conv1"]["w"], params["conv1"]["b"],
                         grid_m=_grid_steps(patches.shape[0]))
    x = x.reshape(N, Ho, Wo, LANE)

    # maxpool1 (3/2 ceil) fused with conv2 (1x1)                   -> feat2
    stk, (Ho, Wo) = _pool_windows(x, 3, 2, 0, True)
    x = _call_whole(_pool_matmul_kernel,
                    jax.ShapeDtypeStruct((stk.shape[1], LANE), x.dtype),
                    stk, params["conv2"]["w"], params["conv2"]["b"])
    x = x.reshape(N, Ho, Wo, LANE)

    # maxpool2 (3/2 ceil)
    stk, (Ho, Wo) = _pool_windows(x, 3, 2, 0, True)
    x = _call_whole(_max_reduce_kernel,
                    jax.ShapeDtypeStruct((stk.shape[1], LANE), x.dtype), stk)
    x = x.reshape(N, Ho, Wo, LANE)

    # conv3: 3x3 pad 1
    patches, _ = _im2col(x, 3, 1, 1)
    x = _matmul_bias_act(patches, params["conv3"]["w"], params["conv3"]["b"])
    x = x.reshape(N, Ho, Wo, LANE)

    # maxpool3 + inception3                                        -> feat3
    x = _pool_then_inception(x, params["inception3"])

    # maxpool4 + inception4 + avgpool + flatten + fc               -> feat4, out
    out = _pool_then_inception_fc(x, params["inception4"], params["fc"],
                                  num_classes)
    return out


# ----------------------------------------------------------------------------
if __name__ == "__main__":
    key = jax.random.PRNGKey(0)
    k_x, k_p = jax.random.split(key)
    x = jax.random.normal(k_x, (2, 3, 64, 64), jnp.float32)   # NCHW like PyTorch
    params = init_params(k_p, num_classes=10)

    fwd = jax.jit(custom_googlenet_forward, static_argnames=("num_classes",))
    out = fwd(x, params, num_classes=10)
    jax.block_until_ready(out)
    assert out.shape == (2, 10) and out.dtype == jnp.float32
    assert bool(jnp.all(jnp.isfinite(out)))
    print("KERNEL_OK")
</pallas_src>

<mosaic_0001>
module attributes {stable_mosaic.version = 11 : i64} {
  func.func @_matmul_bias_kernel(%arg0: i32, %arg1: memref<2048x147xbf16, #tpu.memory_space<vmem>>, %arg2: memref<147x128xbf16, #tpu.memory_space<vmem>>, %arg3: memref<1x128xf32, #tpu.memory_space<vmem>>, %arg4: memref<2048x128xbf16, #tpu.memory_space<vmem>>) attributes {dimension_semantics = [#tpu.dimension_semantics<parallel>], iteration_bounds = array<i64: 1>, scalar_prefetch = 0 : i64, scratch_operands = 0 : i64, tpu.core_type = #tpu.core_type<tc>, window_params = [{transform_indices = @transform_0, window_bounds = array<i64: 2048, 147>}, {pipeline_mode = #tpu.pipeline_mode<synchronous>, transform_indices = @transform_1, window_bounds = array<i64: 147, 128>}, {pipeline_mode = #tpu.pipeline_mode<synchronous>, transform_indices = @transform_2, window_bounds = array<i64: 1, 128>}, {transform_indices = @transform_3, window_bounds = array<i64: 2048, 128>}]} {
    %c0 = arith.constant 0 : index
    %c0_0 = arith.constant 0 : index
    %0 = vector.load %arg1[%c0, %c0_0] : memref<2048x147xbf16, #tpu.memory_space<vmem>>, vector<2048x147xbf16>
    %c0_1 = arith.constant 0 : index
    %c0_2 = arith.constant 0 : index
    %1 = vector.load %arg2[%c0_1, %c0_2] : memref<147x128xbf16, #tpu.memory_space<vmem>>, vector<147x128xbf16>
    %cst = arith.constant dense<0.000000e+00> : vector<2048x128xf32>
    %2 = tpu.matmul %0, %1, %cst {dimension_numbers = #tpu.dot_dimension_numbers<[1], [0], [0], [1], [0, 0, 1, 1], [], []>} : vector<2048x147xbf16>, vector<147x128xbf16>, vector<2048x128xf32> -> vector<2048x128xf32>
    %c0_3 = arith.constant 0 : index
    %c0_4 = arith.constant 0 : index
    %3 = vector.load %arg3[%c0_3, %c0_4] : memref<1x128xf32, #tpu.memory_space<vmem>>, vector<1x128xf32>
    %4 = vector.broadcast %3 : vector<1x128xf32> to vector<2048x128xf32>
    %5 = arith.addf %2, %4 : vector<2048x128xf32>
    %cst_5 = arith.constant 0.000000e+00 : f32
    %6 = vector.broadcast %cst_5 : f32 to vector<2048x128xf32>
    %7 = arith.maximumf %5, %6 : vector<2048x128xf32>
    %8 = arith.truncf %7 : vector<2048x128xf32> to vector<2048x128xbf16>
    %c0_6 = arith.constant 0 : index
    %c0_7 = arith.constant 0 : index
    %9 = vector.load %arg4[%c0_6, %c0_7] : memref<2048x128xbf16, #tpu.memory_space<vmem>>, vector<2048x128xbf16>
    tpu.vector_store %arg4[%c0_6, %c0_7], %8 {strides = array<i32>} : memref<2048x128xbf16, #tpu.memory_space<vmem>>, vector<2048x128xbf16>,
    return
  }
  func.func @transform_0(%arg0: i32) -> (i32, i32) {
    %c0_i32 = arith.constant 0 : i32
    %c0_i32_0 = arith.constant 0 : i32
    return %arg0, %c0_i32 : i32, i32
  }
  func.func @transform_1(%arg0: i32) -> (i32, i32) {
    %c0_i32 = arith.constant 0 : i32
    %c0_i32_0 = arith.constant 0 : i32
    %c0_i32_1 = arith.constant 0 : i32
    return %c0_i32, %c0_i32_0 : i32, i32
  }
  func.func @transform_2(%arg0: i32) -> (i32, i32) {
    %c0_i32 = arith.constant 0 : i32
    %c0_i32_0 = arith.constant 0 : i32
    %c0_i32_1 = arith.constant 0 : i32
    return %c0_i32, %c0_i32_0 : i32, i32
  }
  func.func @transform_3(%arg0: i32) -> (i32, i32) {
    %c0_i32 = arith.constant 0 : i32
    %c0_i32_0 = arith.constant 0 : i32
    return %arg0, %c0_i32 : i32, i32
  }
}

module attributes {stable_mosaic.version = 11 : i64} {
  func.func @_pool_matmul_kernel(%arg0: i32, %arg1: memref<9x512x128xbf16, #tpu.memory_space<vmem>>, %arg2: memref<128x128xbf16, #tpu.memory_space<vmem>>, %arg3: memref<1x128xf32, #tpu.memory_space<vmem>>, %arg4: memref<512x128xbf16, #tpu.memory_space<vmem>>) attributes {dimension_semantics = [#tpu.dimension_semantics<arbitrary>], iteration_bounds = array<i64: 1>, scalar_prefetch = 0 : i64, scratch_operands = 0 : i64, tpu.core_type = #tpu.core_type<tc>, window_params = [{pipeline_mode = #tpu.pipeline_mode<synchronous>, transform_indices = @transform_0, window_bounds = array<i64: 9, 512, 128>}, {pipeline_mode = #tpu.pipeline_mode<synchronous>, transform_indices = @transform_1, window_bounds = array<i64: 128, 128>}, {pipeline_mode = #tpu.pipeline_mode<synchronous>, transform_indices = @transform_2, window_bounds = array<i64: 1, 128>}, {pipeline_mode = #tpu.pipeline_mode<synchronous>, transform_indices = @transform_3, window_bounds = array<i64: 512, 128>}]} {
    %c0 = arith.constant 0 : index
    %c0_0 = arith.constant 0 : index
    %c0_1 = arith.constant 0 : index
    %0 = vector.load %arg1[%c0, %c0_0, %c0_1] : memref<9x512x128xbf16, #tpu.memory_space<vmem>>, vector<9x512x128xbf16>
    %cst = arith.constant dense<0xFF80> : vector<512x128xbf16>
    %1 = vector.multi_reduction <maximumf>, %0, %cst [0] : vector<9x512x128xbf16> to vector<512x128xbf16>
    %c0_2 = arith.constant 0 : index
    %c0_3 = arith.constant 0 : index
    %2 = vector.load %arg2[%c0_2, %c0_3] : memref<128x128xbf16, #tpu.memory_space<vmem>>, vector<128x128xbf16>
    %cst_4 = arith.constant dense<0.000000e+00> : vector<512x128xf32>
    %3 = tpu.matmul %1, %2, %cst_4 {dimension_numbers = #tpu.dot_dimension_numbers<[1], [0], [0], [1], [0, 0, 1, 1], [], []>} : vector<512x128xbf16>, vector<128x128xbf16>, vector<512x128xf32> -> vector<512x128xf32>
    %c0_5 = arith.constant 0 : index
    %c0_6 = arith.constant 0 : index
    %4 = vector.load %arg3[%c0_5, %c0_6] : memref<1x128xf32, #tpu.memory_space<vmem>>, vector<1x128xf32>
    %5 = vector.broadcast %4 : vector<1x128xf32> to vector<512x128xf32>
    %6 = arith.addf %3, %5 : vector<512x128xf32>
    %cst_7 = arith.constant 0.000000e+00 : f32
    %7 = vector.broadcast %cst_7 : f32 to vector<512x128xf32>
    %8 = arith.maximumf %6, %7 : vector<512x128xf32>
    %9 = arith.truncf %8 : vector<512x128xf32> to vector<512x128xbf16>
    %c0_8 = arith.constant 0 : index
    %c0_9 = arith.constant 0 : index
    %10 = vector.load %arg4[%c0_8, %c0_9] : memref<512x128xbf16, #tpu.memory_space<vmem>>, vector<512x128xbf16>
    tpu.vector_store %arg4[%c0_8, %c0_9], %9 {strides = array<i32>} : memref<512x128xbf16, #tpu.memory_space<vmem>>, vector<512x128xbf16>,
    return
  }
  func.func @transform_0(%arg0: i32) -> (i32, i32, i32) {
    %c0_i32 = arith.constant 0 : i32
    %c0_i32_0 = arith.constant 0 : i32
    %c0_i32_1 = arith.constant 0 : i32
    %c0_i32_2 = arith.constant 0 : i32
    return %c0_i32, %c0_i32_0, %c0_i32_1 : i32, i32, i32
  }
  func.func @transform_1(%arg0: i32) -> (i32, i32) {
    %c0_i32 = arith.constant 0 : i32
    %c0_i32_0 = arith.constant 0 : i32
    %c0_i32_1 = arith.constant 0 : i32
    return %c0_i32, %c0_i32_0 : i32, i32
  }
  func.func @transform_2(%arg0: i32) -> (i32, i32) {
    %c0_i32 = arith.constant 0 : i32
    %c0_i32_0 = arith.constant 0 : i32
    %c0_i32_1 = arith.constant 0 : i32
    return %c0_i32, %c0_i32_0 : i32, i32
  }
  func.func @transform_3(%arg0: i32) -> (i32, i32) {
    %c0_i32 = arith.constant 0 : i32
    %c0_i32_0 = arith.constant 0 : i32
    %c0_i32_1 = arith.constant 0 : i32
    return %c0_i32, %c0_i32_0 : i32, i32
  }
}

module attributes {stable_mosaic.version = 11 : i64} {
  func.func @_max_reduce_kernel(%arg0: i32, %arg1: memref<9x128x128xbf16, #tpu.memory_space<vmem>>, %arg2: memref<128x128xbf16, #tpu.memory_space<vmem>>) attributes {dimension_semantics = [#tpu.dimension_semantics<arbitrary>], iteration_bounds = array<i64: 1>, scalar_prefetch = 0 : i64, scratch_operands = 0 : i64, tpu.core_type = #tpu.core_type<tc>, window_params = [{pipeline_mode = #tpu.pipeline_mode<synchronous>, transform_indices = @transform_0, window_bounds = array<i64: 9, 128, 128>}, {pipeline_mode = #tpu.pipeline_mode<synchronous>, transform_indices = @transform_1, window_bounds = array<i64: 128, 128>}]} {
    %c0 = arith.constant 0 : index
    %c0_0 = arith.constant 0 : index
    %c0_1 = arith.constant 0 : index
    %0 = vector.load %arg1[%c0, %c0_0, %c0_1] : memref<9x128x128xbf16, #tpu.memory_space<vmem>>, vector<9x128x128xbf16>
    %cst = arith.constant dense<0xFF80> : vector<128x128xbf16>
    %1 = vector.multi_reduction <maximumf>, %0, %cst [0] : vector<9x128x128xbf16> to vector<128x128xbf16>
    %c0_2 = arith.constant 0 : index
    %c0_3 = arith.constant 0 : index
    %2 = vector.load %arg2[%c0_2, %c0_3] : memref<128x128xbf16, #tpu.memory_space<vmem>>, vector<128x128xbf16>
    tpu.vector_store %arg2[%c0_2, %c0_3], %1 {strides = array<i32>} : memref<128x128xbf16, #tpu.memory_space<vmem>>, vector<128x128xbf16>,
    return
  }
  func.func @transform_0(%arg0: i32) -> (i32, i32, i32) {
    %c0_i32 = arith.constant 0 : i32
    %c0_i32_0 = arith.constant 0 : i32
    %c0_i32_1 = arith.constant 0 : i32
    %c0_i32_2 = arith.constant 0 : i32
    return %c0_i32, %c0_i32_0, %c0_i32_1 : i32, i32, i32
  }
  func.func @transform_1(%arg0: i32) -> (i32, i32) {
    %c0_i32 = arith.constant 0 : i32
    %c0_i32_0 = arith.constant 0 : i32
    %c0_i32_1 = arith.constant 0 : i32
    return %c0_i32, %c0_i32_0 : i32, i32
  }
}

module attributes {stable_mosaic.version = 11 : i64} {
  func.func @_matmul_bias_kernel(%arg0: i32, %arg1: memref<128x1152xbf16, #tpu.memory_space<vmem>>, %arg2: memref<1152x128xbf16, #tpu.memory_space<vmem>>, %arg3: memref<1x128xf32, #tpu.memory_space<vmem>>, %arg4: memref<128x128xbf16, #tpu.memory_space<vmem>>) attributes {dimension_semantics = [#tpu.dimension_semantics<parallel>], iteration_bounds = array<i64: 1>, scalar_prefetch = 0 : i64, scratch_operands = 0 : i64, tpu.core_type = #tpu.core_type<tc>, window_params = [{transform_indices = @transform_0, window_bounds = array<i64: 128, 1152>}, {pipeline_mode = #tpu.pipeline_mode<synchronous>, transform_indices = @transform_1, window_bounds = array<i64: 1152, 128>}, {pipeline_mode = #tpu.pipeline_mode<synchronous>, transform_indices = @transform_2, window_bounds = array<i64: 1, 128>}, {transform_indices = @transform_3, window_bounds = array<i64: 128, 128>}]} {
    %c0 = arith.constant 0 : index
    %c0_0 = arith.constant 0 : index
    %0 = vector.load %arg1[%c0, %c0_0] : memref<128x1152xbf16, #tpu.memory_space<vmem>>, vector<128x1152xbf16>
    %c0_1 = arith.constant 0 : index
    %c0_2 = arith.constant 0 : index
    %1 = vector.load %arg2[%c0_1, %c0_2] : memref<1152x128xbf16, #tpu.memory_space<vmem>>, vector<1152x128xbf16>
    %cst = arith.constant dense<0.000000e+00> : vector<128x128xf32>
    %2 = tpu.matmul %0, %1, %cst {dimension_numbers = #tpu.dot_dimension_numbers<[1], [0], [0], [1], [0, 0, 1, 1], [], []>} : vector<128x1152xbf16>, vector<1152x128xbf16>, vector<128x128xf32> -> vector<128x128xf32>
    %c0_3 = arith.constant 0 : index
    %c0_4 = arith.constant 0 : index
    %3 = vector.load %arg3[%c0_3, %c0_4] : memref<1x128xf32, #tpu.memory_space<vmem>>, vector<1x128xf32>
    %4 = vector.broadcast %3 : vector<1x128xf32> to vector<128x128xf32>
    %5 = arith.addf %2, %4 : vector<128x128xf32>
    %cst_5 = arith.constant 0.000000e+00 : f32
    %6 = vector.broadcast %cst_5 : f32 to vector<128x128xf32>
    %7 = arith.maximumf %5, %6 : vector<128x128xf32>
    %8 = arith.truncf %7 : vector<128x128xf32> to vector<128x128xbf16>
    %c0_6 = arith.constant 0 : index
    %c0_7 = arith.constant 0 : index
    %9 = vector.load %arg4[%c0_6, %c0_7] : memref<128x128xbf16, #tpu.memory_space<vmem>>, vector<128x128xbf16>
    tpu.vector_store %arg4[%c0_6, %c0_7], %8 {strides = array<i32>} : memref<128x128xbf16, #tpu.memory_space<vmem>>, vector<128x128xbf16>,
    return
  }
  func.func @transform_0(%arg0: i32) -> (i32, i32) {
    %c0_i32 = arith.constant 0 : i32
    %c0_i32_0 = arith.constant 0 : i32
    return %arg0, %c0_i32 : i32, i32
  }
  func.func @transform_1(%arg0: i32) -> (i32, i32) {
    %c0_i32 = arith.constant 0 : i32
    %c0_i32_0 = arith.constant 0 : i32
    %c0_i32_1 = arith.constant 0 : i32
    return %c0_i32, %c0_i32_0 : i32, i32
  }
  func.func @transform_2(%arg0: i32) -> (i32, i32) {
    %c0_i32 = arith.constant 0 : i32
    %c0_i32_0 = arith.constant 0 : i32
    %c0_i32_1 = arith.constant 0 : i32
    return %c0_i32, %c0_i32_0 : i32, i32
  }
  func.func @transform_3(%arg0: i32) -> (i32, i32) {
    %c0_i32 = arith.constant 0 : i32
    %c0_i32_0 = arith.constant 0 : i32
    return %arg0, %c0_i32 : i32, i32
  }
}

module attributes {stable_mosaic.version = 11 : i64} {
  func.func @_pool_matmul2_kernel(%arg0: i32, %arg1: memref<9x32x128xbf16, #tpu.memory_space<vmem>>, %arg2: memref<128x128xbf16, #tpu.memory_space<vmem>>, %arg3: memref<1x128xf32, #tpu.memory_space<vmem>>, %arg4: memref<32x128xbf16, #tpu.memory_space<vmem>>, %arg5: memref<32x128xbf16, #tpu.memory_space<vmem>>) attributes {dimension_semantics = [#tpu.dimension_semantics<arbitrary>], iteration_bounds = array<i64: 1>, scalar_prefetch = 0 : i64, scratch_operands = 0 : i64, tpu.core_type = #tpu.core_type<tc>, window_params = [{pipeline_mode = #tpu.pipeline_mode<synchronous>, transform_indices = @transform_0, window_bounds = array<i64: 9, 32, 128>}, {pipeline_mode = #tpu.pipeline_mode<synchronous>, transform_indices = @transform_1, window_bounds = array<i64: 128, 128>}, {pipeline_mode = #tpu.pipeline_mode<synchronous>, transform_indices = @transform_2, window_bounds = array<i64: 1, 128>}, {pipeline_mode = #tpu.pipeline_mode<synchronous>, transform_indices = @transform_3, window_bounds = array<i64: 32, 128>}, {pipeline_mode = #tpu.pipeline_mode<synchronous>, transform_indices = @transform_4, window_bounds = array<i64: 32, 128>}]} {
    %c0 = arith.constant 0 : index
    %c0_0 = arith.constant 0 : index
    %c0_1 = arith.constant 0 : index
    %0 = vector.load %arg1[%c0, %c0_0, %c0_1] : memref<9x32x128xbf16, #tpu.memory_space<vmem>>, vector<9x32x128xbf16>
    %cst = arith.constant dense<0xFF80> : vector<32x128xbf16>
    %1 = vector.multi_reduction <maximumf>, %0, %cst [0] : vector<9x32x128xbf16> to vector<32x128xbf16>
    %c0_2 = arith.constant 0 : index
    %c0_3 = arith.constant 0 : index
    %2 = vector.load %arg4[%c0_2, %c0_3] : memref<32x128xbf16, #tpu.memory_space<vmem>>, vector<32x128xbf16>
    tpu.vector_store %arg4[%c0_2, %c0_3], %1 {strides = array<i32>} : memref<32x128xbf16, #tpu.memory_space<vmem>>, vector<32x128xbf16>,
    %c0_4 = arith.constant 0 : index
    %c0_5 = arith.constant 0 : index
    %3 = vector.load %arg2[%c0_4, %c0_5] : memref<128x128xbf16, #tpu.memory_space<vmem>>, vector<128x128xbf16>
    %cst_6 = arith.constant dense<0.000000e+00> : vector<32x128xf32>
    %4 = tpu.matmul %1, %3, %cst_6 {dimension_numbers = #tpu.dot_dimension_numbers<[1], [0], [0], [1], [0, 0, 1, 1], [], []>} : vector<32x128xbf16>, vector<128x128xbf16>, vector<32x128xf32> -> vector<32x128xf32>
    %c0_7 = arith.constant 0 : index
    %c0_8 = arith.constant 0 : index
    %5 = vector.load %arg3[%c0_7, %c0_8] : memref<1x128xf32, #tpu.memory_space<vmem>>, vector<1x128xf32>
    %6 = vector.broadcast %5 : vector<1x128xf32> to vector<32x128xf32>
    %7 = arith.addf %4, %6 : vector<32x128xf32>
    %cst_9 = arith.constant 0.000000e+00 : f32
    %8 = vector.broadcast %cst_9 : f32 to vector<32x128xf32>
    %9 = arith.maximumf %7, %8 : vector<32x128xf32>
    %10 = arith.truncf %9 : vector<32x128xf32> to vector<32x128xbf16>
    %c0_10 = arith.constant 0 : index
    %c0_11 = arith.constant 0 : index
    %11 = vector.load %arg5[%c0_10, %c0_11] : memref<32x128xbf16, #tpu.memory_space<vmem>>, vector<32x128xbf16>
    tpu.vector_store %arg5[%c0_10, %c0_11], %10 {strides = array<i32>} : memref<32x128xbf16, #tpu.memory_space<vmem>>, vector<32x128xbf16>,
    return
  }
  func.func @transform_0(%arg0: i32) -> (i32, i32, i32) {
    %c0_i32 = arith.constant 0 : i32
    %c0_i32_0 = arith.constant 0 : i32
    %c0_i32_1 = arith.constant 0 : i32
    %c0_i32_2 = arith.constant 0 : i32
    return %c0_i32, %c0_i32_0, %c0_i32_1 : i32, i32, i32
  }
  func.func @transform_1(%arg0: i32) -> (i32, i32) {
    %c0_i32 = arith.constant 0 : i32
    %c0_i32_0 = arith.constant 0 : i32
    %c0_i32_1 = arith.constant 0 : i32
    return %c0_i32, %c0_i32_0 : i32, i32
  }
  func.func @transform_2(%arg0: i32) -> (i32, i32) {
    %c0_i32 = arith.constant 0 : i32
    %c0_i32_0 = arith.constant 0 : i32
    %c0_i32_1 = arith.constant 0 : i32
    return %c0_i32, %c0_i32_0 : i32, i32
  }
  func.func @transform_3(%arg0: i32) -> (i32, i32) {
    %c0_i32 = arith.constant 0 : i32
    %c0_i32_0 = arith.constant 0 : i32
    %c0_i32_1 = arith.constant 0 : i32
    return %c0_i32, %c0_i32_0 : i32, i32
  }
  func.func @transform_4(%arg0: i32) -> (i32, i32) {
    %c0_i32 = arith.constant 0 : i32
    %c0_i32_0 = arith.constant 0 : i32
    %c0_i32_1 = arith.constant 0 : i32
    return %c0_i32, %c0_i32_0 : i32, i32
  }
}

module attributes {stable_mosaic.version = 11 : i64} {
  func.func @_conv33_pool11_kernel(%arg0: i32, %arg1: memref<32x1152xbf16, #tpu.memory_space<vmem>>, %arg2: memref<1152x128xbf16, #tpu.memory_space<vmem>>, %arg3: memref<1x128xf32, #tpu.memory_space<vmem>>, %arg4: memref<9x32x128xbf16, #tpu.memory_space<vmem>>, %arg5: memref<128x128xbf16, #tpu.memory_space<vmem>>, %arg6: memref<1x128xf32, #tpu.memory_space<vmem>>, %arg7: memref<32x128xbf16, #tpu.memory_space<vmem>>, %arg8: memref<32x128xbf16, #tpu.memory_space<vmem>>) attributes {dimension_semantics = [#tpu.dimension_semantics<arbitrary>], iteration_bounds = array<i64: 1>, scalar_prefetch = 0 : i64, scratch_operands = 0 : i64, tpu.core_type = #tpu.core_type<tc>, window_params = [{pipeline_mode = #tpu.pipeline_mode<synchronous>, transform_indices = @transform_0, window_bounds = array<i64: 32, 1152>}, {pipeline_mode = #tpu.pipeline_mode<synchronous>, transform_indices = @transform_1, window_bounds = array<i64: 1152, 128>}, {pipeline_mode = #tpu.pipeline_mode<synchronous>, transform_indices = @transform_2, window_bounds = array<i64: 1, 128>}, {pipeline_mode = #tpu.pipeline_mode<synchronous>, transform_indices = @transform_3, window_bounds = array<i64: 9, 32, 128>}, {pipeline_mode = #tpu.pipeline_mode<synchronous>, transform_indices = @transform_4, window_bounds = array<i64: 128, 128>}, {pipeline_mode = #tpu.pipeline_mode<synchronous>, transform_indices = @transform_5, window_bounds = array<i64: 1, 128>}, {pipeline_mode = #tpu.pipeline_mode<synchronous>, transform_indices = @transform_6, window_bounds = array<i64: 32, 128>}, {pipeline_mode = #tpu.pipeline_mode<synchronous>, transform_indices = @transform_7, window_bounds = array<i64: 32, 128>}]} {
    %c0 = arith.constant 0 : index
    %c0_0 = arith.constant 0 : index
    %0 = vector.load %arg1[%c0, %c0_0] : memref<32x1152xbf16, #tpu.memory_space<vmem>>, vector<32x1152xbf16>
    %c0_1 = arith.constant 0 : index
    %c0_2 = arith.constant 0 : index
    %1 = vector.load %arg2[%c0_1, %c0_2] : memref<1152x128xbf16, #tpu.memory_space<vmem>>, vector<1152x128xbf16>
    %cst = arith.constant dense<0.000000e+00> : vector<32x128xf32>
    %2 = tpu.matmul %0, %1, %cst {dimension_numbers = #tpu.dot_dimension_numbers<[1], [0], [0], [1], [0, 0, 1, 1], [], []>} : vector<32x1152xbf16>, vector<1152x128xbf16>, vector<32x128xf32> -> vector<32x128xf32>
    %c0_3 = arith.constant 0 : index
    %c0_4 = arith.constant 0 : index
    %3 = vector.load %arg3[%c0_3, %c0_4] : memref<1x128xf32, #tpu.memory_space<vmem>>, vector<1x128xf32>
    %4 = vector.broadcast %3 : vector<1x128xf32> to vector<32x128xf32>
    %5 = arith.addf %2, %4 : vector<32x128xf32>
    %cst_5 = arith.constant 0.000000e+00 : f32
    %6 = vector.broadcast %cst_5 : f32 to vector<32x128xf32>
    %7 = arith.maximumf %5, %6 : vector<32x128xf32>
    %8 = arith.truncf %7 : vector<32x128xf32> to vector<32x128xbf16>
    %c0_6 = arith.constant 0 : index
    %c0_7 = arith.constant 0 : index
    %9 = vector.load %arg7[%c0_6, %c0_7] : memref<32x128xbf16, #tpu.memory_space<vmem>>, vector<32x128xbf16>
    tpu.vector_store %arg7[%c0_6, %c0_7], %8 {strides = array<i32>} : memref<32x128xbf16, #tpu.memory_space<vmem>>, vector<32x128xbf16>,
    %c0_8 = arith.constant 0 : index
    %c0_9 = arith.constant 0 : index
    %c0_10 = arith.constant 0 : index
    %10 = vector.load %arg4[%c0_8, %c0_9, %c0_10] : memref<9x32x128xbf16, #tpu.memory_space<vmem>>, vector<9x32x128xbf16>
    %cst_11 = arith.constant dense<0xFF80> : vector<32x128xbf16>
    %11 = vector.multi_reduction <maximumf>, %10, %cst_11 [0] : vector<9x32x128xbf16> to vector<32x128xbf16>
    %c0_12 = arith.constant 0 : index
    %c0_13 = arith.constant 0 : index
    %12 = vector.load %arg5[%c0_12, %c0_13] : memref<128x128xbf16, #tpu.memory_space<vmem>>, vector<128x128xbf16>
    %cst_14 = arith.constant dense<0.000000e+00> : vector<32x128xf32>
    %13 = tpu.matmul %11, %12, %cst_14 {dimension_numbers = #tpu.dot_dimension_numbers<[1], [0], [0], [1], [0, 0, 1, 1], [], []>} : vector<32x128xbf16>, vector<128x128xbf16>, vector<32x128xf32> -> vector<32x128xf32>
    %c0_15 = arith.constant 0 : index
    %c0_16 = arith.constant 0 : index
    %14 = vector.load %arg6[%c0_15, %c0_16] : memref<1x128xf32, #tpu.memory_space<vmem>>, vector<1x128xf32>
    %15 = vector.broadcast %14 : vector<1x128xf32> to vector<32x128xf32>
    %16 = arith.addf %13, %15 : vector<32x128xf32>
    %cst_17 = arith.constant 0.000000e+00 : f32
    %17 = vector.broadcast %cst_17 : f32 to vector<32x128xf32>
    %18 = arith.maximumf %16, %17 : vector<32x128xf32>
    %19 = arith.truncf %18 : vector<32x128xf32> to vector<32x128xbf16>
    %c0_18 = arith.constant 0 : index
    %c0_19 = arith.constant 0 : index
    %20 = vector.load %arg8[%c0_18, %c0_19] : memref<32x128xbf16, #tpu.memory_space<vmem>>, vector<32x128xbf16>
    tpu.vector_store %arg8[%c0_18, %c0_19], %19 {strides = array<i32>} : memref<32x128xbf16, #tpu.memory_space<vmem>>, vector<32x128xbf16>,
    return
  }
  func.func @transform_0(%arg0: i32) -> (i32, i32) {
    %c0_i32 = arith.constant 0 : i32
    %c0_i32_0 = arith.constant 0 : i32
    %c0_i32_1 = arith.constant 0 : i32
    return %c0_i32, %c0_i32_0 : i32, i32
  }
  func.func @transform_1(%arg0: i32) -> (i32, i32) {
    %c0_i32 = arith.constant 0 : i32
    %c0_i32_0 = arith.constant 0 : i32
    %c0_i32_1 = arith.constant 0 : i32
    return %c0_i32, %c0_i32_0 : i32, i32
  }
  func.func @transform_2(%arg0: i32) -> (i32, i32) {
    %c0_i32 = arith.constant 0 : i32
    %c0_i32_0 = arith.constant 0 : i32
    %c0_i32_1 = arith.constant 0 : i32
    return %c0_i32, %c0_i32_0 : i32, i32
  }
  func.func @transform_3(%arg0: i32) -> (i32, i32, i32) {
    %c0_i32 = arith.constant 0 : i32
    %c0_i32_0 = arith.constant 0 : i32
    %c0_i32_1 = arith.constant 0 : i32
    %c0_i32_2 = arith.constant 0 : i32
    return %c0_i32, %c0_i32_0, %c0_i32_1 : i32, i32, i32
  }
  func.func @transform_4(%arg0: i32) -> (i32, i32) {
    %c0_i32 = arith.constant 0 : i32
    %c0_i32_0 = arith.constant 0 : i32
    %c0_i32_1 = arith.constant 0 : i32
    return %c0_i32, %c0_i32_0 : i32, i32
  }
  func.func @transform_5(%arg0: i32) -> (i32, i32) {
    %c0_i32 = arith.constant 0 : i32
    %c0_i32_0 = arith.constant 0 : i32
    %c0_i32_1 = arith.constant 0 : i32
    return %c0_i32, %c0_i32_0 : i32, i32
  }
  func.func @transform_6(%arg0: i32) -> (i32, i32) {
    %c0_i32 = arith.constant 0 : i32
    %c0_i32_0 = arith.constant 0 : i32
    %c0_i32_1 = arith.constant 0 : i32
    return %c0_i32, %c0_i32_0 : i32, i32
  }
  func.func @transform_7(%arg0: i32) -> (i32, i32) {
    %c0_i32 = arith.constant 0 : i32
    %c0_i32_0 = arith.constant 0 : i32
    %c0_i32_1 = arith.constant 0 : i32
    return %c0_i32, %c0_i32_0 : i32, i32
  }
}

module attributes {stable_mosaic.version = 11 : i64} {
  func.func @_pool_matmul2_kernel(%arg0: i32, %arg1: memref<9x8x384xbf16, #tpu.memory_space<vmem>>, %arg2: memref<384x128xbf16, #tpu.memory_space<vmem>>, %arg3: memref<1x128xf32, #tpu.memory_space<vmem>>, %arg4: memref<8x384xbf16, #tpu.memory_space<vmem>>, %arg5: memref<8x128xbf16, #tpu.memory_space<vmem>>) attributes {dimension_semantics = [#tpu.dimension_semantics<arbitrary>], iteration_bounds = array<i64: 1>, scalar_prefetch = 0 : i64, scratch_operands = 0 : i64, tpu.core_type = #tpu.core_type<tc>, window_params = [{pipeline_mode = #tpu.pipeline_mode<synchronous>, transform_indices = @transform_0, window_bounds = array<i64: 9, 8, 384>}, {pipeline_mode = #tpu.pipeline_mode<synchronous>, transform_indices = @transform_1, window_bounds = array<i64: 384, 128>}, {pipeline_mode = #tpu.pipeline_mode<synchronous>, transform_indices = @transform_2, window_bounds = array<i64: 1, 128>}, {pipeline_mode = #tpu.pipeline_mode<synchronous>, transform_indices = @transform_3, window_bounds = array<i64: 8, 384>}, {pipeline_mode = #tpu.pipeline_mode<synchronous>, transform_indices = @transform_4, window_bounds = array<i64: 8, 128>}]} {
    %c0 = arith.constant 0 : index
    %c0_0 = arith.constant 0 : index
    %c0_1 = arith.constant 0 : index
    %0 = vector.load %arg1[%c0, %c0_0, %c0_1] : memref<9x8x384xbf16, #tpu.memory_space<vmem>>, vector<9x8x384xbf16>
    %cst = arith.constant dense<0xFF80> : vector<8x384xbf16>
    %1 = vector.multi_reduction <maximumf>, %0, %cst [0] : vector<9x8x384xbf16> to vector<8x384xbf16>
    %c0_2 = arith.constant 0 : index
    %c0_3 = arith.constant 0 : index
    %2 = vector.load %arg4[%c0_2, %c0_3] : memref<8x384xbf16, #tpu.memory_space<vmem>>, vector<8x384xbf16>
    tpu.vector_store %arg4[%c0_2, %c0_3], %1 {strides = array<i32>} : memref<8x384xbf16, #tpu.memory_space<vmem>>, vector<8x384xbf16>,
    %c0_4 = arith.constant 0 : index
    %c0_5 = arith.constant 0 : index
    %3 = vector.load %arg2[%c0_4, %c0_5] : memref<384x128xbf16, #tpu.memory_space<vmem>>, vector<384x128xbf16>
    %cst_6 = arith.constant dense<0.000000e+00> : vector<8x128xf32>
    %4 = tpu.matmul %1, %3, %cst_6 {dimension_numbers = #tpu.dot_dimension_numbers<[1], [0], [0], [1], [0, 0, 1, 1], [], []>} : vector<8x384xbf16>, vector<384x128xbf16>, vector<8x128xf32> -> vector<8x128xf32>
    %c0_7 = arith.constant 0 : index
    %c0_8 = arith.constant 0 : index
    %5 = vector.load %arg3[%c0_7, %c0_8] : memref<1x128xf32, #tpu.memory_space<vmem>>, vector<1x128xf32>
    %6 = vector.broadcast %5 : vector<1x128xf32> to vector<8x128xf32>
    %7 = arith.addf %4, %6 : vector<8x128xf32>
    %cst_9 = arith.constant 0.000000e+00 : f32
    %8 = vector.broadcast %cst_9 : f32 to vector<8x128xf32>
    %9 = arith.maximumf %7, %8 : vector<8x128xf32>
    %10 = arith.truncf %9 : vector<8x128xf32> to vector<8x128xbf16>
    %c0_10 = arith.constant 0 : index
    %c0_11 = arith.constant 0 : index
    %11 = vector.load %arg5[%c0_10, %c0_11] : memref<8x128xbf16, #tpu.memory_space<vmem>>, vector<8x128xbf16>
    tpu.vector_store %arg5[%c0_10, %c0_11], %10 {strides = array<i32>} : memref<8x128xbf16, #tpu.memory_space<vmem>>, vector<8x128xbf16>,
    return
  }
  func.func @transform_0(%arg0: i32) -> (i32, i32, i32) {
    %c0_i32 = arith.constant 0 : i32
    %c0_i32_0 = arith.constant 0 : i32
    %c0_i32_1 = arith.constant 0 : i32
    %c0_i32_2 = arith.constant 0 : i32
    return %c0_i32, %c0_i32_0, %c0_i32_1 : i32, i32, i32
  }
  func.func @transform_1(%arg0: i32) -> (i32, i32) {
    %c0_i32 = arith.constant 0 : i32
    %c0_i32_0 = arith.constant 0 : i32
    %c0_i32_1 = arith.constant 0 : i32
    return %c0_i32, %c0_i32_0 : i32, i32
  }
  func.func @transform_2(%arg0: i32) -> (i32, i32) {
    %c0_i32 = arith.constant 0 : i32
    %c0_i32_0 = arith.constant 0 : i32
    %c0_i32_1 = arith.constant 0 : i32
    return %c0_i32, %c0_i32_0 : i32, i32
  }
  func.func @transform_3(%arg0: i32) -> (i32, i32) {
    %c0_i32 = arith.constant 0 : i32
    %c0_i32_0 = arith.constant 0 : i32
    %c0_i32_1 = arith.constant 0 : i32
    return %c0_i32, %c0_i32_0 : i32, i32
  }
  func.func @transform_4(%arg0: i32) -> (i32, i32) {
    %c0_i32 = arith.constant 0 : i32
    %c0_i32_0 = arith.constant 0 : i32
    %c0_i32_1 = arith.constant 0 : i32
    return %c0_i32, %c0_i32_0 : i32, i32
  }
}

module attributes {stable_mosaic.version = 11 : i64} {
  func.func @_inception_tail_fc_kernel(%arg0: i32, %arg1: memref<8x1152xbf16, #tpu.memory_space<vmem>>, %arg2: memref<1152x128xbf16, #tpu.memory_space<vmem>>, %arg3: memref<1x128xf32, #tpu.memory_space<vmem>>, %arg4: memref<9x8x384xbf16, #tpu.memory_space<vmem>>, %arg5: memref<384x128xbf16, #tpu.memory_space<vmem>>, %arg6: memref<1x128xf32, #tpu.memory_space<vmem>>, %arg7: memref<8x128xbf16, #tpu.memory_space<vmem>>, %arg8: memref<2x8xf32, #tpu.memory_space<vmem>>, %arg9: memref<128x128xbf16, #tpu.memory_space<vmem>>, %arg10: memref<128x128xbf16, #tpu.memory_space<vmem>>, %arg11: memref<128x128xbf16, #tpu.memory_space<vmem>>, %arg12: memref<1x128xf32, #tpu.memory_space<vmem>>, %arg13: memref<2x128xf32, #tpu.memory_space<vmem>>) attributes {dimension_semantics = [#tpu.dimension_semantics<arbitrary>], iteration_bounds = array<i64: 1>, scalar_prefetch = 0 : i64, scratch_operands = 0 : i64, tpu.core_type = #tpu.core_type<tc>, window_params = [{pipeline_mode = #tpu.pipeline_mode<synchronous>, transform_indices = @transform_0, window_bounds = array<i64: 8, 1152>}, {pipeline_mode = #tpu.pipeline_mode<synchronous>, transform_indices = @transform_1, window_bounds = array<i64: 1152, 128>}, {pipeline_mode = #tpu.pipeline_mode<synchronous>, transform_indices = @transform_2, window_bounds = array<i64: 1, 128>}, {pipeline_mode = #tpu.pipeline_mode<synchronous>, transform_indices = @transform_3, window_bounds = array<i64: 9, 8, 384>}, {pipeline_mode = #tpu.pipeline_mode<synchronous>, transform_indices = @transform_4, window_bounds = array<i64: 384, 128>}, {pipeline_mode = #tpu.pipeline_mode<synchronous>, transform_indices = @transform_5, window_bounds = array<i64: 1, 128>}, {pipeline_mode = #tpu.pipeline_mode<synchronous>, transform_indices = @transform_6, window_bounds = array<i64: 8, 128>}, {pipeline_mode = #tpu.pipeline_mode<synchronous>, transform_indices = @transform_7, window_bounds = array<i64: 2, 8>}, {pipeline_mode = #tpu.pipeline_mode<synchronous>, transform_indices = @transform_8, window_bounds = array<i64: 128, 128>}, {pipeline_mode = #tpu.pipeline_mode<synchronous>, transform_indices = @transform_9, window_bounds = array<i64: 128, 128>}, {pipeline_mode = #tpu.pipeline_mode<synchronous>, transform_indices = @transform_10, window_bounds = array<i64: 128, 128>}, {pipeline_mode = #tpu.pipeline_mode<synchronous>, transform_indices = @transform_11, window_bounds = array<i64: 1, 128>}, {pipeline_mode = #tpu.pipeline_mode<synchronous>, transform_indices = @transform_12, window_bounds = array<i64: 2, 128>}]} {
    %c0 = arith.constant 0 : index
    %c0_0 = arith.constant 0 : index
    %0 = vector.load %arg1[%c0, %c0_0] : memref<8x1152xbf16, #tpu.memory_space<vmem>>, vector<8x1152xbf16>
    %c0_1 = arith.constant 0 : index
    %c0_2 = arith.constant 0 : index
    %1 = vector.load %arg2[%c0_1, %c0_2] : memref<1152x128xbf16, #tpu.memory_space<vmem>>, vector<1152x128xbf16>
    %cst = arith.constant dense<0.000000e+00> : vector<8x128xf32>
    %2 = tpu.matmul %0, %1, %cst {dimension_numbers = #tpu.dot_dimension_numbers<[1], [0], [0], [1], [0, 0, 1, 1], [], []>} : vector<8x1152xbf16>, vector<1152x128xbf16>, vector<8x128xf32> -> vector<8x128xf32>
    %c0_3 = arith.constant 0 : index
    %c0_4 = arith.constant 0 : index
    %3 = vector.load %arg3[%c0_3, %c0_4] : memref<1x128xf32, #tpu.memory_space<vmem>>, vector<1x128xf32>
    %4 = vector.broadcast %3 : vector<1x128xf32> to vector<8x128xf32>
    %5 = arith.addf %2, %4 : vector<8x128xf32>
    %cst_5 = arith.constant 0.000000e+00 : f32
    %6 = vector.broadcast %cst_5 : f32 to vector<8x128xf32>
    %7 = arith.maximumf %5, %6 : vector<8x128xf32>
    %c0_6 = arith.constant 0 : index
    %c0_7 = arith.constant 0 : index
    %c0_8 = arith.constant 0 : index
    %8 = vector.load %arg4[%c0_6, %c0_7, %c0_8] : memref<9x8x384xbf16, #tpu.memory_space<vmem>>, vector<9x8x384xbf16>
    %cst_9 = arith.constant dense<0xFF80> : vector<8x384xbf16>
    %9 = vector.multi_reduction <maximumf>, %8, %cst_9 [0] : vector<9x8x384xbf16> to vector<8x384xbf16>
    %c0_10 = arith.constant 0 : index
    %c0_11 = arith.constant 0 : index
    %10 = vector.load %arg5[%c0_10, %c0_11] : memref<384x128xbf16, #tpu.memory_space<vmem>>, vector<384x128xbf16>
    %cst_12 = arith.constant dense<0.000000e+00> : vector<8x128xf32>
    %11 = tpu.matmul %9, %10, %cst_12 {dimension_numbers = #tpu.dot_dimension_numbers<[1], [0], [0], [1], [0, 0, 1, 1], [], []>} : vector<8x384xbf16>, vector<384x128xbf16>, vector<8x128xf32> -> vector<8x128xf32>
    %c0_13 = arith.constant 0 : index
    %c0_14 = arith.constant 0 : index
    %12 = vector.load %arg6[%c0_13, %c0_14] : memref<1x128xf32, #tpu.memory_space<vmem>>, vector<1x128xf32>
    %13 = vector.broadcast %12 : vector<1x128xf32> to vector<8x128xf32>
    %14 = arith.addf %11, %13 : vector<8x128xf32>
    %cst_15 = arith.constant 0.000000e+00 : f32
    %15 = vector.broadcast %cst_15 : f32 to vector<8x128xf32>
    %16 = arith.maximumf %14, %15 : vector<8x128xf32>
    %c0_16 = arith.constant 0 : index
    %c0_17 = arith.constant 0 : index
    %17 = vector.load %arg8[%c0_16, %c0_17] : memref<2x8xf32, #tpu.memory_space<vmem>>, vector<2x8xf32>
    %c0_18 = arith.constant 0 : index
    %c0_19 = arith.constant 0 : index
    %18 = vector.load %arg7[%c0_18, %c0_19] : memref<8x128xbf16, #tpu.memory_space<vmem>>, vector<8x128xbf16>
    %19 = arith.extf %18 : vector<8x128xbf16> to vector<8x128xf32>
    %cst_20 = arith.constant dense<0.000000e+00> : vector<2x128xf32>
    %20 = tpu.matmul %17, %19, %cst_20 {dimension_numbers = #tpu.dot_dimension_numbers<[1], [0], [0], [1], [0, 0, 1, 1], [], []>} : vector<2x8xf32>, vector<8x128xf32>, vector<2x128xf32> -> vector<2x128xf32>
    %cst_21 = arith.constant dense<0.000000e+00> : vector<2x128xf32>
    %21 = tpu.matmul %17, %7, %cst_21 {dimension_numbers = #tpu.dot_dimension_numbers<[1], [0], [0], [1], [0, 0, 1, 1], [], []>} : vector<2x8xf32>, vector<8x128xf32>, vector<2x128xf32> -> vector<2x128xf32>
    %cst_22 = arith.constant dense<0.000000e+00> : vector<2x128xf32>
    %22 = tpu.matmul %17, %16, %cst_22 {dimension_numbers = #tpu.dot_dimension_numbers<[1], [0], [0], [1], [0, 0, 1, 1], [], []>} : vector<2x8xf32>, vector<8x128xf32>, vector<2x128xf32> -> vector<2x128xf32>
    %23 = arith.truncf %20 : vector<2x128xf32> to vector<2x128xbf16>
    %c0_23 = arith.constant 0 : index
    %c0_24 = arith.constant 0 : index
    %24 = vector.load %arg9[%c0_23, %c0_24] : memref<128x128xbf16, #tpu.memory_space<vmem>>, vector<128x128xbf16>
    %cst_25 = arith.constant dense<0.000000e+00> : vector<2x128xf32>
    %25 = tpu.matmul %23, %24, %cst_25 {dimension_numbers = #tpu.dot_dimension_numbers<[1], [0], [0], [1], [0, 0, 1, 1], [], []>} : vector<2x128xbf16>, vector<128x128xbf16>, vector<2x128xf32> -> vector<2x128xf32>
    %26 = arith.truncf %21 : vector<2x128xf32> to vector<2x128xbf16>
    %c0_26 = arith.constant 0 : index
    %c0_27 = arith.constant 0 : index
    %27 = vector.load %arg10[%c0_26, %c0_27] : memref<128x128xbf16, #tpu.memory_space<vmem>>, vector<128x128xbf16>
    %cst_28 = arith.constant dense<0.000000e+00> : vector<2x128xf32>
    %28 = tpu.matmul %26, %27, %cst_28 {dimension_numbers = #tpu.dot_dimension_numbers<[1], [0], [0], [1], [0, 0, 1, 1], [], []>} : vector<2x128xbf16>, vector<128x128xbf16>, vector<2x128xf32> -> vector<2x128xf32>
    %29 = arith.addf %25, %28 : vector<2x128xf32>
    %30 = arith.truncf %22 : vector<2x128xf32> to vector<2x128xbf16>
    %c0_29 = arith.constant 0 : index
    %c0_30 = arith.constant 0 : index
    %31 = vector.load %arg11[%c0_29, %c0_30] : memref<128x128xbf16, #tpu.memory_space<vmem>>, vector<128x128xbf16>
    %cst_31 = arith.constant dense<0.000000e+00> : vector<2x128xf32>
    %32 = tpu.matmul %30, %31, %cst_31 {dimension_numbers = #tpu.dot_dimension_numbers<[1], [0], [0], [1], [0, 0, 1, 1], [], []>} : vector<2x128xbf16>, vector<128x128xbf16>, vector<2x128xf32> -> vector<2x128xf32>
    %33 = arith.addf %29, %32 : vector<2x128xf32>
    %c0_32 = arith.constant 0 : index
    %c0_33 = arith.constant 0 : index
    %34 = vector.load %arg12[%c0_32, %c0_33] : memref<1x128xf32, #tpu.memory_space<vmem>>, vector<1x128xf32>
    %35 = vector.broadcast %34 : vector<1x128xf32> to vector<2x128xf32>
    %36 = arith.addf %33, %35 : vector<2x128xf32>
    %c0_34 = arith.constant 0 : index
    %c0_35 = arith.constant 0 : index
    %37 = vector.load %arg13[%c0_34, %c0_35] : memref<2x128xf32, #tpu.memory_space<vmem>>, vector<2x128xf32>
    tpu.vector_store %arg13[%c0_34, %c0_35], %36 {strides = array<i32>} : memref<2x128xf32, #tpu.memory_space<vmem>>, vector<2x128xf32>,
    return
  }
  func.func @transform_0(%arg0: i32) -> (i32, i32) {
    %c0_i32 = arith.constant 0 : i32
    %c0_i32_0 = arith.constant 0 : i32
    %c0_i32_1 = arith.constant 0 : i32
    return %c0_i32, %c0_i32_0 : i32, i32
  }
  func.func @transform_1(%arg0: i32) -> (i32, i32) {
    %c0_i32 = arith.constant 0 : i32
    %c0_i32_0 = arith.constant 0 : i32
    %c0_i32_1 = arith.constant 0 : i32
    return %c0_i32, %c0_i32_0 : i32, i32
  }
  func.func @transform_2(%arg0: i32) -> (i32, i32) {
    %c0_i32 = arith.constant 0 : i32
    %c0_i32_0 = arith.constant 0 : i32
    %c0_i32_1 = arith.constant 0 : i32
    return %c0_i32, %c0_i32_0 : i32, i32
  }
  func.func @transform_3(%arg0: i32) -> (i32, i32, i32) {
    %c0_i32 = arith.constant 0 : i32
    %c0_i32_0 = arith.constant 0 : i32
    %c0_i32_1 = arith.constant 0 : i32
    %c0_i32_2 = arith.constant 0 : i32
    return %c0_i32, %c0_i32_0, %c0_i32_1 : i32, i32, i32
  }
  func.func @transform_4(%arg0: i32) -> (i32, i32) {
    %c0_i32 = arith.constant 0 : i32
    %c0_i32_0 = arith.constant 0 : i32
    %c0_i32_1 = arith.constant 0 : i32
    return %c0_i32, %c0_i32_0 : i32, i32
  }
  func.func @transform_5(%arg0: i32) -> (i32, i32) {
    %c0_i32 = arith.constant 0 : i32
    %c0_i32_0 = arith.constant 0 : i32
    %c0_i32_1 = arith.constant 0 : i32
    return %c0_i32, %c0_i32_0 : i32, i32
  }
  func.func @transform_6(%arg0: i32) -> (i32, i32) {
    %c0_i32 = arith.constant 0 : i32
    %c0_i32_0 = arith.constant 0 : i32
    %c0_i32_1 = arith.constant 0 : i32
    return %c0_i32, %c0_i32_0 : i32, i32
  }
  func.func @transform_7(%arg0: i32) -> (i32, i32) {
    %c0_i32 = arith.constant 0 : i32
    %c0_i32_0 = arith.constant 0 : i32
    %c0_i32_1 = arith.constant 0 : i32
    return %c0_i32, %c0_i32_0 : i32, i32
  }
  func.func @transform_8(%arg0: i32) -> (i32, i32) {
    %c0_i32 = arith.constant 0 : i32
    %c0_i32_0 = arith.constant 0 : i32
    %c0_i32_1 = arith.constant 0 : i32
    return %c0_i32, %c0_i32_0 : i32, i32
  }
  func.func @transform_9(%arg0: i32) -> (i32, i32) {
    %c0_i32 = arith.constant 0 : i32
    %c0_i32_0 = arith.constant 0 : i32
    %c0_i32_1 = arith.constant 0 : i32
    return %c0_i32, %c0_i32_0 : i32, i32
  }
  func.func @transform_10(%arg0: i32) -> (i32, i32) {
    %c0_i32 = arith.constant 0 : i32
    %c0_i32_0 = arith.constant 0 : i32
    %c0_i32_1 = arith.constant 0 : i32
    return %c0_i32, %c0_i32_0 : i32, i32
  }
  func.func @transform_11(%arg0: i32) -> (i32, i32) {
    %c0_i32 = arith.constant 0 : i32
    %c0_i32_0 = arith.constant 0 : i32
    %c0_i32_1 = arith.constant 0 : i32
    return %c0_i32, %c0_i32_0 : i32, i32
  }
  func.func @transform_12(%arg0: i32) -> (i32, i32) {
    %c0_i32 = arith.constant 0 : i32
    %c0_i32_0 = arith.constant 0 : i32
    %c0_i32_1 = arith.constant 0 : i32
    return %c0_i32, %c0_i32_0 : i32, i32
  }
}

</mosaic_0001>

<llo_original>
// kernel: custom_googlenet_forward.8
$region0: #{custom_googlenet_forward.8}
  #allocation0 [shape = 'u32[]', space=smem, size = 0x4, offset = 0x4, fixed_abs, tag = 'smem constant byte address 0x4 - core index']
  #allocation1 [shape = 'u32[144,128]{1,0:T(1,128)}', space=vmem, size = 0x12000, scoped, tag = 'internal scratch']
  %s0 = inlined_call_operand.vmem [shape: bf16[2048,147], index: 0, kind: input, shape index: {}]
  %s1 = inlined_call_operand.vmem [shape: bf16[147,128], index: 1, kind: input, shape index: {}]
  %s2 = inlined_call_operand.vmem [shape: f32[1,128], index: 2, kind: input, shape index: {}]
  %s3 = inlined_call_operand.vmem [shape: bf16[2048,128], index: 3, kind: output, shape index: {}]
  %s4 = sld [smem:[#allocation0]]
  $region22: #{custom_googlenet_forward.8} parent=0
    _
  %s6 = ssub.s32 1, %s4
  %s7 = scalar_select 0, %s6, %s4
  // Predicated region
  $region2: #{custom_googlenet_forward.8} parent=0 // pred_check
    _
  $region3: #{custom_googlenet_forward.8} parent=0 // pred_check_branch
    %9 = sbr.rel (0) target = $region5
  $region4: #{custom_googlenet_forward.8} parent=0 // pred_region
    _
  $region5: #{custom_googlenet_forward.8} parent=0 // pred_fallthru
    _
  // Predicated region
  $region6: #{custom_googlenet_forward.8} parent=0 // pred_check
    _
  $region7: #{custom_googlenet_forward.8} parent=0 // pred_check_branch
    %11 = sbr.rel (0) target = $region9
  $region8: #{custom_googlenet_forward.8} parent=0 // pred_region
    _
  $region9: #{custom_googlenet_forward.8} parent=0 // pred_fallthru
    _
  // Predicated region
  $region10: #{custom_googlenet_forward.8} parent=0 // pred_check
    _
  $region11: #{custom_googlenet_forward.8} parent=0 // pred_check_branch
    %13 = sbr.rel (0) target = $region13
  $region12: #{custom_googlenet_forward.8} parent=0 // pred_region
    _
  $region13: #{custom_googlenet_forward.8} parent=0 // pred_fallthru
    _
  %v15 = vld [vmem:[%s0] sm:$0xff]
  %v16 = vld [vmem:[%s0 + $0x8] sm:$0xff]
  %v17 = vld [vmem:[%s0 + $0x10] sm:$0xff]
  %v18 = vld [vmem:[%s0 + $0x18] sm:$0xff]
  %v19 = vld [vmem:[%s0 + $0x20] sm:$0xff]
  %v20 = vld [vmem:[%s0 + $0x28] sm:$0xff]
  %v21 = vld [vmem:[%s0 + $0x30] sm:$0xff]
  %v22 = vld [vmem:[%s0 + $0x38] sm:$0xff]
  %v23 = vld [vmem:[%s0 + $0x40] sm:$0xff]
  %v24 = vld [vmem:[%s0 + $0x48] sm:$0xff]
  %v25 = vld [vmem:[%s0 + $0x50] sm:$0xff]
  %v26 = vld [vmem:[%s0 + $0x58] sm:$0xff]
  %v27 = vld [vmem:[%s0 + $0x60] sm:$0xff]
  %v28 = vld [vmem:[%s0 + $0x68] sm:$0xff]
  %v29 = vld [vmem:[%s0 + $0x70] sm:$0xff]
  %v30 = vld [vmem:[%s0 + $0x78] sm:$0xff]
  %v31 = vld [vmem:[%s0 + $0x80] sm:$0xff]
  %v32 = vld [vmem:[%s0 + $0x88] sm:$0xff]
  %v33 = vld [vmem:[%s0 + $0x90] sm:$0xff]
  %v34 = vld [vmem:[%s0 + $0x98] sm:$0xff]
  %v35 = vld [vmem:[%s0 + $0xa0] sm:$0xff]
  %v36 = vld [vmem:[%s0 + $0xa8] sm:$0xff]
  %v37 = vld [vmem:[%s0 + $0xb0] sm:$0xff]
  %v38 = vld [vmem:[%s0 + $0xb8] sm:$0xff]
  %v39 = vld [vmem:[%s0 + $0xc0] sm:$0xff]
  %v40 = vld [vmem:[%s0 + $0xc8] sm:$0xff]
  %v41 = vld [vmem:[%s0 + $0xd0] sm:$0xff]
  %v42 = vld [vmem:[%s0 + $0xd8] sm:$0xff]
  %v43 = vld [vmem:[%s0 + $0xe0] sm:$0xff]
  %v44 = vld [vmem:[%s0 + $0xe8] sm:$0xff]
  %v45 = vld [vmem:[%s0 + $0xf0] sm:$0xff]
  %v46 = vld [vmem:[%s0 + $0xf8] sm:$0xff]
  %v47 = vld [vmem:[%s0 + $0x100] sm:$0xff]
  %v48 = vld [vmem:[%s0 + $0x108] sm:$0xff]
  %v49 = vld [vmem:[%s0 + $0x110] sm:$0xff]
  %v50 = vld [vmem:[%s0 + $0x118] sm:$0xff]
  %v51 = vld [vmem:[%s0 + $0x120] sm:$0xff]
  %v52 = vld [vmem:[%s0 + $0x128] sm:$0xff]
  %v53 = vld [vmem:[%s0 + $0x130] sm:$0xff]
  %v54 = vld [vmem:[%s0 + $0x138] sm:$0xff]
  %v55 = vld [vmem:[%s0 + $0x140] sm:$0xff]
  %v56 = vld [vmem:[%s0 + $0x148] sm:$0xff]
  %v57 = vld [vmem:[%s0 + $0x150] sm:$0xff]
  %v58 = vld [vmem:[%s0 + $0x158] sm:$0xff]
  %v59 = vld [vmem:[%s0 + $0x160] sm:$0xff]
  %v60 = vld [vmem:[%s0 + $0x168] sm:$0xff]
  %v61 = vld [vmem:[%s0 + $0x170] sm:$0xff]
  %v62 = vld [vmem:[%s0 + $0x178] sm:$0xff]
  %v63 = vld [vmem:[%s0 + $0x180] sm:$0xff]
  %v64 = vld [vmem:[%s0 + $0x188] sm:$0xff]
  %v65 = vld [vmem:[%s0 + $0x190] sm:$0xff]
  %v66 = vld [vmem:[%s0 + $0x198] sm:$0xff]
  %v67 = vld [vmem:[%s0 + $0x1a0] sm:$0xff]
  %v68 = vld [vmem:[%s0 + $0x1a8] sm:$0xff]
  %v69 = vld [vmem:[%s0 + $0x1b0] sm:$0xff]
  %v70 = vld [vmem:[%s0 + $0x1b8] sm:$0xff]
  %v71 = vld [vmem:[%s0 + $0x1c0] sm:$0xff]
  %v72 = vld [vmem:[%s0 + $0x1c8] sm:$0xff]
  %v73 = vld [vmem:[%s0 + $0x1d0] sm:$0xff]
  %v74 = vld [vmem:[%s0 + $0x1d8] sm:$0xff]
  %v75 = vld [vmem:[%s0 + $0x1e0] sm:$0xff]
  %v76 = vld [vmem:[%s0 + $0x1e8] sm:$0xff]
  %v77 = vld [vmem:[%s0 + $0x1f0] sm:$0xff]
  %v78 = vld [vmem:[%s0 + $0x1f8] sm:$0xff]
  %v79 = vld [vmem:[%s0 + $0x200] sm:$0xff]
  %v80 = vld [vmem:[%s0 + $0x208] sm:$0xff]
  %v81 = vld [vmem:[%s0 + $0x210] sm:$0xff]
  %v82 = vld [vmem:[%s0 + $0x218] sm:$0xff]
  %v83 = vld [vmem:[%s0 + $0x220] sm:$0xff]
  %v84 = vld [vmem:[%s0 + $0x228] sm:$0xff]
  %v85 = vld [vmem:[%s0 + $0x230] sm:$0xff]
  %v86 = vld [vmem:[%s0 + $0x238] sm:$0xff]
  %v87 = vld [vmem:[%s0 + $0x240] sm:$0xff]
  %v88 = vld [vmem:[%s0 + $0x248] sm:$0xff]
  %v89 = vld [vmem:[%s0 + $0x250] sm:$0xff]
  %v90 = vld [vmem:[%s0 + $0x258] sm:$0xff]
  %v91 = vld [vmem:[%s0 + $0x260] sm:$0xff]
  %v92 = vld [vmem:[%s0 + $0x268] sm:$0xff]
  %v93 = vld [vmem:[%s0 + $0x270] sm:$0xff]
  %v94 = vld [vmem:[%s0 + $0x278] sm:$0xff]
  %v95 = vld [vmem:[%s0 + $0x280] sm:$0xff]
  %v96 = vld [vmem:[%s0 + $0x288] sm:$0xff]
  %v97 = vld [vmem:[%s0 + $0x290] sm:$0xff]
  %v98 = vld [vmem:[%s0 + $0x298] sm:$0xff]
  %v99 = vld [vmem:[%s0 + $0x2a0] sm:$0xff]
  %v100 = vld [vmem:[%s0 + $0x2a8] sm:$0xff]
  %v101 = vld [vmem:[%s0 + $0x2b0] sm:$0xff]
  %v102 = vld [vmem:[%s0 + $0x2b8] sm:$0xff]
  %v103 = vld [vmem:[%s0 + $0x2c0] sm:$0xff]
  %v104 = vld [vmem:[%s0 + $0x2c8] sm:$0xff]
  %v105 = vld [vmem:[%s0 + $0x2d0] sm:$0xff]
  %v106 = vld [vmem:[%s0 + $0x2d8] sm:$0xff]
  %v107 = vld [vmem:[%s0 + $0x2e0] sm:$0xff]
  %v108 = vld [vmem:[%s0 + $0x2e8] sm:$0xff]
  %v109 = vld [vmem:[%s0 + $0x2f0] sm:$0xff]
  %v110 = vld [vmem:[%s0 + $0x2f8] sm:$0xff]
  %v111 = vld [vmem:[%s0 + $0x300] sm:$0xff]
  %v112 = vld [vmem:[%s0 + $0x308] sm:$0xff]
  %v113 = vld [vmem:[%s0 + $0x310] sm:$0xff]
  %v114 = vld [vmem:[%s0 + $0x318] sm:$0xff]
  %v115 = vld [vmem:[%s0 + $0x320] sm:$0xff]
  %v116 = vld [vmem:[%s0 + $0x328] sm:$0xff]
  %v117 = vld [vmem:[%s0 + $0x330] sm:$0xff]
  %v118 = vld [vmem:[%s0 + $0x338] sm:$0xff]
  %v119 = vld [vmem:[%s0 + $0x340] sm:$0xff]
  %v120 = vld [vmem:[%s0 + $0x348] sm:$0xff]
  %v121 = vld [vmem:[%s0 + $0x350] sm:$0xff]
  %v122 = vld [vmem:[%s0 + $0x358] sm:$0xff]
  %v123 = vld [vmem:[%s0 + $0x360] sm:$0xff]
  %v124 = vld [vmem:[%s0 + $0x368] sm:$0xff]
  %v125 = vld [vmem:[%s0 + $0x370] sm:$0xff]
  %v126 = vld [vmem:[%s0 + $0x378] sm:$0xff]
  %v127 = vld [vmem:[%s0 + $0x380] sm:$0xff]
  %v128 = vld [vmem:[%s0 + $0x388] sm:$0xff]
  %v129 = vld [vmem:[%s0 + $0x390] sm:$0xff]
  %v130 = vld [vmem:[%s0 + $0x398] sm:$0xff]
  %v131 = vld [vmem:[%s0 + $0x3a0] sm:$0xff]
  %v132 = vld [vmem:[%s0 + $0x3a8] sm:$0xff]
  %v133 = vld [vmem:[%s0 + $0x3b0] sm:$0xff]
  %v134 = vld [vmem:[%s0 + $0x3b8] sm:$0xff]
  %v135 = vld [vmem:[%s0 + $0x3c0] sm:$0xff]
  %v136 = vld [vmem:[%s0 + $0x3c8] sm:$0xff]
  %v137 = vld [vmem:[%s0 + $0x3d0] sm:$0xff]
  %v138 = vld [vmem:[%s0 + $0x3d8] sm:$0xff]
  %v139 = vld [vmem:[%s0 + $0x3e0] sm:$0xff]
  %v140 = vld [vmem:[%s0 + $0x3e8] sm:$0xff]
  %v141 = vld [vmem:[%s0 + $0x3f0] sm:$0xff]
  %v142 = vld [vmem:[%s0 + $0x3f8] sm:$0xff]
  %v143 = vld [vmem:[%s0 + $0x400] sm:$0xff]
  %v144 = vld [vmem:[%s0 + $0x408] sm:$0xff]
  %v145 = vld [vmem:[%s0 + $0x410] sm:$0xff]
  %v146 = vld [vmem:[%s0 + $0x418] sm:$0xff]
  %v147 = vld [vmem:[%s0 + $0x420] sm:$0xff]
  %v148 = vld [vmem:[%s0 + $0x428] sm:$0xff]
  %v149 = vld [vmem:[%s0 + $0x430] sm:$0xff]
  %v150 = vld [vmem:[%s0 + $0x438] sm:$0xff]
  %v151 = vld [vmem:[%s0 + $0x440] sm:$0xff]
  %v152 = vld [vmem:[%s0 + $0x448] sm:$0xff]
  %v153 = vld [vmem:[%s0 + $0x450] sm:$0xff]
  %v154 = vld [vmem:[%s0 + $0x458] sm:$0xff]
  %v155 = vld [vmem:[%s0 + $0x460] sm:$0xff]
  %v156 = vld [vmem:[%s0 + $0x468] sm:$0xff]
  %v157 = vld [vmem:[%s0 + $0x470] sm:$0xff]
  %v158 = vld [vmem:[%s0 + $0x478] sm:$0xff]
  %v159 = vld [vmem:[%s0 + $0x480] sm:$0xff]
  %v160 = vld [vmem:[%s0 + $0x488] sm:$0xff]
  %v161 = vld [vmem:[%s0 + $0x490] sm:$0xff]
  %v162 = vld [vmem:[%s0 + $0x498] sm:$0xff]
  %v163 = vld [vmem:[%s0 + $0x4a0] sm:$0xff]
  %v164 = vld [vmem:[%s0 + $0x4a8] sm:$0xff]
  %v165 = vld [vmem:[%s0 + $0x4b0] sm:$0xff]
  %v166 = vld [vmem:[%s0 + $0x4b8] sm:$0xff]
  %v167 = vld [vmem:[%s0 + $0x4c0] sm:$0xff]
  %v168 = vld [vmem:[%s0 + $0x4c8] sm:$0xff]
  %v169 = vld [vmem:[%s0 + $0x4d0] sm:$0xff]
  %v170 = vld [vmem:[%s0 + $0x4d8] sm:$0xff]
  %v171 = vld [vmem:[%s0 + $0x4e0] sm:$0xff]
  %v172 = vld [vmem:[%s0 + $0x4e8] sm:$0xff]
  %v173 = vld [vmem:[%s0 + $0x4f0] sm:$0xff]
  %v174 = vld [vmem:[%s0 + $0x4f8] sm:$0xff]
  %v175 = vld [vmem:[%s0 + $0x500] sm:$0xff]
  %v176 = vld [vmem:[%s0 + $0x508] sm:$0xff]
  %v177 = vld [vmem:[%s0 + $0x510] sm:$0xff]
  %v178 = vld [vmem:[%s0 + $0x518] sm:$0xff]
  %v179 = vld [vmem:[%s0 + $0x520] sm:$0xff]
  %v180 = vld [vmem:[%s0 + $0x528] sm:$0xff]
  %v181 = vld [vmem:[%s0 + $0x530] sm:$0xff]
  %v182 = vld [vmem:[%s0 + $0x538] sm:$0xff]
  %v183 = vld [vmem:[%s0 + $0x540] sm:$0xff]
  %v184 = vld [vmem:[%s0 + $0x548] sm:$0xff]
  %v185 = vld [vmem:[%s0 + $0x550] sm:$0xff]
  %v186 = vld [vmem:[%s0 + $0x558] sm:$0xff]
  %v187 = vld [vmem:[%s0 + $0x560] sm:$0xff]
  %v188 = vld [vmem:[%s0 + $0x568] sm:$0xff]
  %v189 = vld [vmem:[%s0 + $0x570] sm:$0xff]
  %v190 = vld [vmem:[%s0 + $0x578] sm:$0xff]
  %v191 = vld [vmem:[%s0 + $0x580] sm:$0xff]
  %v192 = vld [vmem:[%s0 + $0x588] sm:$0xff]
  %v193 = vld [vmem:[%s0 + $0x590] sm:$0xff]
  %v194 = vld [vmem:[%s0 + $0x598] sm:$0xff]
  %v195 = vld [vmem:[%s0 + $0x5a0] sm:$0xff]
  %v196 = vld [vmem:[%s0 + $0x5a8] sm:$0xff]
  %v197 = vld [vmem:[%s0 + $0x5b0] sm:$0xff]
  %v198 = vld [vmem:[%s0 + $0x5b8] sm:$0xff]
  %v199 = vld [vmem:[%s0 + $0x5c0] sm:$0xff]
  %v200 = vld [vmem:[%s0 + $0x5c8] sm:$0xff]
  %v201 = vld [vmem:[%s0 + $0x5d0] sm:$0xff]
  %v202 = vld [vmem:[%s0 + $0x5d8] sm:$0xff]
  %v203 = vld [vmem:[%s0 + $0x5e0] sm:$0xff]
  %v204 = vld [vmem:[%s0 + $0x5e8] sm:$0xff]
  %v205 = vld [vmem:[%s0 + $0x5f0] sm:$0xff]
  %v206 = vld [vmem:[%s0 + $0x5f8] sm:$0xff]
  %v207 = vld [vmem:[%s0 + $0x600] sm:$0xff]
  %v208 = vld [vmem:[%s0 + $0x608] sm:$0xff]
  %v209 = vld [vmem:[%s0 + $0x610] sm:$0xff]
  %v210 = vld [vmem:[%s0 + $0x618] sm:$0xff]
  %v211 = vld [vmem:[%s0 + $0x620] sm:$0xff]
  %v212 = vld [vmem:[%s0 + $0x628] sm:$0xff]
  %v213 = vld [vmem:[%s0 + $0x630] sm:$0xff]
  %v214 = vld [vmem:[%s0 + $0x638] sm:$0xff]
  %v215 = vld [vmem:[%s0 + $0x640] sm:$0xff]
  %v216 = vld [vmem:[%s0 + $0x648] sm:$0xff]
  %v217 = vld [vmem:[%s0 + $0x650] sm:$0xff]
  %v218 = vld [vmem:[%s0 + $0x658] sm:$0xff]
  %v219 = vld [vmem:[%s0 + $0x660] sm:$0xff]
  %v220 = vld [vmem:[%s0 + $0x668] sm:$0xff]
  %v221 = vld [vmem:[%s0 + $0x670] sm:$0xff]
  %v222 = vld [vmem:[%s0 + $0x678] sm:$0xff]
  %v223 = vld [vmem:[%s0 + $0x680] sm:$0xff]
  %v224 = vld [vmem:[%s0 + $0x688] sm:$0xff]
  %v225 = vld [vmem:[%s0 + $0x690] sm:$0xff]
  %v226 = vld [vmem:[%s0 + $0x698] sm:$0xff]
  %v227 = vld [vmem:[%s0 + $0x6a0] sm:$0xff]
  %v228 = vld [vmem:[%s0 + $0x6a8] sm:$0xff]
  %v229 = vld [vmem:[%s0 + $0x6b0] sm:$0xff]
  %v230 = vld [vmem:[%s0 + $0x6b8] sm:$0xff]
  %v231 = vld [vmem:[%s0 + $0x6c0] sm:$0xff]
  %v232 = vld [vmem:[%s0 + $0x6c8] sm:$0xff]
  %v233 = vld [vmem:[%s0 + $0x6d0] sm:$0xff]
  %v234 = vld [vmem:[%s0 + $0x6d8] sm:$0xff]
  %v235 = vld [vmem:[%s0 + $0x6e0] sm:$0xff]
  %v236 = vld [vmem:[%s0 + $0x6e8] sm:$0xff]
  %v237 = vld [vmem:[%s0 + $0x6f0] sm:$0xff]
  %v238 = vld [vmem:[%s0 + $0x6f8] sm:$0xff]
  %v239 = vld [vmem:[%s0 + $0x700] sm:$0xff]
  %v240 = vld [vmem:[%s0 + $0x708] sm:$0xff]
  %v241 = vld [vmem:[%s0 + $0x710] sm:$0xff]
  %v242 = vld [vmem:[%s0 + $0x718] sm:$0xff]
  %v243 = vld [vmem:[%s0 + $0x720] sm:$0xff]
  %v244 = vld [vmem:[%s0 + $0x728] sm:$0xff]
  %v245 = vld [vmem:[%s0 + $0x730] sm:$0xff]
  %v246 = vld [vmem:[%s0 + $0x738] sm:$0xff]
  %v247 = vld [vmem:[%s0 + $0x740] sm:$0xff]
  %v248 = vld [vmem:[%s0 + $0x748] sm:$0xff]
  %v249 = vld [vmem:[%s0 + $0x750] sm:$0xff]
  %v250 = vld [vmem:[%s0 + $0x758] sm:$0xff]
  %v251 = vld [vmem:[%s0 + $0x760] sm:$0xff]
  %v252 = vld [vmem:[%s0 + $0x768] sm:$0xff]
  %v253 = vld [vmem:[%s0 + $0x770] sm:$0xff]
  %v254 = vld [vmem:[%s0 + $0x778] sm:$0xff]
  %v255 = vld [vmem:[%s0 + $0x780] sm:$0xff]
  %v256 = vld [vmem:[%s0 + $0x788] sm:$0xff]
  %v257 = vld [vmem:[%s0 + $0x790] sm:$0xff]
  %v258 = vld [vmem:[%s0 + $0x798] sm:$0xff]
  %v259 = vld [vmem:[%s0 + $0x7a0] sm:$0xff]
  %v260 = vld [vmem:[%s0 + $0x7a8] sm:$0xff]
  %v261 = vld [vmem:[%s0 + $0x7b0] sm:$0xff]
  %v262 = vld [vmem:[%s0 + $0x7b8] sm:$0xff]
  %v263 = vld [vmem:[%s0 + $0x7c0] sm:$0xff]
  %v264 = vld [vmem:[%s0 + $0x7c8] sm:$0xff]
  %v265 = vld [vmem:[%s0 + $0x7d0] sm:$0xff]
  %v266 = vld [vmem:[%s0 + $0x7d8] sm:$0xff]
  %v267 = vld [vmem:[%s0 + $0x7e0] sm:$0xff]
  %v268 = vld [vmem:[%s0 + $0x7e8] sm:$0xff]
  %v269 = vld [vmem:[%s0 + $0x7f0] sm:$0xff]
  %v270 = vld [vmem:[%s0 + $0x7f8] sm:$0xff]
  %v271 = vld [vmem:[%s1] sm:$0xf]
  %v272 = vld [vmem:[%s1 + $0x4] sm:$0xf]
  %v273 = vld [vmem:[%s1 + $0x8] sm:$0xf]
  %v274 = vld [vmem:[%s1 + $0xc] sm:$0xf]
  %v275 = vld [vmem:[%s1 + $0x10] sm:$0xf]
  %v276 = vld [vmem:[%s1 + $0x14] sm:$0xf]
  %v277 = vld [vmem:[%s1 + $0x18] sm:$0xf]
  %v278 = vld [vmem:[%s1 + $0x1c] sm:$0xf]
  %v279 = vld [vmem:[%s1 + $0x20] sm:$0xf]
  %v280 = vld [vmem:[%s1 + $0x24] sm:$0xf]
  %v281 = vld [vmem:[%s1 + $0x28] sm:$0xf]
  %v282 = vld [vmem:[%s1 + $0x2c] sm:$0xf]
  %v283 = vld [vmem:[%s1 + $0x30] sm:$0xf]
  %v284 = vld [vmem:[%s1 + $0x34] sm:$0xf]
  %v285 = vld [vmem:[%s1 + $0x38] sm:$0xf]
  %v286 = vld [vmem:[%s1 + $0x3c] sm:$0xf]
  %v287 = vld [vmem:[%s1 + $0x40] sm:$0xf]
  %v288 = vld [vmem:[%s1 + $0x44] sm:$0xf]
  %v289 = vld [vmem:[%s1 + $0x48] sm:$0x3]
  %v290 = vld [vmem:[%s2] sm:$0x1]
  %v292 = vlaneseq
  %v293 = vshrl.u32 %v292, 7
  %v294 = vsub.s32 0, %v293
  %v295 = vrot.slane %v290, %v294
  %v553 = vunpack.c.l.b16 %v15
  %v554 = vunpack.c.h.b16 %v15
  %v555 = vunpack.c.l.b16 %v16
  %v556 = vunpack.c.h.b16 %v16
  %v557 = vunpack.c.l.b16 %v17
  %v558 = vunpack.c.h.b16 %v17
  %v559 = vunpack.c.l.b16 %v18
  %v560 = vunpack.c.h.b16 %v18
  %v561 = vunpack.c.l.b16 %v19
  %v562 = vunpack.c.h.b16 %v19
  %v563 = vunpack.c.l.b16 %v20
  %v564 = vunpack.c.h.b16 %v20
  %v565 = vunpack.c.l.b16 %v21
  %v566 = vunpack.c.h.b16 %v21
  %v567 = vunpack.c.l.b16 %v22
  %v568 = vunpack.c.h.b16 %v22
  %v569 = vunpack.c.l.b16 %v23
  %v570 = vunpack.c.h.b16 %v23
  %v571 = vunpack.c.l.b16 %v24
  %v572 = vunpack.c.h.b16 %v24
  %v573 = vunpack.c.l.b16 %v25
  %v574 = vunpack.c.h.b16 %v25
  %v575 = vunpack.c.l.b16 %v26
  %v576 = vunpack.c.h.b16 %v26
  %v577 = vunpack.c.l.b16 %v27
  %v578 = vunpack.c.h.b16 %v27
  %v579 = vunpack.c.l.b16 %v28
  %v580 = vunpack.c.h.b16 %v28
  %v581 = vunpack.c.l.b16 %v29
  %v582 = vunpack.c.h.b16 %v29
  %v583 = vunpack.c.l.b16 %v30
  %v584 = vunpack.c.h.b16 %v30
  %v585 = vunpack.c.l.b16 %v31
  %v586 = vunpack.c.h.b16 %v31
  %v587 = vunpack.c.l.b16 %v32
  %v588 = vunpack.c.h.b16 %v32
  %v589 = vunpack.c.l.b16 %v33
  %v590 = vunpack.c.h.b16 %v33
  %v591 = vunpack.c.l.b16 %v34
  %v592 = vunpack.c.h.b16 %v34
  %v593 = vunpack.c.l.b16 %v35
  %v594 = vunpack.c.h.b16 %v35
  %v595 = vunpack.c.l.b16 %v36
  %v596 = vunpack.c.h.b16 %v36
  %v597 = vunpack.c.l.b16 %v37
  %v598 = vunpack.c.h.b16 %v37
  %v599 = vunpack.c.l.b16 %v38
  %v600 = vunpack.c.h.b16 %v38
  %v601 = vunpack.c.l.b16 %v39
  %v602 = vunpack.c.h.b16 %v39
  %v603 = vunpack.c.l.b16 %v40
  %v604 = vunpack.c.h.b16 %v40
  %v605 = vunpack.c.l.b16 %v41
  %v606 = vunpack.c.h.b16 %v41
  %v607 = vunpack.c.l.b16 %v42
  %v608 = vunpack.c.h.b16 %v42
  %v609 = vunpack.c.l.b16 %v43
  %v610 = vunpack.c.h.b16 %v43
  %v611 = vunpack.c.l.b16 %v44
  %v612 = vunpack.c.h.b16 %v44
  %v613 = vunpack.c.l.b16 %v45
  %v614 = vunpack.c.h.b16 %v45
  %v615 = vunpack.c.l.b16 %v46
  %v616 = vunpack.c.h.b16 %v46
  %v617 = vunpack.c.l.b16 %v47
  %v618 = vunpack.c.h.b16 %v47
  %v619 = vunpack.c.l.b16 %v48
  %v620 = vunpack.c.h.b16 %v48
  %v621 = vunpack.c.l.b16 %v49
  %v622 = vunpack.c.h.b16 %v49
  %v623 = vunpack.c.l.b16 %v50
  %v624 = vunpack.c.h.b16 %v50
  %v625 = vunpack.c.l.b16 %v51
  %v626 = vunpack.c.h.b16 %v51
  %v627 = vunpack.c.l.b16 %v52
  %v628 = vunpack.c.h.b16 %v52
  %v629 = vunpack.c.l.b16 %v53
  %v630 = vunpack.c.h.b16 %v53
  %v631 = vunpack.c.l.b16 %v54
  %v632 = vunpack.c.h.b16 %v54
  %v633 = vunpack.c.l.b16 %v55
  %v634 = vunpack.c.h.b16 %v55
  %v635 = vunpack.c.l.b16 %v56
  %v636 = vunpack.c.h.b16 %v56
  %v637 = vunpack.c.l.b16 %v57
  %v638 = vunpack.c.h.b16 %v57
  %v639 = vunpack.c.l.b16 %v58
  %v640 = vunpack.c.h.b16 %v58
  %v641 = vunpack.c.l.b16 %v59
  %v642 = vunpack.c.h.b16 %v59
  %v643 = vunpack.c.l.b16 %v60
  %v644 = vunpack.c.h.b16 %v60
  %v645 = vunpack.c.l.b16 %v61
  %v646 = vunpack.c.h.b16 %v61
  %v647 = vunpack.c.l.b16 %v62
  %v648 = vunpack.c.h.b16 %v62
  %v649 = vunpack.c.l.b16 %v63
  %v650 = vunpack.c.h.b16 %v63
  %v651 = vunpack.c.l.b16 %v64
  %v652 = vunpack.c.h.b16 %v64
  %v653 = vunpack.c.l.b16 %v65
  %v654 = vunpack.c.h.b16 %v65
  %v655 = vunpack.c.l.b16 %v66
  %v656 = vunpack.c.h.b16 %v66
  %v657 = vunpack.c.l.b16 %v67
  %v658 = vunpack.c.h.b16 %v67
  %v659 = vunpack.c.l.b16 %v68
  %v660 = vunpack.c.h.b16 %v68
  %v661 = vunpack.c.l.b16 %v69
  %v662 = vunpack.c.h.b16 %v69
  %v663 = vunpack.c.l.b16 %v70
  %v664 = vunpack.c.h.b16 %v70
  %v665 = vunpack.c.l.b16 %v71
  %v666 = vunpack.c.h.b16 %v71
  %v667 = vunpack.c.l.b16 %v72
  %v668 = vunpack.c.h.b16 %v72
  %v669 = vunpack.c.l.b16 %v73
  %v670 = vunpack.c.h.b16 %v73
  %v671 = vunpack.c.l.b16 %v74
  %v672 = vunpack.c.h.b16 %v74
  %v673 = vunpack.c.l.b16 %v75
  %v674 = vunpack.c.h.b16 %v75
  %v675 = vunpack.c.l.b16 %v76
  %v676 = vunpack.c.h.b16 %v76
  %v677 = vunpack.c.l.b16 %v77
  %v678 = vunpack.c.h.b16 %v77
  %v679 = vunpack.c.l.b16 %v78
  %v680 = vunpack.c.h.b16 %v78
  %v681 = vunpack.c.l.b16 %v79
  %v682 = vunpack.c.h.b16 %v79
  %v683 = vunpack.c.l.b16 %v80
  %v684 = vunpack.c.h.b16 %v80
  %v685 = vunpack.c.l.b16 %v81
  %v686 = vunpack.c.h.b16 %v81
  %v687 = vunpack.c.l.b16 %v82
  %v688 = vunpack.c.h.b16 %v82
  %v689 = vunpack.c.l.b16 %v83
  %v690 = vunpack.c.h.b16 %v83
  %v691 = vunpack.c.l.b16 %v84
  %v692 = vunpack.c.h.b16 %v84
  %v693 = vunpack.c.l.b16 %v85
  %v694 = vunpack.c.h.b16 %v85
  %v695 = vunpack.c.l.b16 %v86
  %v696 = vunpack.c.h.b16 %v86
  %v697 = vunpack.c.l.b16 %v87
  %v698 = vunpack.c.h.b16 %v87
  %v699 = vunpack.c.l.b16 %v88
  %v700 = vunpack.c.h.b16 %v88
  %v701 = vunpack.c.l.b16 %v89
  %v702 = vunpack.c.h.b16 %v89
  %v703 = vunpack.c.l.b16 %v90
  %v704 = vunpack.c.h.b16 %v90
  %v705 = vunpack.c.l.b16 %v91
  %v706 = vunpack.c.h.b16 %v91
  %v707 = vunpack.c.l.b16 %v92
  %v708 = vunpack.c.h.b16 %v92
  %v709 = vunpack.c.l.b16 %v93
  %v710 = vunpack.c.h.b16 %v93
  %v711 = vunpack.c.l.b16 %v94
  %v712 = vunpack.c.h.b16 %v94
  %v713 = vunpack.c.l.b16 %v95
  %v714 = vunpack.c.h.b16 %v95
  %v715 = vunpack.c.l.b16 %v96
  %v716 = vunpack.c.h.b16 %v96
  %v717 = vunpack.c.l.b16 %v97
  %v718 = vunpack.c.h.b16 %v97
  %v719 = vunpack.c.l.b16 %v98
  %v720 = vunpack.c.h.b16 %v98
  %v721 = vunpack.c.l.b16 %v99
  %v722 = vunpack.c.h.b16 %v99
  %v723 = vunpack.c.l.b16 %v100
  %v724 = vunpack.c.h.b16 %v100
  %v725 = vunpack.c.l.b16 %v101
  %v726 = vunpack.c.h.b16 %v101
  %v727 = vunpack.c.l.b16 %v102
  %v728 = vunpack.c.h.b16 %v102
  %v729 = vunpack.c.l.b16 %v103
  %v730 = vunpack.c.h.b16 %v103
  %v731 = vunpack.c.l.b16 %v104
  %v732 = vunpack.c.h.b16 %v104
  %v733 = vunpack.c.l.b16 %v105
  %v734 = vunpack.c.h.b16 %v105
  %v735 = vunpack.c.l.b16 %v106
  %v736 = vunpack.c.h.b16 %v106
  %v737 = vunpack.c.l.b16 %v107
  %v738 = vunpack.c.h.b16 %v107
  %v739 = vunpack.c.l.b16 %v108
  %v740 = vunpack.c.h.b16 %v108
  %v741 = vunpack.c.l.b16 %v109
  %v742 = vunpack.c.h.b16 %v109
  %v743 = vunpack.c.l.b16 %v110
  %v744 = vunpack.c.h.b16 %v110
  %v745 = vunpack.c.l.b16 %v111
  %v746 = vunpack.c.h.b16 %v111
  %v747 = vunpack.c.l.b16 %v112
  %v748 = vunpack.c.h.b16 %v112
  %v749 = vunpack.c.l.b16 %v113
  %v750 = vunpack.c.h.b16 %v113
  %v751 = vunpack.c.l.b16 %v114
  %v752 = vunpack.c.h.b16 %v114
  %v753 = vunpack.c.l.b16 %v115
  %v754 = vunpack.c.h.b16 %v115
  %v755 = vunpack.c.l.b16 %v116
  %v756 = vunpack.c.h.b16 %v116
  %v757 = vunpack.c.l.b16 %v117
  %v758 = vunpack.c.h.b16 %v117
  %v759 = vunpack.c.l.b16 %v118
  %v760 = vunpack.c.h.b16 %v118
  %v761 = vunpack.c.l.b16 %v119
  %v762 = vunpack.c.h.b16 %v119
  %v763 = vunpack.c.l.b16 %v120
  %v764 = vunpack.c.h.b16 %v120
  %v765 = vunpack.c.l.b16 %v121
  %v766 = vunpack.c.h.b16 %v121
  %v767 = vunpack.c.l.b16 %v122
  %v768 = vunpack.c.h.b16 %v122
  %v769 = vunpack.c.l.b16 %v123
  %v770 = vunpack.c.h.b16 %v123
  %v771 = vunpack.c.l.b16 %v124
  %v772 = vunpack.c.h.b16 %v124
  %v773 = vunpack.c.l.b16 %v125
  %v774 = vunpack.c.h.b16 %v125
  %v775 = vunpack.c.l.b16 %v126
  %v776 = vunpack.c.h.b16 %v126
  %v777 = vunpack.c.l.b16 %v127
  %v778 = vunpack.c.h.b16 %v127
  %v779 = vunpack.c.l.b16 %v128
  %v780 = vunpack.c.h.b16 %v128
  %v781 = vunpack.c.l.b16 %v129
  %v782 = vunpack.c.h.b16 %v129
  %v783 = vunpack.c.l.b16 %v130
  %v784 = vunpack.c.h.b16 %v130
  %v785 = vunpack.c.l.b16 %v131
  %v786 = vunpack.c.h.b16 %v131
  %v787 = vunpack.c.l.b16 %v132
  %v788 = vunpack.c.h.b16 %v132
  %v789 = vunpack.c.l.b16 %v133
  %v790 = vunpack.c.h.b16 %v133
  %v791 = vunpack.c.l.b16 %v134
  %v792 = vunpack.c.h.b16 %v134
  %v793 = vunpack.c.l.b16 %v135
  %v794 = vunpack.c.h.b16 %v135
  %v795 = vunpack.c.l.b16 %v136
  %v796 = vunpack.c.h.b16 %v136
  %v797 = vunpack.c.l.b16 %v137
  %v798 = vunpack.c.h.b16 %v137
  %v799 = vunpack.c.l.b16 %v138
  %v800 = vunpack.c.h.b16 %v138
  %v801 = vunpack.c.l.b16 %v139
  %v802 = vunpack.c.h.b16 %v139
  %v803 = vunpack.c.l.b16 %v140
  %v804 = vunpack.c.h.b16 %v140
  %v805 = vunpack.c.l.b16 %v141
  %v806 = vunpack.c.h.b16 %v141
  %v807 = vunpack.c.l.b16 %v142
  %v808 = vunpack.c.h.b16 %v142
  %v809 = vunpack.c.l.b16 %v143
  %v810 = vunpack.c.h.b16 %v143
  %v811 = vunpack.c.l.b16 %v144
  %v812 = vunpack.c.h.b16 %v144
  %v813 = vunpack.c.l.b16 %v145
  %v814 = vunpack.c.h.b16 %v145
  %v815 = vunpack.c.l.b16 %v146
  %v816 = vunpack.c.h.b16 %v146
  %v817 = vunpack.c.l.b16 %v147
  %v818 = vunpack.c.h.b16 %v147
  %v819 = vunpack.c.l.b16 %v148
  %v820 = vunpack.c.h.b16 %v148
  %v821 = vunpack.c.l.b16 %v149
  %v822 = vunpack.c.h.b16 %v149
  %v823 = vunpack.c.l.b16 %v150
  %v824 = vunpack.c.h.b16 %v150
  %v825 = vunpack.c.l.b16 %v151
  %v826 = vunpack.c.h.b16 %v151
  %v827 = vunpack.c.l.b16 %v152
  %v828 = vunpack.c.h.b16 %v152
  %v829 = vunpack.c.l.b16 %v153
  %v830 = vunpack.c.h.b16 %v153
  %v831 = vunpack.c.l.b16 %v154
  %v832 = vunpack.c.h.b16 %v154
  %v833 = vunpack.c.l.b16 %v155
  %v834 = vunpack.c.h.b16 %v155
  %v835 = vunpack.c.l.b16 %v156
  %v836 = vunpack.c.h.b16 %v156
  %v837 = vunpack.c.l.b16 %v157
  %v838 = vunpack.c.h.b16 %v157
  %v839 = vunpack.c.l.b16 %v158
  %v840 = vunpack.c.h.b16 %v158
  %v841 = vunpack.c.l.b16 %v159
  %v842 = vunpack.c.h.b16 %v159
  %v843 = vunpack.c.l.b16 %v160
  %v844 = vunpack.c.h.b16 %v160
  %v845 = vunpack.c.l.b16 %v161
  %v846 = vunpack.c.h.b16 %v161
  %v847 = vunpack.c.l.b16 %v162
  %v848 = vunpack.c.h.b16 %v162
  %v849 = vunpack.c.l.b16 %v163
  %v850 = vunpack.c.h.b16 %v163
  %v851 = vunpack.c.l.b16 %v164
  %v852 = vunpack.c.h.b16 %v164
  %v853 = vunpack.c.l.b16 %v165
  %v854 = vunpack.c.h.b16 %v165
  %v855 = vunpack.c.l.b16 %v166
  %v856 = vunpack.c.h.b16 %v166
  %v857 = vunpack.c.l.b16 %v167
  %v858 = vunpack.c.h.b16 %v167
  %v859 = vunpack.c.l.b16 %v168
  %v860 = vunpack.c.h.b16 %v168
  %v861 = vunpack.c.l.b16 %v169
  %v862 = vunpack.c.h.b16 %v169
  %v863 = vunpack.c.l.b16 %v170
  %v864 = vunpack.c.h.b16 %v170
  %v865 = vunpack.c.l.b16 %v171
  %v866 = vunpack.c.h.b16 %v171
  %v867 = vunpack.c.l.b16 %v172
  %v868 = vunpack.c.h.b16 %v172
  %v869 = vunpack.c.l.b16 %v173
  %v870 = vunpack.c.h.b16 %v173
  %v871 = vunpack.c.l.b16 %v174
  %v872 = vunpack.c.h.b16 %v174
  %v873 = vunpack.c.l.b16 %v175
  %v874 = vunpack.c.h.b16 %v175
  %v875 = vunpack.c.l.b16 %v176
  %v876 = vunpack.c.h.b16 %v176
  %v877 = vunpack.c.l.b16 %v177
  %v878 = vunpack.c.h.b16 %v177
  %v879 = vunpack.c.l.b16 %v178
  %v880 = vunpack.c.h.b16 %v178
  %v881 = vunpack.c.l.b16 %v179
  %v882 = vunpack.c.h.b16 %v179
  %v883 = vunpack.c.l.b16 %v180
  %v884 = vunpack.c.h.b16 %v180
  %v885 = vunpack.c.l.b16 %v181
  %v886 = vunpack.c.h.b16 %v181
  %v887 = vunpack.c.l.b16 %v182
  %v888 = vunpack.c.h.b16 %v182
  %v889 = vunpack.c.l.b16 %v183
  %v890 = vunpack.c.h.b16 %v183
  %v891 = vunpack.c.l.b16 %v184
  %v892 = vunpack.c.h.b16 %v184
  %v893 = vunpack.c.l.b16 %v185
  %v894 = vunpack.c.h.b16 %v185
  %v895 = vunpack.c.l.b16 %v186
  %v896 = vunpack.c.h.b16 %v186
  %v897 = vunpack.c.l.b16 %v187
  %v898 = vunpack.c.h.b16 %v187
  %v899 = vunpack.c.l.b16 %v188
  %v900 = vunpack.c.h.b16 %v188
  %v901 = vunpack.c.l.b16 %v189
  %v902 = vunpack.c.h.b16 %v189
  %v903 = vunpack.c.l.b16 %v190
  %v904 = vunpack.c.h.b16 %v190
  %v905 = vunpack.c.l.b16 %v191
  %v906 = vunpack.c.h.b16 %v191
  %v907 = vunpack.c.l.b16 %v192
  %v908 = vunpack.c.h.b16 %v192
  %v909 = vunpack.c.l.b16 %v193
  %v910 = vunpack.c.h.b16 %v193
  %v911 = vunpack.c.l.b16 %v194
  %v912 = vunpack.c.h.b16 %v194
  %v913 = vunpack.c.l.b16 %v195
  %v914 = vunpack.c.h.b16 %v195
  %v915 = vunpack.c.l.b16 %v196
  %v916 = vunpack.c.h.b16 %v196
  %v917 = vunpack.c.l.b16 %v197
  %v918 = vunpack.c.h.b16 %v197
  %v919 = vunpack.c.l.b16 %v198
  %v920 = vunpack.c.h.b16 %v198
  %v921 = vunpack.c.l.b16 %v199
  %v922 = vunpack.c.h.b16 %v199
  %v923 = vunpack.c.l.b16 %v200
  %v924 = vunpack.c.h.b16 %v200
  %v925 = vunpack.c.l.b16 %v201
  %v926 = vunpack.c.h.b16 %v201
  %v927 = vunpack.c.l.b16 %v202
  %v928 = vunpack.c.h.b16 %v202
  %v929 = vunpack.c.l.b16 %v203
  %v930 = vunpack.c.h.b16 %v203
  %v931 = vunpack.c.l.b16 %v204
  %v932 = vunpack.c.h.b16 %v204
  %v933 = vunpack.c.l.b16 %v205
  %v934 = vunpack.c.h.b16 %v205
  %v935 = vunpack.c.l.b16 %v206
  %v936 = vunpack.c.h.b16 %v206
  %v937 = vunpack.c.l.b16 %v207
  %v938 = vunpack.c.h.b16 %v207
  %v939 = vunpack.c.l.b16 %v208
  %v940 = vunpack.c.h.b16 %v208
  %v941 = vunpack.c.l.b16 %v209
  %v942 = vunpack.c.h.b16 %v209
  %v943 = vunpack.c.l.b16 %v210
  %v944 = vunpack.c.h.b16 %v210
  %v945 = vunpack.c.l.b16 %v211
  %v946 = vunpack.c.h.b16 %v211
  %v947 = vunpack.c.l.b16 %v212
  %v948 = vunpack.c.h.b16 %v212
  %v949 = vunpack.c.l.b16 %v213
  %v950 = vunpack.c.h.b16 %v213
  %v951 = vunpack.c.l.b16 %v214
  %v952 = vunpack.c.h.b16 %v214
  %v953 = vunpack.c.l.b16 %v215
  %v954 = vunpack.c.h.b16 %v215
  %v955 = vunpack.c.l.b16 %v216
  %v956 = vunpack.c.h.b16 %v216
  %v957 = vunpack.c.l.b16 %v217
  %v958 = vunpack.c.h.b16 %v217
  %v959 = vunpack.c.l.b16 %v218
  %v960 = vunpack.c.h.b16 %v218
  %v961 = vunpack.c.l.b16 %v219
  %v962 = vunpack.c.h.b16 %v219
  %v963 = vunpack.c.l.b16 %v220
  %v964 = vunpack.c.h.b16 %v220
  %v965 = vunpack.c.l.b16 %v221
  %v966 = vunpack.c.h.b16 %v221
  %v967 = vunpack.c.l.b16 %v222
  %v968 = vunpack.c.h.b16 %v222
  %v969 = vunpack.c.l.b16 %v223
  %v970 = vunpack.c.h.b16 %v223
  %v971 = vunpack.c.l.b16 %v224
  %v972 = vunpack.c.h.b16 %v224
  %v973 = vunpack.c.l.b16 %v225
  %v974 = vunpack.c.h.b16 %v225
  %v975 = vunpack.c.l.b16 %v226
  %v976 = vunpack.c.h.b16 %v226
  %v977 = vunpack.c.l.b16 %v227
  %v978 = vunpack.c.h.b16 %v227
  %v979 = vunpack.c.l.b16 %v228
  %v980 = vunpack.c.h.b16 %v228
  %v981 = vunpack.c.l.b16 %v229
  %v982 = vunpack.c.h.b16 %v229
  %v983 = vunpack.c.l.b16 %v230
  %v984 = vunpack.c.h.b16 %v230
  %v985 = vunpack.c.l.b16 %v231
  %v986 = vunpack.c.h.b16 %v231
  %v987 = vunpack.c.l.b16 %v232
  %v988 = vunpack.c.h.b16 %v232
  %v989 = vunpack.c.l.b16 %v233
  %v990 = vunpack.c.h.b16 %v233
  %v991 = vunpack.c.l.b16 %v234
  %v992 = vunpack.c.h.b16 %v234
  %v993 = vunpack.c.l.b16 %v235
  %v994 = vunpack.c.h.b16 %v235
  %v995 = vunpack.c.l.b16 %v236
  %v996 = vunpack.c.h.b16 %v236
  %v997 = vunpack.c.l.b16 %v237
  %v998 = vunpack.c.h.b16 %v237
  %v999 = vunpack.c.l.b16 %v238
  %v1000 = vunpack.c.h.b16 %v238
  %v1001 = vunpack.c.l.b16 %v239
  %v1002 = vunpack.c.h.b16 %v239
  %v1003 = vunpack.c.l.b16 %v240
  %v1004 = vunpack.c.h.b16 %v240
  %v1005 = vunpack.c.l.b16 %v241
  %v1006 = vunpack.c.h.b16 %v241
  %v1007 = vunpack.c.l.b16 %v242
  %v1008 = vunpack.c.h.b16 %v242
  %v1009 = vunpack.c.l.b16 %v243
  %v1010 = vunpack.c.h.b16 %v243
  %v1011 = vunpack.c.l.b16 %v244
  %v1012 = vunpack.c.h.b16 %v244
  %v1013 = vunpack.c.l.b16 %v245
  %v1014 = vunpack.c.h.b16 %v245
  %v1015 = vunpack.c.l.b16 %v246
  %v1016 = vunpack.c.h.b16 %v246
  %v1017 = vunpack.c.l.b16 %v247
  %v1018 = vunpack.c.h.b16 %v247
  %v1019 = vunpack.c.l.b16 %v248
  %v1020 = vunpack.c.h.b16 %v248
  %v1021 = vunpack.c.l.b16 %v249
  %v1022 = vunpack.c.h.b16 %v249
  %v1023 = vunpack.c.l.b16 %v250
  %v1024 = vunpack.c.h.b16 %v250
  %v1025 = vunpack.c.l.b16 %v251
  %v1026 = vunpack.c.h.b16 %v251
  %v1027 = vunpack.c.l.b16 %v252
  %v1028 = vunpack.c.h.b16 %v252
  %v1029 = vunpack.c.l.b16 %v253
  %v1030 = vunpack.c.h.b16 %v253
  %v1031 = vunpack.c.l.b16 %v254
  %v1032 = vunpack.c.h.b16 %v254
  %v1033 = vunpack.c.l.b16 %v255
  %v1034 = vunpack.c.h.b16 %v255
  %v1035 = vunpack.c.l.b16 %v256
  %v1036 = vunpack.c.h.b16 %v256
  %v1037 = vunpack.c.l.b16 %v257
  %v1038 = vunpack.c.h.b16 %v257
  %v1039 = vunpack.c.l.b16 %v258
  %v1040 = vunpack.c.h.b16 %v258
  %v1041 = vunpack.c.l.b16 %v259
  %v1042 = vunpack.c.h.b16 %v259
  %v1043 = vunpack.c.l.b16 %v260
  %v1044 = vunpack.c.h.b16 %v260
  %v1045 = vunpack.c.l.b16 %v261
  %v1046 = vunpack.c.h.b16 %v261
  %v1047 = vunpack.c.l.b16 %v262
  %v1048 = vunpack.c.h.b16 %v262
  %v1049 = vunpack.c.l.b16 %v263
  %v1050 = vunpack.c.h.b16 %v263
  %v1051 = vunpack.c.l.b16 %v264
  %v1052 = vunpack.c.h.b16 %v264
  %v1053 = vunpack.c.l.b16 %v265
  %v1054 = vunpack.c.h.b16 %v265
  %v1055 = vunpack.c.l.b16 %v266
  %v1056 = vunpack.c.h.b16 %v266
  %v1057 = vunpack.c.l.b16 %v267
  %v1058 = vunpack.c.h.b16 %v267
  %v1059 = vunpack.c.l.b16 %v268
  %v1060 = vunpack.c.h.b16 %v268
  %v1061 = vunpack.c.l.b16 %v269
  %v1062 = vunpack.c.h.b16 %v269
  %v1063 = vunpack.c.l.b16 %v270
  %v1064 = vunpack.c.h.b16 %v270
  %v1065 = vpack.c.b16 %v555, %v553
  %v1066 = vpack.c.b16 %v556, %v554
  %v1067 = vpack.c.b16 %v559, %v557
  %v1068 = vpack.c.b16 %v560, %v558
  %v1069 = vpack.c.b16 %v563, %v561
  %v1070 = vpack.c.b16 %v564, %v562
  %v1071 = vpack.c.b16 %v567, %v565
  %v1072 = vpack.c.b16 %v568, %v566
  %v1073 = vpack.c.b16 %v571, %v569
  %v1074 = vpack.c.b16 %v572, %v570
  %v1075 = vpack.c.b16 %v575, %v573
  %v1076 = vpack.c.b16 %v576, %v574
  %v1077 = vpack.c.b16 %v579, %v577
  %v1078 = vpack.c.b16 %v580, %v578
  %v1079 = vpack.c.b16 %v583, %v581
  %v1080 = vpack.c.b16 %v584, %v582
  %v1081 = vpack.c.b16 %v587, %v585
  %v1082 = vpack.c.b16 %v588, %v586
  %v1083 = vpack.c.b16 %v591, %v589
  %v1084 = vpack.c.b16 %v592, %v590
  %v1085 = vpack.c.b16 %v595, %v593
  %v1086 = vpack.c.b16 %v596, %v594
  %v1087 = vpack.c.b16 %v599, %v597
  %v1088 = vpack.c.b16 %v600, %v598
  %v1089 = vpack.c.b16 %v603, %v601
  %v1090 = vpack.c.b16 %v604, %v602
  %v1091 = vpack.c.b16 %v607, %v605
  %v1092 = vpack.c.b16 %v608, %v606
  %v1093 = vpack.c.b16 %v611, %v609
  %v1094 = vpack.c.b16 %v612, %v610
  %v1095 = vpack.c.b16 %v615, %v613
  %v1096 = vpack.c.b16 %v616, %v614
  %v1097 = vpack.c.b16 %v619, %v617
  %v1098 = vpack.c.b16 %v620, %v618
  %v1099 = vpack.c.b16 %v623, %v621
  %v1100 = vpack.c.b16 %v624, %v622
  %v1101 = vpack.c.b16 %v627, %v625
  %v1102 = vpack.c.b16 %v628, %v626
  %v1103 = vpack.c.b16 %v631, %v629
  %v1104 = vpack.c.b16 %v632, %v630
  %v1105 = vpack.c.b16 %v635, %v633
  %v1106 = vpack.c.b16 %v636, %v634
  %v1107 = vpack.c.b16 %v639, %v637
  %v1108 = vpack.c.b16 %v640, %v638
  %v1109 = vpack.c.b16 %v643, %v641
  %v1110 = vpack.c.b16 %v644, %v642
  %v1111 = vpack.c.b16 %v647, %v645
  %v1112 = vpack.c.b16 %v648, %v646
  %v1113 = vpack.c.b16 %v651, %v649
  %v1114 = vpack.c.b16 %v652, %v650
  %v1115 = vpack.c.b16 %v655, %v653
  %v1116 = vpack.c.b16 %v656, %v654
  %v1117 = vpack.c.b16 %v659, %v657
  %v1118 = vpack.c.b16 %v660, %v658
  %v1119 = vpack.c.b16 %v663, %v661
  %v1120 = vpack.c.b16 %v664, %v662
  %v1121 = vpack.c.b16 %v667, %v665
  %v1122 = vpack.c.b16 %v668, %v666
  %v1123 = vpack.c.b16 %v671, %v669
  %v1124 = vpack.c.b16 %v672, %v670
  %v1125 = vpack.c.b16 %v675, %v673
  %v1126 = vpack.c.b16 %v676, %v674
  %v1127 = vpack.c.b16 %v679, %v677
  %v1128 = vpack.c.b16 %v680, %v678
  %v1129 = vpack.c.b16 %v683, %v681
  %v1130 = vpack.c.b16 %v684, %v682
  %v1131 = vpack.c.b16 %v687, %v685
  %v1132 = vpack.c.b16 %v688, %v686
  %v1133 = vpack.c.b16 %v691, %v689
  %v1134 = vpack.c.b16 %v692, %v690
  %v1135 = vpack.c.b16 %v695, %v693
  %v1136 = vpack.c.b16 %v696, %v694
  %v1137 = vpack.c.b16 %v699, %v697
  %v1138 = vpack.c.b16 %v700, %v698
  %v1139 = vpack.c.b16 %v703, %v701
  %v1140 = vpack.c.b16 %v704, %v702
  %v1141 = vpack.c.b16 %v707, %v705
  %v1142 = vpack.c.b16 %v708, %v706
  %v1143 = vpack.c.b16 %v711, %v709
  %v1144 = vpack.c.b16 %v712, %v710
  %v1145 = vpack.c.b16 %v715, %v713
  %v1146 = vpack.c.b16 %v716, %v714
  %v1147 = vpack.c.b16 %v719, %v717
  %v1148 = vpack.c.b16 %v720, %v718
  %v1149 = vpack.c.b16 %v723, %v721
  %v1150 = vpack.c.b16 %v724, %v722
  %v1151 = vpack.c.b16 %v727, %v725
  %v1152 = vpack.c.b16 %v728, %v726
  %v1153 = vpack.c.b16 %v731, %v729
  %v1154 = vpack.c.b16 %v732, %v730
  %v1155 = vpack.c.b16 %v735, %v733
  %v1156 = vpack.c.b16 %v736, %v734
  %v1157 = vpack.c.b16 %v739, %v737
  %v1158 = vpack.c.b16 %v740, %v738
  %v1159 = vpack.c.b16 %v743, %v741
  %v1160 = vpack.c.b16 %v744, %v742
  %v1161 = vpack.c.b16 %v747, %v745
  %v1162 = vpack.c.b16 %v748, %v746
  %v1163 = vpack.c.b16 %v751, %v749
  %v1164 = vpack.c.b16 %v752, %v750
  %v1165 = vpack.c.b16 %v755, %v753
  %v1166 = vpack.c.b16 %v756, %v754
  %v1167 = vpack.c.b16 %v759, %v757
  %v1168 = vpack.c.b16 %v760, %v758
  %v1169 = vpack.c.b16 %v763, %v761
  %v1170 = vpack.c.b16 %v764, %v762
  %v1171 = vpack.c.b16 %v767, %v765
  %v1172 = vpack.c.b16 %v768, %v766
  %v1173 = vpack.c.b16 %v771, %v769
  %v1174 = vpack.c.b16 %v772, %v770
  %v1175 = vpack.c.b16 %v775, %v773
  %v1176 = vpack.c.b16 %v776, %v774
  %v1177 = vpack.c.b16 %v779, %v777
  %v1178 = vpack.c.b16 %v780, %v778
  %v1179 = vpack.c.b16 %v783, %v781
  %v1180 = vpack.c.b16 %v784, %v782
  %v1181 = vpack.c.b16 %v787, %v785
  %v1182 = vpack.c.b16 %v788, %v786
  %v1183 = vpack.c.b16 %v791, %v789
  %v1184 = vpack.c.b16 %v792, %v790
  %v1185 = vpack.c.b16 %v795, %v793
  %v1186 = vpack.c.b16 %v796, %v794
  %v1187 = vpack.c.b16 %v799, %v797
  %v1188 = vpack.c.b16 %v800, %v798
  %v1189 = vpack.c.b16 %v803, %v801
  %v1190 = vpack.c.b16 %v804, %v802
  %v1191 = vpack.c.b16 %v807, %v805
  %v1192 = vpack.c.b16 %v808, %v806
  %v1193 = vpack.c.b16 %v811, %v809
  %v1194 = vpack.c.b16 %v812, %v810
  %v1195 = vpack.c.b16 %v815, %v813
  %v1196 = vpack.c.b16 %v816, %v814
  %v1197 = vpack.c.b16 %v819, %v817
  %v1198 = vpack.c.b16 %v820, %v818
  %v1199 = vpack.c.b16 %v823, %v821
  %v1200 = vpack.c.b16 %v824, %v822
  %v1201 = vpack.c.b16 %v827, %v825
  %v1202 = vpack.c.b16 %v828, %v826
  %v1203 = vpack.c.b16 %v831, %v829
  %v1204 = vpack.c.b16 %v832, %v830
  %v1205 = vpack.c.b16 %v835, %v833
  %v1206 = vpack.c.b16 %v836, %v834
  %v1207 = vpack.c.b16 %v839, %v837
  %v1208 = vpack.c.b16 %v840, %v838
  %v1209 = vpack.c.b16 %v843, %v841
  %v1210 = vpack.c.b16 %v844, %v842
  %v1211 = vpack.c.b16 %v847, %v845
  %v1212 = vpack.c.b16 %v848, %v846
  %v1213 = vpack.c.b16 %v851, %v849
  %v1214 = vpack.c.b16 %v852, %v850
  %v1215 = vpack.c.b16 %v855, %v853
  %v1216 = vpack.c.b16 %v856, %v854
  %v1217 = vpack.c.b16 %v859, %v857
  %v1218 = vpack.c.b16 %v860, %v858
  %v1219 = vpack.c.b16 %v863, %v861
  %v1220 = vpack.c.b16 %v864, %v862
  %v1221 = vpack.c.b16 %v867, %v865
  %v1222 = vpack.c.b16 %v868, %v866
  %v1223 = vpack.c.b16 %v871, %v869
  %v1224 = vpack.c.b16 %v872, %v870
  %v1225 = vpack.c.b16 %v875, %v873
  %v1226 = vpack.c.b16 %v876, %v874
  %v1227 = vpack.c.b16 %v879, %v877
  %v1228 = vpack.c.b16 %v880, %v878
  %v1229 = vpack.c.b16 %v883, %v881
  %v1230 = vpack.c.b16 %v884, %v882
  %v1231 = vpack.c.b16 %v887, %v885
  %v1232 = vpack.c.b16 %v888, %v886
  %v1233 = vpack.c.b16 %v891, %v889
  %v1234 = vpack.c.b16 %v892, %v890
  %v1235 = vpack.c.b16 %v895, %v893
  %v1236 = vpack.c.b16 %v896, %v894
  %v1237 = vpack.c.b16 %v899, %v897
  %v1238 = vpack.c.b16 %v900, %v898
  %v1239 = vpack.c.b16 %v903, %v901
  %v1240 = vpack.c.b16 %v904, %v902
  %v1241 = vpack.c.b16 %v907, %v905
  %v1242 = vpack.c.b16 %v908, %v906
  %v1243 = vpack.c.b16 %v911, %v909
  %v1244 = vpack.c.b16 %v912, %v910
  %v1245 = vpack.c.b16 %v915, %v913
  %v1246 = vpack.c.b16 %v916, %v914
  %v1247 = vpack.c.b16 %v919, %v917
  %v1248 = vpack.c.b16 %v920, %v918
  %v1249 = vpack.c.b16 %v923, %v921
  %v1250 = vpack.c.b16 %v924, %v922
  %v1251 = vpack.c.b16 %v927, %v925
  %v1252 = vpack.c.b16 %v928, %v926
  %v1253 = vpack.c.b16 %v931, %v929
  %v1254 = vpack.c.b16 %v932, %v930
  %v1255 = vpack.c.b16 %v935, %v933
  %v1256 = vpack.c.b16 %v936, %v934
  %v1257 = vpack.c.b16 %v939, %v937
  %v1258 = vpack.c.b16 %v940, %v938
  %v1259 = vpack.c.b16 %v943, %v941
  %v1260 = vpack.c.b16 %v944, %v942
  %v1261 = vpack.c.b16 %v947, %v945
  %v1262 = vpack.c.b16 %v948, %v946
  %v1263 = vpack.c.b16 %v951, %v949
  %v1264 = vpack.c.b16 %v952, %v950
  %v1265 = vpack.c.b16 %v955, %v953
  %v1266 = vpack.c.b16 %v956, %v954
  %v1267 = vpack.c.b16 %v959, %v957
  %v1268 = vpack.c.b16 %v960, %v958
  %v1269 = vpack.c.b16 %v963, %v961
  %v1270 = vpack.c.b16 %v964, %v962
  %v1271 = vpack.c.b16 %v967, %v965
  %v1272 = vpack.c.b16 %v968, %v966
  %v1273 = vpack.c.b16 %v971, %v969
  %v1274 = vpack.c.b16 %v972, %v970
  %v1275 = vpack.c.b16 %v975, %v973
  %v1276 = vpack.c.b16 %v976, %v974
  %v1277 = vpack.c.b16 %v979, %v977
  %v1278 = vpack.c.b16 %v980, %v978
  %v1279 = vpack.c.b16 %v983, %v981
  %v1280 = vpack.c.b16 %v984, %v982
  %v1281 = vpack.c.b16 %v987, %v985
  %v1282 = vpack.c.b16 %v988, %v986
  %v1283 = vpack.c.b16 %v991, %v989
  %v1284 = vpack.c.b16 %v992, %v990
  %v1285 = vpack.c.b16 %v995, %v993
  %v1286 = vpack.c.b16 %v996, %v994
  %v1287 = vpack.c.b16 %v999, %v997
  %v1288 = vpack.c.b16 %v1000, %v998
  %v1289 = vpack.c.b16 %v1003, %v1001
  %v1290 = vpack.c.b16 %v1004, %v1002
  %v1291 = vpack.c.b16 %v1007, %v1005
  %v1292 = vpack.c.b16 %v1008, %v1006
  %v1293 = vpack.c.b16 %v1011, %v1009
  %v1294 = vpack.c.b16 %v1012, %v1010
  %v1295 = vpack.c.b16 %v1015, %v1013
  %v1296 = vpack.c.b16 %v1016, %v1014
  %v1297 = vpack.c.b16 %v1019, %v1017
  %v1298 = vpack.c.b16 %v1020, %v1018
  %v1299 = vpack.c.b16 %v1023, %v1021
  %v1300 = vpack.c.b16 %v1024, %v1022
  %v1301 = vpack.c.b16 %v1027, %v1025
  %v1302 = vpack.c.b16 %v1028, %v1026
  %v1303 = vpack.c.b16 %v1031, %v1029
  %v1304 = vpack.c.b16 %v1032, %v1030
  %v1305 = vpack.c.b16 %v1035, %v1033
  %v1306 = vpack.c.b16 %v1036, %v1034
  %v1307 = vpack.c.b16 %v1039, %v1037
  %v1308 = vpack.c.b16 %v1040, %v1038
  %v1309 = vpack.c.b16 %v1043, %v1041
  %v1310 = vpack.c.b16 %v1044, %v1042
  %v1311 = vpack.c.b16 %v1047, %v1045
  %v1312 = vpack.c.b16 %v1048, %v1046
  %v1313 = vpack.c.b16 %v1051, %v1049
  %v1314 = vpack.c.b16 %v1052, %v1050
  %v1315 = vpack.c.b16 %v1055, %v1053
  %v1316 = vpack.c.b16 %v1056, %v1054
  %v1317 = vpack.c.b16 %v1059, %v1057
  %v1318 = vpack.c.b16 %v1060, %v1058
  %v1319 = vpack.c.b16 %v1063, %v1061
  %v1320 = vpack.c.b16 %v1064, %v1062
  %v1468 = vunpack.c.l.b16 %v271
  %v1469 = vunpack.c.l.b16 %v272
  %v1470 = vunpack.c.l.b16 %v273
  %v1471 = vunpack.c.l.b16 %v274
  %v1472 = vunpack.c.l.b16 %v275
  %v1473 = vunpack.c.l.b16 %v276
  %v1474 = vunpack.c.l.b16 %v277
  %v1475 = vunpack.c.l.b16 %v278
  %v1476 = vunpack.c.l.b16 %v279
  %v1477 = vunpack.c.l.b16 %v280
  %v1478 = vunpack.c.l.b16 %v281
  %v1479 = vunpack.c.l.b16 %v282
  %v1480 = vunpack.c.l.b16 %v283
  %v1481 = vunpack.c.l.b16 %v284
  %v1482 = vunpack.c.l.b16 %v285
  %v1483 = vunpack.c.l.b16 %v286
  %v1484 = vunpack.c.l.b16 %v287
  %v1485 = vunpack.c.l.b16 %v288
  %v1486 = vunpack.c.l.b16 %v289
  %v1487 = vpack.c.b16 %v1469, %v1468
  %v1488 = vpack.c.b16 %v1471, %v1470
  %v1489 = vpack.c.b16 %v1473, %v1472
  %v1490 = vpack.c.b16 %v1475, %v1474
  %v1491 = vpack.c.b16 %v1477, %v1476
  %v1492 = vpack.c.b16 %v1479, %v1478
  %v1493 = vpack.c.b16 %v1481, %v1480
  %v1494 = vpack.c.b16 %v1483, %v1482
  %v1495 = vpack.c.b16 %v1485, %v1484
  %v1496 = vpack.c.b16 %v1486, %v1486
  %vm1506 = vcmask 154624
  %v1508 = vsel %vm1506, %v1066, 0
  %v1511 = vsel %vm1506, %v1068, 0
  %v1514 = vsel %vm1506, %v1070, 0
  %v1517 = vsel %vm1506, %v1072, 0
  %v1520 = vsel %vm1506, %v1074, 0
  %v1523 = vsel %vm1506, %v1076, 0
  %v1526 = vsel %vm1506, %v1078, 0
  %v1529 = vsel %vm1506, %v1080, 0
  %v1532 = vsel %vm1506, %v1082, 0
  %v1535 = vsel %vm1506, %v1084, 0
  %v1538 = vsel %vm1506, %v1086, 0
  %v1541 = vsel %vm1506, %v1088, 0
  %v1544 = vsel %vm1506, %v1090, 0
  %v1547 = vsel %vm1506, %v1092, 0
  %v1550 = vsel %vm1506, %v1094, 0
  %v1553 = vsel %vm1506, %v1096, 0
  %v1556 = vsel %vm1506, %v1098, 0
  %v1559 = vsel %vm1506, %v1100, 0
  %v1562 = vsel %vm1506, %v1102, 0
  %v1565 = vsel %vm1506, %v1104, 0
  %v1568 = vsel %vm1506, %v1106, 0
  %v1571 = vsel %vm1506, %v1108, 0
  %v1574 = vsel %vm1506, %v1110, 0
  %v1577 = vsel %vm1506, %v1112, 0
  %v1580 = vsel %vm1506, %v1114, 0
  %v1583 = vsel %vm1506, %v1116, 0
  %v1586 = vsel %vm1506, %v1118, 0
  %v1589 = vsel %vm1506, %v1120, 0
  %v1592 = vsel %vm1506, %v1122, 0
  %v1595 = vsel %vm1506, %v1124, 0
  %v1598 = vsel %vm1506, %v1126, 0
  %v1601 = vsel %vm1506, %v1128, 0
  %v1604 = vsel %vm1506, %v1130, 0
  %v1607 = vsel %vm1506, %v1132, 0
  %v1610 = vsel %vm1506, %v1134, 0
  %v1613 = vsel %vm1506, %v1136, 0
  %v1616 = vsel %vm1506, %v1138, 0
  %v1619 = vsel %vm1506, %v1140, 0
  %v1622 = vsel %vm1506, %v1142, 0
  %v1625 = vsel %vm1506, %v1144, 0
  %v1628 = vsel %vm1506, %v1146, 0
  %v1631 = vsel %vm1506, %v1148, 0
  %v1634 = vsel %vm1506, %v1150, 0
  %v1637 = vsel %vm1506, %v1152, 0
  %v1640 = vsel %vm1506, %v1154, 0
  %v1643 = vsel %vm1506, %v1156, 0
  %v1646 = vsel %vm1506, %v1158, 0
  %v1649 = vsel %vm1506, %v1160, 0
  %v1652 = vsel %vm1506, %v1162, 0
  %v1655 = vsel %vm1506, %v1164, 0
  %v1658 = vsel %vm1506, %v1166, 0
  %v1661 = vsel %vm1506, %v1168, 0
  %v1664 = vsel %vm1506, %v1170, 0
  %v1667 = vsel %vm1506, %v1172, 0
  %v1670 = vsel %vm1506, %v1174, 0
  %v1673 = vsel %vm1506, %v1176, 0
  %v1676 = vsel %vm1506, %v1178, 0
  %v1679 = vsel %vm1506, %v1180, 0
  %v1682 = vsel %vm1506, %v1182, 0
  %v1685 = vsel %vm1506, %v1184, 0
  %v1688 = vsel %vm1506, %v1186, 0
  %v1691 = vsel %vm1506, %v1188, 0
  %v1694 = vsel %vm1506, %v1190, 0
  %v1697 = vsel %vm1506, %v1192, 0
  %v1700 = vsel %vm1506, %v1194, 0
  %v1703 = vsel %vm1506, %v1196, 0
  %v1706 = vsel %vm1506, %v1198, 0
  %v1709 = vsel %vm1506, %v1200, 0
  %v1712 = vsel %vm1506, %v1202, 0
  %v1715 = vsel %vm1506, %v1204, 0
  %v1718 = vsel %vm1506, %v1206, 0
  %v1721 = vsel %vm1506, %v1208, 0
  %v1724 = vsel %vm1506, %v1210, 0
  %v1727 = vsel %vm1506, %v1212, 0
  %v1730 = vsel %vm1506, %v1214, 0
  %v1733 = vsel %vm1506, %v1216, 0
  %v1736 = vsel %vm1506, %v1218, 0
  %v1739 = vsel %vm1506, %v1220, 0
  %v1742 = vsel %vm1506, %v1222, 0
  %v1745 = vsel %vm1506, %v1224, 0
  %v1748 = vsel %vm1506, %v1226, 0
  %v1751 = vsel %vm1506, %v1228, 0
  %v1754 = vsel %vm1506, %v1230, 0
  %v1757 = vsel %vm1506, %v1232, 0
  %v1760 = vsel %vm1506, %v1234, 0
  %v1763 = vsel %vm1506, %v1236, 0
  %v1766 = vsel %vm1506, %v1238, 0
  %v1769 = vsel %vm1506, %v1240, 0
  %v1772 = vsel %vm1506, %v1242, 0
  %v1775 = vsel %vm1506, %v1244, 0
  %v1778 = vsel %vm1506, %v1246, 0
  %v1781 = vsel %vm1506, %v1248, 0
  %v1784 = vsel %vm1506, %v1250, 0
  %v1787 = vsel %vm1506, %v1252, 0
  %v1790 = vsel %vm1506, %v1254, 0
  %v1793 = vsel %vm1506, %v1256, 0
  %v1796 = vsel %vm1506, %v1258, 0
  %v1799 = vsel %vm1506, %v1260, 0
  %v1802 = vsel %vm1506, %v1262, 0
  %v1805 = vsel %vm1506, %v1264, 0
  %v1808 = vsel %vm1506, %v1266, 0
  %v1811 = vsel %vm1506, %v1268, 0
  %v1814 = vsel %vm1506, %v1270, 0
  %v1817 = vsel %vm1506, %v1272, 0
  %v1820 = vsel %vm1506, %v1274, 0
  %v1823 = vsel %vm1506, %v1276, 0
  %v1826 = vsel %vm1506, %v1278, 0
  %v1829 = vsel %vm1506, %v1280, 0
  %v1832 = vsel %vm1506, %v1282, 0
  %v1835 = vsel %vm1506, %v1284, 0
  %v1838 = vsel %vm1506, %v1286, 0
  %v1841 = vsel %vm1506, %v1288, 0
  %v1844 = vsel %vm1506, %v1290, 0
  %v1847 = vsel %vm1506, %v1292, 0
  %v1850 = vsel %vm1506, %v1294, 0
  %v1853 = vsel %vm1506, %v1296, 0
  %v1856 = vsel %vm1506, %v1298, 0
  %v1859 = vsel %vm1506, %v1300, 0
  %v1862 = vsel %vm1506, %v1302, 0
  %v1865 = vsel %vm1506, %v1304, 0
  %v1868 = vsel %vm1506, %v1306, 0
  %v1871 = vsel %vm1506, %v1308, 0
  %v1874 = vsel %vm1506, %v1310, 0
  %v1877 = vsel %vm1506, %v1312, 0
  %v1880 = vsel %vm1506, %v1314, 0
  %v1883 = vsel %vm1506, %v1316, 0
  %v1886 = vsel %vm1506, %v1318, 0
  %v1889 = vsel %vm1506, %v1320, 0
  %vm1891 = vcmask 1040384
  %vm1892 = vcmask 1041408
  %v1893 = vsel %vm1891, 4294967295, 65535
  %v1894 = vsel %vm1892, %v1893, 0
  %v1896 = vand.u32 %v1496, %v1894
  %1898 = vmatprep.subr.bf16.mxu0 0
  %1899 = vmatpush1.bf16.msra.mxu0 %v1494
  %1900 = vmatprep.subr.bf16.mxu0 0
  %1901 = vmatpush1.bf16.msra.mxu0 %v1493
  %1902 = vmatprep.subr.bf16.mxu0 0
  %1903 = vmatpush1.bf16.msra.mxu0 %v1492
  %1904 = vmatprep.subr.bf16.mxu0 0
  %1905 = vmatpush1.bf16.msra.mxu0 %v1491
  %1906 = vmatprep.subr.bf16.mxu0 0
  %1907 = vmatpush1.bf16.msra.mxu0 %v1490
  %1908 = vmatprep.subr.bf16.mxu0 0
  %1909 = vmatpush1.bf16.msra.mxu0 %v1489
  %1910 = vmatprep.subr.bf16.mxu0 0
  %1911 = vmatpush1.bf16.msra.mxu0 %v1488
  %1912 = vmatprep.subr.bf16.mxu0 0
  %1913 = vmatpush1.bf16.msra.mxu0 %v1487
  %1914 = vmatprep.subr.bf16.mxu0 0
  %1915 = vmatpush2.bf16.msra.mxu0 0
  %1916 = vmatprep.subr.bf16.mxu0 0
  %1917 = vmatpush2.bf16.msra.mxu0 0
  %1918 = vmatprep.subr.bf16.mxu0 0
  %1919 = vmatpush2.bf16.msra.mxu0 0
  %1920 = vmatprep.subr.bf16.mxu0 0
  %1921 = vmatpush2.bf16.msra.mxu0 0
  %1922 = vmatprep.subr.bf16.mxu0 0
  %1923 = vmatpush2.bf16.msra.mxu0 0
  %1924 = vmatprep.subr.bf16.mxu0 0
  %1925 = vmatpush2.bf16.msra.mxu0 0
  %1926 = vmatprep.subr.bf16.mxu0 0
  %1927 = vmatpush2.bf16.msra.mxu0 %v1896
  %1928 = vmatprep.subr.bf16.mxu0 0
  %1929 = vmatpush2.bf16.msra.mxu0 %v1495
  %1930 = vmatprep.mubr.bf16.mxu0 %v1508
  %1931 = vmatmul.mubr.bf16.gmra.mxu0 %v1065
  %v1932 = vpop.f32.mrf.mxu0
  %v1933 = vadd.f32 %v295, %v1932
  %v1934 = vpop.f32.mrf.mxu0
  %v1935 = vpop.f32.mrf.mxu0
  %v1936 = vadd.f32 %v295, %v1935
  %v1937 = vpop.f32.mrf.mxu0
  %1938 = vmatprep.mubr.bf16.mxu0 %v1511
  %1939 = vmatmul.mubr.bf16.gmra.mxu0 %v1067
  %v1940 = vpop.f32.mrf.mxu0
  %v1941 = vadd.f32 %v295, %v1940
  %v1942 = vpop.f32.mrf.mxu0
  %v1943 = vpop.f32.mrf.mxu0
  %v1944 = vadd.f32 %v295, %v1943
  %v1945 = vpop.f32.mrf.mxu0
  %1946 = vmatprep.mubr.bf16.mxu0 %v1514
  %1947 = vmatmul.mubr.bf16.gmra.mxu0 %v1069
  %v1948 = vpop.f32.mrf.mxu0
  %v1949 = vadd.f32 %v295, %v1948
  %v1950 = vpop.f32.mrf.mxu0
  %v1951 = vpop.f32.mrf.mxu0
  %v1952 = vadd.f32 %v295, %v1951
  %v1953 = vpop.f32.mrf.mxu0
  %1954 = vmatprep.mubr.bf16.mxu0 %v1517
  %1955 = vmatmul.mubr.bf16.gmra.mxu0 %v1071
  %v1956 = vpop.f32.mrf.mxu0
  %v1957 = vadd.f32 %v295, %v1956
  %v1958 = vpop.f32.mrf.mxu0
  %v1959 = vpop.f32.mrf.mxu0
  %v1960 = vadd.f32 %v295, %v1959
  %v1961 = vpop.f32.mrf.mxu0
  %1962 = vmatprep.mubr.bf16.mxu0 %v1520
  %1963 = vmatmul.mubr.bf16.gmra.mxu0 %v1073
  %v1964 = vpop.f32.mrf.mxu0
  %v1965 = vadd.f32 %v295, %v1964
  %v1966 = vpop.f32.mrf.mxu0
  %v1967 = vpop.f32.mrf.mxu0
  %v1968 = vadd.f32 %v295, %v1967
  %v1969 = vpop.f32.mrf.mxu0
  %1970 = vmatprep.mubr.bf16.mxu0 %v1523
  %1971 = vmatmul.mubr.bf16.gmra.mxu0 %v1075
  %v1972 = vpop.f32.mrf.mxu0
  %v1973 = vadd.f32 %v295, %v1972
  %v1974 = vpop.f32.mrf.mxu0
  %v1975 = vpop.f32.mrf.mxu0
  %v1976 = vadd.f32 %v295, %v1975
  %v1977 = vpop.f32.mrf.mxu0
  %1978 = vmatprep.mubr.bf16.mxu0 %v1526
  %1979 = vmatmul.mubr.bf16.gmra.mxu0 %v1077
  %v1980 = vpop.f32.mrf.mxu0
  %v1981 = vadd.f32 %v295, %v1980
  %v1982 = vpop.f32.mrf.mxu0
  %v1983 = vpop.f32.mrf.mxu0
  %v1984 = vadd.f32 %v295, %v1983
  %v1985 = vpop.f32.mrf.mxu0
  %1986 = vmatprep.mubr.bf16.mxu0 %v1529
  %1987 = vmatmul.mubr.bf16.gmra.mxu0 %v1079
  %v1988 = vpop.f32.mrf.mxu0
  %v1989 = vadd.f32 %v295, %v1988
  %v1990 = vpop.f32.mrf.mxu0
  %v1991 = vpop.f32.mrf.mxu0
  %v1992 = vadd.f32 %v295, %v1991
  %v1993 = vpop.f32.mrf.mxu0
  %1994 = vmatprep.mubr.bf16.mxu0 %v1532
  %1995 = vmatmul.mubr.bf16.gmra.mxu0 %v1081
  %v1996 = vpop.f32.mrf.mxu0
  %v1997 = vadd.f32 %v295, %v1996
  %v1998 = vpop.f32.mrf.mxu0
  %v1999 = vpop.f32.mrf.mxu0
  %v2000 = vadd.f32 %v295, %v1999
  %v2001 = vpop.f32.mrf.mxu0
  %2002 = vmatprep.mubr.bf16.mxu0 %v1535
  %2003 = vmatmul.mubr.bf16.gmra.mxu0 %v1083
  %v2004 = vpop.f32.mrf.mxu0
  %v2005 = vadd.f32 %v295, %v2004
  %v2006 = vpop.f32.mrf.mxu0
  %v2007 = vpop.f32.mrf.mxu0
  %v2008 = vadd.f32 %v295, %v2007
  %v2009 = vpop.f32.mrf.mxu0
  %2010 = vmatprep.mubr.bf16.mxu0 %v1538
  %2011 = vmatmul.mubr.bf16.gmra.mxu0 %v1085
  %v2012 = vpop.f32.mrf.mxu0
  %v2013 = vadd.f32 %v295, %v2012
  %v2014 = vpop.f32.mrf.mxu0
  %v2015 = vpop.f32.mrf.mxu0
  %v2016 = vadd.f32 %v295, %v2015
  %v2017 = vpop.f32.mrf.mxu0
  %2018 = vmatprep.mubr.bf16.mxu0 %v1541
  %2019 = vmatmul.mubr.bf16.gmra.mxu0 %v1087
  %v2020 = vpop.f32.mrf.mxu0
  %v2021 = vadd.f32 %v295, %v2020
  %v2022 = vpop.f32.mrf.mxu0
  %v2023 = vpop.f32.mrf.mxu0
  %v2024 = vadd.f32 %v295, %v2023
  %v2025 = vpop.f32.mrf.mxu0
  %2026 = vmatprep.mubr.bf16.mxu0 %v1544
  %2027 = vmatmul.mubr.bf16.gmra.mxu0 %v1089
  %v2028 = vpop.f32.mrf.mxu0
  %v2029 = vadd.f32 %v295, %v2028
  %v2030 = vpop.f32.mrf.mxu0
  %v2031 = vpop.f32.mrf.mxu0
  %v2032 = vadd.f32 %v295, %v2031
  %v2033 = vpop.f32.mrf.mxu0
  %2034 = vmatprep.mubr.bf16.mxu0 %v1547
  %2035 = vmatmul.mubr.bf16.gmra.mxu0 %v1091
  %v2036 = vpop.f32.mrf.mxu0
  %v2037 = vadd.f32 %v295, %v2036
  %v2038 = vpop.f32.mrf.mxu0
  %v2039 = vpop.f32.mrf.mxu0
  %v2040 = vadd.f32 %v295, %v2039
  %v2041 = vpop.f32.mrf.mxu0
  %2042 = vmatprep.mubr.bf16.mxu0 %v1550
  %2043 = vmatmul.mubr.bf16.gmra.mxu0 %v1093
  %v2044 = vpop.f32.mrf.mxu0
  %v2045 = vadd.f32 %v295, %v2044
  %v2046 = vpop.f32.mrf.mxu0
  %v2047 = vpop.f32.mrf.mxu0
  %v2048 = vadd.f32 %v295, %v2047
  %v2049 = vpop.f32.mrf.mxu0
  %2050 = vmatprep.mubr.bf16.mxu0 %v1553
  %2051 = vmatmul.mubr.bf16.gmra.mxu0 %v1095
  %v2052 = vpop.f32.mrf.mxu0
  %v2053 = vadd.f32 %v295, %v2052
  %v2054 = vpop.f32.mrf.mxu0
  %v2055 = vpop.f32.mrf.mxu0
  %v2056 = vadd.f32 %v295, %v2055
  %v2057 = vpop.f32.mrf.mxu0
  %2058 = vmatprep.mubr.bf16.mxu0 %v1556
  %2059 = vmatmul.mubr.bf16.gmra.mxu0 %v1097
  %v2060 = vpop.f32.mrf.mxu0
  %v2061 = vadd.f32 %v295, %v2060
  %v2062 = vpop.f32.mrf.mxu0
  %v2063 = vpop.f32.mrf.mxu0
  %v2064 = vadd.f32 %v295, %v2063
  %v2065 = vpop.f32.mrf.mxu0
  %2066 = vmatprep.mubr.bf16.mxu0 %v1559
  %2067 = vmatmul.mubr.bf16.gmra.mxu0 %v1099
  %v2068 = vpop.f32.mrf.mxu0
  %v2069 = vadd.f32 %v295, %v2068
  %v2070 = vpop.f32.mrf.mxu0
  %v2071 = vpop.f32.mrf.mxu0
  %v2072 = vadd.f32 %v295, %v2071
  %v2073 = vpop.f32.mrf.mxu0
  %2074 = vmatprep.mubr.bf16.mxu0 %v1562
  %2075 = vmatmul.mubr.bf16.gmra.mxu0 %v1101
  %v2076 = vpop.f32.mrf.mxu0
  %v2077 = vadd.f32 %v295, %v2076
  %v2078 = vpop.f32.mrf.mxu0
  %v2079 = vpop.f32.mrf.mxu0
  %v2080 = vadd.f32 %v295, %v2079
  %v2081 = vpop.f32.mrf.mxu0
  %2082 = vmatprep.mubr.bf16.mxu0 %v1565
  %2083 = vmatmul.mubr.bf16.gmra.mxu0 %v1103
  %v2084 = vpop.f32.mrf.mxu0
  %v2085 = vadd.f32 %v295, %v2084
  %v2086 = vpop.f32.mrf.mxu0
  %v2087 = vpop.f32.mrf.mxu0
  %v2088 = vadd.f32 %v295, %v2087
  %v2089 = vpop.f32.mrf.mxu0
  %2090 = vmatprep.mubr.bf16.mxu0 %v1568
  %2091 = vmatmul.mubr.bf16.gmra.mxu0 %v1105
  %v2092 = vpop.f32.mrf.mxu0
  %v2093 = vadd.f32 %v295, %v2092
  %v2094 = vpop.f32.mrf.mxu0
  %v2095 = vpop.f32.mrf.mxu0
  %v2096 = vadd.f32 %v295, %v2095
  %v2097 = vpop.f32.mrf.mxu0
  %2098 = vmatprep.mubr.bf16.mxu0 %v1571
  %2099 = vmatmul.mubr.bf16.gmra.mxu0 %v1107
  %v2100 = vpop.f32.mrf.mxu0
  %v2101 = vadd.f32 %v295, %v2100
  %v2102 = vpop.f32.mrf.mxu0
  %v2103 = vpop.f32.mrf.mxu0
  %v2104 = vadd.f32 %v295, %v2103
  %v2105 = vpop.f32.mrf.mxu0
  %2106 = vmatprep.mubr.bf16.mxu0 %v1574
  %2107 = vmatmul.mubr.bf16.gmra.mxu0 %v1109
  %v2108 = vpop.f32.mrf.mxu0
  %v2109 = vadd.f32 %v295, %v2108
  %v2110 = vpop.f32.mrf.mxu0
  %v2111 = vpop.f32.mrf.mxu0
  %v2112 = vadd.f32 %v295, %v2111
  %v2113 = vpop.f32.mrf.mxu0
  %2114 = vmatprep.mubr.bf16.mxu0 %v1577
  %2115 = vmatmul.mubr.bf16.gmra.mxu0 %v1111
  %v2116 = vpop.f32.mrf.mxu0
  %v2117 = vadd.f32 %v295, %v2116
  %v2118 = vpop.f32.mrf.mxu0
  %v2119 = vpop.f32.mrf.mxu0
  %v2120 = vadd.f32 %v295, %v2119
  %v2121 = vpop.f32.mrf.mxu0
  %2122 = vmatprep.mubr.bf16.mxu0 %v1580
  %2123 = vmatmul.mubr.bf16.gmra.mxu0 %v1113
  %v2124 = vpop.f32.mrf.mxu0
  %v2125 = vadd.f32 %v295, %v2124
  %v2126 = vpop.f32.mrf.mxu0
  %v2127 = vpop.f32.mrf.mxu0
  %v2128 = vadd.f32 %v295, %v2127
  %v2129 = vpop.f32.mrf.mxu0
  %2130 = vmatprep.mubr.bf16.mxu0 %v1583
  %2131 = vmatmul.mubr.bf16.gmra.mxu0 %v1115
  %v2132 = vpop.f32.mrf.mxu0
  %v2133 = vadd.f32 %v295, %v2132
  %v2134 = vpop.f32.mrf.mxu0
  %v2135 = vpop.f32.mrf.mxu0
  %v2136 = vadd.f32 %v295, %v2135
  %v2137 = vpop.f32.mrf.mxu0
  %2138 = vmatprep.mubr.bf16.mxu0 %v1586
  %2139 = vmatmul.mubr.bf16.gmra.mxu0 %v1117
  %v2140 = vpop.f32.mrf.mxu0
  %v2141 = vadd.f32 %v295, %v2140
  %v2142 = vpop.f32.mrf.mxu0
  %v2143 = vpop.f32.mrf.mxu0
  %v2144 = vadd.f32 %v295, %v2143
  %v2145 = vpop.f32.mrf.mxu0
  %2146 = vmatprep.mubr.bf16.mxu0 %v1589
  %2147 = vmatmul.mubr.bf16.gmra.mxu0 %v1119
  %v2148 = vpop.f32.mrf.mxu0
  %v2149 = vadd.f32 %v295, %v2148
  %v2150 = vpop.f32.mrf.mxu0
  %v2151 = vpop.f32.mrf.mxu0
  %v2152 = vadd.f32 %v295, %v2151
  %v2153 = vpop.f32.mrf.mxu0
  %2154 = vmatprep.mubr.bf16.mxu0 %v1592
  %2155 = vmatmul.mubr.bf16.gmra.mxu0 %v1121
  %v2156 = vpop.f32.mrf.mxu0
  %v2157 = vadd.f32 %v295, %v2156
  %v2158 = vpop.f32.mrf.mxu0
  %v2159 = vpop.f32.mrf.mxu0
  %v2160 = vadd.f32 %v295, %v2159
  %v2161 = vpop.f32.mrf.mxu0
  %2162 = vmatprep.mubr.bf16.mxu0 %v1595
  %2163 = vmatmul.mubr.bf16.gmra.mxu0 %v1123
  %v2164 = vpop.f32.mrf.mxu0
  %v2165 = vadd.f32 %v295, %v2164
  %v2166 = vpop.f32.mrf.mxu0
  %v2167 = vpop.f32.mrf.mxu0
  %v2168 = vadd.f32 %v295, %v2167
  %v2169 = vpop.f32.mrf.mxu0
  %2170 = vmatprep.mubr.bf16.mxu0 %v1598
  %2171 = vmatmul.mubr.bf16.gmra.mxu0 %v1125
  %v2172 = vpop.f32.mrf.mxu0
  %v2173 = vadd.f32 %v295, %v2172
  %v2174 = vpop.f32.mrf.mxu0
  %v2175 = vpop.f32.mrf.mxu0
  %v2176 = vadd.f32 %v295, %v2175
  %v2177 = vpop.f32.mrf.mxu0
  %2178 = vmatprep.mubr.bf16.mxu0 %v1601
  %2179 = vmatmul.mubr.bf16.gmra.mxu0 %v1127
  %v2180 = vpop.f32.mrf.mxu0
  %v2181 = vadd.f32 %v295, %v2180
  %v2182 = vpop.f32.mrf.mxu0
  %v2183 = vpop.f32.mrf.mxu0
  %v2184 = vadd.f32 %v295, %v2183
  %v2185 = vpop.f32.mrf.mxu0
  %2186 = vmatprep.mubr.bf16.mxu0 %v1604
  %2187 = vmatmul.mubr.bf16.gmra.mxu0 %v1129
  %v2188 = vpop.f32.mrf.mxu0
  %v2189 = vadd.f32 %v295, %v2188
  %v2190 = vpop.f32.mrf.mxu0
  %v2191 = vpop.f32.mrf.mxu0
  %v2192 = vadd.f32 %v295, %v2191
  %v2193 = vpop.f32.mrf.mxu0
  %2194 = vmatprep.mubr.bf16.mxu0 %v1607
  %2195 = vmatmul.mubr.bf16.gmra.mxu0 %v1131
  %v2196 = vpop.f32.mrf.mxu0
  %v2197 = vadd.f32 %v295, %v2196
  %v2198 = vpop.f32.mrf.mxu0
  %v2199 = vpop.f32.mrf.mxu0
  %v2200 = vadd.f32 %v295, %v2199
  %v2201 = vpop.f32.mrf.mxu0
  %2202 = vmatprep.mubr.bf16.mxu0 %v1610
  %2203 = vmatmul.mubr.bf16.gmra.mxu0 %v1133
  %v2204 = vpop.f32.mrf.mxu0
  %v2205 = vadd.f32 %v295, %v2204
  %v2206 = vpop.f32.mrf.mxu0
  %v2207 = vpop.f32.mrf.mxu0
  %v2208 = vadd.f32 %v295, %v2207
  %v2209 = vpop.f32.mrf.mxu0
  %2210 = vmatprep.mubr.bf16.mxu0 %v1613
  %2211 = vmatmul.mubr.bf16.gmra.mxu0 %v1135
  %v2212 = vpop.f32.mrf.mxu0
  %v2213 = vadd.f32 %v295, %v2212
  %v2214 = vpop.f32.mrf.mxu0
  %v2215 = vpop.f32.mrf.mxu0
  %v2216 = vadd.f32 %v295, %v2215
  %v2217 = vpop.f32.mrf.mxu0
  %2218 = vmatprep.mubr.bf16.mxu0 %v1616
  %2219 = vmatmul.mubr.bf16.gmra.mxu0 %v1137
  %v2220 = vpop.f32.mrf.mxu0
  %v2221 = vadd.f32 %v295, %v2220
  %v2222 = vpop.f32.mrf.mxu0
  %v2223 = vpop.f32.mrf.mxu0
  %v2224 = vadd.f32 %v295, %v2223
  %v2225 = vpop.f32.mrf.mxu0
  %2226 = vmatprep.mubr.bf16.mxu0 %v1619
  %2227 = vmatmul.mubr.bf16.gmra.mxu0 %v1139
  %v2228 = vpop.f32.mrf.mxu0
  %v2229 = vadd.f32 %v295, %v2228
  %v2230 = vpop.f32.mrf.mxu0
  %v2231 = vpop.f32.mrf.mxu0
  %v2232 = vadd.f32 %v295, %v2231
  %v2233 = vpop.f32.mrf.mxu0
  %2234 = vmatprep.mubr.bf16.mxu0 %v1622
  %2235 = vmatmul.mubr.bf16.gmra.mxu0 %v1141
  %v2236 = vpop.f32.mrf.mxu0
  %v2237 = vadd.f32 %v295, %v2236
  %v2238 = vpop.f32.mrf.mxu0
  %v2239 = vpop.f32.mrf.mxu0
  %v2240 = vadd.f32 %v295, %v2239
  %v2241 = vpop.f32.mrf.mxu0
  %2242 = vmatprep.mubr.bf16.mxu0 %v1625
  %2243 = vmatmul.mubr.bf16.gmra.mxu0 %v1143
  %v2244 = vpop.f32.mrf.mxu0
  %v2245 = vadd.f32 %v295, %v2244
  %v2246 = vpop.f32.mrf.mxu0
  %v2247 = vpop.f32.mrf.mxu0
  %v2248 = vadd.f32 %v295, %v2247
  %v2249 = vpop.f32.mrf.mxu0
  %2250 = vmatprep.mubr.bf16.mxu0 %v1628
  %2251 = vmatmul.mubr.bf16.gmra.mxu0 %v1145
  %v2252 = vpop.f32.mrf.mxu0
  %v2253 = vadd.f32 %v295, %v2252
  %v2254 = vpop.f32.mrf.mxu0
  %v2255 = vpop.f32.mrf.mxu0
  %v2256 = vadd.f32 %v295, %v2255
  %v2257 = vpop.f32.mrf.mxu0
  %2258 = vmatprep.mubr.bf16.mxu0 %v1631
  %2259 = vmatmul.mubr.bf16.gmra.mxu0 %v1147
  %v2260 = vpop.f32.mrf.mxu0
  %v2261 = vadd.f32 %v295, %v2260
  %v2262 = vpop.f32.mrf.mxu0
  %v2263 = vpop.f32.mrf.mxu0
  %v2264 = vadd.f32 %v295, %v2263
  %v2265 = vpop.f32.mrf.mxu0
  %2266 = vmatprep.mubr.bf16.mxu0 %v1634
  %2267 = vmatmul.mubr.bf16.gmra.mxu0 %v1149
  %v2268 = vpop.f32.mrf.mxu0
  %v2269 = vadd.f32 %v295, %v2268
  %v2270 = vpop.f32.mrf.mxu0
  %v2271 = vpop.f32.mrf.mxu0
  %v2272 = vadd.f32 %v295, %v2271
  %v2273 = vpop.f32.mrf.mxu0
  %2274 = vmatprep.mubr.bf16.mxu0 %v1637
  %2275 = vmatmul.mubr.bf16.gmra.mxu0 %v1151
  %v2276 = vpop.f32.mrf.mxu0
  %v2277 = vadd.f32 %v295, %v2276
  %v2278 = vpop.f32.mrf.mxu0
  %v2279 = vpop.f32.mrf.mxu0
  %v2280 = vadd.f32 %v295, %v2279
  %v2281 = vpop.f32.mrf.mxu0
  %2282 = vmatprep.mubr.bf16.mxu0 %v1640
  %2283 = vmatmul.mubr.bf16.gmra.mxu0 %v1153
  %v2284 = vpop.f32.mrf.mxu0
  %v2285 = vadd.f32 %v295, %v2284
  %v2286 = vpop.f32.mrf.mxu0
  %v2287 = vpop.f32.mrf.mxu0
  %v2288 = vadd.f32 %v295, %v2287
  %v2289 = vpop.f32.mrf.mxu0
  %2290 = vmatprep.mubr.bf16.mxu0 %v1643
  %2291 = vmatmul.mubr.bf16.gmra.mxu0 %v1155
  %v2292 = vpop.f32.mrf.mxu0
  %v2293 = vadd.f32 %v295, %v2292
  %v2294 = vpop.f32.mrf.mxu0
  %v2295 = vpop.f32.mrf.mxu0
  %v2296 = vadd.f32 %v295, %v2295
  %v2297 = vpop.f32.mrf.mxu0
  %2298 = vmatprep.mubr.bf16.mxu0 %v1646
  %2299 = vmatmul.mubr.bf16.gmra.mxu0 %v1157
  %v2300 = vpop.f32.mrf.mxu0
  %v2301 = vadd.f32 %v295, %v2300
  %v2302 = vpop.f32.mrf.mxu0
  %v2303 = vpop.f32.mrf.mxu0
  %v2304 = vadd.f32 %v295, %v2303
  %v2305 = vpop.f32.mrf.mxu0
  %2306 = vmatprep.mubr.bf16.mxu0 %v1649
  %2307 = vmatmul.mubr.bf16.gmra.mxu0 %v1159
  %v2308 = vpop.f32.mrf.mxu0
  %v2309 = vadd.f32 %v295, %v2308
  %v2310 = vpop.f32.mrf.mxu0
  %v2311 = vpop.f32.mrf.mxu0
  %v2312 = vadd.f32 %v295, %v2311
  %v2313 = vpop.f32.mrf.mxu0
  %2314 = vmatprep.mubr.bf16.mxu0 %v1652
  %2315 = vmatmul.mubr.bf16.gmra.mxu0 %v1161
  %v2316 = vpop.f32.mrf.mxu0
  %v2317 = vadd.f32 %v295, %v2316
  %v2318 = vpop.f32.mrf.mxu0
  %v2319 = vpop.f32.mrf.mxu0
  %v2320 = vadd.f32 %v295, %v2319
  %v2321 = vpop.f32.mrf.mxu0
  %2322 = vmatprep.mubr.bf16.mxu0 %v1655
  %2323 = vmatmul.mubr.bf16.gmra.mxu0 %v1163
  %v2324 = vpop.f32.mrf.mxu0
  %v2325 = vadd.f32 %v295, %v2324
  %v2326 = vpop.f32.mrf.mxu0
  %v2327 = vpop.f32.mrf.mxu0
  %v2328 = vadd.f32 %v295, %v2327
  %v2329 = vpop.f32.mrf.mxu0
  %2330 = vmatprep.mubr.bf16.mxu0 %v1658
  %2331 = vmatmul.mubr.bf16.gmra.mxu0 %v1165
  %v2332 = vpop.f32.mrf.mxu0
  %v2333 = vadd.f32 %v295, %v2332
  %v2334 = vpop.f32.mrf.mxu0
  %v2335 = vpop.f32.mrf.mxu0
  %v2336 = vadd.f32 %v295, %v2335
  %v2337 = vpop.f32.mrf.mxu0
  %2338 = vmatprep.mubr.bf16.mxu0 %v1661
  %2339 = vmatmul.mubr.bf16.gmra.mxu0 %v1167
  %v2340 = vpop.f32.mrf.mxu0
  %v2341 = vadd.f32 %v295, %v2340
  %v2342 = vpop.f32.mrf.mxu0
  %v2343 = vpop.f32.mrf.mxu0
  %v2344 = vadd.f32 %v295, %v2343
  %v2345 = vpop.f32.mrf.mxu0
  %2346 = vmatprep.mubr.bf16.mxu0 %v1664
  %2347 = vmatmul.mubr.bf16.gmra.mxu0 %v1169
  %v2348 = vpop.f32.mrf.mxu0
  %v2349 = vadd.f32 %v295, %v2348
  %v2350 = vpop.f32.mrf.mxu0
  %v2351 = vpop.f32.mrf.mxu0
  %v2352 = vadd.f32 %v295, %v2351
  %v2353 = vpop.f32.mrf.mxu0
  %2354 = vmatprep.mubr.bf16.mxu0 %v1667
  %2355 = vmatmul.mubr.bf16.gmra.mxu0 %v1171
  %v2356 = vpop.f32.mrf.mxu0
  %v2357 = vadd.f32 %v295, %v2356
  %v2358 = vpop.f32.mrf.mxu0
  %v2359 = vpop.f32.mrf.mxu0
  %v2360 = vadd.f32 %v295, %v2359
  %v2361 = vpop.f32.mrf.mxu0
  %2362 = vmatprep.mubr.bf16.mxu0 %v1670
  %2363 = vmatmul.mubr.bf16.gmra.mxu0 %v1173
  %v2364 = vpop.f32.mrf.mxu0
  %v2365 = vadd.f32 %v295, %v2364
  %v2366 = vpop.f32.mrf.mxu0
  %v2367 = vpop.f32.mrf.mxu0
  %v2368 = vadd.f32 %v295, %v2367
  %v2369 = vpop.f32.mrf.mxu0
  %2370 = vmatprep.mubr.bf16.mxu0 %v1673
  %2371 = vmatmul.mubr.bf16.gmra.mxu0 %v1175
  %v2372 = vpop.f32.mrf.mxu0
  %v2373 = vadd.f32 %v295, %v2372
  %v2374 = vpop.f32.mrf.mxu0
  %v2375 = vpop.f32.mrf.mxu0
  %v2376 = vadd.f32 %v295, %v2375
  %v2377 = vpop.f32.mrf.mxu0
  %2378 = vmatprep.mubr.bf16.mxu0 %v1676
  %2379 = vmatmul.mubr.bf16.gmra.mxu0 %v1177
  %v2380 = vpop.f32.mrf.mxu0
  %v2381 = vadd.f32 %v295, %v2380
  %v2382 = vpop.f32.mrf.mxu0
  %v2383 = vpop.f32.mrf.mxu0
  %v2384 = vadd.f32 %v295, %v2383
  %v2385 = vpop.f32.mrf.mxu0
  %2386 = vmatprep.mubr.bf16.mxu0 %v1679
  %2387 = vmatmul.mubr.bf16.gmra.mxu0 %v1179
  %v2388 = vpop.f32.mrf.mxu0
  %v2389 = vadd.f32 %v295, %v2388
  %v2390 = vpop.f32.mrf.mxu0
  %v2391 = vpop.f32.mrf.mxu0
  %v2392 = vadd.f32 %v295, %v2391
  %v2393 = vpop.f32.mrf.mxu0
  %2394 = vmatprep.mubr.bf16.mxu0 %v1682
  %2395 = vmatmul.mubr.bf16.gmra.mxu0 %v1181
  %v2396 = vpop.f32.mrf.mxu0
  %v2397 = vadd.f32 %v295, %v2396
  %v2398 = vpop.f32.mrf.mxu0
  %v2399 = vpop.f32.mrf.mxu0
  %v2400 = vadd.f32 %v295, %v2399
  %v2401 = vpop.f32.mrf.mxu0
  %2402 = vmatprep.mubr.bf16.mxu0 %v1685
  %2403 = vmatmul.mubr.bf16.gmra.mxu0 %v1183
  %v2404 = vpop.f32.mrf.mxu0
  %v2405 = vadd.f32 %v295, %v2404
  %v2406 = vpop.f32.mrf.mxu0
  %v2407 = vpop.f32.mrf.mxu0
  %v2408 = vadd.f32 %v295, %v2407
  %v2409 = vpop.f32.mrf.mxu0
  %2410 = vmatprep.mubr.bf16.mxu0 %v1688
  %2411 = vmatmul.mubr.bf16.gmra.mxu0 %v1185
  %v2412 = vpop.f32.mrf.mxu0
  %v2413 = vadd.f32 %v295, %v2412
  %v2414 = vpop.f32.mrf.mxu0
  %v2415 = vpop.f32.mrf.mxu0
  %v2416 = vadd.f32 %v295, %v2415
  %v2417 = vpop.f32.mrf.mxu0
  %2418 = vmatprep.mubr.bf16.mxu0 %v1691
  %2419 = vmatmul.mubr.bf16.gmra.mxu0 %v1187
  %v2420 = vpop.f32.mrf.mxu0
  %v2421 = vadd.f32 %v295, %v2420
  %v2422 = vpop.f32.mrf.mxu0
  %v2423 = vpop.f32.mrf.mxu0
  %v2424 = vadd.f32 %v295, %v2423
  %v2425 = vpop.f32.mrf.mxu0
  %2426 = vmatprep.mubr.bf16.mxu0 %v1694
  %2427 = vmatmul.mubr.bf16.gmra.mxu0 %v1189
  %v2428 = vpop.f32.mrf.mxu0
  %v2429 = vadd.f32 %v295, %v2428
  %v2430 = vpop.f32.mrf.mxu0
  %v2431 = vpop.f32.mrf.mxu0
  %v2432 = vadd.f32 %v295, %v2431
  %v2433 = vpop.f32.mrf.mxu0
  %2434 = vmatprep.mubr.bf16.mxu0 %v1697
  %2435 = vmatmul.mubr.bf16.gmra.mxu0 %v1191
  %v2436 = vpop.f32.mrf.mxu0
  %v2437 = vadd.f32 %v295, %v2436
  %v2438 = vpop.f32.mrf.mxu0
  %v2439 = vpop.f32.mrf.mxu0
  %v2440 = vadd.f32 %v295, %v2439
  %v2441 = vpop.f32.mrf.mxu0
  %2442 = vmatprep.mubr.bf16.mxu0 %v1700
  %2443 = vmatmul.mubr.bf16.gmra.mxu0 %v1193
  %v2444 = vpop.f32.mrf.mxu0
  %v2445 = vadd.f32 %v295, %v2444
  %v2446 = vpop.f32.mrf.mxu0
  %v2447 = vpop.f32.mrf.mxu0
  %v2448 = vadd.f32 %v295, %v2447
  %v2449 = vpop.f32.mrf.mxu0
  %2450 = vmatprep.mubr.bf16.mxu0 %v1703
  %2451 = vmatmul.mubr.bf16.gmra.mxu0 %v1195
  %v2452 = vpop.f32.mrf.mxu0
  %v2453 = vadd.f32 %v295, %v2452
  %v2454 = vpop.f32.mrf.mxu0
  %v2455 = vpop.f32.mrf.mxu0
  %v2456 = vadd.f32 %v295, %v2455
  %v2457 = vpop.f32.mrf.mxu0
  %2458 = vmatprep.mubr.bf16.mxu0 %v1706
  %2459 = vmatmul.mubr.bf16.gmra.mxu0 %v1197
  %v2460 = vpop.f32.mrf.mxu0
  %v2461 = vadd.f32 %v295, %v2460
  %v2462 = vpop.f32.mrf.mxu0
  %v2463 = vpop.f32.mrf.mxu0
  %v2464 = vadd.f32 %v295, %v2463
  %v2465 = vpop.f32.mrf.mxu0
  %2466 = vmatprep.mubr.bf16.mxu0 %v1709
  %2467 = vmatmul.mubr.bf16.gmra.mxu0 %v1199
  %v2468 = vpop.f32.mrf.mxu0
  %v2469 = vadd.f32 %v295, %v2468
  %v2470 = vpop.f32.mrf.mxu0
  %v2471 = vpop.f32.mrf.mxu0
  %v2472 = vadd.f32 %v295, %v2471
  %v2473 = vpop.f32.mrf.mxu0
  %2474 = vmatprep.mubr.bf16.mxu0 %v1712
  %2475 = vmatmul.mubr.bf16.gmra.mxu0 %v1201
  %v2476 = vpop.f32.mrf.mxu0
  %v2477 = vadd.f32 %v295, %v2476
  %v2478 = vpop.f32.mrf.mxu0
  %v2479 = vpop.f32.mrf.mxu0
  %v2480 = vadd.f32 %v295, %v2479
  %v2481 = vpop.f32.mrf.mxu0
  %2482 = vmatprep.mubr.bf16.mxu0 %v1715
  %2483 = vmatmul.mubr.bf16.gmra.mxu0 %v1203
  %v2484 = vpop.f32.mrf.mxu0
  %v2485 = vadd.f32 %v295, %v2484
  %v2486 = vpop.f32.mrf.mxu0
  %v2487 = vpop.f32.mrf.mxu0
  %v2488 = vadd.f32 %v295, %v2487
  %v2489 = vpop.f32.mrf.mxu0
  %2490 = vmatprep.mubr.bf16.mxu0 %v1718
  %2491 = vmatmul.mubr.bf16.gmra.mxu0 %v1205
  %v2492 = vpop.f32.mrf.mxu0
  %v2493 = vadd.f32 %v295, %v2492
  %v2494 = vpop.f32.mrf.mxu0
  %v2495 = vpop.f32.mrf.mxu0
  %v2496 = vadd.f32 %v295, %v2495
  %v2497 = vpop.f32.mrf.mxu0
  %2498 = vmatprep.mubr.bf16.mxu0 %v1721
  %2499 = vmatmul.mubr.bf16.gmra.mxu0 %v1207
  %v2500 = vpop.f32.mrf.mxu0
  %v2501 = vadd.f32 %v295, %v2500
  %v2502 = vpop.f32.mrf.mxu0
  %v2503 = vpop.f32.mrf.mxu0
  %v2504 = vadd.f32 %v295, %v2503
  %v2505 = vpop.f32.mrf.mxu0
  %2506 = vmatprep.mubr.bf16.mxu0 %v1724
  %2507 = vmatmul.mubr.bf16.gmra.mxu0 %v1209
  %v2508 = vpop.f32.mrf.mxu0
  %v2509 = vadd.f32 %v295, %v2508
  %v2510 = vpop.f32.mrf.mxu0
  %v2511 = vpop.f32.mrf.mxu0
  %v2512 = vadd.f32 %v295, %v2511
  %v2513 = vpop.f32.mrf.mxu0
  %2514 = vmatprep.mubr.bf16.mxu0 %v1727
  %2515 = vmatmul.mubr.bf16.gmra.mxu0 %v1211
  %v2516 = vpop.f32.mrf.mxu0
  %v2517 = vadd.f32 %v295, %v2516
  %v2518 = vpop.f32.mrf.mxu0
  %v2519 = vpop.f32.mrf.mxu0
  %v2520 = vadd.f32 %v295, %v2519
  %v2521 = vpop.f32.mrf.mxu0
  %2522 = vmatprep.mubr.bf16.mxu0 %v1730
  %2523 = vmatmul.mubr.bf16.gmra.mxu0 %v1213
  %v2524 = vpop.f32.mrf.mxu0
  %v2525 = vadd.f32 %v295, %v2524
  %v2526 = vpop.f32.mrf.mxu0
  %v2527 = vpop.f32.mrf.mxu0
  %v2528 = vadd.f32 %v295, %v2527
  %v2529 = vpop.f32.mrf.mxu0
  %2530 = vmatprep.mubr.bf16.mxu0 %v1733
  %2531 = vmatmul.mubr.bf16.gmra.mxu0 %v1215
  %v2532 = vpop.f32.mrf.mxu0
  %v2533 = vadd.f32 %v295, %v2532
  %v2534 = vpop.f32.mrf.mxu0
  %v2535 = vpop.f32.mrf.mxu0
  %v2536 = vadd.f32 %v295, %v2535
  %v2537 = vpop.f32.mrf.mxu0
  %2538 = vmatprep.mubr.bf16.mxu0 %v1736
  %2539 = vmatmul.mubr.bf16.gmra.mxu0 %v1217
  %v2540 = vpop.f32.mrf.mxu0
  %v2541 = vadd.f32 %v295, %v2540
  %v2542 = vpop.f32.mrf.mxu0
  %v2543 = vpop.f32.mrf.mxu0
  %v2544 = vadd.f32 %v295, %v2543
  %v2545 = vpop.f32.mrf.mxu0
  %2546 = vmatprep.mubr.bf16.mxu0 %v1739
  %2547 = vmatmul.mubr.bf16.gmra.mxu0 %v1219
  %v2548 = vpop.f32.mrf.mxu0
  %v2549 = vadd.f32 %v295, %v2548
  %v2550 = vpop.f32.mrf.mxu0
  %v2551 = vpop.f32.mrf.mxu0
  %v2552 = vadd.f32 %v295, %v2551
  %v2553 = vpop.f32.mrf.mxu0
  %2554 = vmatprep.mubr.bf16.mxu0 %v1742
  %2555 = vmatmul.mubr.bf16.gmra.mxu0 %v1221
  %v2556 = vpop.f32.mrf.mxu0
  %v2557 = vadd.f32 %v295, %v2556
  %v2558 = vpop.f32.mrf.mxu0
  %v2559 = vpop.f32.mrf.mxu0
  %v2560 = vadd.f32 %v295, %v2559
  %v2561 = vpop.f32.mrf.mxu0
  %2562 = vmatprep.mubr.bf16.mxu0 %v1745
  %2563 = vmatmul.mubr.bf16.gmra.mxu0 %v1223
  %v2564 = vpop.f32.mrf.mxu0
  %v2565 = vadd.f32 %v295, %v2564
  %v2566 = vpop.f32.mrf.mxu0
  %v2567 = vpop.f32.mrf.mxu0
  %v2568 = vadd.f32 %v295, %v2567
  %v2569 = vpop.f32.mrf.mxu0
  %2570 = vmatprep.mubr.bf16.mxu0 %v1748
  %2571 = vmatmul.mubr.bf16.gmra.mxu0 %v1225
  %v2572 = vpop.f32.mrf.mxu0
  %v2573 = vadd.f32 %v295, %v2572
  %v2574 = vpop.f32.mrf.mxu0
  %v2575 = vpop.f32.mrf.mxu0
  %v2576 = vadd.f32 %v295, %v2575
  %v2577 = vpop.f32.mrf.mxu0
  %2578 = vmatprep.mubr.bf16.mxu0 %v1751
  %2579 = vmatmul.mubr.bf16.gmra.mxu0 %v1227
  %v2580 = vpop.f32.mrf.mxu0
  %v2581 = vadd.f32 %v295, %v2580
  %v2582 = vpop.f32.mrf.mxu0
  %v2583 = vpop.f32.mrf.mxu0
  %v2584 = vadd.f32 %v295, %v2583
  %v2585 = vpop.f32.mrf.mxu0
  %2586 = vmatprep.mubr.bf16.mxu0 %v1754
  %2587 = vmatmul.mubr.bf16.gmra.mxu0 %v1229
  %v2588 = vpop.f32.mrf.mxu0
  %v2589 = vadd.f32 %v295, %v2588
  %v2590 = vpop.f32.mrf.mxu0
  %v2591 = vpop.f32.mrf.mxu0
  %v2592 = vadd.f32 %v295, %v2591
  %v2593 = vpop.f32.mrf.mxu0
  %2594 = vmatprep.mubr.bf16.mxu0 %v1757
  %2595 = vmatmul.mubr.bf16.gmra.mxu0 %v1231
  %v2596 = vpop.f32.mrf.mxu0
  %v2597 = vadd.f32 %v295, %v2596
  %v2598 = vpop.f32.mrf.mxu0
  %v2599 = vpop.f32.mrf.mxu0
  %v2600 = vadd.f32 %v295, %v2599
  %v2601 = vpop.f32.mrf.mxu0
  %2602 = vmatprep.mubr.bf16.mxu0 %v1760
  %2603 = vmatmul.mubr.bf16.gmra.mxu0 %v1233
  %v2604 = vpop.f32.mrf.mxu0
  %v2605 = vadd.f32 %v295, %v2604
  %v2606 = vpop.f32.mrf.mxu0
  %v2607 = vpop.f32.mrf.mxu0
  %v2608 = vadd.f32 %v295, %v2607
  %v2609 = vpop.f32.mrf.mxu0
  %2610 = vmatprep.mubr.bf16.mxu0 %v1763
  %2611 = vmatmul.mubr.bf16.gmra.mxu0 %v1235
  %v2612 = vpop.f32.mrf.mxu0
  %v2613 = vadd.f32 %v295, %v2612
  %v2614 = vpop.f32.mrf.mxu0
  %v2615 = vpop.f32.mrf.mxu0
  %v2616 = vadd.f32 %v295, %v2615
  %v2617 = vpop.f32.mrf.mxu0
  %2618 = vmatprep.mubr.bf16.mxu0 %v1766
  %2619 = vmatmul.mubr.bf16.gmra.mxu0 %v1237
  %v2620 = vpop.f32.mrf.mxu0
  %v2621 = vadd.f32 %v295, %v2620
  %v2622 = vpop.f32.mrf.mxu0
  %v2623 = vpop.f32.mrf.mxu0
  %v2624 = vadd.f32 %v295, %v2623
  %v2625 = vpop.f32.mrf.mxu0
  %2626 = vmatprep.mubr.bf16.mxu0 %v1769
  %2627 = vmatmul.mubr.bf16.gmra.mxu0 %v1239
  %v2628 = vpop.f32.mrf.mxu0
  %v2629 = vadd.f32 %v295, %v2628
  %v2630 = vpop.f32.mrf.mxu0
  %v2631 = vpop.f32.mrf.mxu0
  %v2632 = vadd.f32 %v295, %v2631
  %v2633 = vpop.f32.mrf.mxu0
  %2634 = vmatprep.mubr.bf16.mxu0 %v1772
  %2635 = vmatmul.mubr.bf16.gmra.mxu0 %v1241
  %v2636 = vpop.f32.mrf.mxu0
  %v2637 = vadd.f32 %v295, %v2636
  %v2638 = vpop.f32.mrf.mxu0
  %v2639 = vpop.f32.mrf.mxu0
  %v2640 = vadd.f32 %v295, %v2639
  %v2641 = vpop.f32.mrf.mxu0
  %2642 = vmatprep.mubr.bf16.mxu0 %v1775
  %2643 = vmatmul.mubr.bf16.gmra.mxu0 %v1243
  %v2644 = vpop.f32.mrf.mxu0
  %v2645 = vadd.f32 %v295, %v2644
  %v2646 = vpop.f32.mrf.mxu0
  %v2647 = vpop.f32.mrf.mxu0
  %v2648 = vadd.f32 %v295, %v2647
  %v2649 = vpop.f32.mrf.mxu0
  %2650 = vmatprep.mubr.bf16.mxu0 %v1778
  %2651 = vmatmul.mubr.bf16.gmra.mxu0 %v1245
  %v2652 = vpop.f32.mrf.mxu0
  %v2653 = vadd.f32 %v295, %v2652
  %v2654 = vpop.f32.mrf.mxu0
  %v2655 = vpop.f32.mrf.mxu0
  %v2656 = vadd.f32 %v295, %v2655
  %v2657 = vpop.f32.mrf.mxu0
  %2658 = vmatprep.mubr.bf16.mxu0 %v1781
  %2659 = vmatmul.mubr.bf16.gmra.mxu0 %v1247
  %v2660 = vpop.f32.mrf.mxu0
  %v2661 = vadd.f32 %v295, %v2660
  %v2662 = vpop.f32.mrf.mxu0
  %v2663 = vpop.f32.mrf.mxu0
  %v2664 = vadd.f32 %v295, %v2663
  %v2665 = vpop.f32.mrf.mxu0
  %2666 = vmatprep.mubr.bf16.mxu0 %v1784
  %2667 = vmatmul.mubr.bf16.gmra.mxu0 %v1249
  %v2668 = vpop.f32.mrf.mxu0
  %v2669 = vadd.f32 %v295, %v2668
  %v2670 = vpop.f32.mrf.mxu0
  %v2671 = vpop.f32.mrf.mxu0
  %v2672 = vadd.f32 %v295, %v2671
  %v2673 = vpop.f32.mrf.mxu0
  %2674 = vmatprep.mubr.bf16.mxu0 %v1787
  %2675 = vmatmul.mubr.bf16.gmra.mxu0 %v1251
  %v2676 = vpop.f32.mrf.mxu0
  %v2677 = vadd.f32 %v295, %v2676
  %v2678 = vpop.f32.mrf.mxu0
  %v2679 = vpop.f32.mrf.mxu0
  %v2680 = vadd.f32 %v295, %v2679
  %v2681 = vpop.f32.mrf.mxu0
  %2682 = vmatprep.mubr.bf16.mxu0 %v1790
  %2683 = vmatmul.mubr.bf16.gmra.mxu0 %v1253
  %v2684 = vpop.f32.mrf.mxu0
  %v2685 = vadd.f32 %v295, %v2684
  %v2686 = vpop.f32.mrf.mxu0
  %v2687 = vpop.f32.mrf.mxu0
  %v2688 = vadd.f32 %v295, %v2687
  %v2689 = vpop.f32.mrf.mxu0
  %2690 = vmatprep.mubr.bf16.mxu0 %v1793
  %2691 = vmatmul.mubr.bf16.gmra.mxu0 %v1255
  %v2692 = vpop.f32.mrf.mxu0
  %v2693 = vadd.f32 %v295, %v2692
  %v2694 = vpop.f32.mrf.mxu0
  %v2695 = vpop.f32.mrf.mxu0
  %v2696 = vadd.f32 %v295, %v2695
  %v2697 = vpop.f32.mrf.mxu0
  %2698 = vmatprep.mubr.bf16.mxu0 %v1796
  %2699 = vmatmul.mubr.bf16.gmra.mxu0 %v1257
  %v2700 = vpop.f32.mrf.mxu0
  %v2701 = vadd.f32 %v295, %v2700
  %v2702 = vpop.f32.mrf.mxu0
  %v2703 = vpop.f32.mrf.mxu0
  %v2704 = vadd.f32 %v295, %v2703
  %v2705 = vpop.f32.mrf.mxu0
  %2706 = vmatprep.mubr.bf16.mxu0 %v1799
  %2707 = vmatmul.mubr.bf16.gmra.mxu0 %v1259
  %v2708 = vpop.f32.mrf.mxu0
  %v2709 = vadd.f32 %v295, %v2708
  %v2710 = vpop.f32.mrf.mxu0
  %v2711 = vpop.f32.mrf.mxu0
  %v2712 = vadd.f32 %v295, %v2711
  %v2713 = vpop.f32.mrf.mxu0
  %2714 = vmatprep.mubr.bf16.mxu0 %v1802
  %2715 = vmatmul.mubr.bf16.gmra.mxu0 %v1261
  %v2716 = vpop.f32.mrf.mxu0
  %v2717 = vadd.f32 %v295, %v2716
  %v2718 = vpop.f32.mrf.mxu0
  %v2719 = vpop.f32.mrf.mxu0
  %v2720 = vadd.f32 %v295, %v2719
  %v2721 = vpop.f32.mrf.mxu0
  %2722 = vmatprep.mubr.bf16.mxu0 %v1805
  %2723 = vmatmul.mubr.bf16.gmra.mxu0 %v1263
  %v2724 = vpop.f32.mrf.mxu0
  %v2725 = vadd.f32 %v295, %v2724
  %v2726 = vpop.f32.mrf.mxu0
  %v2727 = vpop.f32.mrf.mxu0
  %v2728 = vadd.f32 %v295, %v2727
  %v2729 = vpop.f32.mrf.mxu0
  %2730 = vmatprep.mubr.bf16.mxu0 %v1808
  %2731 = vmatmul.mubr.bf16.gmra.mxu0 %v1265
  %v2732 = vpop.f32.mrf.mxu0
  %v2733 = vadd.f32 %v295, %v2732
  %v2734 = vpop.f32.mrf.mxu0
  %v2735 = vpop.f32.mrf.mxu0
  %v2736 = vadd.f32 %v295, %v2735
  %v2737 = vpop.f32.mrf.mxu0
  %2738 = vmatprep.mubr.bf16.mxu0 %v1811
  %2739 = vmatmul.mubr.bf16.gmra.mxu0 %v1267
  %v2740 = vpop.f32.mrf.mxu0
  %v2741 = vadd.f32 %v295, %v2740
  %v2742 = vpop.f32.mrf.mxu0
  %v2743 = vpop.f32.mrf.mxu0
  %v2744 = vadd.f32 %v295, %v2743
  %v2745 = vpop.f32.mrf.mxu0
  %2746 = vmatprep.mubr.bf16.mxu0 %v1814
  %2747 = vmatmul.mubr.bf16.gmra.mxu0 %v1269
  %v2748 = vpop.f32.mrf.mxu0
  %v2749 = vadd.f32 %v295, %v2748
  %v2750 = vpop.f32.mrf.mxu0
  %v2751 = vpop.f32.mrf.mxu0
  %v2752 = vadd.f32 %v295, %v2751
  %v2753 = vpop.f32.mrf.mxu0
  %2754 = vmatprep.mubr.bf16.mxu0 %v1817
  %2755 = vmatmul.mubr.bf16.gmra.mxu0 %v1271
  %v2756 = vpop.f32.mrf.mxu0
  %v2757 = vadd.f32 %v295, %v2756
  %v2758 = vpop.f32.mrf.mxu0
  %v2759 = vpop.f32.mrf.mxu0
  %v2760 = vadd.f32 %v295, %v2759
  %v2761 = vpop.f32.mrf.mxu0
  %2762 = vmatprep.mubr.bf16.mxu0 %v1820
  %2763 = vmatmul.mubr.bf16.gmra.mxu0 %v1273
  %v2764 = vpop.f32.mrf.mxu0
  %v2765 = vadd.f32 %v295, %v2764
  %v2766 = vpop.f32.mrf.mxu0
  %v2767 = vpop.f32.mrf.mxu0
  %v2768 = vadd.f32 %v295, %v2767
  %v2769 = vpop.f32.mrf.mxu0
  %2770 = vmatprep.mubr.bf16.mxu0 %v1823
  %2771 = vmatmul.mubr.bf16.gmra.mxu0 %v1275
  %v2772 = vpop.f32.mrf.mxu0
  %v2773 = vadd.f32 %v295, %v2772
  %v2774 = vpop.f32.mrf.mxu0
  %v2775 = vpop.f32.mrf.mxu0
  %v2776 = vadd.f32 %v295, %v2775
  %v2777 = vpop.f32.mrf.mxu0
  %2778 = vmatprep.mubr.bf16.mxu0 %v1826
  %2779 = vmatmul.mubr.bf16.gmra.mxu0 %v1277
  %v2780 = vpop.f32.mrf.mxu0
  %v2781 = vadd.f32 %v295, %v2780
  %v2782 = vpop.f32.mrf.mxu0
  %v2783 = vpop.f32.mrf.mxu0
  %v2784 = vadd.f32 %v295, %v2783
  %v2785 = vpop.f32.mrf.mxu0
  %2786 = vmatprep.mubr.bf16.mxu0 %v1829
  %2787 = vmatmul.mubr.bf16.gmra.mxu0 %v1279
  %v2788 = vpop.f32.mrf.mxu0
  %v2789 = vadd.f32 %v295, %v2788
  %v2790 = vpop.f32.mrf.mxu0
  %v2791 = vpop.f32.mrf.mxu0
  %v2792 = vadd.f32 %v295, %v2791
  %v2793 = vpop.f32.mrf.mxu0
  %2794 = vmatprep.mubr.bf16.mxu0 %v1832
  %2795 = vmatmul.mubr.bf16.gmra.mxu0 %v1281
  %v2796 = vpop.f32.mrf.mxu0
  %v2797 = vadd.f32 %v295, %v2796
  %v2798 = vpop.f32.mrf.mxu0
  %v2799 = vpop.f32.mrf.mxu0
  %v2800 = vadd.f32 %v295, %v2799
  %v2801 = vpop.f32.mrf.mxu0
  %2802 = vmatprep.mubr.bf16.mxu0 %v1835
  %2803 = vmatmul.mubr.bf16.gmra.mxu0 %v1283
  %v2804 = vpop.f32.mrf.mxu0
  %v2805 = vadd.f32 %v295, %v2804
  %v2806 = vpop.f32.mrf.mxu0
  %v2807 = vpop.f32.mrf.mxu0
  %v2808 = vadd.f32 %v295, %v2807
  %v2809 = vpop.f32.mrf.mxu0
  %2810 = vmatprep.mubr.bf16.mxu0 %v1838
  %2811 = vmatmul.mubr.bf16.gmra.mxu0 %v1285
  %v2812 = vpop.f32.mrf.mxu0
  %v2813 = vadd.f32 %v295, %v2812
  %v2814 = vpop.f32.mrf.mxu0
  %v2815 = vpop.f32.mrf.mxu0
  %v2816 = vadd.f32 %v295, %v2815
  %v2817 = vpop.f32.mrf.mxu0
  %2818 = vmatprep.mubr.bf16.mxu0 %v1841
  %2819 = vmatmul.mubr.bf16.gmra.mxu0 %v1287
  %v2820 = vpop.f32.mrf.mxu0
  %v2821 = vadd.f32 %v295, %v2820
  %v2822 = vpop.f32.mrf.mxu0
  %v2823 = vpop.f32.mrf.mxu0
  %v2824 = vadd.f32 %v295, %v2823
  %v2825 = vpop.f32.mrf.mxu0
  %2826 = vmatprep.mubr.bf16.mxu0 %v1844
  %2827 = vmatmul.mubr.bf16.gmra.mxu0 %v1289
  %v2828 = vpop.f32.mrf.mxu0
  %v2829 = vadd.f32 %v295, %v2828
  %v2830 = vpop.f32.mrf.mxu0
  %v2831 = vpop.f32.mrf.mxu0
  %v2832 = vadd.f32 %v295, %v2831
  %v2833 = vpop.f32.mrf.mxu0
  %2834 = vmatprep.mubr.bf16.mxu0 %v1847
  %2835 = vmatmul.mubr.bf16.gmra.mxu0 %v1291
  %v2836 = vpop.f32.mrf.mxu0
  %v2837 = vadd.f32 %v295, %v2836
  %v2838 = vpop.f32.mrf.mxu0
  %v2839 = vpop.f32.mrf.mxu0
  %v2840 = vadd.f32 %v295, %v2839
  %v2841 = vpop.f32.mrf.mxu0
  %2842 = vmatprep.mubr.bf16.mxu0 %v1850
  %2843 = vmatmul.mubr.bf16.gmra.mxu0 %v1293
  %v2844 = vpop.f32.mrf.mxu0
  %v2845 = vadd.f32 %v295, %v2844
  %v2846 = vpop.f32.mrf.mxu0
  %v2847 = vpop.f32.mrf.mxu0
  %v2848 = vadd.f32 %v295, %v2847
  %v2849 = vpop.f32.mrf.mxu0
  %2850 = vmatprep.mubr.bf16.mxu0 %v1853
  %2851 = vmatmul.mubr.bf16.gmra.mxu0 %v1295
  %v2852 = vpop.f32.mrf.mxu0
  %v2853 = vadd.f32 %v295, %v2852
  %v2854 = vpop.f32.mrf.mxu0
  %v2855 = vpop.f32.mrf.mxu0
  %v2856 = vadd.f32 %v295, %v2855
  %v2857 = vpop.f32.mrf.mxu0
  %2858 = vmatprep.mubr.bf16.mxu0 %v1856
  %2859 = vmatmul.mubr.bf16.gmra.mxu0 %v1297
  %v2860 = vpop.f32.mrf.mxu0
  %v2861 = vadd.f32 %v295, %v2860
  %v2862 = vpop.f32.mrf.mxu0
  %v2863 = vpop.f32.mrf.mxu0
  %v2864 = vadd.f32 %v295, %v2863
  %v2865 = vpop.f32.mrf.mxu0
  %2866 = vmatprep.mubr.bf16.mxu0 %v1859
  %2867 = vmatmul.mubr.bf16.gmra.mxu0 %v1299
  %v2868 = vpop.f32.mrf.mxu0
  %v2869 = vadd.f32 %v295, %v2868
  %v2870 = vpop.f32.mrf.mxu0
  %v2871 = vpop.f32.mrf.mxu0
  %v2872 = vadd.f32 %v295, %v2871
  %v2873 = vpop.f32.mrf.mxu0
  %2874 = vmatprep.mubr.bf16.mxu0 %v1862
  %2875 = vmatmul.mubr.bf16.gmra.mxu0 %v1301
  %v2876 = vpop.f32.mrf.mxu0
  %v2877 = vadd.f32 %v295, %v2876
  %v2878 = vpop.f32.mrf.mxu0
  %v2879 = vpop.f32.mrf.mxu0
  %v2880 = vadd.f32 %v295, %v2879
  %v2881 = vpop.f32.mrf.mxu0
  %2882 = vmatprep.mubr.bf16.mxu0 %v1865
  %2883 = vmatmul.mubr.bf16.gmra.mxu0 %v1303
  %v2884 = vpop.f32.mrf.mxu0
  %v2885 = vadd.f32 %v295, %v2884
  %v2886 = vpop.f32.mrf.mxu0
  %v2887 = vpop.f32.mrf.mxu0
  %v2888 = vadd.f32 %v295, %v2887
  %v2889 = vpop.f32.mrf.mxu0
  %2890 = vmatprep.mubr.bf16.mxu0 %v1868
  %2891 = vmatmul.mubr.bf16.gmra.mxu0 %v1305
  %v2892 = vpop.f32.mrf.mxu0
  %v2893 = vadd.f32 %v295, %v2892
  %v2894 = vpop.f32.mrf.mxu0
  %v2895 = vpop.f32.mrf.mxu0
  %v2896 = vadd.f32 %v295, %v2895
  %v2897 = vpop.f32.mrf.mxu0
  %2898 = vmatprep.mubr.bf16.mxu0 %v1871
  %2899 = vmatmul.mubr.bf16.gmra.mxu0 %v1307
  %v2900 = vpop.f32.mrf.mxu0
  %v2901 = vadd.f32 %v295, %v2900
  %v2902 = vpop.f32.mrf.mxu0
  %v2903 = vpop.f32.mrf.mxu0
  %v2904 = vadd.f32 %v295, %v2903
  %v2905 = vpop.f32.mrf.mxu0
  %2906 = vmatprep.mubr.bf16.mxu0 %v1874
  %2907 = vmatmul.mubr.bf16.gmra.mxu0 %v1309
  %v2908 = vpop.f32.mrf.mxu0
  %v2909 = vadd.f32 %v295, %v2908
  %v2910 = vpop.f32.mrf.mxu0
  %v2911 = vpop.f32.mrf.mxu0
  %v2912 = vadd.f32 %v295, %v2911
  %v2913 = vpop.f32.mrf.mxu0
  %2914 = vmatprep.mubr.bf16.mxu0 %v1877
  %2915 = vmatmul.mubr.bf16.gmra.mxu0 %v1311
  %v2916 = vpop.f32.mrf.mxu0
  %v2917 = vadd.f32 %v295, %v2916
  %v2918 = vpop.f32.mrf.mxu0
  %v2919 = vpop.f32.mrf.mxu0
  %v2920 = vadd.f32 %v295, %v2919
  %v2921 = vpop.f32.mrf.mxu0
  %2922 = vmatprep.mubr.bf16.mxu0 %v1880
  %2923 = vmatmul.mubr.bf16.gmra.mxu0 %v1313
  %v2924 = vpop.f32.mrf.mxu0
  %v2925 = vadd.f32 %v295, %v2924
  %v2926 = vpop.f32.mrf.mxu0
  %v2927 = vpop.f32.mrf.mxu0
  %v2928 = vadd.f32 %v295, %v2927
  %v2929 = vpop.f32.mrf.mxu0
  %2930 = vmatprep.mubr.bf16.mxu0 %v1883
  %2931 = vmatmul.mubr.bf16.gmra.mxu0 %v1315
  %v2932 = vpop.f32.mrf.mxu0
  %v2933 = vadd.f32 %v295, %v2932
  %v2934 = vpop.f32.mrf.mxu0
  %v2935 = vpop.f32.mrf.mxu0
  %v2936 = vadd.f32 %v295, %v2935
  %v2937 = vpop.f32.mrf.mxu0
  %2938 = vmatprep.mubr.bf16.mxu0 %v1886
  %2939 = vmatmul.mubr.bf16.gmra.mxu0 %v1317
  %v2940 = vpop.f32.mrf.mxu0
  %v2941 = vadd.f32 %v295, %v2940
  %v2942 = vpop.f32.mrf.mxu0
  %v2943 = vpop.f32.mrf.mxu0
  %v2944 = vadd.f32 %v295, %v2943
  %v2945 = vpop.f32.mrf.mxu0
  %2946 = vmatprep.mubr.bf16.mxu0 %v1889
  %2947 = vmatmul.mubr.bf16.gmra.mxu0 %v1319
  %v2948 = vpop.f32.mrf.mxu0
  %v2949 = vadd.f32 %v295, %v2948
  %v2950 = vpop.f32.mrf.mxu0
  %v2951 = vpop.f32.mrf.mxu0
  %v2952 = vadd.f32 %v295, %v2951
  %v2953 = vpop.f32.mrf.mxu0
  %2954 = vdwg.mxu0
  %v2955 = vmax.f32 %v1933, 0.0
  %v2956 = vmax.f32 %v1936, 0.0
  %v2957 = vmax.f32 %v1941, 0.0
  %v2958 = vmax.f32 %v1944, 0.0
  %v2959 = vmax.f32 %v1949, 0.0
  %v2960 = vmax.f32 %v1952, 0.0
  %v2961 = vmax.f32 %v1957, 0.0
  %v2962 = vmax.f32 %v1960, 0.0
  %v2963 = vmax.f32 %v1965, 0.0
  %v2964 = vmax.f32 %v1968, 0.0
  %v2965 = vmax.f32 %v1973, 0.0
  %v2966 = vmax.f32 %v1976, 0.0
  %v2967 = vmax.f32 %v1981, 0.0
  %v2968 = vmax.f32 %v1984, 0.0
  %v2969 = vmax.f32 %v1989, 0.0
  %v2970 = vmax.f32 %v1992, 0.0
  %v2971 = vmax.f32 %v1997, 0.0
  %v2972 = vmax.f32 %v2000, 0.0
  %v2973 = vmax.f32 %v2005, 0.0
  %v2974 = vmax.f32 %v2008, 0.0
  %v2975 = vmax.f32 %v2013, 0.0
  %v2976 = vmax.f32 %v2016, 0.0
  %v2977 = vmax.f32 %v2021, 0.0
  %v2978 = vmax.f32 %v2024, 0.0
  %v2979 = vmax.f32 %v2029, 0.0
  %v2980 = vmax.f32 %v2032, 0.0
  %v2981 = vmax.f32 %v2037, 0.0
  %v2982 = vmax.f32 %v2040, 0.0
  %v2983 = vmax.f32 %v2045, 0.0
  %v2984 = vmax.f32 %v2048, 0.0
  %v2985 = vmax.f32 %v2053, 0.0
  %v2986 = vmax.f32 %v2056, 0.0
  %v2987 = vmax.f32 %v2061, 0.0
  %v2988 = vmax.f32 %v2064, 0.0
  %v2989 = vmax.f32 %v2069, 0.0
  %v2990 = vmax.f32 %v2072, 0.0
  %v2991 = vmax.f32 %v2077, 0.0
  %v2992 = vmax.f32 %v2080, 0.0
  %v2993 = vmax.f32 %v2085, 0.0
  %v2994 = vmax.f32 %v2088, 0.0
  %v2995 = vmax.f32 %v2093, 0.0
  %v2996 = vmax.f32 %v2096, 0.0
  %v2997 = vmax.f32 %v2101, 0.0
  %v2998 = vmax.f32 %v2104, 0.0
  %v2999 = vmax.f32 %v2109, 0.0
  %v3000 = vmax.f32 %v2112, 0.0
  %v3001 = vmax.f32 %v2117, 0.0
  %v3002 = vmax.f32 %v2120, 0.0
  %v3003 = vmax.f32 %v2125, 0.0
  %v3004 = vmax.f32 %v2128, 0.0
  %v3005 = vmax.f32 %v2133, 0.0
  %v3006 = vmax.f32 %v2136, 0.0
  %v3007 = vmax.f32 %v2141, 0.0
  %v3008 = vmax.f32 %v2144, 0.0
  %v3009 = vmax.f32 %v2149, 0.0
  %v3010 = vmax.f32 %v2152, 0.0
  %v3011 = vmax.f32 %v2157, 0.0
  %v3012 = vmax.f32 %v2160, 0.0
  %v3013 = vmax.f32 %v2165, 0.0
  %v3014 = vmax.f32 %v2168, 0.0
  %v3015 = vmax.f32 %v2173, 0.0
  %v3016 = vmax.f32 %v2176, 0.0
  %v3017 = vmax.f32 %v2181, 0.0
  %v3018 = vmax.f32 %v2184, 0.0
  %v3019 = vmax.f32 %v2189, 0.0
  %v3020 = vmax.f32 %v2192, 0.0
  %v3021 = vmax.f32 %v2197, 0.0
  %v3022 = vmax.f32 %v2200, 0.0
  %v3023 = vmax.f32 %v2205, 0.0
  %v3024 = vmax.f32 %v2208, 0.0
  %v3025 = vmax.f32 %v2213, 0.0
  %v3026 = vmax.f32 %v2216, 0.0
  %v3027 = vmax.f32 %v2221, 0.0
  %v3028 = vmax.f32 %v2224, 0.0
  %v3029 = vmax.f32 %v2229, 0.0
  %v3030 = vmax.f32 %v2232, 0.0
  %v3031 = vmax.f32 %v2237, 0.0
  %v3032 = vmax.f32 %v2240, 0.0
  %v3033 = vmax.f32 %v2245, 0.0
  %v3034 = vmax.f32 %v2248, 0.0
  %v3035 = vmax.f32 %v2253, 0.0
  %v3036 = vmax.f32 %v2256, 0.0
  %v3037 = vmax.f32 %v2261, 0.0
  %v3038 = vmax.f32 %v2264, 0.0
  %v3039 = vmax.f32 %v2269, 0.0
  %v3040 = vmax.f32 %v2272, 0.0
  %v3041 = vmax.f32 %v2277, 0.0
  %v3042 = vmax.f32 %v2280, 0.0
  %v3043 = vmax.f32 %v2285, 0.0
  %v3044 = vmax.f32 %v2288, 0.0
  %v3045 = vmax.f32 %v2293, 0.0
  %v3046 = vmax.f32 %v2296, 0.0
  %v3047 = vmax.f32 %v2301, 0.0
  %v3048 = vmax.f32 %v2304, 0.0
  %v3049 = vmax.f32 %v2309, 0.0
  %v3050 = vmax.f32 %v2312, 0.0
  %v3051 = vmax.f32 %v2317, 0.0
  %v3052 = vmax.f32 %v2320, 0.0
  %v3053 = vmax.f32 %v2325, 0.0
  %v3054 = vmax.f32 %v2328, 0.0
  %v3055 = vmax.f32 %v2333, 0.0
  %v3056 = vmax.f32 %v2336, 0.0
  %v3057 = vmax.f32 %v2341, 0.0
  %v3058 = vmax.f32 %v2344, 0.0
  %v3059 = vmax.f32 %v2349, 0.0
  %v3060 = vmax.f32 %v2352, 0.0
  %v3061 = vmax.f32 %v2357, 0.0
  %v3062 = vmax.f32 %v2360, 0.0
  %v3063 = vmax.f32 %v2365, 0.0
  %v3064 = vmax.f32 %v2368, 0.0
  %v3065 = vmax.f32 %v2373, 0.0
  %v3066 = vmax.f32 %v2376, 0.0
  %v3067 = vmax.f32 %v2381, 0.0
  %v3068 = vmax.f32 %v2384, 0.0
  %v3069 = vmax.f32 %v2389, 0.0
  %v3070 = vmax.f32 %v2392, 0.0
  %v3071 = vmax.f32 %v2397, 0.0
  %v3072 = vmax.f32 %v2400, 0.0
  %v3073 = vmax.f32 %v2405, 0.0
  %v3074 = vmax.f32 %v2408, 0.0
  %v3075 = vmax.f32 %v2413, 0.0
  %v3076 = vmax.f32 %v2416, 0.0
  %v3077 = vmax.f32 %v2421, 0.0
  %v3078 = vmax.f32 %v2424, 0.0
  %v3079 = vmax.f32 %v2429, 0.0
  %v3080 = vmax.f32 %v2432, 0.0
  %v3081 = vmax.f32 %v2437, 0.0
  %v3082 = vmax.f32 %v2440, 0.0
  %v3083 = vmax.f32 %v2445, 0.0
  %v3084 = vmax.f32 %v2448, 0.0
  %v3085 = vmax.f32 %v2453, 0.0
  %v3086 = vmax.f32 %v2456, 0.0
  %v3087 = vmax.f32 %v2461, 0.0
  %v3088 = vmax.f32 %v2464, 0.0
  %v3089 = vmax.f32 %v2469, 0.0
  %v3090 = vmax.f32 %v2472, 0.0
  %v3091 = vmax.f32 %v2477, 0.0
  %v3092 = vmax.f32 %v2480, 0.0
  %v3093 = vmax.f32 %v2485, 0.0
  %v3094 = vmax.f32 %v2488, 0.0
  %v3095 = vmax.f32 %v2493, 0.0
  %v3096 = vmax.f32 %v2496, 0.0
  %v3097 = vmax.f32 %v2501, 0.0
  %v3098 = vmax.f32 %v2504, 0.0
  %v3099 = vmax.f32 %v2509, 0.0
  %v3100 = vmax.f32 %v2512, 0.0
  %v3101 = vmax.f32 %v2517, 0.0
  %v3102 = vmax.f32 %v2520, 0.0
  %v3103 = vmax.f32 %v2525, 0.0
  %v3104 = vmax.f32 %v2528, 0.0
  %v3105 = vmax.f32 %v2533, 0.0
  %v3106 = vmax.f32 %v2536, 0.0
  %v3107 = vmax.f32 %v2541, 0.0
  %v3108 = vmax.f32 %v2544, 0.0
  %v3109 = vmax.f32 %v2549, 0.0
  %v3110 = vmax.f32 %v2552, 0.0
  %v3111 = vmax.f32 %v2557, 0.0
  %v3112 = vmax.f32 %v2560, 0.0
  %v3113 = vmax.f32 %v2565, 0.0
  %v3114 = vmax.f32 %v2568, 0.0
  %v3115 = vmax.f32 %v2573, 0.0
  %v3116 = vmax.f32 %v2576, 0.0
  %v3117 = vmax.f32 %v2581, 0.0
  %v3118 = vmax.f32 %v2584, 0.0
  %v3119 = vmax.f32 %v2589, 0.0
  %v3120 = vmax.f32 %v2592, 0.0
  %v3121 = vmax.f32 %v2597, 0.0
  %v3122 = vmax.f32 %v2600, 0.0
  %v3123 = vmax.f32 %v2605, 0.0
  %v3124 = vmax.f32 %v2608, 0.0
  %v3125 = vmax.f32 %v2613, 0.0
  %v3126 = vmax.f32 %v2616, 0.0
  %v3127 = vmax.f32 %v2621, 0.0
  %v3128 = vmax.f32 %v2624, 0.0
  %v3129 = vmax.f32 %v2629, 0.0
  %v3130 = vmax.f32 %v2632, 0.0
  %v3131 = vmax.f32 %v2637, 0.0
  %v3132 = vmax.f32 %v2640, 0.0
  %v3133 = vmax.f32 %v2645, 0.0
  %v3134 = vmax.f32 %v2648, 0.0
  %v3135 = vmax.f32 %v2653, 0.0
  %v3136 = vmax.f32 %v2656, 0.0
  %v3137 = vmax.f32 %v2661, 0.0
  %v3138 = vmax.f32 %v2664, 0.0
  %v3139 = vmax.f32 %v2669, 0.0
  %v3140 = vmax.f32 %v2672, 0.0
  %v3141 = vmax.f32 %v2677, 0.0
  %v3142 = vmax.f32 %v2680, 0.0
  %v3143 = vmax.f32 %v2685, 0.0
  %v3144 = vmax.f32 %v2688, 0.0
  %v3145 = vmax.f32 %v2693, 0.0
  %v3146 = vmax.f32 %v2696, 0.0
  %v3147 = vmax.f32 %v2701, 0.0
  %v3148 = vmax.f32 %v2704, 0.0
  %v3149 = vmax.f32 %v2709, 0.0
  %v3150 = vmax.f32 %v2712, 0.0
  %v3151 = vmax.f32 %v2717, 0.0
  %v3152 = vmax.f32 %v2720, 0.0
  %v3153 = vmax.f32 %v2725, 0.0
  %v3154 = vmax.f32 %v2728, 0.0
  %v3155 = vmax.f32 %v2733, 0.0
  %v3156 = vmax.f32 %v2736, 0.0
  %v3157 = vmax.f32 %v2741, 0.0
  %v3158 = vmax.f32 %v2744, 0.0
  %v3159 = vmax.f32 %v2749, 0.0
  %v3160 = vmax.f32 %v2752, 0.0
  %v3161 = vmax.f32 %v2757, 0.0
  %v3162 = vmax.f32 %v2760, 0.0
  %v3163 = vmax.f32 %v2765, 0.0
  %v3164 = vmax.f32 %v2768, 0.0
  %v3165 = vmax.f32 %v2773, 0.0
  %v3166 = vmax.f32 %v2776, 0.0
  %v3167 = vmax.f32 %v2781, 0.0
  %v3168 = vmax.f32 %v2784, 0.0
  %v3169 = vmax.f32 %v2789, 0.0
  %v3170 = vmax.f32 %v2792, 0.0
  %v3171 = vmax.f32 %v2797, 0.0
  %v3172 = vmax.f32 %v2800, 0.0
  %v3173 = vmax.f32 %v2805, 0.0
  %v3174 = vmax.f32 %v2808, 0.0
  %v3175 = vmax.f32 %v2813, 0.0
  %v3176 = vmax.f32 %v2816, 0.0
  %v3177 = vmax.f32 %v2821, 0.0
  %v3178 = vmax.f32 %v2824, 0.0
  %v3179 = vmax.f32 %v2829, 0.0
  %v3180 = vmax.f32 %v2832, 0.0
  %v3181 = vmax.f32 %v2837, 0.0
  %v3182 = vmax.f32 %v2840, 0.0
  %v3183 = vmax.f32 %v2845, 0.0
  %v3184 = vmax.f32 %v2848, 0.0
  %v3185 = vmax.f32 %v2853, 0.0
  %v3186 = vmax.f32 %v2856, 0.0
  %v3187 = vmax.f32 %v2861, 0.0
  %v3188 = vmax.f32 %v2864, 0.0
  %v3189 = vmax.f32 %v2869, 0.0
  %v3190 = vmax.f32 %v2872, 0.0
  %v3191 = vmax.f32 %v2877, 0.0
  %v3192 = vmax.f32 %v2880, 0.0
  %v3193 = vmax.f32 %v2885, 0.0
  %v3194 = vmax.f32 %v2888, 0.0
  %v3195 = vmax.f32 %v2893, 0.0
  %v3196 = vmax.f32 %v2896, 0.0
  %v3197 = vmax.f32 %v2901, 0.0
  %v3198 = vmax.f32 %v2904, 0.0
  %v3199 = vmax.f32 %v2909, 0.0
  %v3200 = vmax.f32 %v2912, 0.0
  %v3201 = vmax.f32 %v2917, 0.0
  %v3202 = vmax.f32 %v2920, 0.0
  %v3203 = vmax.f32 %v2925, 0.0
  %v3204 = vmax.f32 %v2928, 0.0
  %v3205 = vmax.f32 %v2933, 0.0
  %v3206 = vmax.f32 %v2936, 0.0
  %v3207 = vmax.f32 %v2941, 0.0
  %v3208 = vmax.f32 %v2944, 0.0
  %v3209 = vmax.f32 %v2949, 0.0
  %v3210 = vmax.f32 %v2952, 0.0
  %v3211 = vpack.c.bf16 %v2956, %v2955
  %v3212 = vpack.c.bf16 %v2958, %v2957
  %v3213 = vpack.c.bf16 %v2960, %v2959
  %v3214 = vpack.c.bf16 %v2962, %v2961
  %v3215 = vpack.c.bf16 %v2964, %v2963
  %v3216 = vpack.c.bf16 %v2966, %v2965
  %v3217 = vpack.c.bf16 %v2968, %v2967
  %v3218 = vpack.c.bf16 %v2970, %v2969
  %v3219 = vpack.c.bf16 %v2972, %v2971
  %v3220 = vpack.c.bf16 %v2974, %v2973
  %v3221 = vpack.c.bf16 %v2976, %v2975
  %v3222 = vpack.c.bf16 %v2978, %v2977
  %v3223 = vpack.c.bf16 %v2980, %v2979
  %v3224 = vpack.c.bf16 %v2982, %v2981
  %v3225 = vpack.c.bf16 %v2984, %v2983
  %v3226 = vpack.c.bf16 %v2986, %v2985
  %v3227 = vpack.c.bf16 %v2988, %v2987
  %v3228 = vpack.c.bf16 %v2990, %v2989
  %v3229 = vpack.c.bf16 %v2992, %v2991
  %v3230 = vpack.c.bf16 %v2994, %v2993
  %v3231 = vpack.c.bf16 %v2996, %v2995
  %v3232 = vpack.c.bf16 %v2998, %v2997
  %v3233 = vpack.c.bf16 %v3000, %v2999
  %v3234 = vpack.c.bf16 %v3002, %v3001
  %v3235 = vpack.c.bf16 %v3004, %v3003
  %v3236 = vpack.c.bf16 %v3006, %v3005
  %v3237 = vpack.c.bf16 %v3008, %v3007
  %v3238 = vpack.c.bf16 %v3010, %v3009
  %v3239 = vpack.c.bf16 %v3012, %v3011
  %v3240 = vpack.c.bf16 %v3014, %v3013
  %v3241 = vpack.c.bf16 %v3016, %v3015
  %v3242 = vpack.c.bf16 %v3018, %v3017
  %v3243 = vpack.c.bf16 %v3020, %v3019
  %v3244 = vpack.c.bf16 %v3022, %v3021
  %v3245 = vpack.c.bf16 %v3024, %v3023
  %v3246 = vpack.c.bf16 %v3026, %v3025
  %v3247 = vpack.c.bf16 %v3028, %v3027
  %v3248 = vpack.c.bf16 %v3030, %v3029
  %v3249 = vpack.c.bf16 %v3032, %v3031
  %v3250 = vpack.c.bf16 %v3034, %v3033
  %v3251 = vpack.c.bf16 %v3036, %v3035
  %v3252 = vpack.c.bf16 %v3038, %v3037
  %v3253 = vpack.c.bf16 %v3040, %v3039
  %v3254 = vpack.c.bf16 %v3042, %v3041
  %v3255 = vpack.c.bf16 %v3044, %v3043
  %v3256 = vpack.c.bf16 %v3046, %v3045
  %v3257 = vpack.c.bf16 %v3048, %v3047
  %v3258 = vpack.c.bf16 %v3050, %v3049
  %v3259 = vpack.c.bf16 %v3052, %v3051
  %v3260 = vpack.c.bf16 %v3054, %v3053
  %v3261 = vpack.c.bf16 %v3056, %v3055
  %v3262 = vpack.c.bf16 %v3058, %v3057
  %v3263 = vpack.c.bf16 %v3060, %v3059
  %v3264 = vpack.c.bf16 %v3062, %v3061
  %v3265 = vpack.c.bf16 %v3064, %v3063
  %v3266 = vpack.c.bf16 %v3066, %v3065
  %v3267 = vpack.c.bf16 %v3068, %v3067
  %v3268 = vpack.c.bf16 %v3070, %v3069
  %v3269 = vpack.c.bf16 %v3072, %v3071
  %v3270 = vpack.c.bf16 %v3074, %v3073
  %v3271 = vpack.c.bf16 %v3076, %v3075
  %v3272 = vpack.c.bf16 %v3078, %v3077
  %v3273 = vpack.c.bf16 %v3080, %v3079
  %v3274 = vpack.c.bf16 %v3082, %v3081
  %v3275 = vpack.c.bf16 %v3084, %v3083
  %v3276 = vpack.c.bf16 %v3086, %v3085
  %v3277 = vpack.c.bf16 %v3088, %v3087
  %v3278 = vpack.c.bf16 %v3090, %v3089
  %v3279 = vpack.c.bf16 %v3092, %v3091
  %v3280 = vpack.c.bf16 %v3094, %v3093
  %v3281 = vpack.c.bf16 %v3096, %v3095
  %v3282 = vpack.c.bf16 %v3098, %v3097
  %v3283 = vpack.c.bf16 %v3100, %v3099
  %v3284 = vpack.c.bf16 %v3102, %v3101
  %v3285 = vpack.c.bf16 %v3104, %v3103
  %v3286 = vpack.c.bf16 %v3106, %v3105
  %v3287 = vpack.c.bf16 %v3108, %v3107
  %v3288 = vpack.c.bf16 %v3110, %v3109
  %v3289 = vpack.c.bf16 %v3112, %v3111
  %v3290 = vpack.c.bf16 %v3114, %v3113
  %v3291 = vpack.c.bf16 %v3116, %v3115
  %v3292 = vpack.c.bf16 %v3118, %v3117
  %v3293 = vpack.c.bf16 %v3120, %v3119
  %v3294 = vpack.c.bf16 %v3122, %v3121
  %v3295 = vpack.c.bf16 %v3124, %v3123
  %v3296 = vpack.c.bf16 %v3126, %v3125
  %v3297 = vpack.c.bf16 %v3128, %v3127
  %v3298 = vpack.c.bf16 %v3130, %v3129
  %v3299 = vpack.c.bf16 %v3132, %v3131
  %v3300 = vpack.c.bf16 %v3134, %v3133
  %v3301 = vpack.c.bf16 %v3136, %v3135
  %v3302 = vpack.c.bf16 %v3138, %v3137
  %v3303 = vpack.c.bf16 %v3140, %v3139
  %v3304 = vpack.c.bf16 %v3142, %v3141
  %v3305 = vpack.c.bf16 %v3144, %v3143
  %v3306 = vpack.c.bf16 %v3146, %v3145
  %v3307 = vpack.c.bf16 %v3148, %v3147
  %v3308 = vpack.c.bf16 %v3150, %v3149
  %v3309 = vpack.c.bf16 %v3152, %v3151
  %v3310 = vpack.c.bf16 %v3154, %v3153
  %v3311 = vpack.c.bf16 %v3156, %v3155
  %v3312 = vpack.c.bf16 %v3158, %v3157
  %v3313 = vpack.c.bf16 %v3160, %v3159
  %v3314 = vpack.c.bf16 %v3162, %v3161
  %v3315 = vpack.c.bf16 %v3164, %v3163
  %v3316 = vpack.c.bf16 %v3166, %v3165
  %v3317 = vpack.c.bf16 %v3168, %v3167
  %v3318 = vpack.c.bf16 %v3170, %v3169
  %v3319 = vpack.c.bf16 %v3172, %v3171
  %v3320 = vpack.c.bf16 %v3174, %v3173
  %v3321 = vpack.c.bf16 %v3176, %v3175
  %v3322 = vpack.c.bf16 %v3178, %v3177
  %v3323 = vpack.c.bf16 %v3180, %v3179
  %v3324 = vpack.c.bf16 %v3182, %v3181
  %v3325 = vpack.c.bf16 %v3184, %v3183
  %v3326 = vpack.c.bf16 %v3186, %v3185
  %v3327 = vpack.c.bf16 %v3188, %v3187
  %v3328 = vpack.c.bf16 %v3190, %v3189
  %v3329 = vpack.c.bf16 %v3192, %v3191
  %v3330 = vpack.c.bf16 %v3194, %v3193
  %v3331 = vpack.c.bf16 %v3196, %v3195
  %v3332 = vpack.c.bf16 %v3198, %v3197
  %v3333 = vpack.c.bf16 %v3200, %v3199
  %v3334 = vpack.c.bf16 %v3202, %v3201
  %v3335 = vpack.c.bf16 %v3204, %v3203
  %v3336 = vpack.c.bf16 %v3206, %v3205
  %v3337 = vpack.c.bf16 %v3208, %v3207
  %v3338 = vpack.c.bf16 %v3210, %v3209
  %v3467 = vunpack.c.l.b16 %v3211
  %v3468 = vunpack.c.h.b16 %v3211
  %v3469 = vunpack.c.l.b16 %v3212
  %v3470 = vunpack.c.h.b16 %v3212
  %v3471 = vunpack.c.l.b16 %v3213
  %v3472 = vunpack.c.h.b16 %v3213
  %v3473 = vunpack.c.l.b16 %v3214
  %v3474 = vunpack.c.h.b16 %v3214
  %v3475 = vunpack.c.l.b16 %v3215
  %v3476 = vunpack.c.h.b16 %v3215
  %v3477 = vunpack.c.l.b16 %v3216
  %v3478 = vunpack.c.h.b16 %v3216
  %v3479 = vunpack.c.l.b16 %v3217
  %v3480 = vunpack.c.h.b16 %v3217
  %v3481 = vunpack.c.l.b16 %v3218
  %v3482 = vunpack.c.h.b16 %v3218
  %v3483 = vunpack.c.l.b16 %v3219
  %v3484 = vunpack.c.h.b16 %v3219
  %v3485 = vunpack.c.l.b16 %v3220
  %v3486 = vunpack.c.h.b16 %v3220
  %v3487 = vunpack.c.l.b16 %v3221
  %v3488 = vunpack.c.h.b16 %v3221
  %v3489 = vunpack.c.l.b16 %v3222
  %v3490 = vunpack.c.h.b16 %v3222
  %v3491 = vunpack.c.l.b16 %v3223
  %v3492 = vunpack.c.h.b16 %v3223
  %v3493 = vunpack.c.l.b16 %v3224
  %v3494 = vunpack.c.h.b16 %v3224
  %v3495 = vunpack.c.l.b16 %v3225
  %v3496 = vunpack.c.h.b16 %v3225
  %v3497 = vunpack.c.l.b16 %v3226
  %v3498 = vunpack.c.h.b16 %v3226
  %v3499 = vunpack.c.l.b16 %v3227
  %v3500 = vunpack.c.h.b16 %v3227
  %v3501 = vunpack.c.l.b16 %v3228
  %v3502 = vunpack.c.h.b16 %v3228
  %v3503 = vunpack.c.l.b16 %v3229
  %v3504 = vunpack.c.h.b16 %v3229
  %v3505 = vunpack.c.l.b16 %v3230
  %v3506 = vunpack.c.h.b16 %v3230
  %v3507 = vunpack.c.l.b16 %v3231
  %v3508 = vunpack.c.h.b16 %v3231
  %v3509 = vunpack.c.l.b16 %v3232
  %v3510 = vunpack.c.h.b16 %v3232
  %v3511 = vunpack.c.l.b16 %v3233
  %v3512 = vunpack.c.h.b16 %v3233
  %v3513 = vunpack.c.l.b16 %v3234
  %v3514 = vunpack.c.h.b16 %v3234
  %v3515 = vunpack.c.l.b16 %v3235
  %v3516 = vunpack.c.h.b16 %v3235
  %v3517 = vunpack.c.l.b16 %v3236
  %v3518 = vunpack.c.h.b16 %v3236
  %v3519 = vunpack.c.l.b16 %v3237
  %v3520 = vunpack.c.h.b16 %v3237
  %v3521 = vunpack.c.l.b16 %v3238
  %v3522 = vunpack.c.h.b16 %v3238
  %v3523 = vunpack.c.l.b16 %v3239
  %v3524 = vunpack.c.h.b16 %v3239
  %v3525 = vunpack.c.l.b16 %v3240
  %v3526 = vunpack.c.h.b16 %v3240
  %v3527 = vunpack.c.l.b16 %v3241
  %v3528 = vunpack.c.h.b16 %v3241
  %v3529 = vunpack.c.l.b16 %v3242
  %v3530 = vunpack.c.h.b16 %v3242
  %v3531 = vunpack.c.l.b16 %v3243
  %v3532 = vunpack.c.h.b16 %v3243
  %v3533 = vunpack.c.l.b16 %v3244
  %v3534 = vunpack.c.h.b16 %v3244
  %v3535 = vunpack.c.l.b16 %v3245
  %v3536 = vunpack.c.h.b16 %v3245
  %v3537 = vunpack.c.l.b16 %v3246
  %v3538 = vunpack.c.h.b16 %v3246
  %v3539 = vunpack.c.l.b16 %v3247
  %v3540 = vunpack.c.h.b16 %v3247
  %v3541 = vunpack.c.l.b16 %v3248
  %v3542 = vunpack.c.h.b16 %v3248
  %v3543 = vunpack.c.l.b16 %v3249
  %v3544 = vunpack.c.h.b16 %v3249
  %v3545 = vunpack.c.l.b16 %v3250
  %v3546 = vunpack.c.h.b16 %v3250
  %v3547 = vunpack.c.l.b16 %v3251
  %v3548 = vunpack.c.h.b16 %v3251
  %v3549 = vunpack.c.l.b16 %v3252
  %v3550 = vunpack.c.h.b16 %v3252
  %v3551 = vunpack.c.l.b16 %v3253
  %v3552 = vunpack.c.h.b16 %v3253
  %v3553 = vunpack.c.l.b16 %v3254
  %v3554 = vunpack.c.h.b16 %v3254
  %v3555 = vunpack.c.l.b16 %v3255
  %v3556 = vunpack.c.h.b16 %v3255
  %v3557 = vunpack.c.l.b16 %v3256
  %v3558 = vunpack.c.h.b16 %v3256
  %v3559 = vunpack.c.l.b16 %v3257
  %v3560 = vunpack.c.h.b16 %v3257
  %v3561 = vunpack.c.l.b16 %v3258
  %v3562 = vunpack.c.h.b16 %v3258
  %v3563 = vunpack.c.l.b16 %v3259
  %v3564 = vunpack.c.h.b16 %v3259
  %v3565 = vunpack.c.l.b16 %v3260
  %v3566 = vunpack.c.h.b16 %v3260
  %v3567 = vunpack.c.l.b16 %v3261
  %v3568 = vunpack.c.h.b16 %v3261
  %v3569 = vunpack.c.l.b16 %v3262
  %v3570 = vunpack.c.h.b16 %v3262
  %v3571 = vunpack.c.l.b16 %v3263
  %v3572 = vunpack.c.h.b16 %v3263
  %v3573 = vunpack.c.l.b16 %v3264
  %v3574 = vunpack.c.h.b16 %v3264
  %v3575 = vunpack.c.l.b16 %v3265
  %v3576 = vunpack.c.h.b16 %v3265
  %v3577 = vunpack.c.l.b16 %v3266
  %v3578 = vunpack.c.h.b16 %v3266
  %v3579 = vunpack.c.l.b16 %v3267
  %v3580 = vunpack.c.h.b16 %v3267
  %v3581 = vunpack.c.l.b16 %v3268
  %v3582 = vunpack.c.h.b16 %v3268
  %v3583 = vunpack.c.l.b16 %v3269
  %v3584 = vunpack.c.h.b16 %v3269
  %v3585 = vunpack.c.l.b16 %v3270
  %v3586 = vunpack.c.h.b16 %v3270
  %v3587 = vunpack.c.l.b16 %v3271
  %v3588 = vunpack.c.h.b16 %v3271
  %v3589 = vunpack.c.l.b16 %v3272
  %v3590 = vunpack.c.h.b16 %v3272
  %v3591 = vunpack.c.l.b16 %v3273
  %v3592 = vunpack.c.h.b16 %v3273
  %v3593 = vunpack.c.l.b16 %v3274
  %v3594 = vunpack.c.h.b16 %v3274
  %v3595 = vunpack.c.l.b16 %v3275
  %v3596 = vunpack.c.h.b16 %v3275
  %v3597 = vunpack.c.l.b16 %v3276
  %v3598 = vunpack.c.h.b16 %v3276
  %v3599 = vunpack.c.l.b16 %v3277
  %v3600 = vunpack.c.h.b16 %v3277
  %v3601 = vunpack.c.l.b16 %v3278
  %v3602 = vunpack.c.h.b16 %v3278
  %v3603 = vunpack.c.l.b16 %v3279
  %v3604 = vunpack.c.h.b16 %v3279
  %v3605 = vunpack.c.l.b16 %v3280
  %v3606 = vunpack.c.h.b16 %v3280
  %v3607 = vunpack.c.l.b16 %v3281
  %v3608 = vunpack.c.h.b16 %v3281
  %v3609 = vunpack.c.l.b16 %v3282
  %v3610 = vunpack.c.h.b16 %v3282
  %v3611 = vunpack.c.l.b16 %v3283
  %v3612 = vunpack.c.h.b16 %v3283
  %v3613 = vunpack.c.l.b16 %v3284
  %v3614 = vunpack.c.h.b16 %v3284
  %v3615 = vunpack.c.l.b16 %v3285
  %v3616 = vunpack.c.h.b16 %v3285
  %v3617 = vunpack.c.l.b16 %v3286
  %v3618 = vunpack.c.h.b16 %v3286
  %v3619 = vunpack.c.l.b16 %v3287
  %v3620 = vunpack.c.h.b16 %v3287
  %v3621 = vunpack.c.l.b16 %v3288
  %v3622 = vunpack.c.h.b16 %v3288
  %v3623 = vunpack.c.l.b16 %v3289
  %v3624 = vunpack.c.h.b16 %v3289
  %v3625 = vunpack.c.l.b16 %v3290
  %v3626 = vunpack.c.h.b16 %v3290
  %v3627 = vunpack.c.l.b16 %v3291
  %v3628 = vunpack.c.h.b16 %v3291
  %v3629 = vunpack.c.l.b16 %v3292
  %v3630 = vunpack.c.h.b16 %v3292
  %v3631 = vunpack.c.l.b16 %v3293
  %v3632 = vunpack.c.h.b16 %v3293
  %v3633 = vunpack.c.l.b16 %v3294
  %v3634 = vunpack.c.h.b16 %v3294
  %v3635 = vunpack.c.l.b16 %v3295
  %v3636 = vunpack.c.h.b16 %v3295
  %v3637 = vunpack.c.l.b16 %v3296
  %v3638 = vunpack.c.h.b16 %v3296
  %v3639 = vunpack.c.l.b16 %v3297
  %v3640 = vunpack.c.h.b16 %v3297
  %v3641 = vunpack.c.l.b16 %v3298
  %v3642 = vunpack.c.h.b16 %v3298
  %v3643 = vunpack.c.l.b16 %v3299
  %v3644 = vunpack.c.h.b16 %v3299
  %v3645 = vunpack.c.l.b16 %v3300
  %v3646 = vunpack.c.h.b16 %v3300
  %v3647 = vunpack.c.l.b16 %v3301
  %v3648 = vunpack.c.h.b16 %v3301
  %v3649 = vunpack.c.l.b16 %v3302
  %v3650 = vunpack.c.h.b16 %v3302
  %v3651 = vunpack.c.l.b16 %v3303
  %v3652 = vunpack.c.h.b16 %v3303
  %v3653 = vunpack.c.l.b16 %v3304
  %v3654 = vunpack.c.h.b16 %v3304
  %v3655 = vunpack.c.l.b16 %v3305
  %v3656 = vunpack.c.h.b16 %v3305
  %v3657 = vunpack.c.l.b16 %v3306
  %v3658 = vunpack.c.h.b16 %v3306
  %v3659 = vunpack.c.l.b16 %v3307
  %v3660 = vunpack.c.h.b16 %v3307
  %v3661 = vunpack.c.l.b16 %v3308
  %v3662 = vunpack.c.h.b16 %v3308
  %v3663 = vunpack.c.l.b16 %v3309
  %v3664 = vunpack.c.h.b16 %v3309
  %v3665 = vunpack.c.l.b16 %v3310
  %v3666 = vunpack.c.h.b16 %v3310
  %v3667 = vunpack.c.l.b16 %v3311
  %v3668 = vunpack.c.h.b16 %v3311
  %v3669 = vunpack.c.l.b16 %v3312
  %v3670 = vunpack.c.h.b16 %v3312
  %v3671 = vunpack.c.l.b16 %v3313
  %v3672 = vunpack.c.h.b16 %v3313
  %v3673 = vunpack.c.l.b16 %v3314
  %v3674 = vunpack.c.h.b16 %v3314
  %v3675 = vunpack.c.l.b16 %v3315
  %v3676 = vunpack.c.h.b16 %v3315
  %v3677 = vunpack.c.l.b16 %v3316
  %v3678 = vunpack.c.h.b16 %v3316
  %v3679 = vunpack.c.l.b16 %v3317
  %v3680 = vunpack.c.h.b16 %v3317
  %v3681 = vunpack.c.l.b16 %v3318
  %v3682 = vunpack.c.h.b16 %v3318
  %v3683 = vunpack.c.l.b16 %v3319
  %v3684 = vunpack.c.h.b16 %v3319
  %v3685 = vunpack.c.l.b16 %v3320
  %v3686 = vunpack.c.h.b16 %v3320
  %v3687 = vunpack.c.l.b16 %v3321
  %v3688 = vunpack.c.h.b16 %v3321
  %v3689 = vunpack.c.l.b16 %v3322
  %v3690 = vunpack.c.h.b16 %v3322
  %v3691 = vunpack.c.l.b16 %v3323
  %v3692 = vunpack.c.h.b16 %v3323
  %v3693 = vunpack.c.l.b16 %v3324
  %v3694 = vunpack.c.h.b16 %v3324
  %v3695 = vunpack.c.l.b16 %v3325
  %v3696 = vunpack.c.h.b16 %v3325
  %v3697 = vunpack.c.l.b16 %v3326
  %v3698 = vunpack.c.h.b16 %v3326
  %v3699 = vunpack.c.l.b16 %v3327
  %v3700 = vunpack.c.h.b16 %v3327
  %v3701 = vunpack.c.l.b16 %v3328
  %v3702 = vunpack.c.h.b16 %v3328
  %v3703 = vunpack.c.l.b16 %v3329
  %v3704 = vunpack.c.h.b16 %v3329
  %v3705 = vunpack.c.l.b16 %v3330
  %v3706 = vunpack.c.h.b16 %v3330
  %v3707 = vunpack.c.l.b16 %v3331
  %v3708 = vunpack.c.h.b16 %v3331
  %v3709 = vunpack.c.l.b16 %v3332
  %v3710 = vunpack.c.h.b16 %v3332
  %v3711 = vunpack.c.l.b16 %v3333
  %v3712 = vunpack.c.h.b16 %v3333
  %v3713 = vunpack.c.l.b16 %v3334
  %v3714 = vunpack.c.h.b16 %v3334
  %v3715 = vunpack.c.l.b16 %v3335
  %v3716 = vunpack.c.h.b16 %v3335
  %v3717 = vunpack.c.l.b16 %v3336
  %v3718 = vunpack.c.h.b16 %v3336
  %v3719 = vunpack.c.l.b16 %v3337
  %v3720 = vunpack.c.h.b16 %v3337
  %v3721 = vunpack.c.l.b16 %v3338
  %v3722 = vunpack.c.h.b16 %v3338
  %v3723 = vpack.c.b16 %v3467, %v3467
  %v3724 = vpack.c.b16 %v3468, %v3468
  %v3725 = vpack.c.b16 %v3469, %v3469
  %v3726 = vpack.c.b16 %v3470, %v3470
  %v3727 = vpack.c.b16 %v3471, %v3471
  %v3728 = vpack.c.b16 %v3472, %v3472
  %v3729 = vpack.c.b16 %v3473, %v3473
  %v3730 = vpack.c.b16 %v3474, %v3474
  %v3731 = vpack.c.b16 %v3475, %v3475
  %v3732 = vpack.c.b16 %v3476, %v3476
  %v3733 = vpack.c.b16 %v3477, %v3477
  %v3734 = vpack.c.b16 %v3478, %v3478
  %v3735 = vpack.c.b16 %v3479, %v3479
  %v3736 = vpack.c.b16 %v3480, %v3480
  %v3737 = vpack.c.b16 %v3481, %v3481
  %v3738 = vpack.c.b16 %v3482, %v3482
  %v3739 = vpack.c.b16 %v3483, %v3483
  %v3740 = vpack.c.b16 %v3484, %v3484
  %v3741 = vpack.c.b16 %v3485, %v3485
  %v3742 = vpack.c.b16 %v3486, %v3486
  %v3743 = vpack.c.b16 %v3487, %v3487
  %v3744 = vpack.c.b16 %v3488, %v3488
  %v3745 = vpack.c.b16 %v3489, %v3489
  %v3746 = vpack.c.b16 %v3490, %v3490
  %v3747 = vpack.c.b16 %v3491, %v3491
  %v3748 = vpack.c.b16 %v3492, %v3492
  %v3749 = vpack.c.b16 %v3493, %v3493
  %v3750 = vpack.c.b16 %v3494, %v3494
  %v3751 = vpack.c.b16 %v3495, %v3495
  %v3752 = vpack.c.b16 %v3496, %v3496
  %v3753 = vpack.c.b16 %v3497, %v3497
  %v3754 = vpack.c.b16 %v3498, %v3498
  %v3755 = vpack.c.b16 %v3499, %v3499
  %v3756 = vpack.c.b16 %v3500, %v3500
  %v3757 = vpack.c.b16 %v3501, %v3501
  %v3758 = vpack.c.b16 %v3502, %v3502
  %v3759 = vpack.c.b16 %v3503, %v3503
  %v3760 = vpack.c.b16 %v3504, %v3504
  %v3761 = vpack.c.b16 %v3505, %v3505
  %v3762 = vpack.c.b16 %v3506, %v3506
  %v3763 = vpack.c.b16 %v3507, %v3507
  %v3764 = vpack.c.b16 %v3508, %v3508
  %v3765 = vpack.c.b16 %v3509, %v3509
  %v3766 = vpack.c.b16 %v3510, %v3510
  %v3767 = vpack.c.b16 %v3511, %v3511
  %v3768 = vpack.c.b16 %v3512, %v3512
  %v3769 = vpack.c.b16 %v3513, %v3513
  %v3770 = vpack.c.b16 %v3514, %v3514
  %v3771 = vpack.c.b16 %v3515, %v3515
  %v3772 = vpack.c.b16 %v3516, %v3516
  %v3773 = vpack.c.b16 %v3517, %v3517
  %v3774 = vpack.c.b16 %v3518, %v3518
  %v3775 = vpack.c.b16 %v3519, %v3519
  %v3776 = vpack.c.b16 %v3520, %v3520
  %v3777 = vpack.c.b16 %v3521, %v3521
  %v3778 = vpack.c.b16 %v3522, %v3522
  %v3779 = vpack.c.b16 %v3523, %v3523
  %v3780 = vpack.c.b16 %v3524, %v3524
  %v3781 = vpack.c.b16 %v3525, %v3525
  %v3782 = vpack.c.b16 %v3526, %v3526
  %v3783 = vpack.c.b16 %v3527, %v3527
  %v3784 = vpack.c.b16 %v3528, %v3528
  %v3785 = vpack.c.b16 %v3529, %v3529
  %v3786 = vpack.c.b16 %v3530, %v3530
  %v3787 = vpack.c.b16 %v3531, %v3531
  %v3788 = vpack.c.b16 %v3532, %v3532
  %v3789 = vpack.c.b16 %v3533, %v3533
  %v3790 = vpack.c.b16 %v3534, %v3534
  %v3791 = vpack.c.b16 %v3535, %v3535
  %v3792 = vpack.c.b16 %v3536, %v3536
  %v3793 = vpack.c.b16 %v3537, %v3537
  %v3794 = vpack.c.b16 %v3538, %v3538
  %v3795 = vpack.c.b16 %v3539, %v3539
  %v3796 = vpack.c.b16 %v3540, %v3540
  %v3797 = vpack.c.b16 %v3541, %v3541
  %v3798 = vpack.c.b16 %v3542, %v3542
  %v3799 = vpack.c.b16 %v3543, %v3543
  %v3800 = vpack.c.b16 %v3544, %v3544
  %v3801 = vpack.c.b16 %v3545, %v3545
  %v3802 = vpack.c.b16 %v3546, %v3546
  %v3803 = vpack.c.b16 %v3547, %v3547
  %v3804 = vpack.c.b16 %v3548, %v3548
  %v3805 = vpack.c.b16 %v3549, %v3549
  %v3806 = vpack.c.b16 %v3550, %v3550
  %v3807 = vpack.c.b16 %v3551, %v3551
  %v3808 = vpack.c.b16 %v3552, %v3552
  %v3809 = vpack.c.b16 %v3553, %v3553
  %v3810 = vpack.c.b16 %v3554, %v3554
  %v3811 = vpack.c.b16 %v3555, %v3555
  %v3812 = vpack.c.b16 %v3556, %v3556
  %v3813 = vpack.c.b16 %v3557, %v3557
  %v3814 = vpack.c.b16 %v3558, %v3558
  %v3815 = vpack.c.b16 %v3559, %v3559
  %v3816 = vpack.c.b16 %v3560, %v3560
  %v3817 = vpack.c.b16 %v3561, %v3561
  %v3818 = vpack.c.b16 %v3562, %v3562
  %v3819 = vpack.c.b16 %v3563, %v3563
  %v3820 = vpack.c.b16 %v3564, %v3564
  %v3821 = vpack.c.b16 %v3565, %v3565
  %v3822 = vpack.c.b16 %v3566, %v3566
  %v3823 = vpack.c.b16 %v3567, %v3567
  %v3824 = vpack.c.b16 %v3568, %v3568
  %v3825 = vpack.c.b16 %v3569, %v3569
  %v3826 = vpack.c.b16 %v3570, %v3570
  %v3827 = vpack.c.b16 %v3571, %v3571
  %v3828 = vpack.c.b16 %v3572, %v3572
  %v3829 = vpack.c.b16 %v3573, %v3573
  %v3830 = vpack.c.b16 %v3574, %v3574
  %v3831 = vpack.c.b16 %v3575, %v3575
  %v3832 = vpack.c.b16 %v3576, %v3576
  %v3833 = vpack.c.b16 %v3577, %v3577
  %v3834 = vpack.c.b16 %v3578, %v3578
  %v3835 = vpack.c.b16 %v3579, %v3579
  %v3836 = vpack.c.b16 %v3580, %v3580
  %v3837 = vpack.c.b16 %v3581, %v3581
  %v3838 = vpack.c.b16 %v3582, %v3582
  %v3839 = vpack.c.b16 %v3583, %v3583
  %v3840 = vpack.c.b16 %v3584, %v3584
  %v3841 = vpack.c.b16 %v3585, %v3585
  %v3842 = vpack.c.b16 %v3586, %v3586
  %v3843 = vpack.c.b16 %v3587, %v3587
  %v3844 = vpack.c.b16 %v3588, %v3588
  %v3845 = vpack.c.b16 %v3589, %v3589
  %v3846 = vpack.c.b16 %v3590, %v3590
  %v3847 = vpack.c.b16 %v3591, %v3591
  %v3848 = vpack.c.b16 %v3592, %v3592
  %v3849 = vpack.c.b16 %v3593, %v3593
  %v3850 = vpack.c.b16 %v3594, %v3594
  %v3851 = vpack.c.b16 %v3595, %v3595
  %v3852 = vpack.c.b16 %v3596, %v3596
  %v3853 = vpack.c.b16 %v3597, %v3597
  %v3854 = vpack.c.b16 %v3598, %v3598
  %v3855 = vpack.c.b16 %v3599, %v3599
  %v3856 = vpack.c.b16 %v3600, %v3600
  %v3857 = vpack.c.b16 %v3601, %v3601
  %v3858 = vpack.c.b16 %v3602, %v3602
  %v3859 = vpack.c.b16 %v3603, %v3603
  %v3860 = vpack.c.b16 %v3604, %v3604
  %v3861 = vpack.c.b16 %v3605, %v3605
  %v3862 = vpack.c.b16 %v3606, %v3606
  %v3863 = vpack.c.b16 %v3607, %v3607
  %v3864 = vpack.c.b16 %v3608, %v3608
  %v3865 = vpack.c.b16 %v3609, %v3609
  %v3866 = vpack.c.b16 %v3610, %v3610
  %v3867 = vpack.c.b16 %v3611, %v3611
  %v3868 = vpack.c.b16 %v3612, %v3612
  %v3869 = vpack.c.b16 %v3613, %v3613
  %v3870 = vpack.c.b16 %v3614, %v3614
  %v3871 = vpack.c.b16 %v3615, %v3615
  %v3872 = vpack.c.b16 %v3616, %v3616
  %v3873 = vpack.c.b16 %v3617, %v3617
  %v3874 = vpack.c.b16 %v3618, %v3618
  %v3875 = vpack.c.b16 %v3619, %v3619
  %v3876 = vpack.c.b16 %v3620, %v3620
  %v3877 = vpack.c.b16 %v3621, %v3621
  %v3878 = vpack.c.b16 %v3622, %v3622
  %v3879 = vpack.c.b16 %v3623, %v3623
  %v3880 = vpack.c.b16 %v3624, %v3624
  %v3881 = vpack.c.b16 %v3625, %v3625
  %v3882 = vpack.c.b16 %v3626, %v3626
  %v3883 = vpack.c.b16 %v3627, %v3627
  %v3884 = vpack.c.b16 %v3628, %v3628
  %v3885 = vpack.c.b16 %v3629, %v3629
  %v3886 = vpack.c.b16 %v3630, %v3630
  %v3887 = vpack.c.b16 %v3631, %v3631
  %v3888 = vpack.c.b16 %v3632, %v3632
  %v3889 = vpack.c.b16 %v3633, %v3633
  %v3890 = vpack.c.b16 %v3634, %v3634
  %v3891 = vpack.c.b16 %v3635, %v3635
  %v3892 = vpack.c.b16 %v3636, %v3636
  %v3893 = vpack.c.b16 %v3637, %v3637
  %v3894 = vpack.c.b16 %v3638, %v3638
  %v3895 = vpack.c.b16 %v3639, %v3639
  %v3896 = vpack.c.b16 %v3640, %v3640
  %v3897 = vpack.c.b16 %v3641, %v3641
  %v3898 = vpack.c.b16 %v3642, %v3642
  %v3899 = vpack.c.b16 %v3643, %v3643
  %v3900 = vpack.c.b16 %v3644, %v3644
  %v3901 = vpack.c.b16 %v3645, %v3645
  %v3902 = vpack.c.b16 %v3646, %v3646
  %v3903 = vpack.c.b16 %v3647, %v3647
  %v3904 = vpack.c.b16 %v3648, %v3648
  %v3905 = vpack.c.b16 %v3649, %v3649
  %v3906 = vpack.c.b16 %v3650, %v3650
  %v3907 = vpack.c.b16 %v3651, %v3651
  %v3908 = vpack.c.b16 %v3652, %v3652
  %v3909 = vpack.c.b16 %v3653, %v3653
  %v3910 = vpack.c.b16 %v3654, %v3654
  %v3911 = vpack.c.b16 %v3655, %v3655
  %v3912 = vpack.c.b16 %v3656, %v3656
  %v3913 = vpack.c.b16 %v3657, %v3657
  %v3914 = vpack.c.b16 %v3658, %v3658
  %v3915 = vpack.c.b16 %v3659, %v3659
  %v3916 = vpack.c.b16 %v3660, %v3660
  %v3917 = vpack.c.b16 %v3661, %v3661
  %v3918 = vpack.c.b16 %v3662, %v3662
  %v3919 = vpack.c.b16 %v3663, %v3663
  %v3920 = vpack.c.b16 %v3664, %v3664
  %v3921 = vpack.c.b16 %v3665, %v3665
  %v3922 = vpack.c.b16 %v3666, %v3666
  %v3923 = vpack.c.b16 %v3667, %v3667
  %v3924 = vpack.c.b16 %v3668, %v3668
  %v3925 = vpack.c.b16 %v3669, %v3669
  %v3926 = vpack.c.b16 %v3670, %v3670
  %v3927 = vpack.c.b16 %v3671, %v3671
  %v3928 = vpack.c.b16 %v3672, %v3672
  %v3929 = vpack.c.b16 %v3673, %v3673
  %v3930 = vpack.c.b16 %v3674, %v3674
  %v3931 = vpack.c.b16 %v3675, %v3675
  %v3932 = vpack.c.b16 %v3676, %v3676
  %v3933 = vpack.c.b16 %v3677, %v3677
  %v3934 = vpack.c.b16 %v3678, %v3678
  %v3935 = vpack.c.b16 %v3679, %v3679
  %v3936 = vpack.c.b16 %v3680, %v3680
  %v3937 = vpack.c.b16 %v3681, %v3681
  %v3938 = vpack.c.b16 %v3682, %v3682
  %v3939 = vpack.c.b16 %v3683, %v3683
  %v3940 = vpack.c.b16 %v3684, %v3684
  %v3941 = vpack.c.b16 %v3685, %v3685
  %v3942 = vpack.c.b16 %v3686, %v3686
  %v3943 = vpack.c.b16 %v3687, %v3687
  %v3944 = vpack.c.b16 %v3688, %v3688
  %v3945 = vpack.c.b16 %v3689, %v3689
  %v3946 = vpack.c.b16 %v3690, %v3690
  %v3947 = vpack.c.b16 %v3691, %v3691
  %v3948 = vpack.c.b16 %v3692, %v3692
  %v3949 = vpack.c.b16 %v3693, %v3693
  %v3950 = vpack.c.b16 %v3694, %v3694
  %v3951 = vpack.c.b16 %v3695, %v3695
  %v3952 = vpack.c.b16 %v3696, %v3696
  %v3953 = vpack.c.b16 %v3697, %v3697
  %v3954 = vpack.c.b16 %v3698, %v3698
  %v3955 = vpack.c.b16 %v3699, %v3699
  %v3956 = vpack.c.b16 %v3700, %v3700
  %v3957 = vpack.c.b16 %v3701, %v3701
  %v3958 = vpack.c.b16 %v3702, %v3702
  %v3959 = vpack.c.b16 %v3703, %v3703
  %v3960 = vpack.c.b16 %v3704, %v3704
  %v3961 = vpack.c.b16 %v3705, %v3705
  %v3962 = vpack.c.b16 %v3706, %v3706
  %v3963 = vpack.c.b16 %v3707, %v3707
  %v3964 = vpack.c.b16 %v3708, %v3708
  %v3965 = vpack.c.b16 %v3709, %v3709
  %v3966 = vpack.c.b16 %v3710, %v3710
  %v3967 = vpack.c.b16 %v3711, %v3711
  %v3968 = vpack.c.b16 %v3712, %v3712
  %v3969 = vpack.c.b16 %v3713, %v3713
  %v3970 = vpack.c.b16 %v3714, %v3714
  %v3971 = vpack.c.b16 %v3715, %v3715
  %v3972 = vpack.c.b16 %v3716, %v3716
  %v3973 = vpack.c.b16 %v3717, %v3717
  %v3974 = vpack.c.b16 %v3718, %v3718
  %v3975 = vpack.c.b16 %v3719, %v3719
  %v3976 = vpack.c.b16 %v3720, %v3720
  %v3977 = vpack.c.b16 %v3721, %v3721
  %v3978 = vpack.c.b16 %v3722, %v3722
  %4235 = vst [vmem:[%s3] sm:$0xf] %v3723
  %4236 = vst [vmem:[%s3 + $0x4] sm:$0xf] %v3724
  %4237 = vst [vmem:[%s3 + $0x8] sm:$0xf] %v3725
  %4238 = vst [vmem:[%s3 + $0xc] sm:$0xf] %v3726
  %4239 = vst [vmem:[%s3 + $0x10] sm:$0xf] %v3727
  %4240 = vst [vmem:[%s3 + $0x14] sm:$0xf] %v3728
  %4241 = vst [vmem:[%s3 + $0x18] sm:$0xf] %v3729
  %4242 = vst [vmem:[%s3 + $0x1c] sm:$0xf] %v3730
  %4243 = vst [vmem:[%s3 + $0x20] sm:$0xf] %v3731
  %4244 = vst [vmem:[%s3 + $0x24] sm:$0xf] %v3732
  %4245 = vst [vmem:[%s3 + $0x28] sm:$0xf] %v3733
  %4246 = vst [vmem:[%s3 + $0x2c] sm:$0xf] %v3734
  %4247 = vst [vmem:[%s3 + $0x30] sm:$0xf] %v3735
  %4248 = vst [vmem:[%s3 + $0x34] sm:$0xf] %v3736
  %4249 = vst [vmem:[%s3 + $0x38] sm:$0xf] %v3737
  %4250 = vst [vmem:[%s3 + $0x3c] sm:$0xf] %v3738
  %4251 = vst [vmem:[%s3 + $0x40] sm:$0xf] %v3739
  %4252 = vst [vmem:[%s3 + $0x44] sm:$0xf] %v3740
  %4253 = vst [vmem:[%s3 + $0x48] sm:$0xf] %v3741
  %4254 = vst [vmem:[%s3 + $0x4c] sm:$0xf] %v3742
  %4255 = vst [vmem:[%s3 + $0x50] sm:$0xf] %v3743
  %4256 = vst [vmem:[%s3 + $0x54] sm:$0xf] %v3744
  %4257 = vst [vmem:[%s3 + $0x58] sm:$0xf] %v3745
  %4258 = vst [vmem:[%s3 + $0x5c] sm:$0xf] %v3746
  %4259 = vst [vmem:[%s3 + $0x60] sm:$0xf] %v3747
  %4260 = vst [vmem:[%s3 + $0x64] sm:$0xf] %v3748
  %4261 = vst [vmem:[%s3 + $0x68] sm:$0xf] %v3749
  %4262 = vst [vmem:[%s3 + $0x6c] sm:$0xf] %v3750
  %4263 = vst [vmem:[%s3 + $0x70] sm:$0xf] %v3751
  %4264 = vst [vmem:[%s3 + $0x74] sm:$0xf] %v3752
  %4265 = vst [vmem:[%s3 + $0x78] sm:$0xf] %v3753
  %4266 = vst [vmem:[%s3 + $0x7c] sm:$0xf] %v3754
  %4267 = vst [vmem:[%s3 + $0x80] sm:$0xf] %v3755
  %4268 = vst [vmem:[%s3 + $0x84] sm:$0xf] %v3756
  %4269 = vst [vmem:[%s3 + $0x88] sm:$0xf] %v3757
  %4270 = vst [vmem:[%s3 + $0x8c] sm:$0xf] %v3758
  %4271 = vst [vmem:[%s3 + $0x90] sm:$0xf] %v3759
  %4272 = vst [vmem:[%s3 + $0x94] sm:$0xf] %v3760
  %4273 = vst [vmem:[%s3 + $0x98] sm:$0xf] %v3761
  %4274 = vst [vmem:[%s3 + $0x9c] sm:$0xf] %v3762
  %4275 = vst [vmem:[%s3 + $0xa0] sm:$0xf] %v3763
  %4276 = vst [vmem:[%s3 + $0xa4] sm:$0xf] %v3764
  %4277 = vst [vmem:[%s3 + $0xa8] sm:$0xf] %v3765
  %4278 = vst [vmem:[%s3 + $0xac] sm:$0xf] %v3766
  %4279 = vst [vmem:[%s3 + $0xb0] sm:$0xf] %v3767
  %4280 = vst [vmem:[%s3 + $0xb4] sm:$0xf] %v3768
  %4281 = vst [vmem:[%s3 + $0xb8] sm:$0xf] %v3769
  %4282 = vst [vmem:[%s3 + $0xbc] sm:$0xf] %v3770
  %4283 = vst [vmem:[%s3 + $0xc0] sm:$0xf] %v3771
  %4284 = vst [vmem:[%s3 + $0xc4] sm:$0xf] %v3772
  %4285 = vst [vmem:[%s3 + $0xc8] sm:$0xf] %v3773
  %4286 = vst [vmem:[%s3 + $0xcc] sm:$0xf] %v3774
  %4287 = vst [vmem:[%s3 + $0xd0] sm:$0xf] %v3775
  %4288 = vst [vmem:[%s3 + $0xd4] sm:$0xf] %v3776
  %4289 = vst [vmem:[%s3 + $0xd8] sm:$0xf] %v3777
  %4290 = vst [vmem:[%s3 + $0xdc] sm:$0xf] %v3778
  %4291 = vst [vmem:[%s3 + $0xe0] sm:$0xf] %v3779
  %4292 = vst [vmem:[%s3 + $0xe4] sm:$0xf] %v3780
  %4293 = vst [vmem:[%s3 + $0xe8] sm:$0xf] %v3781
  %4294 = vst [vmem:[%s3 + $0xec] sm:$0xf] %v3782
  %4295 = vst [vmem:[%s3 + $0xf0] sm:$0xf] %v3783
  %4296 = vst [vmem:[%s3 + $0xf4] sm:$0xf] %v3784
  %4297 = vst [vmem:[%s3 + $0xf8] sm:$0xf] %v3785
  %4298 = vst [vmem:[%s3 + $0xfc] sm:$0xf] %v3786
  %4299 = vst [vmem:[%s3 + $0x100] sm:$0xf] %v3787
  %4300 = vst [vmem:[%s3 + $0x104] sm:$0xf] %v3788
  %4301 = vst [vmem:[%s3 + $0x108] sm:$0xf] %v3789
  %4302 = vst [vmem:[%s3 + $0x10c] sm:$0xf] %v3790
  %4303 = vst [vmem:[%s3 + $0x110] sm:$0xf] %v3791
  %4304 = vst [vmem:[%s3 + $0x114] sm:$0xf] %v3792
  %4305 = vst [vmem:[%s3 + $0x118] sm:$0xf] %v3793
  %4306 = vst [vmem:[%s3 + $0x11c] sm:$0xf] %v3794
  %4307 = vst [vmem:[%s3 + $0x120] sm:$0xf] %v3795
  %4308 = vst [vmem:[%s3 + $0x124] sm:$0xf] %v3796
  %4309 = vst [vmem:[%s3 + $0x128] sm:$0xf] %v3797
  %4310 = vst [vmem:[%s3 + $0x12c] sm:$0xf] %v3798
  %4311 = vst [vmem:[%s3 + $0x130] sm:$0xf] %v3799
  %4312 = vst [vmem:[%s3 + $0x134] sm:$0xf] %v3800
  %4313 = vst [vmem:[%s3 + $0x138] sm:$0xf] %v3801
  %4314 = vst [vmem:[%s3 + $0x13c] sm:$0xf] %v3802
  %4315 = vst [vmem:[%s3 + $0x140] sm:$0xf] %v3803
  %4316 = vst [vmem:[%s3 + $0x144] sm:$0xf] %v3804
  %4317 = vst [vmem:[%s3 + $0x148] sm:$0xf] %v3805
  %4318 = vst [vmem:[%s3 + $0x14c] sm:$0xf] %v3806
  %4319 = vst [vmem:[%s3 + $0x150] sm:$0xf] %v3807
  %4320 = vst [vmem:[%s3 + $0x154] sm:$0xf] %v3808
  %4321 = vst [vmem:[%s3 + $0x158] sm:$0xf] %v3809
  %4322 = vst [vmem:[%s3 + $0x15c] sm:$0xf] %v3810
  %4323 = vst [vmem:[%s3 + $0x160] sm:$0xf] %v3811
  %4324 = vst [vmem:[%s3 + $0x164] sm:$0xf] %v3812
  %4325 = vst [vmem:[%s3 + $0x168] sm:$0xf] %v3813
  %4326 = vst [vmem:[%s3 + $0x16c] sm:$0xf] %v3814
  %4327 = vst [vmem:[%s3 + $0x170] sm:$0xf] %v3815
  %4328 = vst [vmem:[%s3 + $0x174] sm:$0xf] %v3816
  %4329 = vst [vmem:[%s3 + $0x178] sm:$0xf] %v3817
  %4330 = vst [vmem:[%s3 + $0x17c] sm:$0xf] %v3818
  %4331 = vst [vmem:[%s3 + $0x180] sm:$0xf] %v3819
  %4332 = vst [vmem:[%s3 + $0x184] sm:$0xf] %v3820
  %4333 = vst [vmem:[%s3 + $0x188] sm:$0xf] %v3821
  %4334 = vst [vmem:[%s3 + $0x18c] sm:$0xf] %v3822
  %4335 = vst [vmem:[%s3 + $0x190] sm:$0xf] %v3823
  %4336 = vst [vmem:[%s3 + $0x194] sm:$0xf] %v3824
  %4337 = vst [vmem:[%s3 + $0x198] sm:$0xf] %v3825
  %4338 = vst [vmem:[%s3 + $0x19c] sm:$0xf] %v3826
  %4339 = vst [vmem:[%s3 + $0x1a0] sm:$0xf] %v3827
  %4340 = vst [vmem:[%s3 + $0x1a4] sm:$0xf] %v3828
  %4341 = vst [vmem:[%s3 + $0x1a8] sm:$0xf] %v3829
  %4342 = vst [vmem:[%s3 + $0x1ac] sm:$0xf] %v3830
  %4343 = vst [vmem:[%s3 + $0x1b0] sm:$0xf] %v3831
  %4344 = vst [vmem:[%s3 + $0x1b4] sm:$0xf] %v3832
  %4345 = vst [vmem:[%s3 + $0x1b8] sm:$0xf] %v3833
  %4346 = vst [vmem:[%s3 + $0x1bc] sm:$0xf] %v3834
  %4347 = vst [vmem:[%s3 + $0x1c0] sm:$0xf] %v3835
  %4348 = vst [vmem:[%s3 + $0x1c4] sm:$0xf] %v3836
  %4349 = vst [vmem:[%s3 + $0x1c8] sm:$0xf] %v3837
  %4350 = vst [vmem:[%s3 + $0x1cc] sm:$0xf] %v3838
  %4351 = vst [vmem:[%s3 + $0x1d0] sm:$0xf] %v3839
  %4352 = vst [vmem:[%s3 + $0x1d4] sm:$0xf] %v3840
  %4353 = vst [vmem:[%s3 + $0x1d8] sm:$0xf] %v3841
  %4354 = vst [vmem:[%s3 + $0x1dc] sm:$0xf] %v3842
  %4355 = vst [vmem:[%s3 + $0x1e0] sm:$0xf] %v3843
  %4356 = vst [vmem:[%s3 + $0x1e4] sm:$0xf] %v3844
  %4357 = vst [vmem:[%s3 + $0x1e8] sm:$0xf] %v3845
  %4358 = vst [vmem:[%s3 + $0x1ec] sm:$0xf] %v3846
  %4359 = vst [vmem:[%s3 + $0x1f0] sm:$0xf] %v3847
  %4360 = vst [vmem:[%s3 + $0x1f4] sm:$0xf] %v3848
  %4361 = vst [vmem:[%s3 + $0x1f8] sm:$0xf] %v3849
  %4362 = vst [vmem:[%s3 + $0x1fc] sm:$0xf] %v3850
  %4363 = vst [vmem:[%s3 + $0x200] sm:$0xf] %v3851
  %4364 = vst [vmem:[%s3 + $0x204] sm:$0xf] %v3852
  %4365 = vst [vmem:[%s3 + $0x208] sm:$0xf] %v3853
  %4366 = vst [vmem:[%s3 + $0x20c] sm:$0xf] %v3854
  %4367 = vst [vmem:[%s3 + $0x210] sm:$0xf] %v3855
  %4368 = vst [vmem:[%s3 + $0x214] sm:$0xf] %v3856
  %4369 = vst [vmem:[%s3 + $0x218] sm:$0xf] %v3857
  %4370 = vst [vmem:[%s3 + $0x21c] sm:$0xf] %v3858
  %4371 = vst [vmem:[%s3 + $0x220] sm:$0xf] %v3859
  %4372 = vst [vmem:[%s3 + $0x224] sm:$0xf] %v3860
  %4373 = vst [vmem:[%s3 + $0x228] sm:$0xf] %v3861
  %4374 = vst [vmem:[%s3 + $0x22c] sm:$0xf] %v3862
  %4375 = vst [vmem:[%s3 + $0x230] sm:$0xf] %v3863
  %4376 = vst [vmem:[%s3 + $0x234] sm:$0xf] %v3864
  %4377 = vst [vmem:[%s3 + $0x238] sm:$0xf] %v3865
  %4378 = vst [vmem:[%s3 + $0x23c] sm:$0xf] %v3866
  %4379 = vst [vmem:[%s3 + $0x240] sm:$0xf] %v3867
  %4380 = vst [vmem:[%s3 + $0x244] sm:$0xf] %v3868
  %4381 = vst [vmem:[%s3 + $0x248] sm:$0xf] %v3869
  %4382 = vst [vmem:[%s3 + $0x24c] sm:$0xf] %v3870
  %4383 = vst [vmem:[%s3 + $0x250] sm:$0xf] %v3871
  %4384 = vst [vmem:[%s3 + $0x254] sm:$0xf] %v3872
  %4385 = vst [vmem:[%s3 + $0x258] sm:$0xf] %v3873
  %4386 = vst [vmem:[%s3 + $0x25c] sm:$0xf] %v3874
  %4387 = vst [vmem:[%s3 + $0x260] sm:$0xf] %v3875
  %4388 = vst [vmem:[%s3 + $0x264] sm:$0xf] %v3876
  %4389 = vst [vmem:[%s3 + $0x268] sm:$0xf] %v3877
  %4390 = vst [vmem:[%s3 + $0x26c] sm:$0xf] %v3878
  %4391 = vst [vmem:[%s3 + $0x270] sm:$0xf] %v3879
  %4392 = vst [vmem:[%s3 + $0x274] sm:$0xf] %v3880
  %4393 = vst [vmem:[%s3 + $0x278] sm:$0xf] %v3881
  %4394 = vst [vmem:[%s3 + $0x27c] sm:$0xf] %v3882
  %4395 = vst [vmem:[%s3 + $0x280] sm:$0xf] %v3883
  %4396 = vst [vmem:[%s3 + $0x284] sm:$0xf] %v3884
  %4397 = vst [vmem:[%s3 + $0x288] sm:$0xf] %v3885
  %4398 = vst [vmem:[%s3 + $0x28c] sm:$0xf] %v3886
  %4399 = vst [vmem:[%s3 + $0x290] sm:$0xf] %v3887
  %4400 = vst [vmem:[%s3 + $0x294] sm:$0xf] %v3888
  %4401 = vst [vmem:[%s3 + $0x298] sm:$0xf] %v3889
  %4402 = vst [vmem:[%s3 + $0x29c] sm:$0xf] %v3890
  %4403 = vst [vmem:[%s3 + $0x2a0] sm:$0xf] %v3891
  %4404 = vst [vmem:[%s3 + $0x2a4] sm:$0xf] %v3892
  %4405 = vst [vmem:[%s3 + $0x2a8] sm:$0xf] %v3893
  %4406 = vst [vmem:[%s3 + $0x2ac] sm:$0xf] %v3894
  %4407 = vst [vmem:[%s3 + $0x2b0] sm:$0xf] %v3895
  %4408 = vst [vmem:[%s3 + $0x2b4] sm:$0xf] %v3896
  %4409 = vst [vmem:[%s3 + $0x2b8] sm:$0xf] %v3897
  %4410 = vst [vmem:[%s3 + $0x2bc] sm:$0xf] %v3898
  %4411 = vst [vmem:[%s3 + $0x2c0] sm:$0xf] %v3899
  %4412 = vst [vmem:[%s3 + $0x2c4] sm:$0xf] %v3900
  %4413 = vst [vmem:[%s3 + $0x2c8] sm:$0xf] %v3901
  %4414 = vst [vmem:[%s3 + $0x2cc] sm:$0xf] %v3902
  %4415 = vst [vmem:[%s3 + $0x2d0] sm:$0xf] %v3903
  %4416 = vst [vmem:[%s3 + $0x2d4] sm:$0xf] %v3904
  %4417 = vst [vmem:[%s3 + $0x2d8] sm:$0xf] %v3905
  %4418 = vst [vmem:[%s3 + $0x2dc] sm:$0xf] %v3906
  %4419 = vst [vmem:[%s3 + $0x2e0] sm:$0xf] %v3907
  %4420 = vst [vmem:[%s3 + $0x2e4] sm:$0xf] %v3908
  %4421 = vst [vmem:[%s3 + $0x2e8] sm:$0xf] %v3909
  %4422 = vst [vmem:[%s3 + $0x2ec] sm:$0xf] %v3910
  %4423 = vst [vmem:[%s3 + $0x2f0] sm:$0xf] %v3911
  %4424 = vst [vmem:[%s3 + $0x2f4] sm:$0xf] %v3912
  %4425 = vst [vmem:[%s3 + $0x2f8] sm:$0xf] %v3913
  %4426 = vst [vmem:[%s3 + $0x2fc] sm:$0xf] %v3914
  %4427 = vst [vmem:[%s3 + $0x300] sm:$0xf] %v3915
  %4428 = vst [vmem:[%s3 + $0x304] sm:$0xf] %v3916
  %4429 = vst [vmem:[%s3 + $0x308] sm:$0xf] %v3917
  %4430 = vst [vmem:[%s3 + $0x30c] sm:$0xf] %v3918
  %4431 = vst [vmem:[%s3 + $0x310] sm:$0xf] %v3919
  %4432 = vst [vmem:[%s3 + $0x314] sm:$0xf] %v3920
  %4433 = vst [vmem:[%s3 + $0x318] sm:$0xf] %v3921
  %4434 = vst [vmem:[%s3 + $0x31c] sm:$0xf] %v3922
  %4435 = vst [vmem:[%s3 + $0x320] sm:$0xf] %v3923
  %4436 = vst [vmem:[%s3 + $0x324] sm:$0xf] %v3924
  %4437 = vst [vmem:[%s3 + $0x328] sm:$0xf] %v3925
  %4438 = vst [vmem:[%s3 + $0x32c] sm:$0xf] %v3926
  %4439 = vst [vmem:[%s3 + $0x330] sm:$0xf] %v3927
  %4440 = vst [vmem:[%s3 + $0x334] sm:$0xf] %v3928
  %4441 = vst [vmem:[%s3 + $0x338] sm:$0xf] %v3929
  %4442 = vst [vmem:[%s3 + $0x33c] sm:$0xf] %v3930
  %4443 = vst [vmem:[%s3 + $0x340] sm:$0xf] %v3931
  %4444 = vst [vmem:[%s3 + $0x344] sm:$0xf] %v3932
  %4445 = vst [vmem:[%s3 + $0x348] sm:$0xf] %v3933
  %4446 = vst [vmem:[%s3 + $0x34c] sm:$0xf] %v3934
  %4447 = vst [vmem:[%s3 + $0x350] sm:$0xf] %v3935
  %4448 = vst [vmem:[%s3 + $0x354] sm:$0xf] %v3936
  %4449 = vst [vmem:[%s3 + $0x358] sm:$0xf] %v3937
  %4450 = vst [vmem:[%s3 + $0x35c] sm:$0xf] %v3938
  %4451 = vst [vmem:[%s3 + $0x360] sm:$0xf] %v3939
  %4452 = vst [vmem:[%s3 + $0x364] sm:$0xf] %v3940
  %4453 = vst [vmem:[%s3 + $0x368] sm:$0xf] %v3941
  %4454 = vst [vmem:[%s3 + $0x36c] sm:$0xf] %v3942
  %4455 = vst [vmem:[%s3 + $0x370] sm:$0xf] %v3943
  %4456 = vst [vmem:[%s3 + $0x374] sm:$0xf] %v3944
  %4457 = vst [vmem:[%s3 + $0x378] sm:$0xf] %v3945
  %4458 = vst [vmem:[%s3 + $0x37c] sm:$0xf] %v3946
  %4459 = vst [vmem:[%s3 + $0x380] sm:$0xf] %v3947
  %4460 = vst [vmem:[%s3 + $0x384] sm:$0xf] %v3948
  %4461 = vst [vmem:[%s3 + $0x388] sm:$0xf] %v3949
  %4462 = vst [vmem:[%s3 + $0x38c] sm:$0xf] %v3950
  %4463 = vst [vmem:[%s3 + $0x390] sm:$0xf] %v3951
  %4464 = vst [vmem:[%s3 + $0x394] sm:$0xf] %v3952
  %4465 = vst [vmem:[%s3 + $0x398] sm:$0xf] %v3953
  %4466 = vst [vmem:[%s3 + $0x39c] sm:$0xf] %v3954
  %4467 = vst [vmem:[%s3 + $0x3a0] sm:$0xf] %v3955
  %4468 = vst [vmem:[%s3 + $0x3a4] sm:$0xf] %v3956
  %4469 = vst [vmem:[%s3 + $0x3a8] sm:$0xf] %v3957
  %4470 = vst [vmem:[%s3 + $0x3ac] sm:$0xf] %v3958
  %4471 = vst [vmem:[%s3 + $0x3b0] sm:$0xf] %v3959
  %4472 = vst [vmem:[%s3 + $0x3b4] sm:$0xf] %v3960
  %4473 = vst [vmem:[%s3 + $0x3b8] sm:$0xf] %v3961
  %4474 = vst [vmem:[%s3 + $0x3bc] sm:$0xf] %v3962
  %4475 = vst [vmem:[%s3 + $0x3c0] sm:$0xf] %v3963
  %4476 = vst [vmem:[%s3 + $0x3c4] sm:$0xf] %v3964
  %4477 = vst [vmem:[%s3 + $0x3c8] sm:$0xf] %v3965
  %4478 = vst [vmem:[%s3 + $0x3cc] sm:$0xf] %v3966
  %4479 = vst [vmem:[%s3 + $0x3d0] sm:$0xf] %v3967
  %4480 = vst [vmem:[%s3 + $0x3d4] sm:$0xf] %v3968
  %4481 = vst [vmem:[%s3 + $0x3d8] sm:$0xf] %v3969
  %4482 = vst [vmem:[%s3 + $0x3dc] sm:$0xf] %v3970
  %4483 = vst [vmem:[%s3 + $0x3e0] sm:$0xf] %v3971
  %4484 = vst [vmem:[%s3 + $0x3e4] sm:$0xf] %v3972
  %4485 = vst [vmem:[%s3 + $0x3e8] sm:$0xf] %v3973
  %4486 = vst [vmem:[%s3 + $0x3ec] sm:$0xf] %v3974
  %4487 = vst [vmem:[%s3 + $0x3f0] sm:$0xf] %v3975
  %4488 = vst [vmem:[%s3 + $0x3f4] sm:$0xf] %v3976
  %4489 = vst [vmem:[%s3 + $0x3f8] sm:$0xf] %v3977
  %4490 = vst [vmem:[%s3 + $0x3fc] sm:$0xf] %v3978
  // Predicated region
  $region14: #{custom_googlenet_forward.8} parent=0 // pred_check
    _
  $region15: #{custom_googlenet_forward.8} parent=0 // pred_check_branch
    %4492 = sbr.rel (0) target = $region17
  $region16: #{custom_googlenet_forward.8} parent=0 // pred_region
    _
  $region17: #{custom_googlenet_forward.8} parent=0 // pred_fallthru
    _
  // Predicated region
  $region18: #{custom_googlenet_forward.8} parent=0 // pred_check
    _
  $region19: #{custom_googlenet_forward.8} parent=0 // pred_check_branch
    %4494 = sbr.rel (0) target = $region21
  $region20: #{custom_googlenet_forward.8} parent=0 // pred_region
    _
  $region21: #{custom_googlenet_forward.8} parent=0 // pred_fallthru
    _

// kernel: custom_googlenet_forward.10
$region0: #{custom_googlenet_forward.10}
  #allocation0 [shape = 'u32[]', space=smem, size = 0x4, offset = 0x4, fixed_abs, tag = 'smem constant byte address 0x4 - core index']
  #allocation1 [shape = 'u32[144,128]{1,0:T(1,128)}', space=vmem, size = 0x12000, scoped, tag = 'internal scratch']
  %s0 = inlined_call_operand.vmem [shape: bf16[9,128,128], index: 0, kind: input, shape index: {}]
  %s1 = inlined_call_operand.vmem [shape: bf16[128,128], index: 1, kind: output, shape index: {}]
  %s2 = sld [smem:[#allocation0]]
  $region14: #{custom_googlenet_forward.10} parent=0
    _
  %s4 = ssub.s32 1, %s2
  %s5 = scalar_select 0, %s4, %s2
  // Predicated region
  $region2: #{custom_googlenet_forward.10} parent=0 // pred_check
    _
  $region3: #{custom_googlenet_forward.10} parent=0 // pred_check_branch
    %7 = sbr.rel (0) target = $region5
  $region4: #{custom_googlenet_forward.10} parent=0 // pred_region
    _
  $region5: #{custom_googlenet_forward.10} parent=0 // pred_fallthru
    _
  %v9 = vld [vmem:[%s0] sm:$0xf]
  %v10 = vld [vmem:[%s0 + $0x4] sm:$0xf]
  %v11 = vld [vmem:[%s0 + $0x8] sm:$0xf]
  %v12 = vld [vmem:[%s0 + $0xc] sm:$0xf]
  %v13 = vld [vmem:[%s0 + $0x10] sm:$0xf]
  %v14 = vld [vmem:[%s0 + $0x14] sm:$0xf]
  %v15 = vld [vmem:[%s0 + $0x18] sm:$0xf]
  %v16 = vld [vmem:[%s0 + $0x1c] sm:$0xf]
  %v17 = vld [vmem:[%s0 + $0x20] sm:$0xf]
  %v18 = vld [vmem:[%s0 + $0x24] sm:$0xf]
  %v19 = vld [vmem:[%s0 + $0x28] sm:$0xf]
  %v20 = vld [vmem:[%s0 + $0x2c] sm:$0xf]
  %v21 = vld [vmem:[%s0 + $0x30] sm:$0xf]
  %v22 = vld [vmem:[%s0 + $0x34] sm:$0xf]
  %v23 = vld [vmem:[%s0 + $0x38] sm:$0xf]
  %v24 = vld [vmem:[%s0 + $0x3c] sm:$0xf]
  %v25 = vld [vmem:[%s0 + $0x40] sm:$0xf]
  %v26 = vld [vmem:[%s0 + $0x44] sm:$0xf]
  %v27 = vld [vmem:[%s0 + $0x48] sm:$0xf]
  %v28 = vld [vmem:[%s0 + $0x4c] sm:$0xf]
  %v29 = vld [vmem:[%s0 + $0x50] sm:$0xf]
  %v30 = vld [vmem:[%s0 + $0x54] sm:$0xf]
  %v31 = vld [vmem:[%s0 + $0x58] sm:$0xf]
  %v32 = vld [vmem:[%s0 + $0x5c] sm:$0xf]
  %v33 = vld [vmem:[%s0 + $0x60] sm:$0xf]
  %v34 = vld [vmem:[%s0 + $0x64] sm:$0xf]
  %v35 = vld [vmem:[%s0 + $0x68] sm:$0xf]
  %v36 = vld [vmem:[%s0 + $0x6c] sm:$0xf]
  %v37 = vld [vmem:[%s0 + $0x70] sm:$0xf]
  %v38 = vld [vmem:[%s0 + $0x74] sm:$0xf]
  %v39 = vld [vmem:[%s0 + $0x78] sm:$0xf]
  %v40 = vld [vmem:[%s0 + $0x7c] sm:$0xf]
  %v41 = vld [vmem:[%s0 + $0x80] sm:$0xf]
  %v42 = vld [vmem:[%s0 + $0x84] sm:$0xf]
  %v43 = vld [vmem:[%s0 + $0x88] sm:$0xf]
  %v44 = vld [vmem:[%s0 + $0x8c] sm:$0xf]
  %v45 = vld [vmem:[%s0 + $0x90] sm:$0xf]
  %v46 = vld [vmem:[%s0 + $0x94] sm:$0xf]
  %v47 = vld [vmem:[%s0 + $0x98] sm:$0xf]
  %v48 = vld [vmem:[%s0 + $0x9c] sm:$0xf]
  %v49 = vld [vmem:[%s0 + $0xa0] sm:$0xf]
  %v50 = vld [vmem:[%s0 + $0xa4] sm:$0xf]
  %v51 = vld [vmem:[%s0 + $0xa8] sm:$0xf]
  %v52 = vld [vmem:[%s0 + $0xac] sm:$0xf]
  %v53 = vld [vmem:[%s0 + $0xb0] sm:$0xf]
  %v54 = vld [vmem:[%s0 + $0xb4] sm:$0xf]
  %v55 = vld [vmem:[%s0 + $0xb8] sm:$0xf]
  %v56 = vld [vmem:[%s0 + $0xbc] sm:$0xf]
  %v57 = vld [vmem:[%s0 + $0xc0] sm:$0xf]
  %v58 = vld [vmem:[%s0 + $0xc4] sm:$0xf]
  %v59 = vld [vmem:[%s0 + $0xc8] sm:$0xf]
  %v60 = vld [vmem:[%s0 + $0xcc] sm:$0xf]
  %v61 = vld [vmem:[%s0 + $0xd0] sm:$0xf]
  %v62 = vld [vmem:[%s0 + $0xd4] sm:$0xf]
  %v63 = vld [vmem:[%s0 + $0xd8] sm:$0xf]
  %v64 = vld [vmem:[%s0 + $0xdc] sm:$0xf]
  %v65 = vld [vmem:[%s0 + $0xe0] sm:$0xf]
  %v66 = vld [vmem:[%s0 + $0xe4] sm:$0xf]
  %v67 = vld [vmem:[%s0 + $0xe8] sm:$0xf]
  %v68 = vld [vmem:[%s0 + $0xec] sm:$0xf]
  %v69 = vld [vmem:[%s0 + $0xf0] sm:$0xf]
  %v70 = vld [vmem:[%s0 + $0xf4] sm:$0xf]
  %v71 = vld [vmem:[%s0 + $0xf8] sm:$0xf]
  %v72 = vld [vmem:[%s0 + $0xfc] sm:$0xf]
  %v73 = vld [vmem:[%s0 + $0x100] sm:$0xf]
  %v74 = vld [vmem:[%s0 + $0x104] sm:$0xf]
  %v75 = vld [vmem:[%s0 + $0x108] sm:$0xf]
  %v76 = vld [vmem:[%s0 + $0x10c] sm:$0xf]
  %v77 = vld [vmem:[%s0 + $0x110] sm:$0xf]
  %v78 = vld [vmem:[%s0 + $0x114] sm:$0xf]
  %v79 = vld [vmem:[%s0 + $0x118] sm:$0xf]
  %v80 = vld [vmem:[%s0 + $0x11c] sm:$0xf]
  %v81 = vld [vmem:[%s0 + $0x120] sm:$0xf]
  %v82 = vld [vmem:[%s0 + $0x124] sm:$0xf]
  %v83 = vld [vmem:[%s0 + $0x128] sm:$0xf]
  %v84 = vld [vmem:[%s0 + $0x12c] sm:$0xf]
  %v85 = vld [vmem:[%s0 + $0x130] sm:$0xf]
  %v86 = vld [vmem:[%s0 + $0x134] sm:$0xf]
  %v87 = vld [vmem:[%s0 + $0x138] sm:$0xf]
  %v88 = vld [vmem:[%s0 + $0x13c] sm:$0xf]
  %v89 = vld [vmem:[%s0 + $0x140] sm:$0xf]
  %v90 = vld [vmem:[%s0 + $0x144] sm:$0xf]
  %v91 = vld [vmem:[%s0 + $0x148] sm:$0xf]
  %v92 = vld [vmem:[%s0 + $0x14c] sm:$0xf]
  %v93 = vld [vmem:[%s0 + $0x150] sm:$0xf]
  %v94 = vld [vmem:[%s0 + $0x154] sm:$0xf]
  %v95 = vld [vmem:[%s0 + $0x158] sm:$0xf]
  %v96 = vld [vmem:[%s0 + $0x15c] sm:$0xf]
  %v97 = vld [vmem:[%s0 + $0x160] sm:$0xf]
  %v98 = vld [vmem:[%s0 + $0x164] sm:$0xf]
  %v99 = vld [vmem:[%s0 + $0x168] sm:$0xf]
  %v100 = vld [vmem:[%s0 + $0x16c] sm:$0xf]
  %v101 = vld [vmem:[%s0 + $0x170] sm:$0xf]
  %v102 = vld [vmem:[%s0 + $0x174] sm:$0xf]
  %v103 = vld [vmem:[%s0 + $0x178] sm:$0xf]
  %v104 = vld [vmem:[%s0 + $0x17c] sm:$0xf]
  %v105 = vld [vmem:[%s0 + $0x180] sm:$0xf]
  %v106 = vld [vmem:[%s0 + $0x184] sm:$0xf]
  %v107 = vld [vmem:[%s0 + $0x188] sm:$0xf]
  %v108 = vld [vmem:[%s0 + $0x18c] sm:$0xf]
  %v109 = vld [vmem:[%s0 + $0x190] sm:$0xf]
  %v110 = vld [vmem:[%s0 + $0x194] sm:$0xf]
  %v111 = vld [vmem:[%s0 + $0x198] sm:$0xf]
  %v112 = vld [vmem:[%s0 + $0x19c] sm:$0xf]
  %v113 = vld [vmem:[%s0 + $0x1a0] sm:$0xf]
  %v114 = vld [vmem:[%s0 + $0x1a4] sm:$0xf]
  %v115 = vld [vmem:[%s0 + $0x1a8] sm:$0xf]
  %v116 = vld [vmem:[%s0 + $0x1ac] sm:$0xf]
  %v117 = vld [vmem:[%s0 + $0x1b0] sm:$0xf]
  %v118 = vld [vmem:[%s0 + $0x1b4] sm:$0xf]
  %v119 = vld [vmem:[%s0 + $0x1b8] sm:$0xf]
  %v120 = vld [vmem:[%s0 + $0x1bc] sm:$0xf]
  %v121 = vld [vmem:[%s0 + $0x1c0] sm:$0xf]
  %v122 = vld [vmem:[%s0 + $0x1c4] sm:$0xf]
  %v123 = vld [vmem:[%s0 + $0x1c8] sm:$0xf]
  %v124 = vld [vmem:[%s0 + $0x1cc] sm:$0xf]
  %v125 = vld [vmem:[%s0 + $0x1d0] sm:$0xf]
  %v126 = vld [vmem:[%s0 + $0x1d4] sm:$0xf]
  %v127 = vld [vmem:[%s0 + $0x1d8] sm:$0xf]
  %v128 = vld [vmem:[%s0 + $0x1dc] sm:$0xf]
  %v129 = vld [vmem:[%s0 + $0x1e0] sm:$0xf]
  %v130 = vld [vmem:[%s0 + $0x1e4] sm:$0xf]
  %v131 = vld [vmem:[%s0 + $0x1e8] sm:$0xf]
  %v132 = vld [vmem:[%s0 + $0x1ec] sm:$0xf]
  %v133 = vld [vmem:[%s0 + $0x1f0] sm:$0xf]
  %v134 = vld [vmem:[%s0 + $0x1f4] sm:$0xf]
  %v135 = vld [vmem:[%s0 + $0x1f8] sm:$0xf]
  %v136 = vld [vmem:[%s0 + $0x1fc] sm:$0xf]
  %v137 = vld [vmem:[%s0 + $0x200] sm:$0xf]
  %v138 = vld [vmem:[%s0 + $0x204] sm:$0xf]
  %v139 = vld [vmem:[%s0 + $0x208] sm:$0xf]
  %v140 = vld [vmem:[%s0 + $0x20c] sm:$0xf]
  %v141 = vld [vmem:[%s0 + $0x210] sm:$0xf]
  %v142 = vld [vmem:[%s0 + $0x214] sm:$0xf]
  %v143 = vld [vmem:[%s0 + $0x218] sm:$0xf]
  %v144 = vld [vmem:[%s0 + $0x21c] sm:$0xf]
  %v145 = vld [vmem:[%s0 + $0x220] sm:$0xf]
  %v146 = vld [vmem:[%s0 + $0x224] sm:$0xf]
  %v147 = vld [vmem:[%s0 + $0x228] sm:$0xf]
  %v148 = vld [vmem:[%s0 + $0x22c] sm:$0xf]
  %v149 = vld [vmem:[%s0 + $0x230] sm:$0xf]
  %v150 = vld [vmem:[%s0 + $0x234] sm:$0xf]
  %v151 = vld [vmem:[%s0 + $0x238] sm:$0xf]
  %v152 = vld [vmem:[%s0 + $0x23c] sm:$0xf]
  %vm153 = vcmask 1043456
  %v156 = vsel %vm153, %v9, 4286644096
  %v159 = vsel %vm153, %v25, 4286644096
  %v161 = vmax.bf16 %v156, %v159
  %v163 = vsel %vm153, %v41, 4286644096
  %v165 = vmax.bf16 %v161, %v163
  %v167 = vsel %vm153, %v57, 4286644096
  %v169 = vmax.bf16 %v165, %v167
  %v171 = vsel %vm153, %v73, 4286644096
  %v173 = vmax.bf16 %v169, %v171
  %v175 = vsel %vm153, %v89, 4286644096
  %v177 = vmax.bf16 %v173, %v175
  %v179 = vsel %vm153, %v105, 4286644096
  %v181 = vmax.bf16 %v177, %v179
  %v183 = vsel %vm153, %v121, 4286644096
  %v185 = vmax.bf16 %v181, %v183
  %v187 = vsel %vm153, %v137, 4286644096
  %v189 = vmax.bf16 %v185, %v187
  %v191 = vsel %vm153, %v10, 4286644096
  %v194 = vsel %vm153, %v26, 4286644096
  %v196 = vmax.bf16 %v191, %v194
  %v198 = vsel %vm153, %v42, 4286644096
  %v200 = vmax.bf16 %v196, %v198
  %v202 = vsel %vm153, %v58, 4286644096
  %v204 = vmax.bf16 %v200, %v202
  %v206 = vsel %vm153, %v74, 4286644096
  %v208 = vmax.bf16 %v204, %v206
  %v210 = vsel %vm153, %v90, 4286644096
  %v212 = vmax.bf16 %v208, %v210
  %v214 = vsel %vm153, %v106, 4286644096
  %v216 = vmax.bf16 %v212, %v214
  %v218 = vsel %vm153, %v122, 4286644096
  %v220 = vmax.bf16 %v216, %v218
  %v222 = vsel %vm153, %v138, 4286644096
  %v224 = vmax.bf16 %v220, %v222
  %v226 = vsel %vm153, %v11, 4286644096
  %v229 = vsel %vm153, %v27, 4286644096
  %v231 = vmax.bf16 %v226, %v229
  %v233 = vsel %vm153, %v43, 4286644096
  %v235 = vmax.bf16 %v231, %v233
  %v237 = vsel %vm153, %v59, 4286644096
  %v239 = vmax.bf16 %v235, %v237
  %v241 = vsel %vm153, %v75, 4286644096
  %v243 = vmax.bf16 %v239, %v241
  %v245 = vsel %vm153, %v91, 4286644096
  %v247 = vmax.bf16 %v243, %v245
  %v249 = vsel %vm153, %v107, 4286644096
  %v251 = vmax.bf16 %v247, %v249
  %v253 = vsel %vm153, %v123, 4286644096
  %v255 = vmax.bf16 %v251, %v253
  %v257 = vsel %vm153, %v139, 4286644096
  %v259 = vmax.bf16 %v255, %v257
  %v261 = vsel %vm153, %v12, 4286644096
  %v264 = vsel %vm153, %v28, 4286644096
  %v266 = vmax.bf16 %v261, %v264
  %v268 = vsel %vm153, %v44, 4286644096
  %v270 = vmax.bf16 %v266, %v268
  %v272 = vsel %vm153, %v60, 4286644096
  %v274 = vmax.bf16 %v270, %v272
  %v276 = vsel %vm153, %v76, 4286644096
  %v278 = vmax.bf16 %v274, %v276
  %v280 = vsel %vm153, %v92, 4286644096
  %v282 = vmax.bf16 %v278, %v280
  %v284 = vsel %vm153, %v108, 4286644096
  %v286 = vmax.bf16 %v282, %v284
  %v288 = vsel %vm153, %v124, 4286644096
  %v290 = vmax.bf16 %v286, %v288
  %v292 = vsel %vm153, %v140, 4286644096
  %v294 = vmax.bf16 %v290, %v292
  %v296 = vsel %vm153, %v13, 4286644096
  %v299 = vsel %vm153, %v29, 4286644096
  %v301 = vmax.bf16 %v296, %v299
  %v303 = vsel %vm153, %v45, 4286644096
  %v305 = vmax.bf16 %v301, %v303
  %v307 = vsel %vm153, %v61, 4286644096
  %v309 = vmax.bf16 %v305, %v307
  %v311 = vsel %vm153, %v77, 4286644096
  %v313 = vmax.bf16 %v309, %v311
  %v315 = vsel %vm153, %v93, 4286644096
  %v317 = vmax.bf16 %v313, %v315
  %v319 = vsel %vm153, %v109, 4286644096
  %v321 = vmax.bf16 %v317, %v319
  %v323 = vsel %vm153, %v125, 4286644096
  %v325 = vmax.bf16 %v321, %v323
  %v327 = vsel %vm153, %v141, 4286644096
  %v329 = vmax.bf16 %v325, %v327
  %v331 = vsel %vm153, %v14, 4286644096
  %v334 = vsel %vm153, %v30, 4286644096
  %v336 = vmax.bf16 %v331, %v334
  %v338 = vsel %vm153, %v46, 4286644096
  %v340 = vmax.bf16 %v336, %v338
  %v342 = vsel %vm153, %v62, 4286644096
  %v344 = vmax.bf16 %v340, %v342
  %v346 = vsel %vm153, %v78, 4286644096
  %v348 = vmax.bf16 %v344, %v346
  %v350 = vsel %vm153, %v94, 4286644096
  %v352 = vmax.bf16 %v348, %v350
  %v354 = vsel %vm153, %v110, 4286644096
  %v356 = vmax.bf16 %v352, %v354
  %v358 = vsel %vm153, %v126, 4286644096
  %v360 = vmax.bf16 %v356, %v358
  %v362 = vsel %vm153, %v142, 4286644096
  %v364 = vmax.bf16 %v360, %v362
  %v366 = vsel %vm153, %v15, 4286644096
  %v369 = vsel %vm153, %v31, 4286644096
  %v371 = vmax.bf16 %v366, %v369
  %v373 = vsel %vm153, %v47, 4286644096
  %v375 = vmax.bf16 %v371, %v373
  %v377 = vsel %vm153, %v63, 4286644096
  %v379 = vmax.bf16 %v375, %v377
  %v381 = vsel %vm153, %v79, 4286644096
  %v383 = vmax.bf16 %v379, %v381
  %v385 = vsel %vm153, %v95, 4286644096
  %v387 = vmax.bf16 %v383, %v385
  %v389 = vsel %vm153, %v111, 4286644096
  %v391 = vmax.bf16 %v387, %v389
  %v393 = vsel %vm153, %v127, 4286644096
  %v395 = vmax.bf16 %v391, %v393
  %v397 = vsel %vm153, %v143, 4286644096
  %v399 = vmax.bf16 %v395, %v397
  %v401 = vsel %vm153, %v16, 4286644096
  %v404 = vsel %vm153, %v32, 4286644096
  %v406 = vmax.bf16 %v401, %v404
  %v408 = vsel %vm153, %v48, 4286644096
  %v410 = vmax.bf16 %v406, %v408
  %v412 = vsel %vm153, %v64, 4286644096
  %v414 = vmax.bf16 %v410, %v412
  %v416 = vsel %vm153, %v80, 4286644096
  %v418 = vmax.bf16 %v414, %v416
  %v420 = vsel %vm153, %v96, 4286644096
  %v422 = vmax.bf16 %v418, %v420
  %v424 = vsel %vm153, %v112, 4286644096
  %v426 = vmax.bf16 %v422, %v424
  %v428 = vsel %vm153, %v128, 4286644096
  %v430 = vmax.bf16 %v426, %v428
  %v432 = vsel %vm153, %v144, 4286644096
  %v434 = vmax.bf16 %v430, %v432
  %v436 = vsel %vm153, %v17, 4286644096
  %v439 = vsel %vm153, %v33, 4286644096
  %v441 = vmax.bf16 %v436, %v439
  %v443 = vsel %vm153, %v49, 4286644096
  %v445 = vmax.bf16 %v441, %v443
  %v447 = vsel %vm153, %v65, 4286644096
  %v449 = vmax.bf16 %v445, %v447
  %v451 = vsel %vm153, %v81, 4286644096
  %v453 = vmax.bf16 %v449, %v451
  %v455 = vsel %vm153, %v97, 4286644096
  %v457 = vmax.bf16 %v453, %v455
  %v459 = vsel %vm153, %v113, 4286644096
  %v461 = vmax.bf16 %v457, %v459
  %v463 = vsel %vm153, %v129, 4286644096
  %v465 = vmax.bf16 %v461, %v463
  %v467 = vsel %vm153, %v145, 4286644096
  %v469 = vmax.bf16 %v465, %v467
  %v471 = vsel %vm153, %v18, 4286644096
  %v474 = vsel %vm153, %v34, 4286644096
  %v476 = vmax.bf16 %v471, %v474
  %v478 = vsel %vm153, %v50, 4286644096
  %v480 = vmax.bf16 %v476, %v478
  %v482 = vsel %vm153, %v66, 4286644096
  %v484 = vmax.bf16 %v480, %v482
  %v486 = vsel %vm153, %v82, 4286644096
  %v488 = vmax.bf16 %v484, %v486
  %v490 = vsel %vm153, %v98, 4286644096
  %v492 = vmax.bf16 %v488, %v490
  %v494 = vsel %vm153, %v114, 4286644096
  %v496 = vmax.bf16 %v492, %v494
  %v498 = vsel %vm153, %v130, 4286644096
  %v500 = vmax.bf16 %v496, %v498
  %v502 = vsel %vm153, %v146, 4286644096
  %v504 = vmax.bf16 %v500, %v502
  %v506 = vsel %vm153, %v19, 4286644096
  %v509 = vsel %vm153, %v35, 4286644096
  %v511 = vmax.bf16 %v506, %v509
  %v513 = vsel %vm153, %v51, 4286644096
  %v515 = vmax.bf16 %v511, %v513
  %v517 = vsel %vm153, %v67, 4286644096
  %v519 = vmax.bf16 %v515, %v517
  %v521 = vsel %vm153, %v83, 4286644096
  %v523 = vmax.bf16 %v519, %v521
  %v525 = vsel %vm153, %v99, 4286644096
  %v527 = vmax.bf16 %v523, %v525
  %v529 = vsel %vm153, %v115, 4286644096
  %v531 = vmax.bf16 %v527, %v529
  %v533 = vsel %vm153, %v131, 4286644096
  %v535 = vmax.bf16 %v531, %v533
  %v537 = vsel %vm153, %v147, 4286644096
  %v539 = vmax.bf16 %v535, %v537
  %v541 = vsel %vm153, %v20, 4286644096
  %v544 = vsel %vm153, %v36, 4286644096
  %v546 = vmax.bf16 %v541, %v544
  %v548 = vsel %vm153, %v52, 4286644096
  %v550 = vmax.bf16 %v546, %v548
  %v552 = vsel %vm153, %v68, 4286644096
  %v554 = vmax.bf16 %v550, %v552
  %v556 = vsel %vm153, %v84, 4286644096
  %v558 = vmax.bf16 %v554, %v556
  %v560 = vsel %vm153, %v100, 4286644096
  %v562 = vmax.bf16 %v558, %v560
  %v564 = vsel %vm153, %v116, 4286644096
  %v566 = vmax.bf16 %v562, %v564
  %v568 = vsel %vm153, %v132, 4286644096
  %v570 = vmax.bf16 %v566, %v568
  %v572 = vsel %vm153, %v148, 4286644096
  %v574 = vmax.bf16 %v570, %v572
  %v576 = vsel %vm153, %v21, 4286644096
  %v579 = vsel %vm153, %v37, 4286644096
  %v581 = vmax.bf16 %v576, %v579
  %v583 = vsel %vm153, %v53, 4286644096
  %v585 = vmax.bf16 %v581, %v583
  %v587 = vsel %vm153, %v69, 4286644096
  %v589 = vmax.bf16 %v585, %v587
  %v591 = vsel %vm153, %v85, 4286644096
  %v593 = vmax.bf16 %v589, %v591
  %v595 = vsel %vm153, %v101, 4286644096
  %v597 = vmax.bf16 %v593, %v595
  %v599 = vsel %vm153, %v117, 4286644096
  %v601 = vmax.bf16 %v597, %v599
  %v603 = vsel %vm153, %v133, 4286644096
  %v605 = vmax.bf16 %v601, %v603
  %v607 = vsel %vm153, %v149, 4286644096
  %v609 = vmax.bf16 %v605, %v607
  %v611 = vsel %vm153, %v22, 4286644096
  %v614 = vsel %vm153, %v38, 4286644096
  %v616 = vmax.bf16 %v611, %v614
  %v618 = vsel %vm153, %v54, 4286644096
  %v620 = vmax.bf16 %v616, %v618
  %v622 = vsel %vm153, %v70, 4286644096
  %v624 = vmax.bf16 %v620, %v622
  %v626 = vsel %vm153, %v86, 4286644096
  %v628 = vmax.bf16 %v624, %v626
  %v630 = vsel %vm153, %v102, 4286644096
  %v632 = vmax.bf16 %v628, %v630
  %v634 = vsel %vm153, %v118, 4286644096
  %v636 = vmax.bf16 %v632, %v634
  %v638 = vsel %vm153, %v134, 4286644096
  %v640 = vmax.bf16 %v636, %v638
  %v642 = vsel %vm153, %v150, 4286644096
  %v644 = vmax.bf16 %v640, %v642
  %v646 = vsel %vm153, %v23, 4286644096
  %v649 = vsel %vm153, %v39, 4286644096
  %v651 = vmax.bf16 %v646, %v649
  %v653 = vsel %vm153, %v55, 4286644096
  %v655 = vmax.bf16 %v651, %v653
  %v657 = vsel %vm153, %v71, 4286644096
  %v659 = vmax.bf16 %v655, %v657
  %v661 = vsel %vm153, %v87, 4286644096
  %v663 = vmax.bf16 %v659, %v661
  %v665 = vsel %vm153, %v103, 4286644096
  %v667 = vmax.bf16 %v663, %v665
  %v669 = vsel %vm153, %v119, 4286644096
  %v671 = vmax.bf16 %v667, %v669
  %v673 = vsel %vm153, %v135, 4286644096
  %v675 = vmax.bf16 %v671, %v673
  %v677 = vsel %vm153, %v151, 4286644096
  %v679 = vmax.bf16 %v675, %v677
  %v681 = vsel %vm153, %v24, 4286644096
  %v684 = vsel %vm153, %v40, 4286644096
  %v686 = vmax.bf16 %v681, %v684
  %v688 = vsel %vm153, %v56, 4286644096
  %v690 = vmax.bf16 %v686, %v688
  %v692 = vsel %vm153, %v72, 4286644096
  %v694 = vmax.bf16 %v690, %v692
  %v696 = vsel %vm153, %v88, 4286644096
  %v698 = vmax.bf16 %v694, %v696
  %v700 = vsel %vm153, %v104, 4286644096
  %v702 = vmax.bf16 %v698, %v700
  %v704 = vsel %vm153, %v120, 4286644096
  %v706 = vmax.bf16 %v702, %v704
  %v708 = vsel %vm153, %v136, 4286644096
  %v710 = vmax.bf16 %v706, %v708
  %v712 = vsel %vm153, %v152, 4286644096
  %v714 = vmax.bf16 %v710, %v712
  %715 = vst [vmem:[%s1] sm:$0xf] %v189
  %716 = vst [vmem:[%s1 + $0x4] sm:$0xf] %v224
  %717 = vst [vmem:[%s1 + $0x8] sm:$0xf] %v259
  %718 = vst [vmem:[%s1 + $0xc] sm:$0xf] %v294
  %719 = vst [vmem:[%s1 + $0x10] sm:$0xf] %v329
  %720 = vst [vmem:[%s1 + $0x14] sm:$0xf] %v364
  %721 = vst [vmem:[%s1 + $0x18] sm:$0xf] %v399
  %722 = vst [vmem:[%s1 + $0x1c] sm:$0xf] %v434
  %723 = vst [vmem:[%s1 + $0x20] sm:$0xf] %v469
  %724 = vst [vmem:[%s1 + $0x24] sm:$0xf] %v504
  %725 = vst [vmem:[%s1 + $0x28] sm:$0xf] %v539
  %726 = vst [vmem:[%s1 + $0x2c] sm:$0xf] %v574
  %727 = vst [vmem:[%s1 + $0x30] sm:$0xf] %v609
  %728 = vst [vmem:[%s1 + $0x34] sm:$0xf] %v644
  %729 = vst [vmem:[%s1 + $0x38] sm:$0xf] %v679
  %730 = vst [vmem:[%s1 + $0x3c] sm:$0xf] %v714
  // Predicated region
  $region6: #{custom_googlenet_forward.10} parent=0 // pred_check
    _
  $region7: #{custom_googlenet_forward.10} parent=0 // pred_check_branch
    %732 = sbr.rel (0) target = $region9
  $region8: #{custom_googlenet_forward.10} parent=0 // pred_region
    _
  $region9: #{custom_googlenet_forward.10} parent=0 // pred_fallthru
    _
  // Predicated region
  $region10: #{custom_googlenet_forward.10} parent=0 // pred_check
    _
  $region11: #{custom_googlenet_forward.10} parent=0 // pred_check_branch
    %734 = sbr.rel (0) target = $region13
  $region12: #{custom_googlenet_forward.10} parent=0 // pred_region
    _
  $region13: #{custom_googlenet_forward.10} parent=0 // pred_fallthru
    _

// kernel: custom_googlenet_forward.9
$region0: #{custom_googlenet_forward.9}
  #allocation0 [shape = 'u32[]', space=smem, size = 0x4, offset = 0x4, fixed_abs, tag = 'smem constant byte address 0x4 - core index']
  #allocation1 [shape = 'u32[144,128]{1,0:T(1,128)}', space=vmem, size = 0x12000, scoped, tag = 'internal scratch']
  %s0 = inlined_call_operand.vmem [shape: bf16[9,512,128], index: 0, kind: input, shape index: {}]
  %s1 = inlined_call_operand.vmem [shape: bf16[128,128], index: 1, kind: input, shape index: {}]
  %s2 = inlined_call_operand.vmem [shape: f32[1,128], index: 2, kind: input, shape index: {}]
  %s3 = inlined_call_operand.vmem [shape: bf16[512,128], index: 3, kind: output, shape index: {}]
  %s4 = sld [smem:[#allocation0]]
  $region22: #{custom_googlenet_forward.9} parent=0
    _
  %s6 = ssub.s32 1, %s4
  %s7 = scalar_select 0, %s6, %s4
  // Predicated region
  $region2: #{custom_googlenet_forward.9} parent=0 // pred_check
    _
  $region3: #{custom_googlenet_forward.9} parent=0 // pred_check_branch
    %9 = sbr.rel (0) target = $region5
  $region4: #{custom_googlenet_forward.9} parent=0 // pred_region
    _
  $region5: #{custom_googlenet_forward.9} parent=0 // pred_fallthru
    _
  // Predicated region
  $region6: #{custom_googlenet_forward.9} parent=0 // pred_check
    _
  $region7: #{custom_googlenet_forward.9} parent=0 // pred_check_branch
    %11 = sbr.rel (0) target = $region9
  $region8: #{custom_googlenet_forward.9} parent=0 // pred_region
    _
  $region9: #{custom_googlenet_forward.9} parent=0 // pred_fallthru
    _
  // Predicated region
  $region10: #{custom_googlenet_forward.9} parent=0 // pred_check
    _
  $region11: #{custom_googlenet_forward.9} parent=0 // pred_check_branch
    %13 = sbr.rel (0) target = $region13
  $region12: #{custom_googlenet_forward.9} parent=0 // pred_region
    _
  $region13: #{custom_googlenet_forward.9} parent=0 // pred_fallthru
    _
  %v16 = vld [vmem:[%s0] sm:$0xf]
  %v17 = vld [vmem:[%s0 + $0x4] sm:$0xf]
  %v18 = vld [vmem:[%s0 + $0x8] sm:$0xf]
  %v19 = vld [vmem:[%s0 + $0xc] sm:$0xf]
  %v20 = vld [vmem:[%s0 + $0x10] sm:$0xf]
  %v21 = vld [vmem:[%s0 + $0x14] sm:$0xf]
  %v22 = vld [vmem:[%s0 + $0x18] sm:$0xf]
  %v23 = vld [vmem:[%s0 + $0x1c] sm:$0xf]
  %v24 = vld [vmem:[%s0 + $0x20] sm:$0xf]
  %v25 = vld [vmem:[%s0 + $0x24] sm:$0xf]
  %v26 = vld [vmem:[%s0 + $0x28] sm:$0xf]
  %v27 = vld [vmem:[%s0 + $0x2c] sm:$0xf]
  %v28 = vld [vmem:[%s0 + $0x30] sm:$0xf]
  %v29 = vld [vmem:[%s0 + $0x34] sm:$0xf]
  %v30 = vld [vmem:[%s0 + $0x38] sm:$0xf]
  %v31 = vld [vmem:[%s0 + $0x3c] sm:$0xf]
  %v32 = vld [vmem:[%s0 + $0x40] sm:$0xf]
  %v33 = vld [vmem:[%s0 + $0x44] sm:$0xf]
  %v34 = vld [vmem:[%s0 + $0x48] sm:$0xf]
  %v35 = vld [vmem:[%s0 + $0x4c] sm:$0xf]
  %v36 = vld [vmem:[%s0 + $0x50] sm:$0xf]
  %v37 = vld [vmem:[%s0 + $0x54] sm:$0xf]
  %v38 = vld [vmem:[%s0 + $0x58] sm:$0xf]
  %v39 = vld [vmem:[%s0 + $0x5c] sm:$0xf]
  %v40 = vld [vmem:[%s0 + $0x60] sm:$0xf]
  %v41 = vld [vmem:[%s0 + $0x64] sm:$0xf]
  %v42 = vld [vmem:[%s0 + $0x68] sm:$0xf]
  %v43 = vld [vmem:[%s0 + $0x6c] sm:$0xf]
  %v44 = vld [vmem:[%s0 + $0x70] sm:$0xf]
  %v45 = vld [vmem:[%s0 + $0x74] sm:$0xf]
  %v46 = vld [vmem:[%s0 + $0x78] sm:$0xf]
  %v47 = vld [vmem:[%s0 + $0x7c] sm:$0xf]
  %v48 = vld [vmem:[%s0 + $0x80] sm:$0xf]
  %v49 = vld [vmem:[%s0 + $0x84] sm:$0xf]
  %v50 = vld [vmem:[%s0 + $0x88] sm:$0xf]
  %v51 = vld [vmem:[%s0 + $0x8c] sm:$0xf]
  %v52 = vld [vmem:[%s0 + $0x90] sm:$0xf]
  %v53 = vld [vmem:[%s0 + $0x94] sm:$0xf]
  %v54 = vld [vmem:[%s0 + $0x98] sm:$0xf]
  %v55 = vld [vmem:[%s0 + $0x9c] sm:$0xf]
  %v56 = vld [vmem:[%s0 + $0xa0] sm:$0xf]
  %v57 = vld [vmem:[%s0 + $0xa4] sm:$0xf]
  %v58 = vld [vmem:[%s0 + $0xa8] sm:$0xf]
  %v59 = vld [vmem:[%s0 + $0xac] sm:$0xf]
  %v60 = vld [vmem:[%s0 + $0xb0] sm:$0xf]
  %v61 = vld [vmem:[%s0 + $0xb4] sm:$0xf]
  %v62 = vld [vmem:[%s0 + $0xb8] sm:$0xf]
  %v63 = vld [vmem:[%s0 + $0xbc] sm:$0xf]
  %v64 = vld [vmem:[%s0 + $0xc0] sm:$0xf]
  %v65 = vld [vmem:[%s0 + $0xc4] sm:$0xf]
  %v66 = vld [vmem:[%s0 + $0xc8] sm:$0xf]
  %v67 = vld [vmem:[%s0 + $0xcc] sm:$0xf]
  %v68 = vld [vmem:[%s0 + $0xd0] sm:$0xf]
  %v69 = vld [vmem:[%s0 + $0xd4] sm:$0xf]
  %v70 = vld [vmem:[%s0 + $0xd8] sm:$0xf]
  %v71 = vld [vmem:[%s0 + $0xdc] sm:$0xf]
  %v72 = vld [vmem:[%s0 + $0xe0] sm:$0xf]
  %v73 = vld [vmem:[%s0 + $0xe4] sm:$0xf]
  %v74 = vld [vmem:[%s0 + $0xe8] sm:$0xf]
  %v75 = vld [vmem:[%s0 + $0xec] sm:$0xf]
  %v76 = vld [vmem:[%s0 + $0xf0] sm:$0xf]
  %v77 = vld [vmem:[%s0 + $0xf4] sm:$0xf]
  %v78 = vld [vmem:[%s0 + $0xf8] sm:$0xf]
  %v79 = vld [vmem:[%s0 + $0xfc] sm:$0xf]
  %v80 = vld [vmem:[%s0 + $0x100] sm:$0xf]
  %v81 = vld [vmem:[%s0 + $0x104] sm:$0xf]
  %v82 = vld [vmem:[%s0 + $0x108] sm:$0xf]
  %v83 = vld [vmem:[%s0 + $0x10c] sm:$0xf]
  %v84 = vld [vmem:[%s0 + $0x110] sm:$0xf]
  %v85 = vld [vmem:[%s0 + $0x114] sm:$0xf]
  %v86 = vld [vmem:[%s0 + $0x118] sm:$0xf]
  %v87 = vld [vmem:[%s0 + $0x11c] sm:$0xf]
  %v88 = vld [vmem:[%s0 + $0x120] sm:$0xf]
  %v89 = vld [vmem:[%s0 + $0x124] sm:$0xf]
  %v90 = vld [vmem:[%s0 + $0x128] sm:$0xf]
  %v91 = vld [vmem:[%s0 + $0x12c] sm:$0xf]
  %v92 = vld [vmem:[%s0 + $0x130] sm:$0xf]
  %v93 = vld [vmem:[%s0 + $0x134] sm:$0xf]
  %v94 = vld [vmem:[%s0 + $0x138] sm:$0xf]
  %v95 = vld [vmem:[%s0 + $0x13c] sm:$0xf]
  %v96 = vld [vmem:[%s0 + $0x140] sm:$0xf]
  %v97 = vld [vmem:[%s0 + $0x144] sm:$0xf]
  %v98 = vld [vmem:[%s0 + $0x148] sm:$0xf]
  %v99 = vld [vmem:[%s0 + $0x14c] sm:$0xf]
  %v100 = vld [vmem:[%s0 + $0x150] sm:$0xf]
  %v101 = vld [vmem:[%s0 + $0x154] sm:$0xf]
  %v102 = vld [vmem:[%s0 + $0x158] sm:$0xf]
  %v103 = vld [vmem:[%s0 + $0x15c] sm:$0xf]
  %v104 = vld [vmem:[%s0 + $0x160] sm:$0xf]
  %v105 = vld [vmem:[%s0 + $0x164] sm:$0xf]
  %v106 = vld [vmem:[%s0 + $0x168] sm:$0xf]
  %v107 = vld [vmem:[%s0 + $0x16c] sm:$0xf]
  %v108 = vld [vmem:[%s0 + $0x170] sm:$0xf]
  %v109 = vld [vmem:[%s0 + $0x174] sm:$0xf]
  %v110 = vld [vmem:[%s0 + $0x178] sm:$0xf]
  %v111 = vld [vmem:[%s0 + $0x17c] sm:$0xf]
  %v112 = vld [vmem:[%s0 + $0x180] sm:$0xf]
  %v113 = vld [vmem:[%s0 + $0x184] sm:$0xf]
  %v114 = vld [vmem:[%s0 + $0x188] sm:$0xf]
  %v115 = vld [vmem:[%s0 + $0x18c] sm:$0xf]
  %v116 = vld [vmem:[%s0 + $0x190] sm:$0xf]
  %v117 = vld [vmem:[%s0 + $0x194] sm:$0xf]
  %v118 = vld [vmem:[%s0 + $0x198] sm:$0xf]
  %v119 = vld [vmem:[%s0 + $0x19c] sm:$0xf]
  %v120 = vld [vmem:[%s0 + $0x1a0] sm:$0xf]
  %v121 = vld [vmem:[%s0 + $0x1a4] sm:$0xf]
  %v122 = vld [vmem:[%s0 + $0x1a8] sm:$0xf]
  %v123 = vld [vmem:[%s0 + $0x1ac] sm:$0xf]
  %v124 = vld [vmem:[%s0 + $0x1b0] sm:$0xf]
  %v125 = vld [vmem:[%s0 + $0x1b4] sm:$0xf]
  %v126 = vld [vmem:[%s0 + $0x1b8] sm:$0xf]
  %v127 = vld [vmem:[%s0 + $0x1bc] sm:$0xf]
  %v128 = vld [vmem:[%s0 + $0x1c0] sm:$0xf]
  %v129 = vld [vmem:[%s0 + $0x1c4] sm:$0xf]
  %v130 = vld [vmem:[%s0 + $0x1c8] sm:$0xf]
  %v131 = vld [vmem:[%s0 + $0x1cc] sm:$0xf]
  %v132 = vld [vmem:[%s0 + $0x1d0] sm:$0xf]
  %v133 = vld [vmem:[%s0 + $0x1d4] sm:$0xf]
  %v134 = vld [vmem:[%s0 + $0x1d8] sm:$0xf]
  %v135 = vld [vmem:[%s0 + $0x1dc] sm:$0xf]
  %v136 = vld [vmem:[%s0 + $0x1e0] sm:$0xf]
  %v137 = vld [vmem:[%s0 + $0x1e4] sm:$0xf]
  %v138 = vld [vmem:[%s0 + $0x1e8] sm:$0xf]
  %v139 = vld [vmem:[%s0 + $0x1ec] sm:$0xf]
  %v140 = vld [vmem:[%s0 + $0x1f0] sm:$0xf]
  %v141 = vld [vmem:[%s0 + $0x1f4] sm:$0xf]
  %v142 = vld [vmem:[%s0 + $0x1f8] sm:$0xf]
  %v143 = vld [vmem:[%s0 + $0x1fc] sm:$0xf]
  %v144 = vld [vmem:[%s0 + $0x200] sm:$0xf]
  %v145 = vld [vmem:[%s0 + $0x204] sm:$0xf]
  %v146 = vld [vmem:[%s0 + $0x208] sm:$0xf]
  %v147 = vld [vmem:[%s0 + $0x20c] sm:$0xf]
  %v148 = vld [vmem:[%s0 + $0x210] sm:$0xf]
  %v149 = vld [vmem:[%s0 + $0x214] sm:$0xf]
  %v150 = vld [vmem:[%s0 + $0x218] sm:$0xf]
  %v151 = vld [vmem:[%s0 + $0x21c] sm:$0xf]
  %v152 = vld [vmem:[%s0 + $0x220] sm:$0xf]
  %v153 = vld [vmem:[%s0 + $0x224] sm:$0xf]
  %v154 = vld [vmem:[%s0 + $0x228] sm:$0xf]
  %v155 = vld [vmem:[%s0 + $0x22c] sm:$0xf]
  %v156 = vld [vmem:[%s0 + $0x230] sm:$0xf]
  %v157 = vld [vmem:[%s0 + $0x234] sm:$0xf]
  %v158 = vld [vmem:[%s0 + $0x238] sm:$0xf]
  %v159 = vld [vmem:[%s0 + $0x23c] sm:$0xf]
  %v160 = vld [vmem:[%s0 + $0x240] sm:$0xf]
  %v161 = vld [vmem:[%s0 + $0x244] sm:$0xf]
  %v162 = vld [vmem:[%s0 + $0x248] sm:$0xf]
  %v163 = vld [vmem:[%s0 + $0x24c] sm:$0xf]
  %v164 = vld [vmem:[%s0 + $0x250] sm:$0xf]
  %v165 = vld [vmem:[%s0 + $0x254] sm:$0xf]
  %v166 = vld [vmem:[%s0 + $0x258] sm:$0xf]
  %v167 = vld [vmem:[%s0 + $0x25c] sm:$0xf]
  %v168 = vld [vmem:[%s0 + $0x260] sm:$0xf]
  %v169 = vld [vmem:[%s0 + $0x264] sm:$0xf]
  %v170 = vld [vmem:[%s0 + $0x268] sm:$0xf]
  %v171 = vld [vmem:[%s0 + $0x26c] sm:$0xf]
  %v172 = vld [vmem:[%s0 + $0x270] sm:$0xf]
  %v173 = vld [vmem:[%s0 + $0x274] sm:$0xf]
  %v174 = vld [vmem:[%s0 + $0x278] sm:$0xf]
  %v175 = vld [vmem:[%s0 + $0x27c] sm:$0xf]
  %v176 = vld [vmem:[%s0 + $0x280] sm:$0xf]
  %v177 = vld [vmem:[%s0 + $0x284] sm:$0xf]
  %v178 = vld [vmem:[%s0 + $0x288] sm:$0xf]
  %v179 = vld [vmem:[%s0 + $0x28c] sm:$0xf]
  %v180 = vld [vmem:[%s0 + $0x290] sm:$0xf]
  %v181 = vld [vmem:[%s0 + $0x294] sm:$0xf]
  %v182 = vld [vmem:[%s0 + $0x298] sm:$0xf]
  %v183 = vld [vmem:[%s0 + $0x29c] sm:$0xf]
  %v184 = vld [vmem:[%s0 + $0x2a0] sm:$0xf]
  %v185 = vld [vmem:[%s0 + $0x2a4] sm:$0xf]
  %v186 = vld [vmem:[%s0 + $0x2a8] sm:$0xf]
  %v187 = vld [vmem:[%s0 + $0x2ac] sm:$0xf]
  %v188 = vld [vmem:[%s0 + $0x2b0] sm:$0xf]
  %v189 = vld [vmem:[%s0 + $0x2b4] sm:$0xf]
  %v190 = vld [vmem:[%s0 + $0x2b8] sm:$0xf]
  %v191 = vld [vmem:[%s0 + $0x2bc] sm:$0xf]
  %v192 = vld [vmem:[%s0 + $0x2c0] sm:$0xf]
  %v193 = vld [vmem:[%s0 + $0x2c4] sm:$0xf]
  %v194 = vld [vmem:[%s0 + $0x2c8] sm:$0xf]
  %v195 = vld [vmem:[%s0 + $0x2cc] sm:$0xf]
  %v196 = vld [vmem:[%s0 + $0x2d0] sm:$0xf]
  %v197 = vld [vmem:[%s0 + $0x2d4] sm:$0xf]
  %v198 = vld [vmem:[%s0 + $0x2d8] sm:$0xf]
  %v199 = vld [vmem:[%s0 + $0x2dc] sm:$0xf]
  %v200 = vld [vmem:[%s0 + $0x2e0] sm:$0xf]
  %v201 = vld [vmem:[%s0 + $0x2e4] sm:$0xf]
  %v202 = vld [vmem:[%s0 + $0x2e8] sm:$0xf]
  %v203 = vld [vmem:[%s0 + $0x2ec] sm:$0xf]
  %v204 = vld [vmem:[%s0 + $0x2f0] sm:$0xf]
  %v205 = vld [vmem:[%s0 + $0x2f4] sm:$0xf]
  %v206 = vld [vmem:[%s0 + $0x2f8] sm:$0xf]
  %v207 = vld [vmem:[%s0 + $0x2fc] sm:$0xf]
  %v208 = vld [vmem:[%s0 + $0x300] sm:$0xf]
  %v209 = vld [vmem:[%s0 + $0x304] sm:$0xf]
  %v210 = vld [vmem:[%s0 + $0x308] sm:$0xf]
  %v211 = vld [vmem:[%s0 + $0x30c] sm:$0xf]
  %v212 = vld [vmem:[%s0 + $0x310] sm:$0xf]
  %v213 = vld [vmem:[%s0 + $0x314] sm:$0xf]
  %v214 = vld [vmem:[%s0 + $0x318] sm:$0xf]
  %v215 = vld [vmem:[%s0 + $0x31c] sm:$0xf]
  %v216 = vld [vmem:[%s0 + $0x320] sm:$0xf]
  %v217 = vld [vmem:[%s0 + $0x324] sm:$0xf]
  %v218 = vld [vmem:[%s0 + $0x328] sm:$0xf]
  %v219 = vld [vmem:[%s0 + $0x32c] sm:$0xf]
  %v220 = vld [vmem:[%s0 + $0x330] sm:$0xf]
  %v221 = vld [vmem:[%s0 + $0x334] sm:$0xf]
  %v222 = vld [vmem:[%s0 + $0x338] sm:$0xf]
  %v223 = vld [vmem:[%s0 + $0x33c] sm:$0xf]
  %v224 = vld [vmem:[%s0 + $0x340] sm:$0xf]
  %v225 = vld [vmem:[%s0 + $0x344] sm:$0xf]
  %v226 = vld [vmem:[%s0 + $0x348] sm:$0xf]
  %v227 = vld [vmem:[%s0 + $0x34c] sm:$0xf]
  %v228 = vld [vmem:[%s0 + $0x350] sm:$0xf]
  %v229 = vld [vmem:[%s0 + $0x354] sm:$0xf]
  %v230 = vld [vmem:[%s0 + $0x358] sm:$0xf]
  %v231 = vld [vmem:[%s0 + $0x35c] sm:$0xf]
  %v232 = vld [vmem:[%s0 + $0x360] sm:$0xf]
  %v233 = vld [vmem:[%s0 + $0x364] sm:$0xf]
  %v234 = vld [vmem:[%s0 + $0x368] sm:$0xf]
  %v235 = vld [vmem:[%s0 + $0x36c] sm:$0xf]
  %v236 = vld [vmem:[%s0 + $0x370] sm:$0xf]
  %v237 = vld [vmem:[%s0 + $0x374] sm:$0xf]
  %v238 = vld [vmem:[%s0 + $0x378] sm:$0xf]
  %v239 = vld [vmem:[%s0 + $0x37c] sm:$0xf]
  %v240 = vld [vmem:[%s0 + $0x380] sm:$0xf]
  %v241 = vld [vmem:[%s0 + $0x384] sm:$0xf]
  %v242 = vld [vmem:[%s0 + $0x388] sm:$0xf]
  %v243 = vld [vmem:[%s0 + $0x38c] sm:$0xf]
  %v244 = vld [vmem:[%s0 + $0x390] sm:$0xf]
  %v245 = vld [vmem:[%s0 + $0x394] sm:$0xf]
  %v246 = vld [vmem:[%s0 + $0x398] sm:$0xf]
  %v247 = vld [vmem:[%s0 + $0x39c] sm:$0xf]
  %v248 = vld [vmem:[%s0 + $0x3a0] sm:$0xf]
  %v249 = vld [vmem:[%s0 + $0x3a4] sm:$0xf]
  %v250 = vld [vmem:[%s0 + $0x3a8] sm:$0xf]
  %v251 = vld [vmem:[%s0 + $0x3ac] sm:$0xf]
  %v252 = vld [vmem:[%s0 + $0x3b0] sm:$0xf]
  %v253 = vld [vmem:[%s0 + $0x3b4] sm:$0xf]
  %v254 = vld [vmem:[%s0 + $0x3b8] sm:$0xf]
  %v255 = vld [vmem:[%s0 + $0x3bc] sm:$0xf]
  %v256 = vld [vmem:[%s0 + $0x3c0] sm:$0xf]
  %v257 = vld [vmem:[%s0 + $0x3c4] sm:$0xf]
  %v258 = vld [vmem:[%s0 + $0x3c8] sm:$0xf]
  %v259 = vld [vmem:[%s0 + $0x3cc] sm:$0xf]
  %v260 = vld [vmem:[%s0 + $0x3d0] sm:$0xf]
  %v261 = vld [vmem:[%s0 + $0x3d4] sm:$0xf]
  %v262 = vld [vmem:[%s0 + $0x3d8] sm:$0xf]
  %v263 = vld [vmem:[%s0 + $0x3dc] sm:$0xf]
  %v264 = vld [vmem:[%s0 + $0x3e0] sm:$0xf]
  %v265 = vld [vmem:[%s0 + $0x3e4] sm:$0xf]
  %v266 = vld [vmem:[%s0 + $0x3e8] sm:$0xf]
  %v267 = vld [vmem:[%s0 + $0x3ec] sm:$0xf]
  %v268 = vld [vmem:[%s0 + $0x3f0] sm:$0xf]
  %v269 = vld [vmem:[%s0 + $0x3f4] sm:$0xf]
  %v270 = vld [vmem:[%s0 + $0x3f8] sm:$0xf]
  %v271 = vld [vmem:[%s0 + $0x3fc] sm:$0xf]
  %v272 = vld [vmem:[%s0 + $0x400] sm:$0xf]
  %v273 = vld [vmem:[%s0 + $0x404] sm:$0xf]
  %v274 = vld [vmem:[%s0 + $0x408] sm:$0xf]
  %v275 = vld [vmem:[%s0 + $0x40c] sm:$0xf]
  %v276 = vld [vmem:[%s0 + $0x410] sm:$0xf]
  %v277 = vld [vmem:[%s0 + $0x414] sm:$0xf]
  %v278 = vld [vmem:[%s0 + $0x418] sm:$0xf]
  %v279 = vld [vmem:[%s0 + $0x41c] sm:$0xf]
  %v280 = vld [vmem:[%s0 + $0x420] sm:$0xf]
  %v281 = vld [vmem:[%s0 + $0x424] sm:$0xf]
  %v282 = vld [vmem:[%s0 + $0x428] sm:$0xf]
  %v283 = vld [vmem:[%s0 + $0x42c] sm:$0xf]
  %v284 = vld [vmem:[%s0 + $0x430] sm:$0xf]
  %v285 = vld [vmem:[%s0 + $0x434] sm:$0xf]
  %v286 = vld [vmem:[%s0 + $0x438] sm:$0xf]
  %v287 = vld [vmem:[%s0 + $0x43c] sm:$0xf]
  %v288 = vld [vmem:[%s0 + $0x440] sm:$0xf]
  %v289 = vld [vmem:[%s0 + $0x444] sm:$0xf]
  %v290 = vld [vmem:[%s0 + $0x448] sm:$0xf]
  %v291 = vld [vmem:[%s0 + $0x44c] sm:$0xf]
  %v292 = vld [vmem:[%s0 + $0x450] sm:$0xf]
  %v293 = vld [vmem:[%s0 + $0x454] sm:$0xf]
  %v294 = vld [vmem:[%s0 + $0x458] sm:$0xf]
  %v295 = vld [vmem:[%s0 + $0x45c] sm:$0xf]
  %v296 = vld [vmem:[%s0 + $0x460] sm:$0xf]
  %v297 = vld [vmem:[%s0 + $0x464] sm:$0xf]
  %v298 = vld [vmem:[%s0 + $0x468] sm:$0xf]
  %v299 = vld [vmem:[%s0 + $0x46c] sm:$0xf]
  %v300 = vld [vmem:[%s0 + $0x470] sm:$0xf]
  %v301 = vld [vmem:[%s0 + $0x474] sm:$0xf]
  %v302 = vld [vmem:[%s0 + $0x478] sm:$0xf]
  %v303 = vld [vmem:[%s0 + $0x47c] sm:$0xf]
  %v304 = vld [vmem:[%s0 + $0x480] sm:$0xf]
  %v305 = vld [vmem:[%s0 + $0x484] sm:$0xf]
  %v306 = vld [vmem:[%s0 + $0x488] sm:$0xf]
  %v307 = vld [vmem:[%s0 + $0x48c] sm:$0xf]
  %v308 = vld [vmem:[%s0 + $0x490] sm:$0xf]
  %v309 = vld [vmem:[%s0 + $0x494] sm:$0xf]
  %v310 = vld [vmem:[%s0 + $0x498] sm:$0xf]
  %v311 = vld [vmem:[%s0 + $0x49c] sm:$0xf]
  %v312 = vld [vmem:[%s0 + $0x4a0] sm:$0xf]
  %v313 = vld [vmem:[%s0 + $0x4a4] sm:$0xf]
  %v314 = vld [vmem:[%s0 + $0x4a8] sm:$0xf]
  %v315 = vld [vmem:[%s0 + $0x4ac] sm:$0xf]
  %v316 = vld [vmem:[%s0 + $0x4b0] sm:$0xf]
  %v317 = vld [vmem:[%s0 + $0x4b4] sm:$0xf]
  %v318 = vld [vmem:[%s0 + $0x4b8] sm:$0xf]
  %v319 = vld [vmem:[%s0 + $0x4bc] sm:$0xf]
  %v320 = vld [vmem:[%s0 + $0x4c0] sm:$0xf]
  %v321 = vld [vmem:[%s0 + $0x4c4] sm:$0xf]
  %v322 = vld [vmem:[%s0 + $0x4c8] sm:$0xf]
  %v323 = vld [vmem:[%s0 + $0x4cc] sm:$0xf]
  %v324 = vld [vmem:[%s0 + $0x4d0] sm:$0xf]
  %v325 = vld [vmem:[%s0 + $0x4d4] sm:$0xf]
  %v326 = vld [vmem:[%s0 + $0x4d8] sm:$0xf]
  %v327 = vld [vmem:[%s0 + $0x4dc] sm:$0xf]
  %v328 = vld [vmem:[%s0 + $0x4e0] sm:$0xf]
  %v329 = vld [vmem:[%s0 + $0x4e4] sm:$0xf]
  %v330 = vld [vmem:[%s0 + $0x4e8] sm:$0xf]
  %v331 = vld [vmem:[%s0 + $0x4ec] sm:$0xf]
  %v332 = vld [vmem:[%s0 + $0x4f0] sm:$0xf]
  %v333 = vld [vmem:[%s0 + $0x4f4] sm:$0xf]
  %v334 = vld [vmem:[%s0 + $0x4f8] sm:$0xf]
  %v335 = vld [vmem:[%s0 + $0x4fc] sm:$0xf]
  %v336 = vld [vmem:[%s0 + $0x500] sm:$0xf]
  %v337 = vld [vmem:[%s0 + $0x504] sm:$0xf]
  %v338 = vld [vmem:[%s0 + $0x508] sm:$0xf]
  %v339 = vld [vmem:[%s0 + $0x50c] sm:$0xf]
  %v340 = vld [vmem:[%s0 + $0x510] sm:$0xf]
  %v341 = vld [vmem:[%s0 + $0x514] sm:$0xf]
  %v342 = vld [vmem:[%s0 + $0x518] sm:$0xf]
  %v343 = vld [vmem:[%s0 + $0x51c] sm:$0xf]
  %v344 = vld [vmem:[%s0 + $0x520] sm:$0xf]
  %v345 = vld [vmem:[%s0 + $0x524] sm:$0xf]
  %v346 = vld [vmem:[%s0 + $0x528] sm:$0xf]
  %v347 = vld [vmem:[%s0 + $0x52c] sm:$0xf]
  %v348 = vld [vmem:[%s0 + $0x530] sm:$0xf]
  %v349 = vld [vmem:[%s0 + $0x534] sm:$0xf]
  %v350 = vld [vmem:[%s0 + $0x538] sm:$0xf]
  %v351 = vld [vmem:[%s0 + $0x53c] sm:$0xf]
  %v352 = vld [vmem:[%s0 + $0x540] sm:$0xf]
  %v353 = vld [vmem:[%s0 + $0x544] sm:$0xf]
  %v354 = vld [vmem:[%s0 + $0x548] sm:$0xf]
  %v355 = vld [vmem:[%s0 + $0x54c] sm:$0xf]
  %v356 = vld [vmem:[%s0 + $0x550] sm:$0xf]
  %v357 = vld [vmem:[%s0 + $0x554] sm:$0xf]
  %v358 = vld [vmem:[%s0 + $0x558] sm:$0xf]
  %v359 = vld [vmem:[%s0 + $0x55c] sm:$0xf]
  %v360 = vld [vmem:[%s0 + $0x560] sm:$0xf]
  %v361 = vld [vmem:[%s0 + $0x564] sm:$0xf]
  %v362 = vld [vmem:[%s0 + $0x568] sm:$0xf]
  %v363 = vld [vmem:[%s0 + $0x56c] sm:$0xf]
  %v364 = vld [vmem:[%s0 + $0x570] sm:$0xf]
  %v365 = vld [vmem:[%s0 + $0x574] sm:$0xf]
  %v366 = vld [vmem:[%s0 + $0x578] sm:$0xf]
  %v367 = vld [vmem:[%s0 + $0x57c] sm:$0xf]
  %v368 = vld [vmem:[%s0 + $0x580] sm:$0xf]
  %v369 = vld [vmem:[%s0 + $0x584] sm:$0xf]
  %v370 = vld [vmem:[%s0 + $0x588] sm:$0xf]
  %v371 = vld [vmem:[%s0 + $0x58c] sm:$0xf]
  %v372 = vld [vmem:[%s0 + $0x590] sm:$0xf]
  %v373 = vld [vmem:[%s0 + $0x594] sm:$0xf]
  %v374 = vld [vmem:[%s0 + $0x598] sm:$0xf]
  %v375 = vld [vmem:[%s0 + $0x59c] sm:$0xf]
  %v376 = vld [vmem:[%s0 + $0x5a0] sm:$0xf]
  %v377 = vld [vmem:[%s0 + $0x5a4] sm:$0xf]
  %v378 = vld [vmem:[%s0 + $0x5a8] sm:$0xf]
  %v379 = vld [vmem:[%s0 + $0x5ac] sm:$0xf]
  %v380 = vld [vmem:[%s0 + $0x5b0] sm:$0xf]
  %v381 = vld [vmem:[%s0 + $0x5b4] sm:$0xf]
  %v382 = vld [vmem:[%s0 + $0x5b8] sm:$0xf]
  %v383 = vld [vmem:[%s0 + $0x5bc] sm:$0xf]
  %v384 = vld [vmem:[%s0 + $0x5c0] sm:$0xf]
  %v385 = vld [vmem:[%s0 + $0x5c4] sm:$0xf]
  %v386 = vld [vmem:[%s0 + $0x5c8] sm:$0xf]
  %v387 = vld [vmem:[%s0 + $0x5cc] sm:$0xf]
  %v388 = vld [vmem:[%s0 + $0x5d0] sm:$0xf]
  %v389 = vld [vmem:[%s0 + $0x5d4] sm:$0xf]
  %v390 = vld [vmem:[%s0 + $0x5d8] sm:$0xf]
  %v391 = vld [vmem:[%s0 + $0x5dc] sm:$0xf]
  %v392 = vld [vmem:[%s0 + $0x5e0] sm:$0xf]
  %v393 = vld [vmem:[%s0 + $0x5e4] sm:$0xf]
  %v394 = vld [vmem:[%s0 + $0x5e8] sm:$0xf]
  %v395 = vld [vmem:[%s0 + $0x5ec] sm:$0xf]
  %v396 = vld [vmem:[%s0 + $0x5f0] sm:$0xf]
  %v397 = vld [vmem:[%s0 + $0x5f4] sm:$0xf]
  %v398 = vld [vmem:[%s0 + $0x5f8] sm:$0xf]
  %v399 = vld [vmem:[%s0 + $0x5fc] sm:$0xf]
  %v400 = vld [vmem:[%s0 + $0x600] sm:$0xf]
  %v401 = vld [vmem:[%s0 + $0x604] sm:$0xf]
  %v402 = vld [vmem:[%s0 + $0x608] sm:$0xf]
  %v403 = vld [vmem:[%s0 + $0x60c] sm:$0xf]
  %v404 = vld [vmem:[%s0 + $0x610] sm:$0xf]
  %v405 = vld [vmem:[%s0 + $0x614] sm:$0xf]
  %v406 = vld [vmem:[%s0 + $0x618] sm:$0xf]
  %v407 = vld [vmem:[%s0 + $0x61c] sm:$0xf]
  %v408 = vld [vmem:[%s0 + $0x620] sm:$0xf]
  %v409 = vld [vmem:[%s0 + $0x624] sm:$0xf]
  %v410 = vld [vmem:[%s0 + $0x628] sm:$0xf]
  %v411 = vld [vmem:[%s0 + $0x62c] sm:$0xf]
  %v412 = vld [vmem:[%s0 + $0x630] sm:$0xf]
  %v413 = vld [vmem:[%s0 + $0x634] sm:$0xf]
  %v414 = vld [vmem:[%s0 + $0x638] sm:$0xf]
  %v415 = vld [vmem:[%s0 + $0x63c] sm:$0xf]
  %v416 = vld [vmem:[%s0 + $0x640] sm:$0xf]
  %v417 = vld [vmem:[%s0 + $0x644] sm:$0xf]
  %v418 = vld [vmem:[%s0 + $0x648] sm:$0xf]
  %v419 = vld [vmem:[%s0 + $0x64c] sm:$0xf]
  %v420 = vld [vmem:[%s0 + $0x650] sm:$0xf]
  %v421 = vld [vmem:[%s0 + $0x654] sm:$0xf]
  %v422 = vld [vmem:[%s0 + $0x658] sm:$0xf]
  %v423 = vld [vmem:[%s0 + $0x65c] sm:$0xf]
  %v424 = vld [vmem:[%s0 + $0x660] sm:$0xf]
  %v425 = vld [vmem:[%s0 + $0x664] sm:$0xf]
  %v426 = vld [vmem:[%s0 + $0x668] sm:$0xf]
  %v427 = vld [vmem:[%s0 + $0x66c] sm:$0xf]
  %v428 = vld [vmem:[%s0 + $0x670] sm:$0xf]
  %v429 = vld [vmem:[%s0 + $0x674] sm:$0xf]
  %v430 = vld [vmem:[%s0 + $0x678] sm:$0xf]
  %v431 = vld [vmem:[%s0 + $0x67c] sm:$0xf]
  %v432 = vld [vmem:[%s0 + $0x680] sm:$0xf]
  %v433 = vld [vmem:[%s0 + $0x684] sm:$0xf]
  %v434 = vld [vmem:[%s0 + $0x688] sm:$0xf]
  %v435 = vld [vmem:[%s0 + $0x68c] sm:$0xf]
  %v436 = vld [vmem:[%s0 + $0x690] sm:$0xf]
  %v437 = vld [vmem:[%s0 + $0x694] sm:$0xf]
  %v438 = vld [vmem:[%s0 + $0x698] sm:$0xf]
  %v439 = vld [vmem:[%s0 + $0x69c] sm:$0xf]
  %v440 = vld [vmem:[%s0 + $0x6a0] sm:$0xf]
  %v441 = vld [vmem:[%s0 + $0x6a4] sm:$0xf]
  %v442 = vld [vmem:[%s0 + $0x6a8] sm:$0xf]
  %v443 = vld [vmem:[%s0 + $0x6ac] sm:$0xf]
  %v444 = vld [vmem:[%s0 + $0x6b0] sm:$0xf]
  %v445 = vld [vmem:[%s0 + $0x6b4] sm:$0xf]
  %v446 = vld [vmem:[%s0 + $0x6b8] sm:$0xf]
  %v447 = vld [vmem:[%s0 + $0x6bc] sm:$0xf]
  %v448 = vld [vmem:[%s0 + $0x6c0] sm:$0xf]
  %v449 = vld [vmem:[%s0 + $0x6c4] sm:$0xf]
  %v450 = vld [vmem:[%s0 + $0x6c8] sm:$0xf]
  %v451 = vld [vmem:[%s0 + $0x6cc] sm:$0xf]
  %v452 = vld [vmem:[%s0 + $0x6d0] sm:$0xf]
  %v453 = vld [vmem:[%s0 + $0x6d4] sm:$0xf]
  %v454 = vld [vmem:[%s0 + $0x6d8] sm:$0xf]
  %v455 = vld [vmem:[%s0 + $0x6dc] sm:$0xf]
  %v456 = vld [vmem:[%s0 + $0x6e0] sm:$0xf]
  %v457 = vld [vmem:[%s0 + $0x6e4] sm:$0xf]
  %v458 = vld [vmem:[%s0 + $0x6e8] sm:$0xf]
  %v459 = vld [vmem:[%s0 + $0x6ec] sm:$0xf]
  %v460 = vld [vmem:[%s0 + $0x6f0] sm:$0xf]
  %v461 = vld [vmem:[%s0 + $0x6f4] sm:$0xf]
  %v462 = vld [vmem:[%s0 + $0x6f8] sm:$0xf]
  %v463 = vld [vmem:[%s0 + $0x6fc] sm:$0xf]
  %v464 = vld [vmem:[%s0 + $0x700] sm:$0xf]
  %v465 = vld [vmem:[%s0 + $0x704] sm:$0xf]
  %v466 = vld [vmem:[%s0 + $0x708] sm:$0xf]
  %v467 = vld [vmem:[%s0 + $0x70c] sm:$0xf]
  %v468 = vld [vmem:[%s0 + $0x710] sm:$0xf]
  %v469 = vld [vmem:[%s0 + $0x714] sm:$0xf]
  %v470 = vld [vmem:[%s0 + $0x718] sm:$0xf]
  %v471 = vld [vmem:[%s0 + $0x71c] sm:$0xf]
  %v472 = vld [vmem:[%s0 + $0x720] sm:$0xf]
  %v473 = vld [vmem:[%s0 + $0x724] sm:$0xf]
  %v474 = vld [vmem:[%s0 + $0x728] sm:$0xf]
  %v475 = vld [vmem:[%s0 + $0x72c] sm:$0xf]
  %v476 = vld [vmem:[%s0 + $0x730] sm:$0xf]
  %v477 = vld [vmem:[%s0 + $0x734] sm:$0xf]
  %v478 = vld [vmem:[%s0 + $0x738] sm:$0xf]
  %v479 = vld [vmem:[%s0 + $0x73c] sm:$0xf]
  %v480 = vld [vmem:[%s0 + $0x740] sm:$0xf]
  %v481 = vld [vmem:[%s0 + $0x744] sm:$0xf]
  %v482 = vld [vmem:[%s0 + $0x748] sm:$0xf]
  %v483 = vld [vmem:[%s0 + $0x74c] sm:$0xf]
  %v484 = vld [vmem:[%s0 + $0x750] sm:$0xf]
  %v485 = vld [vmem:[%s0 + $0x754] sm:$0xf]
  %v486 = vld [vmem:[%s0 + $0x758] sm:$0xf]
  %v487 = vld [vmem:[%s0 + $0x75c] sm:$0xf]
  %v488 = vld [vmem:[%s0 + $0x760] sm:$0xf]
  %v489 = vld [vmem:[%s0 + $0x764] sm:$0xf]
  %v490 = vld [vmem:[%s0 + $0x768] sm:$0xf]
  %v491 = vld [vmem:[%s0 + $0x76c] sm:$0xf]
  %v492 = vld [vmem:[%s0 + $0x770] sm:$0xf]
  %v493 = vld [vmem:[%s0 + $0x774] sm:$0xf]
  %v494 = vld [vmem:[%s0 + $0x778] sm:$0xf]
  %v495 = vld [vmem:[%s0 + $0x77c] sm:$0xf]
  %v496 = vld [vmem:[%s0 + $0x780] sm:$0xf]
  %v497 = vld [vmem:[%s0 + $0x784] sm:$0xf]
  %v498 = vld [vmem:[%s0 + $0x788] sm:$0xf]
  %v499 = vld [vmem:[%s0 + $0x78c] sm:$0xf]
  %v500 = vld [vmem:[%s0 + $0x790] sm:$0xf]
  %v501 = vld [vmem:[%s0 + $0x794] sm:$0xf]
  %v502 = vld [vmem:[%s0 + $0x798] sm:$0xf]
  %v503 = vld [vmem:[%s0 + $0x79c] sm:$0xf]
  %v504 = vld [vmem:[%s0 + $0x7a0] sm:$0xf]
  %v505 = vld [vmem:[%s0 + $0x7a4] sm:$0xf]
  %v506 = vld [vmem:[%s0 + $0x7a8] sm:$0xf]
  %v507 = vld [vmem:[%s0 + $0x7ac] sm:$0xf]
  %v508 = vld [vmem:[%s0 + $0x7b0] sm:$0xf]
  %v509 = vld [vmem:[%s0 + $0x7b4] sm:$0xf]
  %v510 = vld [vmem:[%s0 + $0x7b8] sm:$0xf]
  %v511 = vld [vmem:[%s0 + $0x7bc] sm:$0xf]
  %v512 = vld [vmem:[%s0 + $0x7c0] sm:$0xf]
  %v513 = vld [vmem:[%s0 + $0x7c4] sm:$0xf]
  %v514 = vld [vmem:[%s0 + $0x7c8] sm:$0xf]
  %v515 = vld [vmem:[%s0 + $0x7cc] sm:$0xf]
  %v516 = vld [vmem:[%s0 + $0x7d0] sm:$0xf]
  %v517 = vld [vmem:[%s0 + $0x7d4] sm:$0xf]
  %v518 = vld [vmem:[%s0 + $0x7d8] sm:$0xf]
  %v519 = vld [vmem:[%s0 + $0x7dc] sm:$0xf]
  %v520 = vld [vmem:[%s0 + $0x7e0] sm:$0xf]
  %v521 = vld [vmem:[%s0 + $0x7e4] sm:$0xf]
  %v522 = vld [vmem:[%s0 + $0x7e8] sm:$0xf]
  %v523 = vld [vmem:[%s0 + $0x7ec] sm:$0xf]
  %v524 = vld [vmem:[%s0 + $0x7f0] sm:$0xf]
  %v525 = vld [vmem:[%s0 + $0x7f4] sm:$0xf]
  %v526 = vld [vmem:[%s0 + $0x7f8] sm:$0xf]
  %v527 = vld [vmem:[%s0 + $0x7fc] sm:$0xf]
  %v528 = vld [vmem:[%s0 + $0x800] sm:$0xf]
  %v529 = vld [vmem:[%s0 + $0x804] sm:$0xf]
  %v530 = vld [vmem:[%s0 + $0x808] sm:$0xf]
  %v531 = vld [vmem:[%s0 + $0x80c] sm:$0xf]
  %v532 = vld [vmem:[%s0 + $0x810] sm:$0xf]
  %v533 = vld [vmem:[%s0 + $0x814] sm:$0xf]
  %v534 = vld [vmem:[%s0 + $0x818] sm:$0xf]
  %v535 = vld [vmem:[%s0 + $0x81c] sm:$0xf]
  %v536 = vld [vmem:[%s0 + $0x820] sm:$0xf]
  %v537 = vld [vmem:[%s0 + $0x824] sm:$0xf]
  %v538 = vld [vmem:[%s0 + $0x828] sm:$0xf]
  %v539 = vld [vmem:[%s0 + $0x82c] sm:$0xf]
  %v540 = vld [vmem:[%s0 + $0x830] sm:$0xf]
  %v541 = vld [vmem:[%s0 + $0x834] sm:$0xf]
  %v542 = vld [vmem:[%s0 + $0x838] sm:$0xf]
  %v543 = vld [vmem:[%s0 + $0x83c] sm:$0xf]
  %v544 = vld [vmem:[%s0 + $0x840] sm:$0xf]
  %v545 = vld [vmem:[%s0 + $0x844] sm:$0xf]
  %v546 = vld [vmem:[%s0 + $0x848] sm:$0xf]
  %v547 = vld [vmem:[%s0 + $0x84c] sm:$0xf]
  %v548 = vld [vmem:[%s0 + $0x850] sm:$0xf]
  %v549 = vld [vmem:[%s0 + $0x854] sm:$0xf]
  %v550 = vld [vmem:[%s0 + $0x858] sm:$0xf]
  %v551 = vld [vmem:[%s0 + $0x85c] sm:$0xf]
  %v552 = vld [vmem:[%s0 + $0x860] sm:$0xf]
  %v553 = vld [vmem:[%s0 + $0x864] sm:$0xf]
  %v554 = vld [vmem:[%s0 + $0x868] sm:$0xf]
  %v555 = vld [vmem:[%s0 + $0x86c] sm:$0xf]
  %v556 = vld [vmem:[%s0 + $0x870] sm:$0xf]
  %v557 = vld [vmem:[%s0 + $0x874] sm:$0xf]
  %v558 = vld [vmem:[%s0 + $0x878] sm:$0xf]
  %v559 = vld [vmem:[%s0 + $0x87c] sm:$0xf]
  %v560 = vld [vmem:[%s0 + $0x880] sm:$0xf]
  %v561 = vld [vmem:[%s0 + $0x884] sm:$0xf]
  %v562 = vld [vmem:[%s0 + $0x888] sm:$0xf]
  %v563 = vld [vmem:[%s0 + $0x88c] sm:$0xf]
  %v564 = vld [vmem:[%s0 + $0x890] sm:$0xf]
  %v565 = vld [vmem:[%s0 + $0x894] sm:$0xf]
  %v566 = vld [vmem:[%s0 + $0x898] sm:$0xf]
  %v567 = vld [vmem:[%s0 + $0x89c] sm:$0xf]
  %v568 = vld [vmem:[%s0 + $0x8a0] sm:$0xf]
  %v569 = vld [vmem:[%s0 + $0x8a4] sm:$0xf]
  %v570 = vld [vmem:[%s0 + $0x8a8] sm:$0xf]
  %v571 = vld [vmem:[%s0 + $0x8ac] sm:$0xf]
  %v572 = vld [vmem:[%s0 + $0x8b0] sm:$0xf]
  %v573 = vld [vmem:[%s0 + $0x8b4] sm:$0xf]
  %v574 = vld [vmem:[%s0 + $0x8b8] sm:$0xf]
  %v575 = vld [vmem:[%s0 + $0x8bc] sm:$0xf]
  %v576 = vld [vmem:[%s0 + $0x8c0] sm:$0xf]
  %v577 = vld [vmem:[%s0 + $0x8c4] sm:$0xf]
  %v578 = vld [vmem:[%s0 + $0x8c8] sm:$0xf]
  %v579 = vld [vmem:[%s0 + $0x8cc] sm:$0xf]
  %v580 = vld [vmem:[%s0 + $0x8d0] sm:$0xf]
  %v581 = vld [vmem:[%s0 + $0x8d4] sm:$0xf]
  %v582 = vld [vmem:[%s0 + $0x8d8] sm:$0xf]
  %v583 = vld [vmem:[%s0 + $0x8dc] sm:$0xf]
  %v584 = vld [vmem:[%s0 + $0x8e0] sm:$0xf]
  %v585 = vld [vmem:[%s0 + $0x8e4] sm:$0xf]
  %v586 = vld [vmem:[%s0 + $0x8e8] sm:$0xf]
  %v587 = vld [vmem:[%s0 + $0x8ec] sm:$0xf]
  %v588 = vld [vmem:[%s0 + $0x8f0] sm:$0xf]
  %v589 = vld [vmem:[%s0 + $0x8f4] sm:$0xf]
  %v590 = vld [vmem:[%s0 + $0x8f8] sm:$0xf]
  %v591 = vld [vmem:[%s0 + $0x8fc] sm:$0xf]
  %vm592 = vcmask 1043456
  %v595 = vsel %vm592, %v16, 4286644096
  %v598 = vsel %vm592, %v80, 4286644096
  %v600 = vmax.bf16 %v595, %v598
  %v602 = vsel %vm592, %v144, 4286644096
  %v604 = vmax.bf16 %v600, %v602
  %v606 = vsel %vm592, %v208, 4286644096
  %v608 = vmax.bf16 %v604, %v606
  %v610 = vsel %vm592, %v272, 4286644096
  %v612 = vmax.bf16 %v608, %v610
  %v614 = vsel %vm592, %v336, 4286644096
  %v616 = vmax.bf16 %v612, %v614
  %v618 = vsel %vm592, %v400, 4286644096
  %v620 = vmax.bf16 %v616, %v618
  %v622 = vsel %vm592, %v464, 4286644096
  %v624 = vmax.bf16 %v620, %v622
  %v626 = vsel %vm592, %v528, 4286644096
  %v628 = vmax.bf16 %v624, %v626
  %v630 = vsel %vm592, %v17, 4286644096
  %v633 = vsel %vm592, %v81, 4286644096
  %v635 = vmax.bf16 %v630, %v633
  %v637 = vsel %vm592, %v145, 4286644096
  %v639 = vmax.bf16 %v635, %v637
  %v641 = vsel %vm592, %v209, 4286644096
  %v643 = vmax.bf16 %v639, %v641
  %v645 = vsel %vm592, %v273, 4286644096
  %v647 = vmax.bf16 %v643, %v645
  %v649 = vsel %vm592, %v337, 4286644096
  %v651 = vmax.bf16 %v647, %v649
  %v653 = vsel %vm592, %v401, 4286644096
  %v655 = vmax.bf16 %v651, %v653
  %v657 = vsel %vm592, %v465, 4286644096
  %v659 = vmax.bf16 %v655, %v657
  %v661 = vsel %vm592, %v529, 4286644096
  %v663 = vmax.bf16 %v659, %v661
  %v665 = vsel %vm592, %v18, 4286644096
  %v668 = vsel %vm592, %v82, 4286644096
  %v670 = vmax.bf16 %v665, %v668
  %v672 = vsel %vm592, %v146, 4286644096
  %v674 = vmax.bf16 %v670, %v672
  %v676 = vsel %vm592, %v210, 4286644096
  %v678 = vmax.bf16 %v674, %v676
  %v680 = vsel %vm592, %v274, 4286644096
  %v682 = vmax.bf16 %v678, %v680
  %v684 = vsel %vm592, %v338, 4286644096
  %v686 = vmax.bf16 %v682, %v684
  %v688 = vsel %vm592, %v402, 4286644096
  %v690 = vmax.bf16 %v686, %v688
  %v692 = vsel %vm592, %v466, 4286644096
  %v694 = vmax.bf16 %v690, %v692
  %v696 = vsel %vm592, %v530, 4286644096
  %v698 = vmax.bf16 %v694, %v696
  %v700 = vsel %vm592, %v19, 4286644096
  %v703 = vsel %vm592, %v83, 4286644096
  %v705 = vmax.bf16 %v700, %v703
  %v707 = vsel %vm592, %v147, 4286644096
  %v709 = vmax.bf16 %v705, %v707
  %v711 = vsel %vm592, %v211, 4286644096
  %v713 = vmax.bf16 %v709, %v711
  %v715 = vsel %vm592, %v275, 4286644096
  %v717 = vmax.bf16 %v713, %v715
  %v719 = vsel %vm592, %v339, 4286644096
  %v721 = vmax.bf16 %v717, %v719
  %v723 = vsel %vm592, %v403, 4286644096
  %v725 = vmax.bf16 %v721, %v723
  %v727 = vsel %vm592, %v467, 4286644096
  %v729 = vmax.bf16 %v725, %v727
  %v731 = vsel %vm592, %v531, 4286644096
  %v733 = vmax.bf16 %v729, %v731
  %v735 = vsel %vm592, %v20, 4286644096
  %v738 = vsel %vm592, %v84, 4286644096
  %v740 = vmax.bf16 %v735, %v738
  %v742 = vsel %vm592, %v148, 4286644096
  %v744 = vmax.bf16 %v740, %v742
  %v746 = vsel %vm592, %v212, 4286644096
  %v748 = vmax.bf16 %v744, %v746
  %v750 = vsel %vm592, %v276, 4286644096
  %v752 = vmax.bf16 %v748, %v750
  %v754 = vsel %vm592, %v340, 4286644096
  %v756 = vmax.bf16 %v752, %v754
  %v758 = vsel %vm592, %v404, 4286644096
  %v760 = vmax.bf16 %v756, %v758
  %v762 = vsel %vm592, %v468, 4286644096
  %v764 = vmax.bf16 %v760, %v762
  %v766 = vsel %vm592, %v532, 4286644096
  %v768 = vmax.bf16 %v764, %v766
  %v770 = vsel %vm592, %v21, 4286644096
  %v773 = vsel %vm592, %v85, 4286644096
  %v775 = vmax.bf16 %v770, %v773
  %v777 = vsel %vm592, %v149, 4286644096
  %v779 = vmax.bf16 %v775, %v777
  %v781 = vsel %vm592, %v213, 4286644096
  %v783 = vmax.bf16 %v779, %v781
  %v785 = vsel %vm592, %v277, 4286644096
  %v787 = vmax.bf16 %v783, %v785
  %v789 = vsel %vm592, %v341, 4286644096
  %v791 = vmax.bf16 %v787, %v789
  %v793 = vsel %vm592, %v405, 4286644096
  %v795 = vmax.bf16 %v791, %v793
  %v797 = vsel %vm592, %v469, 4286644096
  %v799 = vmax.bf16 %v795, %v797
  %v801 = vsel %vm592, %v533, 4286644096
  %v803 = vmax.bf16 %v799, %v801
  %v805 = vsel %vm592, %v22, 4286644096
  %v808 = vsel %vm592, %v86, 4286644096
  %v810 = vmax.bf16 %v805, %v808
  %v812 = vsel %vm592, %v150, 4286644096
  %v814 = vmax.bf16 %v810, %v812
  %v816 = vsel %vm592, %v214, 4286644096
  %v818 = vmax.bf16 %v814, %v816
  %v820 = vsel %vm592, %v278, 4286644096
  %v822 = vmax.bf16 %v818, %v820
  %v824 = vsel %vm592, %v342, 4286644096
  %v826 = vmax.bf16 %v822, %v824
  %v828 = vsel %vm592, %v406, 4286644096
  %v830 = vmax.bf16 %v826, %v828
  %v832 = vsel %vm592, %v470, 4286644096
  %v834 = vmax.bf16 %v830, %v832
  %v836 = vsel %vm592, %v534, 4286644096
  %v838 = vmax.bf16 %v834, %v836
  %v840 = vsel %vm592, %v23, 4286644096
  %v843 = vsel %vm592, %v87, 4286644096
  %v845 = vmax.bf16 %v840, %v843
  %v847 = vsel %vm592, %v151, 4286644096
  %v849 = vmax.bf16 %v845, %v847
  %v851 = vsel %vm592, %v215, 4286644096
  %v853 = vmax.bf16 %v849, %v851
  %v855 = vsel %vm592, %v279, 4286644096
  %v857 = vmax.bf16 %v853, %v855
  %v859 = vsel %vm592, %v343, 4286644096
  %v861 = vmax.bf16 %v857, %v859
  %v863 = vsel %vm592, %v407, 4286644096
  %v865 = vmax.bf16 %v861, %v863
  %v867 = vsel %vm592, %v471, 4286644096
  %v869 = vmax.bf16 %v865, %v867
  %v871 = vsel %vm592, %v535, 4286644096
  %v873 = vmax.bf16 %v869, %v871
  %v875 = vsel %vm592, %v24, 4286644096
  %v878 = vsel %vm592, %v88, 4286644096
  %v880 = vmax.bf16 %v875, %v878
  %v882 = vsel %vm592, %v152, 4286644096
  %v884 = vmax.bf16 %v880, %v882
  %v886 = vsel %vm592, %v216, 4286644096
  %v888 = vmax.bf16 %v884, %v886
  %v890 = vsel %vm592, %v280, 4286644096
  %v892 = vmax.bf16 %v888, %v890
  %v894 = vsel %vm592, %v344, 4286644096
  %v896 = vmax.bf16 %v892, %v894
  %v898 = vsel %vm592, %v408, 4286644096
  %v900 = vmax.bf16 %v896, %v898
  %v902 = vsel %vm592, %v472, 4286644096
  %v904 = vmax.bf16 %v900, %v902
  %v906 = vsel %vm592, %v536, 4286644096
  %v908 = vmax.bf16 %v904, %v906
  %v910 = vsel %vm592, %v25, 4286644096
  %v913 = vsel %vm592, %v89, 4286644096
  %v915 = vmax.bf16 %v910, %v913
  %v917 = vsel %vm592, %v153, 4286644096
  %v919 = vmax.bf16 %v915, %v917
  %v921 = vsel %vm592, %v217, 4286644096
  %v923 = vmax.bf16 %v919, %v921
  %v925 = vsel %vm592, %v281, 4286644096
  %v927 = vmax.bf16 %v923, %v925
  %v929 = vsel %vm592, %v345, 4286644096
  %v931 = vmax.bf16 %v927, %v929
  %v933 = vsel %vm592, %v409, 4286644096
  %v935 = vmax.bf16 %v931, %v933
  %v937 = vsel %vm592, %v473, 4286644096
  %v939 = vmax.bf16 %v935, %v937
  %v941 = vsel %vm592, %v537, 4286644096
  %v943 = vmax.bf16 %v939, %v941
  %v945 = vsel %vm592, %v26, 4286644096
  %v948 = vsel %vm592, %v90, 4286644096
  %v950 = vmax.bf16 %v945, %v948
  %v952 = vsel %vm592, %v154, 4286644096
  %v954 = vmax.bf16 %v950, %v952
  %v956 = vsel %vm592, %v218, 4286644096
  %v958 = vmax.bf16 %v954, %v956
  %v960 = vsel %vm592, %v282, 4286644096
  %v962 = vmax.bf16 %v958, %v960
  %v964 = vsel %vm592, %v346, 4286644096
  %v966 = vmax.bf16 %v962, %v964
  %v968 = vsel %vm592, %v410, 4286644096
  %v970 = vmax.bf16 %v966, %v968
  %v972 = vsel %vm592, %v474, 4286644096
  %v974 = vmax.bf16 %v970, %v972
  %v976 = vsel %vm592, %v538, 4286644096
  %v978 = vmax.bf16 %v974, %v976
  %v980 = vsel %vm592, %v27, 4286644096
  %v983 = vsel %vm592, %v91, 4286644096
  %v985 = vmax.bf16 %v980, %v983
  %v987 = vsel %vm592, %v155, 4286644096
  %v989 = vmax.bf16 %v985, %v987
  %v991 = vsel %vm592, %v219, 4286644096
  %v993 = vmax.bf16 %v989, %v991
  %v995 = vsel %vm592, %v283, 4286644096
  %v997 = vmax.bf16 %v993, %v995
  %v999 = vsel %vm592, %v347, 4286644096
  %v1001 = vmax.bf16 %v997, %v999
  %v1003 = vsel %vm592, %v411, 4286644096
  %v1005 = vmax.bf16 %v1001, %v1003
  %v1007 = vsel %vm592, %v475, 4286644096
  %v1009 = vmax.bf16 %v1005, %v1007
  %v1011 = vsel %vm592, %v539, 4286644096
  %v1013 = vmax.bf16 %v1009, %v1011
  %v1015 = vsel %vm592, %v28, 4286644096
  %v1018 = vsel %vm592, %v92, 4286644096
  %v1020 = vmax.bf16 %v1015, %v1018
  %v1022 = vsel %vm592, %v156, 4286644096
  %v1024 = vmax.bf16 %v1020, %v1022
  %v1026 = vsel %vm592, %v220, 4286644096
  %v1028 = vmax.bf16 %v1024, %v1026
  %v1030 = vsel %vm592, %v284, 4286644096
  %v1032 = vmax.bf16 %v1028, %v1030
  %v1034 = vsel %vm592, %v348, 4286644096
  %v1036 = vmax.bf16 %v1032, %v1034
  %v1038 = vsel %vm592, %v412, 4286644096
  %v1040 = vmax.bf16 %v1036, %v1038
  %v1042 = vsel %vm592, %v476, 4286644096
  %v1044 = vmax.bf16 %v1040, %v1042
  %v1046 = vsel %vm592, %v540, 4286644096
  %v1048 = vmax.bf16 %v1044, %v1046
  %v1050 = vsel %vm592, %v29, 4286644096
  %v1053 = vsel %vm592, %v93, 4286644096
  %v1055 = vmax.bf16 %v1050, %v1053
  %v1057 = vsel %vm592, %v157, 4286644096
  %v1059 = vmax.bf16 %v1055, %v1057
  %v1061 = vsel %vm592, %v221, 4286644096
  %v1063 = vmax.bf16 %v1059, %v1061
  %v1065 = vsel %vm592, %v285, 4286644096
  %v1067 = vmax.bf16 %v1063, %v1065
  %v1069 = vsel %vm592, %v349, 4286644096
  %v1071 = vmax.bf16 %v1067, %v1069
  %v1073 = vsel %vm592, %v413, 4286644096
  %v1075 = vmax.bf16 %v1071, %v1073
  %v1077 = vsel %vm592, %v477, 4286644096
  %v1079 = vmax.bf16 %v1075, %v1077
  %v1081 = vsel %vm592, %v541, 4286644096
  %v1083 = vmax.bf16 %v1079, %v1081
  %v1085 = vsel %vm592, %v30, 4286644096
  %v1088 = vsel %vm592, %v94, 4286644096
  %v1090 = vmax.bf16 %v1085, %v1088
  %v1092 = vsel %vm592, %v158, 4286644096
  %v1094 = vmax.bf16 %v1090, %v1092
  %v1096 = vsel %vm592, %v222, 4286644096
  %v1098 = vmax.bf16 %v1094, %v1096
  %v1100 = vsel %vm592, %v286, 4286644096
  %v1102 = vmax.bf16 %v1098, %v1100
  %v1104 = vsel %vm592, %v350, 4286644096
  %v1106 = vmax.bf16 %v1102, %v1104
  %v1108 = vsel %vm592, %v414, 4286644096
  %v1110 = vmax.bf16 %v1106, %v1108
  %v1112 = vsel %vm592, %v478, 4286644096
  %v1114 = vmax.bf16 %v1110, %v1112
  %v1116 = vsel %vm592, %v542, 4286644096
  %v1118 = vmax.bf16 %v1114, %v1116
  %v1120 = vsel %vm592, %v31, 4286644096
  %v1123 = vsel %vm592, %v95, 4286644096
  %v1125 = vmax.bf16 %v1120, %v1123
  %v1127 = vsel %vm592, %v159, 4286644096
  %v1129 = vmax.bf16 %v1125, %v1127
  %v1131 = vsel %vm592, %v223, 4286644096
  %v1133 = vmax.bf16 %v1129, %v1131
  %v1135 = vsel %vm592, %v287, 4286644096
  %v1137 = vmax.bf16 %v1133, %v1135
  %v1139 = vsel %vm592, %v351, 4286644096
  %v1141 = vmax.bf16 %v1137, %v1139
  %v1143 = vsel %vm592, %v415, 4286644096
  %v1145 = vmax.bf16 %v1141, %v1143
  %v1147 = vsel %vm592, %v479, 4286644096
  %v1149 = vmax.bf16 %v1145, %v1147
  %v1151 = vsel %vm592, %v543, 4286644096
  %v1153 = vmax.bf16 %v1149, %v1151
  %v1155 = vsel %vm592, %v32, 4286644096
  %v1158 = vsel %vm592, %v96, 4286644096
  %v1160 = vmax.bf16 %v1155, %v1158
  %v1162 = vsel %vm592, %v160, 4286644096
  %v1164 = vmax.bf16 %v1160, %v1162
  %v1166 = vsel %vm592, %v224, 4286644096
  %v1168 = vmax.bf16 %v1164, %v1166
  %v1170 = vsel %vm592, %v288, 4286644096
  %v1172 = vmax.bf16 %v1168, %v1170
  %v1174 = vsel %vm592, %v352, 4286644096
  %v1176 = vmax.bf16 %v1172, %v1174
  %v1178 = vsel %vm592, %v416, 4286644096
  %v1180 = vmax.bf16 %v1176, %v1178
  %v1182 = vsel %vm592, %v480, 4286644096
  %v1184 = vmax.bf16 %v1180, %v1182
  %v1186 = vsel %vm592, %v544, 4286644096
  %v1188 = vmax.bf16 %v1184, %v1186
  %v1190 = vsel %vm592, %v33, 4286644096
  %v1193 = vsel %vm592, %v97, 4286644096
  %v1195 = vmax.bf16 %v1190, %v1193
  %v1197 = vsel %vm592, %v161, 4286644096
  %v1199 = vmax.bf16 %v1195, %v1197
  %v1201 = vsel %vm592, %v225, 4286644096
  %v1203 = vmax.bf16 %v1199, %v1201
  %v1205 = vsel %vm592, %v289, 4286644096
  %v1207 = vmax.bf16 %v1203, %v1205
  %v1209 = vsel %vm592, %v353, 4286644096
  %v1211 = vmax.bf16 %v1207, %v1209
  %v1213 = vsel %vm592, %v417, 4286644096
  %v1215 = vmax.bf16 %v1211, %v1213
  %v1217 = vsel %vm592, %v481, 4286644096
  %v1219 = vmax.bf16 %v1215, %v1217
  %v1221 = vsel %vm592, %v545, 4286644096
  %v1223 = vmax.bf16 %v1219, %v1221
  %v1225 = vsel %vm592, %v34, 4286644096
  %v1228 = vsel %vm592, %v98, 4286644096
  %v1230 = vmax.bf16 %v1225, %v1228
  %v1232 = vsel %vm592, %v162, 4286644096
  %v1234 = vmax.bf16 %v1230, %v1232
  %v1236 = vsel %vm592, %v226, 4286644096
  %v1238 = vmax.bf16 %v1234, %v1236
  %v1240 = vsel %vm592, %v290, 4286644096
  %v1242 = vmax.bf16 %v1238, %v1240
  %v1244 = vsel %vm592, %v354, 4286644096
  %v1246 = vmax.bf16 %v1242, %v1244
  %v1248 = vsel %vm592, %v418, 4286644096
  %v1250 = vmax.bf16 %v1246, %v1248
  %v1252 = vsel %vm592, %v482, 4286644096
  %v1254 = vmax.bf16 %v1250, %v1252
  %v1256 = vsel %vm592, %v546, 4286644096
  %v1258 = vmax.bf16 %v1254, %v1256
  %v1260 = vsel %vm592, %v35, 4286644096
  %v1263 = vsel %vm592, %v99, 4286644096
  %v1265 = vmax.bf16 %v1260, %v1263
  %v1267 = vsel %vm592, %v163, 4286644096
  %v1269 = vmax.bf16 %v1265, %v1267
  %v1271 = vsel %vm592, %v227, 4286644096
  %v1273 = vmax.bf16 %v1269, %v1271
  %v1275 = vsel %vm592, %v291, 4286644096
  %v1277 = vmax.bf16 %v1273, %v1275
  %v1279 = vsel %vm592, %v355, 4286644096
  %v1281 = vmax.bf16 %v1277, %v1279
  %v1283 = vsel %vm592, %v419, 4286644096
  %v1285 = vmax.bf16 %v1281, %v1283
  %v1287 = vsel %vm592, %v483, 4286644096
  %v1289 = vmax.bf16 %v1285, %v1287
  %v1291 = vsel %vm592, %v547, 4286644096
  %v1293 = vmax.bf16 %v1289, %v1291
  %v1295 = vsel %vm592, %v36, 4286644096
  %v1298 = vsel %vm592, %v100, 4286644096
  %v1300 = vmax.bf16 %v1295, %v1298
  %v1302 = vsel %vm592, %v164, 4286644096
  %v1304 = vmax.bf16 %v1300, %v1302
  %v1306 = vsel %vm592, %v228, 4286644096
  %v1308 = vmax.bf16 %v1304, %v1306
  %v1310 = vsel %vm592, %v292, 4286644096
  %v1312 = vmax.bf16 %v1308, %v1310
  %v1314 = vsel %vm592, %v356, 4286644096
  %v1316 = vmax.bf16 %v1312, %v1314
  %v1318 = vsel %vm592, %v420, 4286644096
  %v1320 = vmax.bf16 %v1316, %v1318
  %v1322 = vsel %vm592, %v484, 4286644096
  %v1324 = vmax.bf16 %v1320, %v1322
  %v1326 = vsel %vm592, %v548, 4286644096
  %v1328 = vmax.bf16 %v1324, %v1326
  %v1330 = vsel %vm592, %v37, 4286644096
  %v1333 = vsel %vm592, %v101, 4286644096
  %v1335 = vmax.bf16 %v1330, %v1333
  %v1337 = vsel %vm592, %v165, 4286644096
  %v1339 = vmax.bf16 %v1335, %v1337
  %v1341 = vsel %vm592, %v229, 4286644096
  %v1343 = vmax.bf16 %v1339, %v1341
  %v1345 = vsel %vm592, %v293, 4286644096
  %v1347 = vmax.bf16 %v1343, %v1345
  %v1349 = vsel %vm592, %v357, 4286644096
  %v1351 = vmax.bf16 %v1347, %v1349
  %v1353 = vsel %vm592, %v421, 4286644096
  %v1355 = vmax.bf16 %v1351, %v1353
  %v1357 = vsel %vm592, %v485, 4286644096
  %v1359 = vmax.bf16 %v1355, %v1357
  %v1361 = vsel %vm592, %v549, 4286644096
  %v1363 = vmax.bf16 %v1359, %v1361
  %v1365 = vsel %vm592, %v38, 4286644096
  %v1368 = vsel %vm592, %v102, 4286644096
  %v1370 = vmax.bf16 %v1365, %v1368
  %v1372 = vsel %vm592, %v166, 4286644096
  %v1374 = vmax.bf16 %v1370, %v1372
  %v1376 = vsel %vm592, %v230, 4286644096
  %v1378 = vmax.bf16 %v1374, %v1376
  %v1380 = vsel %vm592, %v294, 4286644096
  %v1382 = vmax.bf16 %v1378, %v1380
  %v1384 = vsel %vm592, %v358, 4286644096
  %v1386 = vmax.bf16 %v1382, %v1384
  %v1388 = vsel %vm592, %v422, 4286644096
  %v1390 = vmax.bf16 %v1386, %v1388
  %v1392 = vsel %vm592, %v486, 4286644096
  %v1394 = vmax.bf16 %v1390, %v1392
  %v1396 = vsel %vm592, %v550, 4286644096
  %v1398 = vmax.bf16 %v1394, %v1396
  %v1400 = vsel %vm592, %v39, 4286644096
  %v1403 = vsel %vm592, %v103, 4286644096
  %v1405 = vmax.bf16 %v1400, %v1403
  %v1407 = vsel %vm592, %v167, 4286644096
  %v1409 = vmax.bf16 %v1405, %v1407
  %v1411 = vsel %vm592, %v231, 4286644096
  %v1413 = vmax.bf16 %v1409, %v1411
  %v1415 = vsel %vm592, %v295, 4286644096
  %v1417 = vmax.bf16 %v1413, %v1415
  %v1419 = vsel %vm592, %v359, 4286644096
  %v1421 = vmax.bf16 %v1417, %v1419
  %v1423 = vsel %vm592, %v423, 4286644096
  %v1425 = vmax.bf16 %v1421, %v1423
  %v1427 = vsel %vm592, %v487, 4286644096
  %v1429 = vmax.bf16 %v1425, %v1427
  %v1431 = vsel %vm592, %v551, 4286644096
  %v1433 = vmax.bf16 %v1429, %v1431
  %v1435 = vsel %vm592, %v40, 4286644096
  %v1438 = vsel %vm592, %v104, 4286644096
  %v1440 = vmax.bf16 %v1435, %v1438
  %v1442 = vsel %vm592, %v168, 4286644096
  %v1444 = vmax.bf16 %v1440, %v1442
  %v1446 = vsel %vm592, %v232, 4286644096
  %v1448 = vmax.bf16 %v1444, %v1446
  %v1450 = vsel %vm592, %v296, 4286644096
  %v1452 = vmax.bf16 %v1448, %v1450
  %v1454 = vsel %vm592, %v360, 4286644096
  %v1456 = vmax.bf16 %v1452, %v1454
  %v1458 = vsel %vm592, %v424, 4286644096
  %v1460 = vmax.bf16 %v1456, %v1458
  %v1462 = vsel %vm592, %v488, 4286644096
  %v1464 = vmax.bf16 %v1460, %v1462
  %v1466 = vsel %vm592, %v552, 4286644096
  %v1468 = vmax.bf16 %v1464, %v1466
  %v1470 = vsel %vm592, %v41, 4286644096
  %v1473 = vsel %vm592, %v105, 4286644096
  %v1475 = vmax.bf16 %v1470, %v1473
  %v1477 = vsel %vm592, %v169, 4286644096
  %v1479 = vmax.bf16 %v1475, %v1477
  %v1481 = vsel %vm592, %v233, 4286644096
  %v1483 = vmax.bf16 %v1479, %v1481
  %v1485 = vsel %vm592, %v297, 4286644096
  %v1487 = vmax.bf16 %v1483, %v1485
  %v1489 = vsel %vm592, %v361, 4286644096
  %v1491 = vmax.bf16 %v1487, %v1489
  %v1493 = vsel %vm592, %v425, 4286644096
  %v1495 = vmax.bf16 %v1491, %v1493
  %v1497 = vsel %vm592, %v489, 4286644096
  %v1499 = vmax.bf16 %v1495, %v1497
  %v1501 = vsel %vm592, %v553, 4286644096
  %v1503 = vmax.bf16 %v1499, %v1501
  %v1505 = vsel %vm592, %v42, 4286644096
  %v1508 = vsel %vm592, %v106, 4286644096
  %v1510 = vmax.bf16 %v1505, %v1508
  %v1512 = vsel %vm592, %v170, 4286644096
  %v1514 = vmax.bf16 %v1510, %v1512
  %v1516 = vsel %vm592, %v234, 4286644096
  %v1518 = vmax.bf16 %v1514, %v1516
  %v1520 = vsel %vm592, %v298, 4286644096
  %v1522 = vmax.bf16 %v1518, %v1520
  %v1524 = vsel %vm592, %v362, 4286644096
  %v1526 = vmax.bf16 %v1522, %v1524
  %v1528 = vsel %vm592, %v426, 4286644096
  %v1530 = vmax.bf16 %v1526, %v1528
  %v1532 = vsel %vm592, %v490, 4286644096
  %v1534 = vmax.bf16 %v1530, %v1532
  %v1536 = vsel %vm592, %v554, 4286644096
  %v1538 = vmax.bf16 %v1534, %v1536
  %v1540 = vsel %vm592, %v43, 4286644096
  %v1543 = vsel %vm592, %v107, 4286644096
  %v1545 = vmax.bf16 %v1540, %v1543
  %v1547 = vsel %vm592, %v171, 4286644096
  %v1549 = vmax.bf16 %v1545, %v1547
  %v1551 = vsel %vm592, %v235, 4286644096
  %v1553 = vmax.bf16 %v1549, %v1551
  %v1555 = vsel %vm592, %v299, 4286644096
  %v1557 = vmax.bf16 %v1553, %v1555
  %v1559 = vsel %vm592, %v363, 4286644096
  %v1561 = vmax.bf16 %v1557, %v1559
  %v1563 = vsel %vm592, %v427, 4286644096
  %v1565 = vmax.bf16 %v1561, %v1563
  %v1567 = vsel %vm592, %v491, 4286644096
  %v1569 = vmax.bf16 %v1565, %v1567
  %v1571 = vsel %vm592, %v555, 4286644096
  %v1573 = vmax.bf16 %v1569, %v1571
  %v1575 = vsel %vm592, %v44, 4286644096
  %v1578 = vsel %vm592, %v108, 4286644096
  %v1580 = vmax.bf16 %v1575, %v1578
  %v1582 = vsel %vm592, %v172, 4286644096
  %v1584 = vmax.bf16 %v1580, %v1582
  %v1586 = vsel %vm592, %v236, 4286644096
  %v1588 = vmax.bf16 %v1584, %v1586
  %v1590 = vsel %vm592, %v300, 4286644096
  %v1592 = vmax.bf16 %v1588, %v1590
  %v1594 = vsel %vm592, %v364, 4286644096
  %v1596 = vmax.bf16 %v1592, %v1594
  %v1598 = vsel %vm592, %v428, 4286644096
  %v1600 = vmax.bf16 %v1596, %v1598
  %v1602 = vsel %vm592, %v492, 4286644096
  %v1604 = vmax.bf16 %v1600, %v1602
  %v1606 = vsel %vm592, %v556, 4286644096
  %v1608 = vmax.bf16 %v1604, %v1606
  %v1610 = vsel %vm592, %v45, 4286644096
  %v1613 = vsel %vm592, %v109, 4286644096
  %v1615 = vmax.bf16 %v1610, %v1613
  %v1617 = vsel %vm592, %v173, 4286644096
  %v1619 = vmax.bf16 %v1615, %v1617
  %v1621 = vsel %vm592, %v237, 4286644096
  %v1623 = vmax.bf16 %v1619, %v1621
  %v1625 = vsel %vm592, %v301, 4286644096
  %v1627 = vmax.bf16 %v1623, %v1625
  %v1629 = vsel %vm592, %v365, 4286644096
  %v1631 = vmax.bf16 %v1627, %v1629
  %v1633 = vsel %vm592, %v429, 4286644096
  %v1635 = vmax.bf16 %v1631, %v1633
  %v1637 = vsel %vm592, %v493, 4286644096
  %v1639 = vmax.bf16 %v1635, %v1637
  %v1641 = vsel %vm592, %v557, 4286644096
  %v1643 = vmax.bf16 %v1639, %v1641
  %v1645 = vsel %vm592, %v46, 4286644096
  %v1648 = vsel %vm592, %v110, 4286644096
  %v1650 = vmax.bf16 %v1645, %v1648
  %v1652 = vsel %vm592, %v174, 4286644096
  %v1654 = vmax.bf16 %v1650, %v1652
  %v1656 = vsel %vm592, %v238, 4286644096
  %v1658 = vmax.bf16 %v1654, %v1656
  %v1660 = vsel %vm592, %v302, 4286644096
  %v1662 = vmax.bf16 %v1658, %v1660
  %v1664 = vsel %vm592, %v366, 4286644096
  %v1666 = vmax.bf16 %v1662, %v1664
  %v1668 = vsel %vm592, %v430, 4286644096
  %v1670 = vmax.bf16 %v1666, %v1668
  %v1672 = vsel %vm592, %v494, 4286644096
  %v1674 = vmax.bf16 %v1670, %v1672
  %v1676 = vsel %vm592, %v558, 4286644096
  %v1678 = vmax.bf16 %v1674, %v1676
  %v1680 = vsel %vm592, %v47, 4286644096
  %v1683 = vsel %vm592, %v111, 4286644096
  %v1685 = vmax.bf16 %v1680, %v1683
  %v1687 = vsel %vm592, %v175, 4286644096
  %v1689 = vmax.bf16 %v1685, %v1687
  %v1691 = vsel %vm592, %v239, 4286644096
  %v1693 = vmax.bf16 %v1689, %v1691
  %v1695 = vsel %vm592, %v303, 4286644096
  %v1697 = vmax.bf16 %v1693, %v1695
  %v1699 = vsel %vm592, %v367, 4286644096
  %v1701 = vmax.bf16 %v1697, %v1699
  %v1703 = vsel %vm592, %v431, 4286644096
  %v1705 = vmax.bf16 %v1701, %v1703
  %v1707 = vsel %vm592, %v495, 4286644096
  %v1709 = vmax.bf16 %v1705, %v1707
  %v1711 = vsel %vm592, %v559, 4286644096
  %v1713 = vmax.bf16 %v1709, %v1711
  %v1715 = vsel %vm592, %v48, 4286644096
  %v1718 = vsel %vm592, %v112, 4286644096
  %v1720 = vmax.bf16 %v1715, %v1718
  %v1722 = vsel %vm592, %v176, 4286644096
  %v1724 = vmax.bf16 %v1720, %v1722
  %v1726 = vsel %vm592, %v240, 4286644096
  %v1728 = vmax.bf16 %v1724, %v1726
  %v1730 = vsel %vm592, %v304, 4286644096
  %v1732 = vmax.bf16 %v1728, %v1730
  %v1734 = vsel %vm592, %v368, 4286644096
  %v1736 = vmax.bf16 %v1732, %v1734
  %v1738 = vsel %vm592, %v432, 4286644096
  %v1740 = vmax.bf16 %v1736, %v1738
  %v1742 = vsel %vm592, %v496, 4286644096
  %v1744 = vmax.bf16 %v1740, %v1742
  %v1746 = vsel %vm592, %v560, 4286644096
  %v1748 = vmax.bf16 %v1744, %v1746
  %v1750 = vsel %vm592, %v49, 4286644096
  %v1753 = vsel %vm592, %v113, 4286644096
  %v1755 = vmax.bf16 %v1750, %v1753
  %v1757 = vsel %vm592, %v177, 4286644096
  %v1759 = vmax.bf16 %v1755, %v1757
  %v1761 = vsel %vm592, %v241, 4286644096
  %v1763 = vmax.bf16 %v1759, %v1761
  %v1765 = vsel %vm592, %v305, 4286644096
  %v1767 = vmax.bf16 %v1763, %v1765
  %v1769 = vsel %vm592, %v369, 4286644096
  %v1771 = vmax.bf16 %v1767, %v1769
  %v1773 = vsel %vm592, %v433, 4286644096
  %v1775 = vmax.bf16 %v1771, %v1773
  %v1777 = vsel %vm592, %v497, 4286644096
  %v1779 = vmax.bf16 %v1775, %v1777
  %v1781 = vsel %vm592, %v561, 4286644096
  %v1783 = vmax.bf16 %v1779, %v1781
  %v1785 = vsel %vm592, %v50, 4286644096
  %v1788 = vsel %vm592, %v114, 4286644096
  %v1790 = vmax.bf16 %v1785, %v1788
  %v1792 = vsel %vm592, %v178, 4286644096
  %v1794 = vmax.bf16 %v1790, %v1792
  %v1796 = vsel %vm592, %v242, 4286644096
  %v1798 = vmax.bf16 %v1794, %v1796
  %v1800 = vsel %vm592, %v306, 4286644096
  %v1802 = vmax.bf16 %v1798, %v1800
  %v1804 = vsel %vm592, %v370, 4286644096
  %v1806 = vmax.bf16 %v1802, %v1804
  %v1808 = vsel %vm592, %v434, 4286644096
  %v1810 = vmax.bf16 %v1806, %v1808
  %v1812 = vsel %vm592, %v498, 4286644096
  %v1814 = vmax.bf16 %v1810, %v1812
  %v1816 = vsel %vm592, %v562, 4286644096
  %v1818 = vmax.bf16 %v1814, %v1816
  %v1820 = vsel %vm592, %v51, 4286644096
  %v1823 = vsel %vm592, %v115, 4286644096
  %v1825 = vmax.bf16 %v1820, %v1823
  %v1827 = vsel %vm592, %v179, 4286644096
  %v1829 = vmax.bf16 %v1825, %v1827
  %v1831 = vsel %vm592, %v243, 4286644096
  %v1833 = vmax.bf16 %v1829, %v1831
  %v1835 = vsel %vm592, %v307, 4286644096
  %v1837 = vmax.bf16 %v1833, %v1835
  %v1839 = vsel %vm592, %v371, 4286644096
  %v1841 = vmax.bf16 %v1837, %v1839
  %v1843 = vsel %vm592, %v435, 4286644096
  %v1845 = vmax.bf16 %v1841, %v1843
  %v1847 = vsel %vm592, %v499, 4286644096
  %v1849 = vmax.bf16 %v1845, %v1847
  %v1851 = vsel %vm592, %v563, 4286644096
  %v1853 = vmax.bf16 %v1849, %v1851
  %v1855 = vsel %vm592, %v52, 4286644096
  %v1858 = vsel %vm592, %v116, 4286644096
  %v1860 = vmax.bf16 %v1855, %v1858
  %v1862 = vsel %vm592, %v180, 4286644096
  %v1864 = vmax.bf16 %v1860, %v1862
  %v1866 = vsel %vm592, %v244, 4286644096
  %v1868 = vmax.bf16 %v1864, %v1866
  %v1870 = vsel %vm592, %v308, 4286644096
  %v1872 = vmax.bf16 %v1868, %v1870
  %v1874 = vsel %vm592, %v372, 4286644096
  %v1876 = vmax.bf16 %v1872, %v1874
  %v1878 = vsel %vm592, %v436, 4286644096
  %v1880 = vmax.bf16 %v1876, %v1878
  %v1882 = vsel %vm592, %v500, 4286644096
  %v1884 = vmax.bf16 %v1880, %v1882
  %v1886 = vsel %vm592, %v564, 4286644096
  %v1888 = vmax.bf16 %v1884, %v1886
  %v1890 = vsel %vm592, %v53, 4286644096
  %v1893 = vsel %vm592, %v117, 4286644096
  %v1895 = vmax.bf16 %v1890, %v1893
  %v1897 = vsel %vm592, %v181, 4286644096
  %v1899 = vmax.bf16 %v1895, %v1897
  %v1901 = vsel %vm592, %v245, 4286644096
  %v1903 = vmax.bf16 %v1899, %v1901
  %v1905 = vsel %vm592, %v309, 4286644096
  %v1907 = vmax.bf16 %v1903, %v1905
  %v1909 = vsel %vm592, %v373, 4286644096
  %v1911 = vmax.bf16 %v1907, %v1909
  %v1913 = vsel %vm592, %v437, 4286644096
  %v1915 = vmax.bf16 %v1911, %v1913
  %v1917 = vsel %vm592, %v501, 4286644096
  %v1919 = vmax.bf16 %v1915, %v1917
  %v1921 = vsel %vm592, %v565, 4286644096
  %v1923 = vmax.bf16 %v1919, %v1921
  %v1925 = vsel %vm592, %v54, 4286644096
  %v1928 = vsel %vm592, %v118, 4286644096
  %v1930 = vmax.bf16 %v1925, %v1928
  %v1932 = vsel %vm592, %v182, 4286644096
  %v1934 = vmax.bf16 %v1930, %v1932
  %v1936 = vsel %vm592, %v246, 4286644096
  %v1938 = vmax.bf16 %v1934, %v1936
  %v1940 = vsel %vm592, %v310, 4286644096
  %v1942 = vmax.bf16 %v1938, %v1940
  %v1944 = vsel %vm592, %v374, 4286644096
  %v1946 = vmax.bf16 %v1942, %v1944
  %v1948 = vsel %vm592, %v438, 4286644096
  %v1950 = vmax.bf16 %v1946, %v1948
  %v1952 = vsel %vm592, %v502, 4286644096
  %v1954 = vmax.bf16 %v1950, %v1952
  %v1956 = vsel %vm592, %v566, 4286644096
  %v1958 = vmax.bf16 %v1954, %v1956
  %v1960 = vsel %vm592, %v55, 4286644096
  %v1963 = vsel %vm592, %v119, 4286644096
  %v1965 = vmax.bf16 %v1960, %v1963
  %v1967 = vsel %vm592, %v183, 4286644096
  %v1969 = vmax.bf16 %v1965, %v1967
  %v1971 = vsel %vm592, %v247, 4286644096
  %v1973 = vmax.bf16 %v1969, %v1971
  %v1975 = vsel %vm592, %v311, 4286644096
  %v1977 = vmax.bf16 %v1973, %v1975
  %v1979 = vsel %vm592, %v375, 4286644096
  %v1981 = vmax.bf16 %v1977, %v1979
  %v1983 = vsel %vm592, %v439, 4286644096
  %v1985 = vmax.bf16 %v1981, %v1983
  %v1987 = vsel %vm592, %v503, 4286644096
  %v1989 = vmax.bf16 %v1985, %v1987
  %v1991 = vsel %vm592, %v567, 4286644096
  %v1993 = vmax.bf16 %v1989, %v1991
  %v1995 = vsel %vm592, %v56, 4286644096
  %v1998 = vsel %vm592, %v120, 4286644096
  %v2000 = vmax.bf16 %v1995, %v1998
  %v2002 = vsel %vm592, %v184, 4286644096
  %v2004 = vmax.bf16 %v2000, %v2002
  %v2006 = vsel %vm592, %v248, 4286644096
  %v2008 = vmax.bf16 %v2004, %v2006
  %v2010 = vsel %vm592, %v312, 4286644096
  %v2012 = vmax.bf16 %v2008, %v2010
  %v2014 = vsel %vm592, %v376, 4286644096
  %v2016 = vmax.bf16 %v2012, %v2014
  %v2018 = vsel %vm592, %v440, 4286644096
  %v2020 = vmax.bf16 %v2016, %v2018
  %v2022 = vsel %vm592, %v504, 4286644096
  %v2024 = vmax.bf16 %v2020, %v2022
  %v2026 = vsel %vm592, %v568, 4286644096
  %v2028 = vmax.bf16 %v2024, %v2026
  %v2030 = vsel %vm592, %v57, 4286644096
  %v2033 = vsel %vm592, %v121, 4286644096
  %v2035 = vmax.bf16 %v2030, %v2033
  %v2037 = vsel %vm592, %v185, 4286644096
  %v2039 = vmax.bf16 %v2035, %v2037
  %v2041 = vsel %vm592, %v249, 4286644096
  %v2043 = vmax.bf16 %v2039, %v2041
  %v2045 = vsel %vm592, %v313, 4286644096
  %v2047 = vmax.bf16 %v2043, %v2045
  %v2049 = vsel %vm592, %v377, 4286644096
  %v2051 = vmax.bf16 %v2047, %v2049
  %v2053 = vsel %vm592, %v441, 4286644096
  %v2055 = vmax.bf16 %v2051, %v2053
  %v2057 = vsel %vm592, %v505, 4286644096
  %v2059 = vmax.bf16 %v2055, %v2057
  %v2061 = vsel %vm592, %v569, 4286644096
  %v2063 = vmax.bf16 %v2059, %v2061
  %v2065 = vsel %vm592, %v58, 4286644096
  %v2068 = vsel %vm592, %v122, 4286644096
  %v2070 = vmax.bf16 %v2065, %v2068
  %v2072 = vsel %vm592, %v186, 4286644096
  %v2074 = vmax.bf16 %v2070, %v2072
  %v2076 = vsel %vm592, %v250, 4286644096
  %v2078 = vmax.bf16 %v2074, %v2076
  %v2080 = vsel %vm592, %v314, 4286644096
  %v2082 = vmax.bf16 %v2078, %v2080
  %v2084 = vsel %vm592, %v378, 4286644096
  %v2086 = vmax.bf16 %v2082, %v2084
  %v2088 = vsel %vm592, %v442, 4286644096
  %v2090 = vmax.bf16 %v2086, %v2088
  %v2092 = vsel %vm592, %v506, 4286644096
  %v2094 = vmax.bf16 %v2090, %v2092
  %v2096 = vsel %vm592, %v570, 4286644096
  %v2098 = vmax.bf16 %v2094, %v2096
  %v2100 = vsel %vm592, %v59, 4286644096
  %v2103 = vsel %vm592, %v123, 4286644096
  %v2105 = vmax.bf16 %v2100, %v2103
  %v2107 = vsel %vm592, %v187, 4286644096
  %v2109 = vmax.bf16 %v2105, %v2107
  %v2111 = vsel %vm592, %v251, 4286644096
  %v2113 = vmax.bf16 %v2109, %v2111
  %v2115 = vsel %vm592, %v315, 4286644096
  %v2117 = vmax.bf16 %v2113, %v2115
  %v2119 = vsel %vm592, %v379, 4286644096
  %v2121 = vmax.bf16 %v2117, %v2119
  %v2123 = vsel %vm592, %v443, 4286644096
  %v2125 = vmax.bf16 %v2121, %v2123
  %v2127 = vsel %vm592, %v507, 4286644096
  %v2129 = vmax.bf16 %v2125, %v2127
  %v2131 = vsel %vm592, %v571, 4286644096
  %v2133 = vmax.bf16 %v2129, %v2131
  %v2135 = vsel %vm592, %v60, 4286644096
  %v2138 = vsel %vm592, %v124, 4286644096
  %v2140 = vmax.bf16 %v2135, %v2138
  %v2142 = vsel %vm592, %v188, 4286644096
  %v2144 = vmax.bf16 %v2140, %v2142
  %v2146 = vsel %vm592, %v252, 4286644096
  %v2148 = vmax.bf16 %v2144, %v2146
  %v2150 = vsel %vm592, %v316, 4286644096
  %v2152 = vmax.bf16 %v2148, %v2150
  %v2154 = vsel %vm592, %v380, 4286644096
  %v2156 = vmax.bf16 %v2152, %v2154
  %v2158 = vsel %vm592, %v444, 4286644096
  %v2160 = vmax.bf16 %v2156, %v2158
  %v2162 = vsel %vm592, %v508, 4286644096
  %v2164 = vmax.bf16 %v2160, %v2162
  %v2166 = vsel %vm592, %v572, 4286644096
  %v2168 = vmax.bf16 %v2164, %v2166
  %v2170 = vsel %vm592, %v61, 4286644096
  %v2173 = vsel %vm592, %v125, 4286644096
  %v2175 = vmax.bf16 %v2170, %v2173
  %v2177 = vsel %vm592, %v189, 4286644096
  %v2179 = vmax.bf16 %v2175, %v2177
  %v2181 = vsel %vm592, %v253, 4286644096
  %v2183 = vmax.bf16 %v2179, %v2181
  %v2185 = vsel %vm592, %v317, 4286644096
  %v2187 = vmax.bf16 %v2183, %v2185
  %v2189 = vsel %vm592, %v381, 4286644096
  %v2191 = vmax.bf16 %v2187, %v2189
  %v2193 = vsel %vm592, %v445, 4286644096
  %v2195 = vmax.bf16 %v2191, %v2193
  %v2197 = vsel %vm592, %v509, 4286644096
  %v2199 = vmax.bf16 %v2195, %v2197
  %v2201 = vsel %vm592, %v573, 4286644096
  %v2203 = vmax.bf16 %v2199, %v2201
  %v2205 = vsel %vm592, %v62, 4286644096
  %v2208 = vsel %vm592, %v126, 4286644096
  %v2210 = vmax.bf16 %v2205, %v2208
  %v2212 = vsel %vm592, %v190, 4286644096
  %v2214 = vmax.bf16 %v2210, %v2212
  %v2216 = vsel %vm592, %v254, 4286644096
  %v2218 = vmax.bf16 %v2214, %v2216
  %v2220 = vsel %vm592, %v318, 4286644096
  %v2222 = vmax.bf16 %v2218, %v2220
  %v2224 = vsel %vm592, %v382, 4286644096
  %v2226 = vmax.bf16 %v2222, %v2224
  %v2228 = vsel %vm592, %v446, 4286644096
  %v2230 = vmax.bf16 %v2226, %v2228
  %v2232 = vsel %vm592, %v510, 4286644096
  %v2234 = vmax.bf16 %v2230, %v2232
  %v2236 = vsel %vm592, %v574, 4286644096
  %v2238 = vmax.bf16 %v2234, %v2236
  %v2240 = vsel %vm592, %v63, 4286644096
  %v2243 = vsel %vm592, %v127, 4286644096
  %v2245 = vmax.bf16 %v2240, %v2243
  %v2247 = vsel %vm592, %v191, 4286644096
  %v2249 = vmax.bf16 %v2245, %v2247
  %v2251 = vsel %vm592, %v255, 4286644096
  %v2253 = vmax.bf16 %v2249, %v2251
  %v2255 = vsel %vm592, %v319, 4286644096
  %v2257 = vmax.bf16 %v2253, %v2255
  %v2259 = vsel %vm592, %v383, 4286644096
  %v2261 = vmax.bf16 %v2257, %v2259
  %v2263 = vsel %vm592, %v447, 4286644096
  %v2265 = vmax.bf16 %v2261, %v2263
  %v2267 = vsel %vm592, %v511, 4286644096
  %v2269 = vmax.bf16 %v2265, %v2267
  %v2271 = vsel %vm592, %v575, 4286644096
  %v2273 = vmax.bf16 %v2269, %v2271
  %v2275 = vsel %vm592, %v64, 4286644096
  %v2278 = vsel %vm592, %v128, 4286644096
  %v2280 = vmax.bf16 %v2275, %v2278
  %v2282 = vsel %vm592, %v192, 4286644096
  %v2284 = vmax.bf16 %v2280, %v2282
  %v2286 = vsel %vm592, %v256, 4286644096
  %v2288 = vmax.bf16 %v2284, %v2286
  %v2290 = vsel %vm592, %v320, 4286644096
  %v2292 = vmax.bf16 %v2288, %v2290
  %v2294 = vsel %vm592, %v384, 4286644096
  %v2296 = vmax.bf16 %v2292, %v2294
  %v2298 = vsel %vm592, %v448, 4286644096
  %v2300 = vmax.bf16 %v2296, %v2298
  %v2302 = vsel %vm592, %v512, 4286644096
  %v2304 = vmax.bf16 %v2300, %v2302
  %v2306 = vsel %vm592, %v576, 4286644096
  %v2308 = vmax.bf16 %v2304, %v2306
  %v2310 = vsel %vm592, %v65, 4286644096
  %v2313 = vsel %vm592, %v129, 4286644096
  %v2315 = vmax.bf16 %v2310, %v2313
  %v2317 = vsel %vm592, %v193, 4286644096
  %v2319 = vmax.bf16 %v2315, %v2317
  %v2321 = vsel %vm592, %v257, 4286644096
  %v2323 = vmax.bf16 %v2319, %v2321
  %v2325 = vsel %vm592, %v321, 4286644096
  %v2327 = vmax.bf16 %v2323, %v2325
  %v2329 = vsel %vm592, %v385, 4286644096
  %v2331 = vmax.bf16 %v2327, %v2329
  %v2333 = vsel %vm592, %v449, 4286644096
  %v2335 = vmax.bf16 %v2331, %v2333
  %v2337 = vsel %vm592, %v513, 4286644096
  %v2339 = vmax.bf16 %v2335, %v2337
  %v2341 = vsel %vm592, %v577, 4286644096
  %v2343 = vmax.bf16 %v2339, %v2341
  %v2345 = vsel %vm592, %v66, 4286644096
  %v2348 = vsel %vm592, %v130, 4286644096
  %v2350 = vmax.bf16 %v2345, %v2348
  %v2352 = vsel %vm592, %v194, 4286644096
  %v2354 = vmax.bf16 %v2350, %v2352
  %v2356 = vsel %vm592, %v258, 4286644096
  %v2358 = vmax.bf16 %v2354, %v2356
  %v2360 = vsel %vm592, %v322, 4286644096
  %v2362 = vmax.bf16 %v2358, %v2360
  %v2364 = vsel %vm592, %v386, 4286644096
  %v2366 = vmax.bf16 %v2362, %v2364
  %v2368 = vsel %vm592, %v450, 4286644096
  %v2370 = vmax.bf16 %v2366, %v2368
  %v2372 = vsel %vm592, %v514, 4286644096
  %v2374 = vmax.bf16 %v2370, %v2372
  %v2376 = vsel %vm592, %v578, 4286644096
  %v2378 = vmax.bf16 %v2374, %v2376
  %v2380 = vsel %vm592, %v67, 4286644096
  %v2383 = vsel %vm592, %v131, 4286644096
  %v2385 = vmax.bf16 %v2380, %v2383
  %v2387 = vsel %vm592, %v195, 4286644096
  %v2389 = vmax.bf16 %v2385, %v2387
  %v2391 = vsel %vm592, %v259, 4286644096
  %v2393 = vmax.bf16 %v2389, %v2391
  %v2395 = vsel %vm592, %v323, 4286644096
  %v2397 = vmax.bf16 %v2393, %v2395
  %v2399 = vsel %vm592, %v387, 4286644096
  %v2401 = vmax.bf16 %v2397, %v2399
  %v2403 = vsel %vm592, %v451, 4286644096
  %v2405 = vmax.bf16 %v2401, %v2403
  %v2407 = vsel %vm592, %v515, 4286644096
  %v2409 = vmax.bf16 %v2405, %v2407
  %v2411 = vsel %vm592, %v579, 4286644096
  %v2413 = vmax.bf16 %v2409, %v2411
  %v2415 = vsel %vm592, %v68, 4286644096
  %v2418 = vsel %vm592, %v132, 4286644096
  %v2420 = vmax.bf16 %v2415, %v2418
  %v2422 = vsel %vm592, %v196, 4286644096
  %v2424 = vmax.bf16 %v2420, %v2422
  %v2426 = vsel %vm592, %v260, 4286644096
  %v2428 = vmax.bf16 %v2424, %v2426
  %v2430 = vsel %vm592, %v324, 4286644096
  %v2432 = vmax.bf16 %v2428, %v2430
  %v2434 = vsel %vm592, %v388, 4286644096
  %v2436 = vmax.bf16 %v2432, %v2434
  %v2438 = vsel %vm592, %v452, 4286644096
  %v2440 = vmax.bf16 %v2436, %v2438
  %v2442 = vsel %vm592, %v516, 4286644096
  %v2444 = vmax.bf16 %v2440, %v2442
  %v2446 = vsel %vm592, %v580, 4286644096
  %v2448 = vmax.bf16 %v2444, %v2446
  %v2450 = vsel %vm592, %v69, 4286644096
  %v2453 = vsel %vm592, %v133, 4286644096
  %v2455 = vmax.bf16 %v2450, %v2453
  %v2457 = vsel %vm592, %v197, 4286644096
  %v2459 = vmax.bf16 %v2455, %v2457
  %v2461 = vsel %vm592, %v261, 4286644096
  %v2463 = vmax.bf16 %v2459, %v2461
  %v2465 = vsel %vm592, %v325, 4286644096
  %v2467 = vmax.bf16 %v2463, %v2465
  %v2469 = vsel %vm592, %v389, 4286644096
  %v2471 = vmax.bf16 %v2467, %v2469
  %v2473 = vsel %vm592, %v453, 4286644096
  %v2475 = vmax.bf16 %v2471, %v2473
  %v2477 = vsel %vm592, %v517, 4286644096
  %v2479 = vmax.bf16 %v2475, %v2477
  %v2481 = vsel %vm592, %v581, 4286644096
  %v2483 = vmax.bf16 %v2479, %v2481
  %v2485 = vsel %vm592, %v70, 4286644096
  %v2488 = vsel %vm592, %v134, 4286644096
  %v2490 = vmax.bf16 %v2485, %v2488
  %v2492 = vsel %vm592, %v198, 4286644096
  %v2494 = vmax.bf16 %v2490, %v2492
  %v2496 = vsel %vm592, %v262, 4286644096
  %v2498 = vmax.bf16 %v2494, %v2496
  %v2500 = vsel %vm592, %v326, 4286644096
  %v2502 = vmax.bf16 %v2498, %v2500
  %v2504 = vsel %vm592, %v390, 4286644096
  %v2506 = vmax.bf16 %v2502, %v2504
  %v2508 = vsel %vm592, %v454, 4286644096
  %v2510 = vmax.bf16 %v2506, %v2508
  %v2512 = vsel %vm592, %v518, 4286644096
  %v2514 = vmax.bf16 %v2510, %v2512
  %v2516 = vsel %vm592, %v582, 4286644096
  %v2518 = vmax.bf16 %v2514, %v2516
  %v2520 = vsel %vm592, %v71, 4286644096
  %v2523 = vsel %vm592, %v135, 4286644096
  %v2525 = vmax.bf16 %v2520, %v2523
  %v2527 = vsel %vm592, %v199, 4286644096
  %v2529 = vmax.bf16 %v2525, %v2527
  %v2531 = vsel %vm592, %v263, 4286644096
  %v2533 = vmax.bf16 %v2529, %v2531
  %v2535 = vsel %vm592, %v327, 4286644096
  %v2537 = vmax.bf16 %v2533, %v2535
  %v2539 = vsel %vm592, %v391, 4286644096
  %v2541 = vmax.bf16 %v2537, %v2539
  %v2543 = vsel %vm592, %v455, 4286644096
  %v2545 = vmax.bf16 %v2541, %v2543
  %v2547 = vsel %vm592, %v519, 4286644096
  %v2549 = vmax.bf16 %v2545, %v2547
  %v2551 = vsel %vm592, %v583, 4286644096
  %v2553 = vmax.bf16 %v2549, %v2551
  %v2555 = vsel %vm592, %v72, 4286644096
  %v2558 = vsel %vm592, %v136, 4286644096
  %v2560 = vmax.bf16 %v2555, %v2558
  %v2562 = vsel %vm592, %v200, 4286644096
  %v2564 = vmax.bf16 %v2560, %v2562
  %v2566 = vsel %vm592, %v264, 4286644096
  %v2568 = vmax.bf16 %v2564, %v2566
  %v2570 = vsel %vm592, %v328, 4286644096
  %v2572 = vmax.bf16 %v2568, %v2570
  %v2574 = vsel %vm592, %v392, 4286644096
  %v2576 = vmax.bf16 %v2572, %v2574
  %v2578 = vsel %vm592, %v456, 4286644096
  %v2580 = vmax.bf16 %v2576, %v2578
  %v2582 = vsel %vm592, %v520, 4286644096
  %v2584 = vmax.bf16 %v2580, %v2582
  %v2586 = vsel %vm592, %v584, 4286644096
  %v2588 = vmax.bf16 %v2584, %v2586
  %v2590 = vsel %vm592, %v73, 4286644096
  %v2593 = vsel %vm592, %v137, 4286644096
  %v2595 = vmax.bf16 %v2590, %v2593
  %v2597 = vsel %vm592, %v201, 4286644096
  %v2599 = vmax.bf16 %v2595, %v2597
  %v2601 = vsel %vm592, %v265, 4286644096
  %v2603 = vmax.bf16 %v2599, %v2601
  %v2605 = vsel %vm592, %v329, 4286644096
  %v2607 = vmax.bf16 %v2603, %v2605
  %v2609 = vsel %vm592, %v393, 4286644096
  %v2611 = vmax.bf16 %v2607, %v2609
  %v2613 = vsel %vm592, %v457, 4286644096
  %v2615 = vmax.bf16 %v2611, %v2613
  %v2617 = vsel %vm592, %v521, 4286644096
  %v2619 = vmax.bf16 %v2615, %v2617
  %v2621 = vsel %vm592, %v585, 4286644096
  %v2623 = vmax.bf16 %v2619, %v2621
  %v2625 = vsel %vm592, %v74, 4286644096
  %v2628 = vsel %vm592, %v138, 4286644096
  %v2630 = vmax.bf16 %v2625, %v2628
  %v2632 = vsel %vm592, %v202, 4286644096
  %v2634 = vmax.bf16 %v2630, %v2632
  %v2636 = vsel %vm592, %v266, 4286644096
  %v2638 = vmax.bf16 %v2634, %v2636
  %v2640 = vsel %vm592, %v330, 4286644096
  %v2642 = vmax.bf16 %v2638, %v2640
  %v2644 = vsel %vm592, %v394, 4286644096
  %v2646 = vmax.bf16 %v2642, %v2644
  %v2648 = vsel %vm592, %v458, 4286644096
  %v2650 = vmax.bf16 %v2646, %v2648
  %v2652 = vsel %vm592, %v522, 4286644096
  %v2654 = vmax.bf16 %v2650, %v2652
  %v2656 = vsel %vm592, %v586, 4286644096
  %v2658 = vmax.bf16 %v2654, %v2656
  %v2660 = vsel %vm592, %v75, 4286644096
  %v2663 = vsel %vm592, %v139, 4286644096
  %v2665 = vmax.bf16 %v2660, %v2663
  %v2667 = vsel %vm592, %v203, 4286644096
  %v2669 = vmax.bf16 %v2665, %v2667
  %v2671 = vsel %vm592, %v267, 4286644096
  %v2673 = vmax.bf16 %v2669, %v2671
  %v2675 = vsel %vm592, %v331, 4286644096
  %v2677 = vmax.bf16 %v2673, %v2675
  %v2679 = vsel %vm592, %v395, 4286644096
  %v2681 = vmax.bf16 %v2677, %v2679
  %v2683 = vsel %vm592, %v459, 4286644096
  %v2685 = vmax.bf16 %v2681, %v2683
  %v2687 = vsel %vm592, %v523, 4286644096
  %v2689 = vmax.bf16 %v2685, %v2687
  %v2691 = vsel %vm592, %v587, 4286644096
  %v2693 = vmax.bf16 %v2689, %v2691
  %v2695 = vsel %vm592, %v76, 4286644096
  %v2698 = vsel %vm592, %v140, 4286644096
  %v2700 = vmax.bf16 %v2695, %v2698
  %v2702 = vsel %vm592, %v204, 4286644096
  %v2704 = vmax.bf16 %v2700, %v2702
  %v2706 = vsel %vm592, %v268, 4286644096
  %v2708 = vmax.bf16 %v2704, %v2706
  %v2710 = vsel %vm592, %v332, 4286644096
  %v2712 = vmax.bf16 %v2708, %v2710
  %v2714 = vsel %vm592, %v396, 4286644096
  %v2716 = vmax.bf16 %v2712, %v2714
  %v2718 = vsel %vm592, %v460, 4286644096
  %v2720 = vmax.bf16 %v2716, %v2718
  %v2722 = vsel %vm592, %v524, 4286644096
  %v2724 = vmax.bf16 %v2720, %v2722
  %v2726 = vsel %vm592, %v588, 4286644096
  %v2728 = vmax.bf16 %v2724, %v2726
  %v2730 = vsel %vm592, %v77, 4286644096
  %v2733 = vsel %vm592, %v141, 4286644096
  %v2735 = vmax.bf16 %v2730, %v2733
  %v2737 = vsel %vm592, %v205, 4286644096
  %v2739 = vmax.bf16 %v2735, %v2737
  %v2741 = vsel %vm592, %v269, 4286644096
  %v2743 = vmax.bf16 %v2739, %v2741
  %v2745 = vsel %vm592, %v333, 4286644096
  %v2747 = vmax.bf16 %v2743, %v2745
  %v2749 = vsel %vm592, %v397, 4286644096
  %v2751 = vmax.bf16 %v2747, %v2749
  %v2753 = vsel %vm592, %v461, 4286644096
  %v2755 = vmax.bf16 %v2751, %v2753
  %v2757 = vsel %vm592, %v525, 4286644096
  %v2759 = vmax.bf16 %v2755, %v2757
  %v2761 = vsel %vm592, %v589, 4286644096
  %v2763 = vmax.bf16 %v2759, %v2761
  %v2765 = vsel %vm592, %v78, 4286644096
  %v2768 = vsel %vm592, %v142, 4286644096
  %v2770 = vmax.bf16 %v2765, %v2768
  %v2772 = vsel %vm592, %v206, 4286644096
  %v2774 = vmax.bf16 %v2770, %v2772
  %v2776 = vsel %vm592, %v270, 4286644096
  %v2778 = vmax.bf16 %v2774, %v2776
  %v2780 = vsel %vm592, %v334, 4286644096
  %v2782 = vmax.bf16 %v2778, %v2780
  %v2784 = vsel %vm592, %v398, 4286644096
  %v2786 = vmax.bf16 %v2782, %v2784
  %v2788 = vsel %vm592, %v462, 4286644096
  %v2790 = vmax.bf16 %v2786, %v2788
  %v2792 = vsel %vm592, %v526, 4286644096
  %v2794 = vmax.bf16 %v2790, %v2792
  %v2796 = vsel %vm592, %v590, 4286644096
  %v2798 = vmax.bf16 %v2794, %v2796
  %v2800 = vsel %vm592, %v79, 4286644096
  %v2803 = vsel %vm592, %v143, 4286644096
  %v2805 = vmax.bf16 %v2800, %v2803
  %v2807 = vsel %vm592, %v207, 4286644096
  %v2809 = vmax.bf16 %v2805, %v2807
  %v2811 = vsel %vm592, %v271, 4286644096
  %v2813 = vmax.bf16 %v2809, %v2811
  %v2815 = vsel %vm592, %v335, 4286644096
  %v2817 = vmax.bf16 %v2813, %v2815
  %v2819 = vsel %vm592, %v399, 4286644096
  %v2821 = vmax.bf16 %v2817, %v2819
  %v2823 = vsel %vm592, %v463, 4286644096
  %v2825 = vmax.bf16 %v2821, %v2823
  %v2827 = vsel %vm592, %v527, 4286644096
  %v2829 = vmax.bf16 %v2825, %v2827
  %v2831 = vsel %vm592, %v591, 4286644096
  %v2833 = vmax.bf16 %v2829, %v2831
  %v2834 = vld [vmem:[%s1] sm:$0xf]
  %v2835 = vld [vmem:[%s1 + $0x4] sm:$0xf]
  %v2836 = vld [vmem:[%s1 + $0x8] sm:$0xf]
  %v2837 = vld [vmem:[%s1 + $0xc] sm:$0xf]
  %v2838 = vld [vmem:[%s1 + $0x10] sm:$0xf]
  %v2839 = vld [vmem:[%s1 + $0x14] sm:$0xf]
  %v2840 = vld [vmem:[%s1 + $0x18] sm:$0xf]
  %v2841 = vld [vmem:[%s1 + $0x1c] sm:$0xf]
  %v2842 = vld [vmem:[%s1 + $0x20] sm:$0xf]
  %v2843 = vld [vmem:[%s1 + $0x24] sm:$0xf]
  %v2844 = vld [vmem:[%s1 + $0x28] sm:$0xf]
  %v2845 = vld [vmem:[%s1 + $0x2c] sm:$0xf]
  %v2846 = vld [vmem:[%s1 + $0x30] sm:$0xf]
  %v2847 = vld [vmem:[%s1 + $0x34] sm:$0xf]
  %v2848 = vld [vmem:[%s1 + $0x38] sm:$0xf]
  %v2849 = vld [vmem:[%s1 + $0x3c] sm:$0xf]
  %v2850 = vld [vmem:[%s2] sm:$0x1]
  %v2852 = vlaneseq
  %v2853 = vshrl.u32 %v2852, 7
  %v2854 = vsub.s32 0, %v2853
  %v2855 = vrot.slane %v2850, %v2854
  %v2921 = vunpack.c.l.b16 %v628
  %v2922 = vunpack.c.l.b16 %v663
  %v2923 = vunpack.c.l.b16 %v698
  %v2924 = vunpack.c.l.b16 %v733
  %v2925 = vunpack.c.l.b16 %v768
  %v2926 = vunpack.c.l.b16 %v803
  %v2927 = vunpack.c.l.b16 %v838
  %v2928 = vunpack.c.l.b16 %v873
  %v2929 = vunpack.c.l.b16 %v908
  %v2930 = vunpack.c.l.b16 %v943
  %v2931 = vunpack.c.l.b16 %v978
  %v2932 = vunpack.c.l.b16 %v1013
  %v2933 = vunpack.c.l.b16 %v1048
  %v2934 = vunpack.c.l.b16 %v1083
  %v2935 = vunpack.c.l.b16 %v1118
  %v2936 = vunpack.c.l.b16 %v1153
  %v2937 = vunpack.c.l.b16 %v1188
  %v2938 = vunpack.c.l.b16 %v1223
  %v2939 = vunpack.c.l.b16 %v1258
  %v2940 = vunpack.c.l.b16 %v1293
  %v2941 = vunpack.c.l.b16 %v1328
  %v2942 = vunpack.c.l.b16 %v1363
  %v2943 = vunpack.c.l.b16 %v1398
  %v2944 = vunpack.c.l.b16 %v1433
  %v2945 = vunpack.c.l.b16 %v1468
  %v2946 = vunpack.c.l.b16 %v1503
  %v2947 = vunpack.c.l.b16 %v1538
  %v2948 = vunpack.c.l.b16 %v1573
  %v2949 = vunpack.c.l.b16 %v1608
  %v2950 = vunpack.c.l.b16 %v1643
  %v2951 = vunpack.c.l.b16 %v1678
  %v2952 = vunpack.c.l.b16 %v1713
  %v2953 = vunpack.c.l.b16 %v1748
  %v2954 = vunpack.c.l.b16 %v1783
  %v2955 = vunpack.c.l.b16 %v1818
  %v2956 = vunpack.c.l.b16 %v1853
  %v2957 = vunpack.c.l.b16 %v1888
  %v2958 = vunpack.c.l.b16 %v1923
  %v2959 = vunpack.c.l.b16 %v1958
  %v2960 = vunpack.c.l.b16 %v1993
  %v2961 = vunpack.c.l.b16 %v2028
  %v2962 = vunpack.c.l.b16 %v2063
  %v2963 = vunpack.c.l.b16 %v2098
  %v2964 = vunpack.c.l.b16 %v2133
  %v2965 = vunpack.c.l.b16 %v2168
  %v2966 = vunpack.c.l.b16 %v2203
  %v2967 = vunpack.c.l.b16 %v2238
  %v2968 = vunpack.c.l.b16 %v2273
  %v2969 = vunpack.c.l.b16 %v2308
  %v2970 = vunpack.c.l.b16 %v2343
  %v2971 = vunpack.c.l.b16 %v2378
  %v2972 = vunpack.c.l.b16 %v2413
  %v2973 = vunpack.c.l.b16 %v2448
  %v2974 = vunpack.c.l.b16 %v2483
  %v2975 = vunpack.c.l.b16 %v2518
  %v2976 = vunpack.c.l.b16 %v2553
  %v2977 = vunpack.c.l.b16 %v2588
  %v2978 = vunpack.c.l.b16 %v2623
  %v2979 = vunpack.c.l.b16 %v2658
  %v2980 = vunpack.c.l.b16 %v2693
  %v2981 = vunpack.c.l.b16 %v2728
  %v2982 = vunpack.c.l.b16 %v2763
  %v2983 = vunpack.c.l.b16 %v2798
  %v2984 = vunpack.c.l.b16 %v2833
  %v2985 = vpack.c.b16 %v2922, %v2921
  %v2986 = vpack.c.b16 %v2924, %v2923
  %v2987 = vpack.c.b16 %v2926, %v2925
  %v2988 = vpack.c.b16 %v2928, %v2927
  %v2989 = vpack.c.b16 %v2930, %v2929
  %v2990 = vpack.c.b16 %v2932, %v2931
  %v2991 = vpack.c.b16 %v2934, %v2933
  %v2992 = vpack.c.b16 %v2936, %v2935
  %v2993 = vpack.c.b16 %v2938, %v2937
  %v2994 = vpack.c.b16 %v2940, %v2939
  %v2995 = vpack.c.b16 %v2942, %v2941
  %v2996 = vpack.c.b16 %v2944, %v2943
  %v2997 = vpack.c.b16 %v2946, %v2945
  %v2998 = vpack.c.b16 %v2948, %v2947
  %v2999 = vpack.c.b16 %v2950, %v2949
  %v3000 = vpack.c.b16 %v2952, %v2951
  %v3001 = vpack.c.b16 %v2954, %v2953
  %v3002 = vpack.c.b16 %v2956, %v2955
  %v3003 = vpack.c.b16 %v2958, %v2957
  %v3004 = vpack.c.b16 %v2960, %v2959
  %v3005 = vpack.c.b16 %v2962, %v2961
  %v3006 = vpack.c.b16 %v2964, %v2963
  %v3007 = vpack.c.b16 %v2966, %v2965
  %v3008 = vpack.c.b16 %v2968, %v2967
  %v3009 = vpack.c.b16 %v2970, %v2969
  %v3010 = vpack.c.b16 %v2972, %v2971
  %v3011 = vpack.c.b16 %v2974, %v2973
  %v3012 = vpack.c.b16 %v2976, %v2975
  %v3013 = vpack.c.b16 %v2978, %v2977
  %v3014 = vpack.c.b16 %v2980, %v2979
  %v3015 = vpack.c.b16 %v2982, %v2981
  %v3016 = vpack.c.b16 %v2984, %v2983
  %v3065 = vunpack.c.l.b16 %v2834
  %v3066 = vunpack.c.l.b16 %v2835
  %v3067 = vunpack.c.l.b16 %v2836
  %v3068 = vunpack.c.l.b16 %v2837
  %v3069 = vunpack.c.l.b16 %v2838
  %v3070 = vunpack.c.l.b16 %v2839
  %v3071 = vunpack.c.l.b16 %v2840
  %v3072 = vunpack.c.l.b16 %v2841
  %v3073 = vunpack.c.l.b16 %v2842
  %v3074 = vunpack.c.l.b16 %v2843
  %v3075 = vunpack.c.l.b16 %v2844
  %v3076 = vunpack.c.l.b16 %v2845
  %v3077 = vunpack.c.l.b16 %v2846
  %v3078 = vunpack.c.l.b16 %v2847
  %v3079 = vunpack.c.l.b16 %v2848
  %v3080 = vunpack.c.l.b16 %v2849
  %v3081 = vpack.c.b16 %v3066, %v3065
  %v3082 = vpack.c.b16 %v3068, %v3067
  %v3083 = vpack.c.b16 %v3070, %v3069
  %v3084 = vpack.c.b16 %v3072, %v3071
  %v3085 = vpack.c.b16 %v3074, %v3073
  %v3086 = vpack.c.b16 %v3076, %v3075
  %v3087 = vpack.c.b16 %v3078, %v3077
  %v3088 = vpack.c.b16 %v3080, %v3079
  %3097 = vmatprep.subr.bf16.mxu0 0
  %3098 = vmatpush1.bf16.msra.mxu0 %v3088
  %3099 = vmatprep.subr.bf16.mxu0 0
  %3100 = vmatpush1.bf16.msra.mxu0 %v3087
  %3101 = vmatprep.subr.bf16.mxu0 0
  %3102 = vmatpush1.bf16.msra.mxu0 %v3086
  %3103 = vmatprep.subr.bf16.mxu0 0
  %3104 = vmatpush1.bf16.msra.mxu0 %v3085
  %3105 = vmatprep.subr.bf16.mxu0 0
  %3106 = vmatpush1.bf16.msra.mxu0 %v3084
  %3107 = vmatprep.subr.bf16.mxu0 0
  %3108 = vmatpush1.bf16.msra.mxu0 %v3083
  %3109 = vmatprep.subr.bf16.mxu0 0
  %3110 = vmatpush1.bf16.msra.mxu0 %v3082
  %3111 = vmatprep.subr.bf16.mxu0 0
  %3112 = vmatpush1.bf16.msra.mxu0 %v3081
  %3113 = vmatprep.subr.bf16.mxu0 0
  %3114 = vmatpush2.bf16.msra.mxu0 0
  %3115 = vmatprep.subr.bf16.mxu0 0
  %3116 = vmatpush2.bf16.msra.mxu0 0
  %3117 = vmatprep.subr.bf16.mxu0 0
  %3118 = vmatpush2.bf16.msra.mxu0 0
  %3119 = vmatprep.subr.bf16.mxu0 0
  %3120 = vmatpush2.bf16.msra.mxu0 0
  %3121 = vmatprep.subr.bf16.mxu0 0
  %3122 = vmatpush2.bf16.msra.mxu0 0
  %3123 = vmatprep.subr.bf16.mxu0 0
  %3124 = vmatpush2.bf16.msra.mxu0 0
  %3125 = vmatprep.subr.bf16.mxu0 0
  %3126 = vmatpush2.bf16.msra.mxu0 0
  %3127 = vmatprep.subr.bf16.mxu0 0
  %3128 = vmatpush2.bf16.msra.mxu0 0
  %3129 = vmatprep.mubr.bf16.mxu0 0
  %3130 = vmatmul.mubr.bf16.gmra.mxu0 %v2985
  %v3131 = vpop.f32.mrf.mxu0
  %v3132 = vadd.f32 %v2855, %v3131
  %v3133 = vpop.f32.mrf.mxu0
  %v3134 = vpop.f32.mrf.mxu0
  %v3135 = vadd.f32 %v2855, %v3134
  %v3136 = vpop.f32.mrf.mxu0
  %3137 = vmatprep.mubr.bf16.mxu0 0
  %3138 = vmatmul.mubr.bf16.gmra.mxu0 %v2986
  %v3139 = vpop.f32.mrf.mxu0
  %v3140 = vadd.f32 %v2855, %v3139
  %v3141 = vpop.f32.mrf.mxu0
  %v3142 = vpop.f32.mrf.mxu0
  %v3143 = vadd.f32 %v2855, %v3142
  %v3144 = vpop.f32.mrf.mxu0
  %3145 = vmatprep.mubr.bf16.mxu0 0
  %3146 = vmatmul.mubr.bf16.gmra.mxu0 %v2987
  %v3147 = vpop.f32.mrf.mxu0
  %v3148 = vadd.f32 %v2855, %v3147
  %v3149 = vpop.f32.mrf.mxu0
  %v3150 = vpop.f32.mrf.mxu0
  %v3151 = vadd.f32 %v2855, %v3150
  %v3152 = vpop.f32.mrf.mxu0
  %3153 = vmatprep.mubr.bf16.mxu0 0
  %3154 = vmatmul.mubr.bf16.gmra.mxu0 %v2988
  %v3155 = vpop.f32.mrf.mxu0
  %v3156 = vadd.f32 %v2855, %v3155
  %v3157 = vpop.f32.mrf.mxu0
  %v3158 = vpop.f32.mrf.mxu0
  %v3159 = vadd.f32 %v2855, %v3158
  %v3160 = vpop.f32.mrf.mxu0
  %3161 = vmatprep.mubr.bf16.mxu0 0
  %3162 = vmatmul.mubr.bf16.gmra.mxu0 %v2989
  %v3163 = vpop.f32.mrf.mxu0
  %v3164 = vadd.f32 %v2855, %v3163
  %v3165 = vpop.f32.mrf.mxu0
  %v3166 = vpop.f32.mrf.mxu0
  %v3167 = vadd.f32 %v2855, %v3166
  %v3168 = vpop.f32.mrf.mxu0
  %3169 = vmatprep.mubr.bf16.mxu0 0
  %3170 = vmatmul.mubr.bf16.gmra.mxu0 %v2990
  %v3171 = vpop.f32.mrf.mxu0
  %v3172 = vadd.f32 %v2855, %v3171
  %v3173 = vpop.f32.mrf.mxu0
  %v3174 = vpop.f32.mrf.mxu0
  %v3175 = vadd.f32 %v2855, %v3174
  %v3176 = vpop.f32.mrf.mxu0
  %3177 = vmatprep.mubr.bf16.mxu0 0
  %3178 = vmatmul.mubr.bf16.gmra.mxu0 %v2991
  %v3179 = vpop.f32.mrf.mxu0
  %v3180 = vadd.f32 %v2855, %v3179
  %v3181 = vpop.f32.mrf.mxu0
  %v3182 = vpop.f32.mrf.mxu0
  %v3183 = vadd.f32 %v2855, %v3182
  %v3184 = vpop.f32.mrf.mxu0
  %3185 = vmatprep.mubr.bf16.mxu0 0
  %3186 = vmatmul.mubr.bf16.gmra.mxu0 %v2992
  %v3187 = vpop.f32.mrf.mxu0
  %v3188 = vadd.f32 %v2855, %v3187
  %v3189 = vpop.f32.mrf.mxu0
  %v3190 = vpop.f32.mrf.mxu0
  %v3191 = vadd.f32 %v2855, %v3190
  %v3192 = vpop.f32.mrf.mxu0
  %3193 = vmatprep.mubr.bf16.mxu0 0
  %3194 = vmatmul.mubr.bf16.gmra.mxu0 %v2993
  %v3195 = vpop.f32.mrf.mxu0
  %v3196 = vadd.f32 %v2855, %v3195
  %v3197 = vpop.f32.mrf.mxu0
  %v3198 = vpop.f32.mrf.mxu0
  %v3199 = vadd.f32 %v2855, %v3198
  %v3200 = vpop.f32.mrf.mxu0
  %3201 = vmatprep.mubr.bf16.mxu0 0
  %3202 = vmatmul.mubr.bf16.gmra.mxu0 %v2994
  %v3203 = vpop.f32.mrf.mxu0
  %v3204 = vadd.f32 %v2855, %v3203
  %v3205 = vpop.f32.mrf.mxu0
  %v3206 = vpop.f32.mrf.mxu0
  %v3207 = vadd.f32 %v2855, %v3206
  %v3208 = vpop.f32.mrf.mxu0
  %3209 = vmatprep.mubr.bf16.mxu0 0
  %3210 = vmatmul.mubr.bf16.gmra.mxu0 %v2995
  %v3211 = vpop.f32.mrf.mxu0
  %v3212 = vadd.f32 %v2855, %v3211
  %v3213 = vpop.f32.mrf.mxu0
  %v3214 = vpop.f32.mrf.mxu0
  %v3215 = vadd.f32 %v2855, %v3214
  %v3216 = vpop.f32.mrf.mxu0
  %3217 = vmatprep.mubr.bf16.mxu0 0
  %3218 = vmatmul.mubr.bf16.gmra.mxu0 %v2996
  %v3219 = vpop.f32.mrf.mxu0
  %v3220 = vadd.f32 %v2855, %v3219
  %v3221 = vpop.f32.mrf.mxu0
  %v3222 = vpop.f32.mrf.mxu0
  %v3223 = vadd.f32 %v2855, %v3222
  %v3224 = vpop.f32.mrf.mxu0
  %3225 = vmatprep.mubr.bf16.mxu0 0
  %3226 = vmatmul.mubr.bf16.gmra.mxu0 %v2997
  %v3227 = vpop.f32.mrf.mxu0
  %v3228 = vadd.f32 %v2855, %v3227
  %v3229 = vpop.f32.mrf.mxu0
  %v3230 = vpop.f32.mrf.mxu0
  %v3231 = vadd.f32 %v2855, %v3230
  %v3232 = vpop.f32.mrf.mxu0
  %3233 = vmatprep.mubr.bf16.mxu0 0
  %3234 = vmatmul.mubr.bf16.gmra.mxu0 %v2998
  %v3235 = vpop.f32.mrf.mxu0
  %v3236 = vadd.f32 %v2855, %v3235
  %v3237 = vpop.f32.mrf.mxu0
  %v3238 = vpop.f32.mrf.mxu0
  %v3239 = vadd.f32 %v2855, %v3238
  %v3240 = vpop.f32.mrf.mxu0
  %3241 = vmatprep.mubr.bf16.mxu0 0
  %3242 = vmatmul.mubr.bf16.gmra.mxu0 %v2999
  %v3243 = vpop.f32.mrf.mxu0
  %v3244 = vadd.f32 %v2855, %v3243
  %v3245 = vpop.f32.mrf.mxu0
  %v3246 = vpop.f32.mrf.mxu0
  %v3247 = vadd.f32 %v2855, %v3246
  %v3248 = vpop.f32.mrf.mxu0
  %3249 = vmatprep.mubr.bf16.mxu0 0
  %3250 = vmatmul.mubr.bf16.gmra.mxu0 %v3000
  %v3251 = vpop.f32.mrf.mxu0
  %v3252 = vadd.f32 %v2855, %v3251
  %v3253 = vpop.f32.mrf.mxu0
  %v3254 = vpop.f32.mrf.mxu0
  %v3255 = vadd.f32 %v2855, %v3254
  %v3256 = vpop.f32.mrf.mxu0
  %3257 = vmatprep.mubr.bf16.mxu0 0
  %3258 = vmatmul.mubr.bf16.gmra.mxu0 %v3001
  %v3259 = vpop.f32.mrf.mxu0
  %v3260 = vadd.f32 %v2855, %v3259
  %v3261 = vpop.f32.mrf.mxu0
  %v3262 = vpop.f32.mrf.mxu0
  %v3263 = vadd.f32 %v2855, %v3262
  %v3264 = vpop.f32.mrf.mxu0
  %3265 = vmatprep.mubr.bf16.mxu0 0
  %3266 = vmatmul.mubr.bf16.gmra.mxu0 %v3002
  %v3267 = vpop.f32.mrf.mxu0
  %v3268 = vadd.f32 %v2855, %v3267
  %v3269 = vpop.f32.mrf.mxu0
  %v3270 = vpop.f32.mrf.mxu0
  %v3271 = vadd.f32 %v2855, %v3270
  %v3272 = vpop.f32.mrf.mxu0
  %3273 = vmatprep.mubr.bf16.mxu0 0
  %3274 = vmatmul.mubr.bf16.gmra.mxu0 %v3003
  %v3275 = vpop.f32.mrf.mxu0
  %v3276 = vadd.f32 %v2855, %v3275
  %v3277 = vpop.f32.mrf.mxu0
  %v3278 = vpop.f32.mrf.mxu0
  %v3279 = vadd.f32 %v2855, %v3278
  %v3280 = vpop.f32.mrf.mxu0
  %3281 = vmatprep.mubr.bf16.mxu0 0
  %3282 = vmatmul.mubr.bf16.gmra.mxu0 %v3004
  %v3283 = vpop.f32.mrf.mxu0
  %v3284 = vadd.f32 %v2855, %v3283
  %v3285 = vpop.f32.mrf.mxu0
  %v3286 = vpop.f32.mrf.mxu0
  %v3287 = vadd.f32 %v2855, %v3286
  %v3288 = vpop.f32.mrf.mxu0
  %3289 = vmatprep.mubr.bf16.mxu0 0
  %3290 = vmatmul.mubr.bf16.gmra.mxu0 %v3005
  %v3291 = vpop.f32.mrf.mxu0
  %v3292 = vadd.f32 %v2855, %v3291
  %v3293 = vpop.f32.mrf.mxu0
  %v3294 = vpop.f32.mrf.mxu0
  %v3295 = vadd.f32 %v2855, %v3294
  %v3296 = vpop.f32.mrf.mxu0
  %3297 = vmatprep.mubr.bf16.mxu0 0
  %3298 = vmatmul.mubr.bf16.gmra.mxu0 %v3006
  %v3299 = vpop.f32.mrf.mxu0
  %v3300 = vadd.f32 %v2855, %v3299
  %v3301 = vpop.f32.mrf.mxu0
  %v3302 = vpop.f32.mrf.mxu0
  %v3303 = vadd.f32 %v2855, %v3302
  %v3304 = vpop.f32.mrf.mxu0
  %3305 = vmatprep.mubr.bf16.mxu0 0
  %3306 = vmatmul.mubr.bf16.gmra.mxu0 %v3007
  %v3307 = vpop.f32.mrf.mxu0
  %v3308 = vadd.f32 %v2855, %v3307
  %v3309 = vpop.f32.mrf.mxu0
  %v3310 = vpop.f32.mrf.mxu0
  %v3311 = vadd.f32 %v2855, %v3310
  %v3312 = vpop.f32.mrf.mxu0
  %3313 = vmatprep.mubr.bf16.mxu0 0
  %3314 = vmatmul.mubr.bf16.gmra.mxu0 %v3008
  %v3315 = vpop.f32.mrf.mxu0
  %v3316 = vadd.f32 %v2855, %v3315
  %v3317 = vpop.f32.mrf.mxu0
  %v3318 = vpop.f32.mrf.mxu0
  %v3319 = vadd.f32 %v2855, %v3318
  %v3320 = vpop.f32.mrf.mxu0
  %3321 = vmatprep.mubr.bf16.mxu0 0
  %3322 = vmatmul.mubr.bf16.gmra.mxu0 %v3009
  %v3323 = vpop.f32.mrf.mxu0
  %v3324 = vadd.f32 %v2855, %v3323
  %v3325 = vpop.f32.mrf.mxu0
  %v3326 = vpop.f32.mrf.mxu0
  %v3327 = vadd.f32 %v2855, %v3326
  %v3328 = vpop.f32.mrf.mxu0
  %3329 = vmatprep.mubr.bf16.mxu0 0
  %3330 = vmatmul.mubr.bf16.gmra.mxu0 %v3010
  %v3331 = vpop.f32.mrf.mxu0
  %v3332 = vadd.f32 %v2855, %v3331
  %v3333 = vpop.f32.mrf.mxu0
  %v3334 = vpop.f32.mrf.mxu0
  %v3335 = vadd.f32 %v2855, %v3334
  %v3336 = vpop.f32.mrf.mxu0
  %3337 = vmatprep.mubr.bf16.mxu0 0
  %3338 = vmatmul.mubr.bf16.gmra.mxu0 %v3011
  %v3339 = vpop.f32.mrf.mxu0
  %v3340 = vadd.f32 %v2855, %v3339
  %v3341 = vpop.f32.mrf.mxu0
  %v3342 = vpop.f32.mrf.mxu0
  %v3343 = vadd.f32 %v2855, %v3342
  %v3344 = vpop.f32.mrf.mxu0
  %3345 = vmatprep.mubr.bf16.mxu0 0
  %3346 = vmatmul.mubr.bf16.gmra.mxu0 %v3012
  %v3347 = vpop.f32.mrf.mxu0
  %v3348 = vadd.f32 %v2855, %v3347
  %v3349 = vpop.f32.mrf.mxu0
  %v3350 = vpop.f32.mrf.mxu0
  %v3351 = vadd.f32 %v2855, %v3350
  %v3352 = vpop.f32.mrf.mxu0
  %3353 = vmatprep.mubr.bf16.mxu0 0
  %3354 = vmatmul.mubr.bf16.gmra.mxu0 %v3013
  %v3355 = vpop.f32.mrf.mxu0
  %v3356 = vadd.f32 %v2855, %v3355
  %v3357 = vpop.f32.mrf.mxu0
  %v3358 = vpop.f32.mrf.mxu0
  %v3359 = vadd.f32 %v2855, %v3358
  %v3360 = vpop.f32.mrf.mxu0
  %3361 = vmatprep.mubr.bf16.mxu0 0
  %3362 = vmatmul.mubr.bf16.gmra.mxu0 %v3014
  %v3363 = vpop.f32.mrf.mxu0
  %v3364 = vadd.f32 %v2855, %v3363
  %v3365 = vpop.f32.mrf.mxu0
  %v3366 = vpop.f32.mrf.mxu0
  %v3367 = vadd.f32 %v2855, %v3366
  %v3368 = vpop.f32.mrf.mxu0
  %3369 = vmatprep.mubr.bf16.mxu0 0
  %3370 = vmatmul.mubr.bf16.gmra.mxu0 %v3015
  %v3371 = vpop.f32.mrf.mxu0
  %v3372 = vadd.f32 %v2855, %v3371
  %v3373 = vpop.f32.mrf.mxu0
  %v3374 = vpop.f32.mrf.mxu0
  %v3375 = vadd.f32 %v2855, %v3374
  %v3376 = vpop.f32.mrf.mxu0
  %3377 = vmatprep.mubr.bf16.mxu0 0
  %3378 = vmatmul.mubr.bf16.gmra.mxu0 %v3016
  %v3379 = vpop.f32.mrf.mxu0
  %v3380 = vadd.f32 %v2855, %v3379
  %v3381 = vpop.f32.mrf.mxu0
  %v3382 = vpop.f32.mrf.mxu0
  %v3383 = vadd.f32 %v2855, %v3382
  %v3384 = vpop.f32.mrf.mxu0
  %3385 = vdwg.mxu0
  %v3386 = vmax.f32 %v3132, 0.0
  %v3387 = vmax.f32 %v3135, 0.0
  %v3388 = vmax.f32 %v3140, 0.0
  %v3389 = vmax.f32 %v3143, 0.0
  %v3390 = vmax.f32 %v3148, 0.0
  %v3391 = vmax.f32 %v3151, 0.0
  %v3392 = vmax.f32 %v3156, 0.0
  %v3393 = vmax.f32 %v3159, 0.0
  %v3394 = vmax.f32 %v3164, 0.0
  %v3395 = vmax.f32 %v3167, 0.0
  %v3396 = vmax.f32 %v3172, 0.0
  %v3397 = vmax.f32 %v3175, 0.0
  %v3398 = vmax.f32 %v3180, 0.0
  %v3399 = vmax.f32 %v3183, 0.0
  %v3400 = vmax.f32 %v3188, 0.0
  %v3401 = vmax.f32 %v3191, 0.0
  %v3402 = vmax.f32 %v3196, 0.0
  %v3403 = vmax.f32 %v3199, 0.0
  %v3404 = vmax.f32 %v3204, 0.0
  %v3405 = vmax.f32 %v3207, 0.0
  %v3406 = vmax.f32 %v3212, 0.0
  %v3407 = vmax.f32 %v3215, 0.0
  %v3408 = vmax.f32 %v3220, 0.0
  %v3409 = vmax.f32 %v3223, 0.0
  %v3410 = vmax.f32 %v3228, 0.0
  %v3411 = vmax.f32 %v3231, 0.0
  %v3412 = vmax.f32 %v3236, 0.0
  %v3413 = vmax.f32 %v3239, 0.0
  %v3414 = vmax.f32 %v3244, 0.0
  %v3415 = vmax.f32 %v3247, 0.0
  %v3416 = vmax.f32 %v3252, 0.0
  %v3417 = vmax.f32 %v3255, 0.0
  %v3418 = vmax.f32 %v3260, 0.0
  %v3419 = vmax.f32 %v3263, 0.0
  %v3420 = vmax.f32 %v3268, 0.0
  %v3421 = vmax.f32 %v3271, 0.0
  %v3422 = vmax.f32 %v3276, 0.0
  %v3423 = vmax.f32 %v3279, 0.0
  %v3424 = vmax.f32 %v3284, 0.0
  %v3425 = vmax.f32 %v3287, 0.0
  %v3426 = vmax.f32 %v3292, 0.0
  %v3427 = vmax.f32 %v3295, 0.0
  %v3428 = vmax.f32 %v3300, 0.0
  %v3429 = vmax.f32 %v3303, 0.0
  %v3430 = vmax.f32 %v3308, 0.0
  %v3431 = vmax.f32 %v3311, 0.0
  %v3432 = vmax.f32 %v3316, 0.0
  %v3433 = vmax.f32 %v3319, 0.0
  %v3434 = vmax.f32 %v3324, 0.0
  %v3435 = vmax.f32 %v3327, 0.0
  %v3436 = vmax.f32 %v3332, 0.0
  %v3437 = vmax.f32 %v3335, 0.0
  %v3438 = vmax.f32 %v3340, 0.0
  %v3439 = vmax.f32 %v3343, 0.0
  %v3440 = vmax.f32 %v3348, 0.0
  %v3441 = vmax.f32 %v3351, 0.0
  %v3442 = vmax.f32 %v3356, 0.0
  %v3443 = vmax.f32 %v3359, 0.0
  %v3444 = vmax.f32 %v3364, 0.0
  %v3445 = vmax.f32 %v3367, 0.0
  %v3446 = vmax.f32 %v3372, 0.0
  %v3447 = vmax.f32 %v3375, 0.0
  %v3448 = vmax.f32 %v3380, 0.0
  %v3449 = vmax.f32 %v3383, 0.0
  %v3450 = vpack.c.bf16 %v3387, %v3386
  %v3451 = vpack.c.bf16 %v3389, %v3388
  %v3452 = vpack.c.bf16 %v3391, %v3390
  %v3453 = vpack.c.bf16 %v3393, %v3392
  %v3454 = vpack.c.bf16 %v3395, %v3394
  %v3455 = vpack.c.bf16 %v3397, %v3396
  %v3456 = vpack.c.bf16 %v3399, %v3398
  %v3457 = vpack.c.bf16 %v3401, %v3400
  %v3458 = vpack.c.bf16 %v3403, %v3402
  %v3459 = vpack.c.bf16 %v3405, %v3404
  %v3460 = vpack.c.bf16 %v3407, %v3406
  %v3461 = vpack.c.bf16 %v3409, %v3408
  %v3462 = vpack.c.bf16 %v3411, %v3410
  %v3463 = vpack.c.bf16 %v3413, %v3412
  %v3464 = vpack.c.bf16 %v3415, %v3414
  %v3465 = vpack.c.bf16 %v3417, %v3416
  %v3466 = vpack.c.bf16 %v3419, %v3418
  %v3467 = vpack.c.bf16 %v3421, %v3420
  %v3468 = vpack.c.bf16 %v3423, %v3422
  %v3469 = vpack.c.bf16 %v3425, %v3424
  %v3470 = vpack.c.bf16 %v3427, %v3426
  %v3471 = vpack.c.bf16 %v3429, %v3428
  %v3472 = vpack.c.bf16 %v3431, %v3430
  %v3473 = vpack.c.bf16 %v3433, %v3432
  %v3474 = vpack.c.bf16 %v3435, %v3434
  %v3475 = vpack.c.bf16 %v3437, %v3436
  %v3476 = vpack.c.bf16 %v3439, %v3438
  %v3477 = vpack.c.bf16 %v3441, %v3440
  %v3478 = vpack.c.bf16 %v3443, %v3442
  %v3479 = vpack.c.bf16 %v3445, %v3444
  %v3480 = vpack.c.bf16 %v3447, %v3446
  %v3481 = vpack.c.bf16 %v3449, %v3448
  %v3514 = vunpack.c.l.b16 %v3450
  %v3515 = vunpack.c.h.b16 %v3450
  %v3516 = vunpack.c.l.b16 %v3451
  %v3517 = vunpack.c.h.b16 %v3451
  %v3518 = vunpack.c.l.b16 %v3452
  %v3519 = vunpack.c.h.b16 %v3452
  %v3520 = vunpack.c.l.b16 %v3453
  %v3521 = vunpack.c.h.b16 %v3453
  %v3522 = vunpack.c.l.b16 %v3454
  %v3523 = vunpack.c.h.b16 %v3454
  %v3524 = vunpack.c.l.b16 %v3455
  %v3525 = vunpack.c.h.b16 %v3455
  %v3526 = vunpack.c.l.b16 %v3456
  %v3527 = vunpack.c.h.b16 %v3456
  %v3528 = vunpack.c.l.b16 %v3457
  %v3529 = vunpack.c.h.b16 %v3457
  %v3530 = vunpack.c.l.b16 %v3458
  %v3531 = vunpack.c.h.b16 %v3458
  %v3532 = vunpack.c.l.b16 %v3459
  %v3533 = vunpack.c.h.b16 %v3459
  %v3534 = vunpack.c.l.b16 %v3460
  %v3535 = vunpack.c.h.b16 %v3460
  %v3536 = vunpack.c.l.b16 %v3461
  %v3537 = vunpack.c.h.b16 %v3461
  %v3538 = vunpack.c.l.b16 %v3462
  %v3539 = vunpack.c.h.b16 %v3462
  %v3540 = vunpack.c.l.b16 %v3463
  %v3541 = vunpack.c.h.b16 %v3463
  %v3542 = vunpack.c.l.b16 %v3464
  %v3543 = vunpack.c.h.b16 %v3464
  %v3544 = vunpack.c.l.b16 %v3465
  %v3545 = vunpack.c.h.b16 %v3465
  %v3546 = vunpack.c.l.b16 %v3466
  %v3547 = vunpack.c.h.b16 %v3466
  %v3548 = vunpack.c.l.b16 %v3467
  %v3549 = vunpack.c.h.b16 %v3467
  %v3550 = vunpack.c.l.b16 %v3468
  %v3551 = vunpack.c.h.b16 %v3468
  %v3552 = vunpack.c.l.b16 %v3469
  %v3553 = vunpack.c.h.b16 %v3469
  %v3554 = vunpack.c.l.b16 %v3470
  %v3555 = vunpack.c.h.b16 %v3470
  %v3556 = vunpack.c.l.b16 %v3471
  %v3557 = vunpack.c.h.b16 %v3471
  %v3558 = vunpack.c.l.b16 %v3472
  %v3559 = vunpack.c.h.b16 %v3472
  %v3560 = vunpack.c.l.b16 %v3473
  %v3561 = vunpack.c.h.b16 %v3473
  %v3562 = vunpack.c.l.b16 %v3474
  %v3563 = vunpack.c.h.b16 %v3474
  %v3564 = vunpack.c.l.b16 %v3475
  %v3565 = vunpack.c.h.b16 %v3475
  %v3566 = vunpack.c.l.b16 %v3476
  %v3567 = vunpack.c.h.b16 %v3476
  %v3568 = vunpack.c.l.b16 %v3477
  %v3569 = vunpack.c.h.b16 %v3477
  %v3570 = vunpack.c.l.b16 %v3478
  %v3571 = vunpack.c.h.b16 %v3478
  %v3572 = vunpack.c.l.b16 %v3479
  %v3573 = vunpack.c.h.b16 %v3479
  %v3574 = vunpack.c.l.b16 %v3480
  %v3575 = vunpack.c.h.b16 %v3480
  %v3576 = vunpack.c.l.b16 %v3481
  %v3577 = vunpack.c.h.b16 %v3481
  %v3578 = vpack.c.b16 %v3514, %v3514
  %v3579 = vpack.c.b16 %v3515, %v3515
  %v3580 = vpack.c.b16 %v3516, %v3516
  %v3581 = vpack.c.b16 %v3517, %v3517
  %v3582 = vpack.c.b16 %v3518, %v3518
  %v3583 = vpack.c.b16 %v3519, %v3519
  %v3584 = vpack.c.b16 %v3520, %v3520
  %v3585 = vpack.c.b16 %v3521, %v3521
  %v3586 = vpack.c.b16 %v3522, %v3522
  %v3587 = vpack.c.b16 %v3523, %v3523
  %v3588 = vpack.c.b16 %v3524, %v3524
  %v3589 = vpack.c.b16 %v3525, %v3525
  %v3590 = vpack.c.b16 %v3526, %v3526
  %v3591 = vpack.c.b16 %v3527, %v3527
  %v3592 = vpack.c.b16 %v3528, %v3528
  %v3593 = vpack.c.b16 %v3529, %v3529
  %v3594 = vpack.c.b16 %v3530, %v3530
  %v3595 = vpack.c.b16 %v3531, %v3531
  %v3596 = vpack.c.b16 %v3532, %v3532
  %v3597 = vpack.c.b16 %v3533, %v3533
  %v3598 = vpack.c.b16 %v3534, %v3534
  %v3599 = vpack.c.b16 %v3535, %v3535
  %v3600 = vpack.c.b16 %v3536, %v3536
  %v3601 = vpack.c.b16 %v3537, %v3537
  %v3602 = vpack.c.b16 %v3538, %v3538
  %v3603 = vpack.c.b16 %v3539, %v3539
  %v3604 = vpack.c.b16 %v3540, %v3540
  %v3605 = vpack.c.b16 %v3541, %v3541
  %v3606 = vpack.c.b16 %v3542, %v3542
  %v3607 = vpack.c.b16 %v3543, %v3543
  %v3608 = vpack.c.b16 %v3544, %v3544
  %v3609 = vpack.c.b16 %v3545, %v3545
  %v3610 = vpack.c.b16 %v3546, %v3546
  %v3611 = vpack.c.b16 %v3547, %v3547
  %v3612 = vpack.c.b16 %v3548, %v3548
  %v3613 = vpack.c.b16 %v3549, %v3549
  %v3614 = vpack.c.b16 %v3550, %v3550
  %v3615 = vpack.c.b16 %v3551, %v3551
  %v3616 = vpack.c.b16 %v3552, %v3552
  %v3617 = vpack.c.b16 %v3553, %v3553
  %v3618 = vpack.c.b16 %v3554, %v3554
  %v3619 = vpack.c.b16 %v3555, %v3555
  %v3620 = vpack.c.b16 %v3556, %v3556
  %v3621 = vpack.c.b16 %v3557, %v3557
  %v3622 = vpack.c.b16 %v3558, %v3558
  %v3623 = vpack.c.b16 %v3559, %v3559
  %v3624 = vpack.c.b16 %v3560, %v3560
  %v3625 = vpack.c.b16 %v3561, %v3561
  %v3626 = vpack.c.b16 %v3562, %v3562
  %v3627 = vpack.c.b16 %v3563, %v3563
  %v3628 = vpack.c.b16 %v3564, %v3564
  %v3629 = vpack.c.b16 %v3565, %v3565
  %v3630 = vpack.c.b16 %v3566, %v3566
  %v3631 = vpack.c.b16 %v3567, %v3567
  %v3632 = vpack.c.b16 %v3568, %v3568
  %v3633 = vpack.c.b16 %v3569, %v3569
  %v3634 = vpack.c.b16 %v3570, %v3570
  %v3635 = vpack.c.b16 %v3571, %v3571
  %v3636 = vpack.c.b16 %v3572, %v3572
  %v3637 = vpack.c.b16 %v3573, %v3573
  %v3638 = vpack.c.b16 %v3574, %v3574
  %v3639 = vpack.c.b16 %v3575, %v3575
  %v3640 = vpack.c.b16 %v3576, %v3576
  %v3641 = vpack.c.b16 %v3577, %v3577
  %3706 = vst [vmem:[%s3] sm:$0xf] %v3578
  %3707 = vst [vmem:[%s3 + $0x4] sm:$0xf] %v3579
  %3708 = vst [vmem:[%s3 + $0x8] sm:$0xf] %v3580
  %3709 = vst [vmem:[%s3 + $0xc] sm:$0xf] %v3581
  %3710 = vst [vmem:[%s3 + $0x10] sm:$0xf] %v3582
  %3711 = vst [vmem:[%s3 + $0x14] sm:$0xf] %v3583
  %3712 = vst [vmem:[%s3 + $0x18] sm:$0xf] %v3584
  %3713 = vst [vmem:[%s3 + $0x1c] sm:$0xf] %v3585
  %3714 = vst [vmem:[%s3 + $0x20] sm:$0xf] %v3586
  %3715 = vst [vmem:[%s3 + $0x24] sm:$0xf] %v3587
  %3716 = vst [vmem:[%s3 + $0x28] sm:$0xf] %v3588
  %3717 = vst [vmem:[%s3 + $0x2c] sm:$0xf] %v3589
  %3718 = vst [vmem:[%s3 + $0x30] sm:$0xf] %v3590
  %3719 = vst [vmem:[%s3 + $0x34] sm:$0xf] %v3591
  %3720 = vst [vmem:[%s3 + $0x38] sm:$0xf] %v3592
  %3721 = vst [vmem:[%s3 + $0x3c] sm:$0xf] %v3593
  %3722 = vst [vmem:[%s3 + $0x40] sm:$0xf] %v3594
  %3723 = vst [vmem:[%s3 + $0x44] sm:$0xf] %v3595
  %3724 = vst [vmem:[%s3 + $0x48] sm:$0xf] %v3596
  %3725 = vst [vmem:[%s3 + $0x4c] sm:$0xf] %v3597
  %3726 = vst [vmem:[%s3 + $0x50] sm:$0xf] %v3598
  %3727 = vst [vmem:[%s3 + $0x54] sm:$0xf] %v3599
  %3728 = vst [vmem:[%s3 + $0x58] sm:$0xf] %v3600
  %3729 = vst [vmem:[%s3 + $0x5c] sm:$0xf] %v3601
  %3730 = vst [vmem:[%s3 + $0x60] sm:$0xf] %v3602
  %3731 = vst [vmem:[%s3 + $0x64] sm:$0xf] %v3603
  %3732 = vst [vmem:[%s3 + $0x68] sm:$0xf] %v3604
  %3733 = vst [vmem:[%s3 + $0x6c] sm:$0xf] %v3605
  %3734 = vst [vmem:[%s3 + $0x70] sm:$0xf] %v3606
  %3735 = vst [vmem:[%s3 + $0x74] sm:$0xf] %v3607
  %3736 = vst [vmem:[%s3 + $0x78] sm:$0xf] %v3608
  %3737 = vst [vmem:[%s3 + $0x7c] sm:$0xf] %v3609
  %3738 = vst [vmem:[%s3 + $0x80] sm:$0xf] %v3610
  %3739 = vst [vmem:[%s3 + $0x84] sm:$0xf] %v3611
  %3740 = vst [vmem:[%s3 + $0x88] sm:$0xf] %v3612
  %3741 = vst [vmem:[%s3 + $0x8c] sm:$0xf] %v3613
  %3742 = vst [vmem:[%s3 + $0x90] sm:$0xf] %v3614
  %3743 = vst [vmem:[%s3 + $0x94] sm:$0xf] %v3615
  %3744 = vst [vmem:[%s3 + $0x98] sm:$0xf] %v3616
  %3745 = vst [vmem:[%s3 + $0x9c] sm:$0xf] %v3617
  %3746 = vst [vmem:[%s3 + $0xa0] sm:$0xf] %v3618
  %3747 = vst [vmem:[%s3 + $0xa4] sm:$0xf] %v3619
  %3748 = vst [vmem:[%s3 + $0xa8] sm:$0xf] %v3620
  %3749 = vst [vmem:[%s3 + $0xac] sm:$0xf] %v3621
  %3750 = vst [vmem:[%s3 + $0xb0] sm:$0xf] %v3622
  %3751 = vst [vmem:[%s3 + $0xb4] sm:$0xf] %v3623
  %3752 = vst [vmem:[%s3 + $0xb8] sm:$0xf] %v3624
  %3753 = vst [vmem:[%s3 + $0xbc] sm:$0xf] %v3625
  %3754 = vst [vmem:[%s3 + $0xc0] sm:$0xf] %v3626
  %3755 = vst [vmem:[%s3 + $0xc4] sm:$0xf] %v3627
  %3756 = vst [vmem:[%s3 + $0xc8] sm:$0xf] %v3628
  %3757 = vst [vmem:[%s3 + $0xcc] sm:$0xf] %v3629
  %3758 = vst [vmem:[%s3 + $0xd0] sm:$0xf] %v3630
  %3759 = vst [vmem:[%s3 + $0xd4] sm:$0xf] %v3631
  %3760 = vst [vmem:[%s3 + $0xd8] sm:$0xf] %v3632
  %3761 = vst [vmem:[%s3 + $0xdc] sm:$0xf] %v3633
  %3762 = vst [vmem:[%s3 + $0xe0] sm:$0xf] %v3634
  %3763 = vst [vmem:[%s3 + $0xe4] sm:$0xf] %v3635
  %3764 = vst [vmem:[%s3 + $0xe8] sm:$0xf] %v3636
  %3765 = vst [vmem:[%s3 + $0xec] sm:$0xf] %v3637
  %3766 = vst [vmem:[%s3 + $0xf0] sm:$0xf] %v3638
  %3767 = vst [vmem:[%s3 + $0xf4] sm:$0xf] %v3639
  %3768 = vst [vmem:[%s3 + $0xf8] sm:$0xf] %v3640
  %3769 = vst [vmem:[%s3 + $0xfc] sm:$0xf] %v3641
  // Predicated region
  $region14: #{custom_googlenet_forward.9} parent=0 // pred_check
    _
  $region15: #{custom_googlenet_forward.9} parent=0 // pred_check_branch
    %3771 = sbr.rel (0) target = $region17
  $region16: #{custom_googlenet_forward.9} parent=0 // pred_region
    _
  $region17: #{custom_googlenet_forward.9} parent=0 // pred_fallthru
    _
  // Predicated region
  $region18: #{custom_googlenet_forward.9} parent=0 // pred_check
    _
  $region19: #{custom_googlenet_forward.9} parent=0 // pred_check_branch
    %3773 = sbr.rel (0) target = $region21
  $region20: #{custom_googlenet_forward.9} parent=0 // pred_region
    _
  $region21: #{custom_googlenet_forward.9} parent=0 // pred_fallthru
    _

// kernel: custom_googlenet_forward.11
$region0: #{custom_googlenet_forward.11}
  #allocation0 [shape = 'u32[]', space=smem, size = 0x4, offset = 0x4, fixed_abs, tag = 'smem constant byte address 0x4 - core index']
  #allocation1 [shape = 'u32[144,128]{1,0:T(1,128)}', space=vmem, size = 0x12000, scoped, tag = 'internal scratch']
  %s0 = inlined_call_operand.vmem [shape: bf16[128,1152], index: 0, kind: input, shape index: {}]
  %s1 = inlined_call_operand.vmem [shape: bf16[1152,128], index: 1, kind: input, shape index: {}]
  %s2 = inlined_call_operand.vmem [shape: f32[1,128], index: 2, kind: input, shape index: {}]
  %s3 = inlined_call_operand.vmem [shape: bf16[128,128], index: 3, kind: output, shape index: {}]
  %s4 = sld [smem:[#allocation0]]
  $region22: #{custom_googlenet_forward.11} parent=0
    _
  %s6 = ssub.s32 1, %s4
  %s7 = scalar_select 0, %s6, %s4
  // Predicated region
  $region2: #{custom_googlenet_forward.11} parent=0 // pred_check
    _
  $region3: #{custom_googlenet_forward.11} parent=0 // pred_check_branch
    %9 = sbr.rel (0) target = $region5
  $region4: #{custom_googlenet_forward.11} parent=0 // pred_region
    _
  $region5: #{custom_googlenet_forward.11} parent=0 // pred_fallthru
    _
  // Predicated region
  $region6: #{custom_googlenet_forward.11} parent=0 // pred_check
    _
  $region7: #{custom_googlenet_forward.11} parent=0 // pred_check_branch
    %11 = sbr.rel (0) target = $region9
  $region8: #{custom_googlenet_forward.11} parent=0 // pred_region
    _
  $region9: #{custom_googlenet_forward.11} parent=0 // pred_fallthru
    _
  // Predicated region
  $region10: #{custom_googlenet_forward.11} parent=0 // pred_check
    _
  $region11: #{custom_googlenet_forward.11} parent=0 // pred_check_branch
    %13 = sbr.rel (0) target = $region13
  $region12: #{custom_googlenet_forward.11} parent=0 // pred_region
    _
  $region13: #{custom_googlenet_forward.11} parent=0 // pred_fallthru
    _
  %v15 = vld [vmem:[%s0] sm:$0xff]
  %v16 = vld [vmem:[%s0 + $0x8] sm:$0xff]
  %v17 = vld [vmem:[%s0 + $0x10] sm:$0xff]
  %v18 = vld [vmem:[%s0 + $0x18] sm:$0xff]
  %v19 = vld [vmem:[%s0 + $0x20] sm:$0xf]
  %v20 = vld [vmem:[%s0 + $0x24] sm:$0xff]
  %v21 = vld [vmem:[%s0 + $0x2c] sm:$0xff]
  %v22 = vld [vmem:[%s0 + $0x34] sm:$0xff]
  %v23 = vld [vmem:[%s0 + $0x3c] sm:$0xff]
  %v24 = vld [vmem:[%s0 + $0x44] sm:$0xf]
  %v25 = vld [vmem:[%s0 + $0x48] sm:$0xff]
  %v26 = vld [vmem:[%s0 + $0x50] sm:$0xff]
  %v27 = vld [vmem:[%s0 + $0x58] sm:$0xff]
  %v28 = vld [vmem:[%s0 + $0x60] sm:$0xff]
  %v29 = vld [vmem:[%s0 + $0x68] sm:$0xf]
  %v30 = vld [vmem:[%s0 + $0x6c] sm:$0xff]
  %v31 = vld [vmem:[%s0 + $0x74] sm:$0xff]
  %v32 = vld [vmem:[%s0 + $0x7c] sm:$0xff]
  %v33 = vld [vmem:[%s0 + $0x84] sm:$0xff]
  %v34 = vld [vmem:[%s0 + $0x8c] sm:$0xf]
  %v35 = vld [vmem:[%s0 + $0x90] sm:$0xff]
  %v36 = vld [vmem:[%s0 + $0x98] sm:$0xff]
  %v37 = vld [vmem:[%s0 + $0xa0] sm:$0xff]
  %v38 = vld [vmem:[%s0 + $0xa8] sm:$0xff]
  %v39 = vld [vmem:[%s0 + $0xb0] sm:$0xf]
  %v40 = vld [vmem:[%s0 + $0xb4] sm:$0xff]
  %v41 = vld [vmem:[%s0 + $0xbc] sm:$0xff]
  %v42 = vld [vmem:[%s0 + $0xc4] sm:$0xff]
  %v43 = vld [vmem:[%s0 + $0xcc] sm:$0xff]
  %v44 = vld [vmem:[%s0 + $0xd4] sm:$0xf]
  %v45 = vld [vmem:[%s0 + $0xd8] sm:$0xff]
  %v46 = vld [vmem:[%s0 + $0xe0] sm:$0xff]
  %v47 = vld [vmem:[%s0 + $0xe8] sm:$0xff]
  %v48 = vld [vmem:[%s0 + $0xf0] sm:$0xff]
  %v49 = vld [vmem:[%s0 + $0xf8] sm:$0xf]
  %v50 = vld [vmem:[%s0 + $0xfc] sm:$0xff]
  %v51 = vld [vmem:[%s0 + $0x104] sm:$0xff]
  %v52 = vld [vmem:[%s0 + $0x10c] sm:$0xff]
  %v53 = vld [vmem:[%s0 + $0x114] sm:$0xff]
  %v54 = vld [vmem:[%s0 + $0x11c] sm:$0xf]
  %v55 = vld [vmem:[%s0 + $0x120] sm:$0xff]
  %v56 = vld [vmem:[%s0 + $0x128] sm:$0xff]
  %v57 = vld [vmem:[%s0 + $0x130] sm:$0xff]
  %v58 = vld [vmem:[%s0 + $0x138] sm:$0xff]
  %v59 = vld [vmem:[%s0 + $0x140] sm:$0xf]
  %v60 = vld [vmem:[%s0 + $0x144] sm:$0xff]
  %v61 = vld [vmem:[%s0 + $0x14c] sm:$0xff]
  %v62 = vld [vmem:[%s0 + $0x154] sm:$0xff]
  %v63 = vld [vmem:[%s0 + $0x15c] sm:$0xff]
  %v64 = vld [vmem:[%s0 + $0x164] sm:$0xf]
  %v65 = vld [vmem:[%s0 + $0x168] sm:$0xff]
  %v66 = vld [vmem:[%s0 + $0x170] sm:$0xff]
  %v67 = vld [vmem:[%s0 + $0x178] sm:$0xff]
  %v68 = vld [vmem:[%s0 + $0x180] sm:$0xff]
  %v69 = vld [vmem:[%s0 + $0x188] sm:$0xf]
  %v70 = vld [vmem:[%s0 + $0x18c] sm:$0xff]
  %v71 = vld [vmem:[%s0 + $0x194] sm:$0xff]
  %v72 = vld [vmem:[%s0 + $0x19c] sm:$0xff]
  %v73 = vld [vmem:[%s0 + $0x1a4] sm:$0xff]
  %v74 = vld [vmem:[%s0 + $0x1ac] sm:$0xf]
  %v75 = vld [vmem:[%s0 + $0x1b0] sm:$0xff]
  %v76 = vld [vmem:[%s0 + $0x1b8] sm:$0xff]
  %v77 = vld [vmem:[%s0 + $0x1c0] sm:$0xff]
  %v78 = vld [vmem:[%s0 + $0x1c8] sm:$0xff]
  %v79 = vld [vmem:[%s0 + $0x1d0] sm:$0xf]
  %v80 = vld [vmem:[%s0 + $0x1d4] sm:$0xff]
  %v81 = vld [vmem:[%s0 + $0x1dc] sm:$0xff]
  %v82 = vld [vmem:[%s0 + $0x1e4] sm:$0xff]
  %v83 = vld [vmem:[%s0 + $0x1ec] sm:$0xff]
  %v84 = vld [vmem:[%s0 + $0x1f4] sm:$0xf]
  %v85 = vld [vmem:[%s0 + $0x1f8] sm:$0xff]
  %v86 = vld [vmem:[%s0 + $0x200] sm:$0xff]
  %v87 = vld [vmem:[%s0 + $0x208] sm:$0xff]
  %v88 = vld [vmem:[%s0 + $0x210] sm:$0xff]
  %v89 = vld [vmem:[%s0 + $0x218] sm:$0xf]
  %v90 = vld [vmem:[%s0 + $0x21c] sm:$0xff]
  %v91 = vld [vmem:[%s0 + $0x224] sm:$0xff]
  %v92 = vld [vmem:[%s0 + $0x22c] sm:$0xff]
  %v93 = vld [vmem:[%s0 + $0x234] sm:$0xff]
  %v94 = vld [vmem:[%s0 + $0x23c] sm:$0xf]
  %v95 = vld [vmem:[%s1] sm:$0xf]
  %v96 = vld [vmem:[%s1 + $0x4] sm:$0xf]
  %v97 = vld [vmem:[%s1 + $0x8] sm:$0xf]
  %v98 = vld [vmem:[%s1 + $0xc] sm:$0xf]
  %v99 = vld [vmem:[%s1 + $0x10] sm:$0xf]
  %v100 = vld [vmem:[%s1 + $0x14] sm:$0xf]
  %v101 = vld [vmem:[%s1 + $0x18] sm:$0xf]
  %v102 = vld [vmem:[%s1 + $0x1c] sm:$0xf]
  %v103 = vld [vmem:[%s1 + $0x20] sm:$0xf]
  %v104 = vld [vmem:[%s1 + $0x24] sm:$0xf]
  %v105 = vld [vmem:[%s1 + $0x28] sm:$0xf]
  %v106 = vld [vmem:[%s1 + $0x2c] sm:$0xf]
  %v107 = vld [vmem:[%s1 + $0x30] sm:$0xf]
  %v108 = vld [vmem:[%s1 + $0x34] sm:$0xf]
  %v109 = vld [vmem:[%s1 + $0x38] sm:$0xf]
  %v110 = vld [vmem:[%s1 + $0x3c] sm:$0xf]
  %v111 = vld [vmem:[%s1 + $0x40] sm:$0xf]
  %v112 = vld [vmem:[%s1 + $0x44] sm:$0xf]
  %v113 = vld [vmem:[%s1 + $0x48] sm:$0xf]
  %v114 = vld [vmem:[%s1 + $0x4c] sm:$0xf]
  %v115 = vld [vmem:[%s1 + $0x50] sm:$0xf]
  %v116 = vld [vmem:[%s1 + $0x54] sm:$0xf]
  %v117 = vld [vmem:[%s1 + $0x58] sm:$0xf]
  %v118 = vld [vmem:[%s1 + $0x5c] sm:$0xf]
  %v119 = vld [vmem:[%s1 + $0x60] sm:$0xf]
  %v120 = vld [vmem:[%s1 + $0x64] sm:$0xf]
  %v121 = vld [vmem:[%s1 + $0x68] sm:$0xf]
  %v122 = vld [vmem:[%s1 + $0x6c] sm:$0xf]
  %v123 = vld [vmem:[%s1 + $0x70] sm:$0xf]
  %v124 = vld [vmem:[%s1 + $0x74] sm:$0xf]
  %v125 = vld [vmem:[%s1 + $0x78] sm:$0xf]
  %v126 = vld [vmem:[%s1 + $0x7c] sm:$0xf]
  %v127 = vld [vmem:[%s1 + $0x80] sm:$0xf]
  %v128 = vld [vmem:[%s1 + $0x84] sm:$0xf]
  %v129 = vld [vmem:[%s1 + $0x88] sm:$0xf]
  %v130 = vld [vmem:[%s1 + $0x8c] sm:$0xf]
  %v131 = vld [vmem:[%s1 + $0x90] sm:$0xf]
  %v132 = vld [vmem:[%s1 + $0x94] sm:$0xf]
  %v133 = vld [vmem:[%s1 + $0x98] sm:$0xf]
  %v134 = vld [vmem:[%s1 + $0x9c] sm:$0xf]
  %v135 = vld [vmem:[%s1 + $0xa0] sm:$0xf]
  %v136 = vld [vmem:[%s1 + $0xa4] sm:$0xf]
  %v137 = vld [vmem:[%s1 + $0xa8] sm:$0xf]
  %v138 = vld [vmem:[%s1 + $0xac] sm:$0xf]
  %v139 = vld [vmem:[%s1 + $0xb0] sm:$0xf]
  %v140 = vld [vmem:[%s1 + $0xb4] sm:$0xf]
  %v141 = vld [vmem:[%s1 + $0xb8] sm:$0xf]
  %v142 = vld [vmem:[%s1 + $0xbc] sm:$0xf]
  %v143 = vld [vmem:[%s1 + $0xc0] sm:$0xf]
  %v144 = vld [vmem:[%s1 + $0xc4] sm:$0xf]
  %v145 = vld [vmem:[%s1 + $0xc8] sm:$0xf]
  %v146 = vld [vmem:[%s1 + $0xcc] sm:$0xf]
  %v147 = vld [vmem:[%s1 + $0xd0] sm:$0xf]
  %v148 = vld [vmem:[%s1 + $0xd4] sm:$0xf]
  %v149 = vld [vmem:[%s1 + $0xd8] sm:$0xf]
  %v150 = vld [vmem:[%s1 + $0xdc] sm:$0xf]
  %v151 = vld [vmem:[%s1 + $0xe0] sm:$0xf]
  %v152 = vld [vmem:[%s1 + $0xe4] sm:$0xf]
  %v153 = vld [vmem:[%s1 + $0xe8] sm:$0xf]
  %v154 = vld [vmem:[%s1 + $0xec] sm:$0xf]
  %v155 = vld [vmem:[%s1 + $0xf0] sm:$0xf]
  %v156 = vld [vmem:[%s1 + $0xf4] sm:$0xf]
  %v157 = vld [vmem:[%s1 + $0xf8] sm:$0xf]
  %v158 = vld [vmem:[%s1 + $0xfc] sm:$0xf]
  %v159 = vld [vmem:[%s1 + $0x100] sm:$0xf]
  %v160 = vld [vmem:[%s1 + $0x104] sm:$0xf]
  %v161 = vld [vmem:[%s1 + $0x108] sm:$0xf]
  %v162 = vld [vmem:[%s1 + $0x10c] sm:$0xf]
  %v163 = vld [vmem:[%s1 + $0x110] sm:$0xf]
  %v164 = vld [vmem:[%s1 + $0x114] sm:$0xf]
  %v165 = vld [vmem:[%s1 + $0x118] sm:$0xf]
  %v166 = vld [vmem:[%s1 + $0x11c] sm:$0xf]
  %v167 = vld [vmem:[%s1 + $0x120] sm:$0xf]
  %v168 = vld [vmem:[%s1 + $0x124] sm:$0xf]
  %v169 = vld [vmem:[%s1 + $0x128] sm:$0xf]
  %v170 = vld [vmem:[%s1 + $0x12c] sm:$0xf]
  %v171 = vld [vmem:[%s1 + $0x130] sm:$0xf]
  %v172 = vld [vmem:[%s1 + $0x134] sm:$0xf]
  %v173 = vld [vmem:[%s1 + $0x138] sm:$0xf]
  %v174 = vld [vmem:[%s1 + $0x13c] sm:$0xf]
  %v175 = vld [vmem:[%s1 + $0x140] sm:$0xf]
  %v176 = vld [vmem:[%s1 + $0x144] sm:$0xf]
  %v177 = vld [vmem:[%s1 + $0x148] sm:$0xf]
  %v178 = vld [vmem:[%s1 + $0x14c] sm:$0xf]
  %v179 = vld [vmem:[%s1 + $0x150] sm:$0xf]
  %v180 = vld [vmem:[%s1 + $0x154] sm:$0xf]
  %v181 = vld [vmem:[%s1 + $0x158] sm:$0xf]
  %v182 = vld [vmem:[%s1 + $0x15c] sm:$0xf]
  %v183 = vld [vmem:[%s1 + $0x160] sm:$0xf]
  %v184 = vld [vmem:[%s1 + $0x164] sm:$0xf]
  %v185 = vld [vmem:[%s1 + $0x168] sm:$0xf]
  %v186 = vld [vmem:[%s1 + $0x16c] sm:$0xf]
  %v187 = vld [vmem:[%s1 + $0x170] sm:$0xf]
  %v188 = vld [vmem:[%s1 + $0x174] sm:$0xf]
  %v189 = vld [vmem:[%s1 + $0x178] sm:$0xf]
  %v190 = vld [vmem:[%s1 + $0x17c] sm:$0xf]
  %v191 = vld [vmem:[%s1 + $0x180] sm:$0xf]
  %v192 = vld [vmem:[%s1 + $0x184] sm:$0xf]
  %v193 = vld [vmem:[%s1 + $0x188] sm:$0xf]
  %v194 = vld [vmem:[%s1 + $0x18c] sm:$0xf]
  %v195 = vld [vmem:[%s1 + $0x190] sm:$0xf]
  %v196 = vld [vmem:[%s1 + $0x194] sm:$0xf]
  %v197 = vld [vmem:[%s1 + $0x198] sm:$0xf]
  %v198 = vld [vmem:[%s1 + $0x19c] sm:$0xf]
  %v199 = vld [vmem:[%s1 + $0x1a0] sm:$0xf]
  %v200 = vld [vmem:[%s1 + $0x1a4] sm:$0xf]
  %v201 = vld [vmem:[%s1 + $0x1a8] sm:$0xf]
  %v202 = vld [vmem:[%s1 + $0x1ac] sm:$0xf]
  %v203 = vld [vmem:[%s1 + $0x1b0] sm:$0xf]
  %v204 = vld [vmem:[%s1 + $0x1b4] sm:$0xf]
  %v205 = vld [vmem:[%s1 + $0x1b8] sm:$0xf]
  %v206 = vld [vmem:[%s1 + $0x1bc] sm:$0xf]
  %v207 = vld [vmem:[%s1 + $0x1c0] sm:$0xf]
  %v208 = vld [vmem:[%s1 + $0x1c4] sm:$0xf]
  %v209 = vld [vmem:[%s1 + $0x1c8] sm:$0xf]
  %v210 = vld [vmem:[%s1 + $0x1cc] sm:$0xf]
  %v211 = vld [vmem:[%s1 + $0x1d0] sm:$0xf]
  %v212 = vld [vmem:[%s1 + $0x1d4] sm:$0xf]
  %v213 = vld [vmem:[%s1 + $0x1d8] sm:$0xf]
  %v214 = vld [vmem:[%s1 + $0x1dc] sm:$0xf]
  %v215 = vld [vmem:[%s1 + $0x1e0] sm:$0xf]
  %v216 = vld [vmem:[%s1 + $0x1e4] sm:$0xf]
  %v217 = vld [vmem:[%s1 + $0x1e8] sm:$0xf]
  %v218 = vld [vmem:[%s1 + $0x1ec] sm:$0xf]
  %v219 = vld [vmem:[%s1 + $0x1f0] sm:$0xf]
  %v220 = vld [vmem:[%s1 + $0x1f4] sm:$0xf]
  %v221 = vld [vmem:[%s1 + $0x1f8] sm:$0xf]
  %v222 = vld [vmem:[%s1 + $0x1fc] sm:$0xf]
  %v223 = vld [vmem:[%s1 + $0x200] sm:$0xf]
  %v224 = vld [vmem:[%s1 + $0x204] sm:$0xf]
  %v225 = vld [vmem:[%s1 + $0x208] sm:$0xf]
  %v226 = vld [vmem:[%s1 + $0x20c] sm:$0xf]
  %v227 = vld [vmem:[%s1 + $0x210] sm:$0xf]
  %v228 = vld [vmem:[%s1 + $0x214] sm:$0xf]
  %v229 = vld [vmem:[%s1 + $0x218] sm:$0xf]
  %v230 = vld [vmem:[%s1 + $0x21c] sm:$0xf]
  %v231 = vld [vmem:[%s1 + $0x220] sm:$0xf]
  %v232 = vld [vmem:[%s1 + $0x224] sm:$0xf]
  %v233 = vld [vmem:[%s1 + $0x228] sm:$0xf]
  %v234 = vld [vmem:[%s1 + $0x22c] sm:$0xf]
  %v235 = vld [vmem:[%s1 + $0x230] sm:$0xf]
  %v236 = vld [vmem:[%s1 + $0x234] sm:$0xf]
  %v237 = vld [vmem:[%s1 + $0x238] sm:$0xf]
  %v238 = vld [vmem:[%s1 + $0x23c] sm:$0xf]
  %v239 = vld [vmem:[%s2] sm:$0x1]
  %v241 = vlaneseq
  %v242 = vshrl.u32 %v241, 7
  %v243 = vsub.s32 0, %v242
  %v244 = vrot.slane %v239, %v243
  %v326 = vunpack.c.l.b16 %v15
  %v327 = vunpack.c.h.b16 %v15
  %v328 = vunpack.c.l.b16 %v16
  %v329 = vunpack.c.h.b16 %v16
  %v330 = vunpack.c.l.b16 %v17
  %v331 = vunpack.c.h.b16 %v17
  %v332 = vunpack.c.l.b16 %v18
  %v333 = vunpack.c.h.b16 %v18
  %v334 = vunpack.c.l.b16 %v19
  %v335 = vunpack.c.l.b16 %v20
  %v336 = vunpack.c.h.b16 %v20
  %v337 = vunpack.c.l.b16 %v21
  %v338 = vunpack.c.h.b16 %v21
  %v339 = vunpack.c.l.b16 %v22
  %v340 = vunpack.c.h.b16 %v22
  %v341 = vunpack.c.l.b16 %v23
  %v342 = vunpack.c.h.b16 %v23
  %v343 = vunpack.c.l.b16 %v24
  %v344 = vunpack.c.l.b16 %v25
  %v345 = vunpack.c.h.b16 %v25
  %v346 = vunpack.c.l.b16 %v26
  %v347 = vunpack.c.h.b16 %v26
  %v348 = vunpack.c.l.b16 %v27
  %v349 = vunpack.c.h.b16 %v27
  %v350 = vunpack.c.l.b16 %v28
  %v351 = vunpack.c.h.b16 %v28
  %v352 = vunpack.c.l.b16 %v29
  %v353 = vunpack.c.l.b16 %v30
  %v354 = vunpack.c.h.b16 %v30
  %v355 = vunpack.c.l.b16 %v31
  %v356 = vunpack.c.h.b16 %v31
  %v357 = vunpack.c.l.b16 %v32
  %v358 = vunpack.c.h.b16 %v32
  %v359 = vunpack.c.l.b16 %v33
  %v360 = vunpack.c.h.b16 %v33
  %v361 = vunpack.c.l.b16 %v34
  %v362 = vunpack.c.l.b16 %v35
  %v363 = vunpack.c.h.b16 %v35
  %v364 = vunpack.c.l.b16 %v36
  %v365 = vunpack.c.h.b16 %v36
  %v366 = vunpack.c.l.b16 %v37
  %v367 = vunpack.c.h.b16 %v37
  %v368 = vunpack.c.l.b16 %v38
  %v369 = vunpack.c.h.b16 %v38
  %v370 = vunpack.c.l.b16 %v39
  %v371 = vunpack.c.l.b16 %v40
  %v372 = vunpack.c.h.b16 %v40
  %v373 = vunpack.c.l.b16 %v41
  %v374 = vunpack.c.h.b16 %v41
  %v375 = vunpack.c.l.b16 %v42
  %v376 = vunpack.c.h.b16 %v42
  %v377 = vunpack.c.l.b16 %v43
  %v378 = vunpack.c.h.b16 %v43
  %v379 = vunpack.c.l.b16 %v44
  %v380 = vunpack.c.l.b16 %v45
  %v381 = vunpack.c.h.b16 %v45
  %v382 = vunpack.c.l.b16 %v46
  %v383 = vunpack.c.h.b16 %v46
  %v384 = vunpack.c.l.b16 %v47
  %v385 = vunpack.c.h.b16 %v47
  %v386 = vunpack.c.l.b16 %v48
  %v387 = vunpack.c.h.b16 %v48
  %v388 = vunpack.c.l.b16 %v49
  %v389 = vunpack.c.l.b16 %v50
  %v390 = vunpack.c.h.b16 %v50
  %v391 = vunpack.c.l.b16 %v51
  %v392 = vunpack.c.h.b16 %v51
  %v393 = vunpack.c.l.b16 %v52
  %v394 = vunpack.c.h.b16 %v52
  %v395 = vunpack.c.l.b16 %v53
  %v396 = vunpack.c.h.b16 %v53
  %v397 = vunpack.c.l.b16 %v54
  %v398 = vunpack.c.l.b16 %v55
  %v399 = vunpack.c.h.b16 %v55
  %v400 = vunpack.c.l.b16 %v56
  %v401 = vunpack.c.h.b16 %v56
  %v402 = vunpack.c.l.b16 %v57
  %v403 = vunpack.c.h.b16 %v57
  %v404 = vunpack.c.l.b16 %v58
  %v405 = vunpack.c.h.b16 %v58
  %v406 = vunpack.c.l.b16 %v59
  %v407 = vunpack.c.l.b16 %v60
  %v408 = vunpack.c.h.b16 %v60
  %v409 = vunpack.c.l.b16 %v61
  %v410 = vunpack.c.h.b16 %v61
  %v411 = vunpack.c.l.b16 %v62
  %v412 = vunpack.c.h.b16 %v62
  %v413 = vunpack.c.l.b16 %v63
  %v414 = vunpack.c.h.b16 %v63
  %v415 = vunpack.c.l.b16 %v64
  %v416 = vunpack.c.l.b16 %v65
  %v417 = vunpack.c.h.b16 %v65
  %v418 = vunpack.c.l.b16 %v66
  %v419 = vunpack.c.h.b16 %v66
  %v420 = vunpack.c.l.b16 %v67
  %v421 = vunpack.c.h.b16 %v67
  %v422 = vunpack.c.l.b16 %v68
  %v423 = vunpack.c.h.b16 %v68
  %v424 = vunpack.c.l.b16 %v69
  %v425 = vunpack.c.l.b16 %v70
  %v426 = vunpack.c.h.b16 %v70
  %v427 = vunpack.c.l.b16 %v71
  %v428 = vunpack.c.h.b16 %v71
  %v429 = vunpack.c.l.b16 %v72
  %v430 = vunpack.c.h.b16 %v72
  %v431 = vunpack.c.l.b16 %v73
  %v432 = vunpack.c.h.b16 %v73
  %v433 = vunpack.c.l.b16 %v74
  %v434 = vunpack.c.l.b16 %v75
  %v435 = vunpack.c.h.b16 %v75
  %v436 = vunpack.c.l.b16 %v76
  %v437 = vunpack.c.h.b16 %v76
  %v438 = vunpack.c.l.b16 %v77
  %v439 = vunpack.c.h.b16 %v77
  %v440 = vunpack.c.l.b16 %v78
  %v441 = vunpack.c.h.b16 %v78
  %v442 = vunpack.c.l.b16 %v79
  %v443 = vunpack.c.l.b16 %v80
  %v444 = vunpack.c.h.b16 %v80
  %v445 = vunpack.c.l.b16 %v81
  %v446 = vunpack.c.h.b16 %v81
  %v447 = vunpack.c.l.b16 %v82
  %v448 = vunpack.c.h.b16 %v82
  %v449 = vunpack.c.l.b16 %v83
  %v450 = vunpack.c.h.b16 %v83
  %v451 = vunpack.c.l.b16 %v84
  %v452 = vunpack.c.l.b16 %v85
  %v453 = vunpack.c.h.b16 %v85
  %v454 = vunpack.c.l.b16 %v86
  %v455 = vunpack.c.h.b16 %v86
  %v456 = vunpack.c.l.b16 %v87
  %v457 = vunpack.c.h.b16 %v87
  %v458 = vunpack.c.l.b16 %v88
  %v459 = vunpack.c.h.b16 %v88
  %v460 = vunpack.c.l.b16 %v89
  %v461 = vunpack.c.l.b16 %v90
  %v462 = vunpack.c.h.b16 %v90
  %v463 = vunpack.c.l.b16 %v91
  %v464 = vunpack.c.h.b16 %v91
  %v465 = vunpack.c.l.b16 %v92
  %v466 = vunpack.c.h.b16 %v92
  %v467 = vunpack.c.l.b16 %v93
  %v468 = vunpack.c.h.b16 %v93
  %v469 = vunpack.c.l.b16 %v94
  %v470 = vpack.c.b16 %v335, %v326
  %v471 = vpack.c.b16 %v336, %v327
  %v472 = vpack.c.b16 %v337, %v328
  %v473 = vpack.c.b16 %v338, %v329
  %v474 = vpack.c.b16 %v339, %v330
  %v475 = vpack.c.b16 %v340, %v331
  %v476 = vpack.c.b16 %v341, %v332
  %v477 = vpack.c.b16 %v342, %v333
  %v478 = vpack.c.b16 %v343, %v334
  %v479 = vpack.c.b16 %v353, %v344
  %v480 = vpack.c.b16 %v354, %v345
  %v481 = vpack.c.b16 %v355, %v346
  %v482 = vpack.c.b16 %v356, %v347
  %v483 = vpack.c.b16 %v357, %v348
  %v484 = vpack.c.b16 %v358, %v349
  %v485 = vpack.c.b16 %v359, %v350
  %v486 = vpack.c.b16 %v360, %v351
  %v487 = vpack.c.b16 %v361, %v352
  %v488 = vpack.c.b16 %v371, %v362
  %v489 = vpack.c.b16 %v372, %v363
  %v490 = vpack.c.b16 %v373, %v364
  %v491 = vpack.c.b16 %v374, %v365
  %v492 = vpack.c.b16 %v375, %v366
  %v493 = vpack.c.b16 %v376, %v367
  %v494 = vpack.c.b16 %v377, %v368
  %v495 = vpack.c.b16 %v378, %v369
  %v496 = vpack.c.b16 %v379, %v370
  %v497 = vpack.c.b16 %v389, %v380
  %v498 = vpack.c.b16 %v390, %v381
  %v499 = vpack.c.b16 %v391, %v382
  %v500 = vpack.c.b16 %v392, %v383
  %v501 = vpack.c.b16 %v393, %v384
  %v502 = vpack.c.b16 %v394, %v385
  %v503 = vpack.c.b16 %v395, %v386
  %v504 = vpack.c.b16 %v396, %v387
  %v505 = vpack.c.b16 %v397, %v388
  %v506 = vpack.c.b16 %v407, %v398
  %v507 = vpack.c.b16 %v408, %v399
  %v508 = vpack.c.b16 %v409, %v400
  %v509 = vpack.c.b16 %v410, %v401
  %v510 = vpack.c.b16 %v411, %v402
  %v511 = vpack.c.b16 %v412, %v403
  %v512 = vpack.c.b16 %v413, %v404
  %v513 = vpack.c.b16 %v414, %v405
  %v514 = vpack.c.b16 %v415, %v406
  %v515 = vpack.c.b16 %v425, %v416
  %v516 = vpack.c.b16 %v426, %v417
  %v517 = vpack.c.b16 %v427, %v418
  %v518 = vpack.c.b16 %v428, %v419
  %v519 = vpack.c.b16 %v429, %v420
  %v520 = vpack.c.b16 %v430, %v421
  %v521 = vpack.c.b16 %v431, %v422
  %v522 = vpack.c.b16 %v432, %v423
  %v523 = vpack.c.b16 %v433, %v424
  %v524 = vpack.c.b16 %v443, %v434
  %v525 = vpack.c.b16 %v444, %v435
  %v526 = vpack.c.b16 %v445, %v436
  %v527 = vpack.c.b16 %v446, %v437
  %v528 = vpack.c.b16 %v447, %v438
  %v529 = vpack.c.b16 %v448, %v439
  %v530 = vpack.c.b16 %v449, %v440
  %v531 = vpack.c.b16 %v450, %v441
  %v532 = vpack.c.b16 %v451, %v442
  %v533 = vpack.c.b16 %v461, %v452
  %v534 = vpack.c.b16 %v462, %v453
  %v535 = vpack.c.b16 %v463, %v454
  %v536 = vpack.c.b16 %v464, %v455
  %v537 = vpack.c.b16 %v465, %v456
  %v538 = vpack.c.b16 %v466, %v457
  %v539 = vpack.c.b16 %v467, %v458
  %v540 = vpack.c.b16 %v468, %v459
  %v541 = vpack.c.b16 %v469, %v460
  %v758 = vunpack.c.l.b16 %v95
  %v759 = vunpack.c.l.b16 %v96
  %v760 = vunpack.c.l.b16 %v97
  %v761 = vunpack.c.l.b16 %v98
  %v762 = vunpack.c.l.b16 %v99
  %v763 = vunpack.c.l.b16 %v100
  %v764 = vunpack.c.l.b16 %v101
  %v765 = vunpack.c.l.b16 %v102
  %v766 = vunpack.c.l.b16 %v103
  %v767 = vunpack.c.l.b16 %v104
  %v768 = vunpack.c.l.b16 %v105
  %v769 = vunpack.c.l.b16 %v106
  %v770 = vunpack.c.l.b16 %v107
  %v771 = vunpack.c.l.b16 %v108
  %v772 = vunpack.c.l.b16 %v109
  %v773 = vunpack.c.l.b16 %v110
  %v774 = vunpack.c.l.b16 %v111
  %v775 = vunpack.c.l.b16 %v112
  %v776 = vunpack.c.l.b16 %v113
  %v777 = vunpack.c.l.b16 %v114
  %v778 = vunpack.c.l.b16 %v115
  %v779 = vunpack.c.l.b16 %v116
  %v780 = vunpack.c.l.b16 %v117
  %v781 = vunpack.c.l.b16 %v118
  %v782 = vunpack.c.l.b16 %v119
  %v783 = vunpack.c.l.b16 %v120
  %v784 = vunpack.c.l.b16 %v121
  %v785 = vunpack.c.l.b16 %v122
  %v786 = vunpack.c.l.b16 %v123
  %v787 = vunpack.c.l.b16 %v124
  %v788 = vunpack.c.l.b16 %v125
  %v789 = vunpack.c.l.b16 %v126
  %v790 = vunpack.c.l.b16 %v127
  %v791 = vunpack.c.l.b16 %v128
  %v792 = vunpack.c.l.b16 %v129
  %v793 = vunpack.c.l.b16 %v130
  %v794 = vunpack.c.l.b16 %v131
  %v795 = vunpack.c.l.b16 %v132
  %v796 = vunpack.c.l.b16 %v133
  %v797 = vunpack.c.l.b16 %v134
  %v798 = vunpack.c.l.b16 %v135
  %v799 = vunpack.c.l.b16 %v136
  %v800 = vunpack.c.l.b16 %v137
  %v801 = vunpack.c.l.b16 %v138
  %v802 = vunpack.c.l.b16 %v139
  %v803 = vunpack.c.l.b16 %v140
  %v804 = vunpack.c.l.b16 %v141
  %v805 = vunpack.c.l.b16 %v142
  %v806 = vunpack.c.l.b16 %v143
  %v807 = vunpack.c.l.b16 %v144
  %v808 = vunpack.c.l.b16 %v145
  %v809 = vunpack.c.l.b16 %v146
  %v810 = vunpack.c.l.b16 %v147
  %v811 = vunpack.c.l.b16 %v148
  %v812 = vunpack.c.l.b16 %v149
  %v813 = vunpack.c.l.b16 %v150
  %v814 = vunpack.c.l.b16 %v151
  %v815 = vunpack.c.l.b16 %v152
  %v816 = vunpack.c.l.b16 %v153
  %v817 = vunpack.c.l.b16 %v154
  %v818 = vunpack.c.l.b16 %v155
  %v819 = vunpack.c.l.b16 %v156
  %v820 = vunpack.c.l.b16 %v157
  %v821 = vunpack.c.l.b16 %v158
  %v822 = vunpack.c.l.b16 %v159
  %v823 = vunpack.c.l.b16 %v160
  %v824 = vunpack.c.l.b16 %v161
  %v825 = vunpack.c.l.b16 %v162
  %v826 = vunpack.c.l.b16 %v163
  %v827 = vunpack.c.l.b16 %v164
  %v828 = vunpack.c.l.b16 %v165
  %v829 = vunpack.c.l.b16 %v166
  %v830 = vunpack.c.l.b16 %v167
  %v831 = vunpack.c.l.b16 %v168
  %v832 = vunpack.c.l.b16 %v169
  %v833 = vunpack.c.l.b16 %v170
  %v834 = vunpack.c.l.b16 %v171
  %v835 = vunpack.c.l.b16 %v172
  %v836 = vunpack.c.l.b16 %v173
  %v837 = vunpack.c.l.b16 %v174
  %v838 = vunpack.c.l.b16 %v175
  %v839 = vunpack.c.l.b16 %v176
  %v840 = vunpack.c.l.b16 %v177
  %v841 = vunpack.c.l.b16 %v178
  %v842 = vunpack.c.l.b16 %v179
  %v843 = vunpack.c.l.b16 %v180
  %v844 = vunpack.c.l.b16 %v181
  %v845 = vunpack.c.l.b16 %v182
  %v846 = vunpack.c.l.b16 %v183
  %v847 = vunpack.c.l.b16 %v184
  %v848 = vunpack.c.l.b16 %v185
  %v849 = vunpack.c.l.b16 %v186
  %v850 = vunpack.c.l.b16 %v187
  %v851 = vunpack.c.l.b16 %v188
  %v852 = vunpack.c.l.b16 %v189
  %v853 = vunpack.c.l.b16 %v190
  %v854 = vunpack.c.l.b16 %v191
  %v855 = vunpack.c.l.b16 %v192
  %v856 = vunpack.c.l.b16 %v193
  %v857 = vunpack.c.l.b16 %v194
  %v858 = vunpack.c.l.b16 %v195
  %v859 = vunpack.c.l.b16 %v196
  %v860 = vunpack.c.l.b16 %v197
  %v861 = vunpack.c.l.b16 %v198
  %v862 = vunpack.c.l.b16 %v199
  %v863 = vunpack.c.l.b16 %v200
  %v864 = vunpack.c.l.b16 %v201
  %v865 = vunpack.c.l.b16 %v202
  %v866 = vunpack.c.l.b16 %v203
  %v867 = vunpack.c.l.b16 %v204
  %v868 = vunpack.c.l.b16 %v205
  %v869 = vunpack.c.l.b16 %v206
  %v870 = vunpack.c.l.b16 %v207
  %v871 = vunpack.c.l.b16 %v208
  %v872 = vunpack.c.l.b16 %v209
  %v873 = vunpack.c.l.b16 %v210
  %v874 = vunpack.c.l.b16 %v211
  %v875 = vunpack.c.l.b16 %v212
  %v876 = vunpack.c.l.b16 %v213
  %v877 = vunpack.c.l.b16 %v214
  %v878 = vunpack.c.l.b16 %v215
  %v879 = vunpack.c.l.b16 %v216
  %v880 = vunpack.c.l.b16 %v217
  %v881 = vunpack.c.l.b16 %v218
  %v882 = vunpack.c.l.b16 %v219
  %v883 = vunpack.c.l.b16 %v220
  %v884 = vunpack.c.l.b16 %v221
  %v885 = vunpack.c.l.b16 %v222
  %v886 = vunpack.c.l.b16 %v223
  %v887 = vunpack.c.l.b16 %v224
  %v888 = vunpack.c.l.b16 %v225
  %v889 = vunpack.c.l.b16 %v226
  %v890 = vunpack.c.l.b16 %v227
  %v891 = vunpack.c.l.b16 %v228
  %v892 = vunpack.c.l.b16 %v229
  %v893 = vunpack.c.l.b16 %v230
  %v894 = vunpack.c.l.b16 %v231
  %v895 = vunpack.c.l.b16 %v232
  %v896 = vunpack.c.l.b16 %v233
  %v897 = vunpack.c.l.b16 %v234
  %v898 = vunpack.c.l.b16 %v235
  %v899 = vunpack.c.l.b16 %v236
  %v900 = vunpack.c.l.b16 %v237
  %v901 = vunpack.c.l.b16 %v238
  %v902 = vpack.c.b16 %v759, %v758
  %v903 = vpack.c.b16 %v761, %v760
  %v904 = vpack.c.b16 %v763, %v762
  %v905 = vpack.c.b16 %v765, %v764
  %v906 = vpack.c.b16 %v767, %v766
  %v907 = vpack.c.b16 %v769, %v768
  %v908 = vpack.c.b16 %v771, %v770
  %v909 = vpack.c.b16 %v773, %v772
  %v910 = vpack.c.b16 %v775, %v774
  %v911 = vpack.c.b16 %v777, %v776
  %v912 = vpack.c.b16 %v779, %v778
  %v913 = vpack.c.b16 %v781, %v780
  %v914 = vpack.c.b16 %v783, %v782
  %v915 = vpack.c.b16 %v785, %v784
  %v916 = vpack.c.b16 %v787, %v786
  %v917 = vpack.c.b16 %v789, %v788
  %v918 = vpack.c.b16 %v791, %v790
  %v919 = vpack.c.b16 %v793, %v792
  %v920 = vpack.c.b16 %v795, %v794
  %v921 = vpack.c.b16 %v797, %v796
  %v922 = vpack.c.b16 %v799, %v798
  %v923 = vpack.c.b16 %v801, %v800
  %v924 = vpack.c.b16 %v803, %v802
  %v925 = vpack.c.b16 %v805, %v804
  %v926 = vpack.c.b16 %v807, %v806
  %v927 = vpack.c.b16 %v809, %v808
  %v928 = vpack.c.b16 %v811, %v810
  %v929 = vpack.c.b16 %v813, %v812
  %v930 = vpack.c.b16 %v815, %v814
  %v931 = vpack.c.b16 %v817, %v816
  %v932 = vpack.c.b16 %v819, %v818
  %v933 = vpack.c.b16 %v821, %v820
  %v934 = vpack.c.b16 %v823, %v822
  %v935 = vpack.c.b16 %v825, %v824
  %v936 = vpack.c.b16 %v827, %v826
  %v937 = vpack.c.b16 %v829, %v828
  %v938 = vpack.c.b16 %v831, %v830
  %v939 = vpack.c.b16 %v833, %v832
  %v940 = vpack.c.b16 %v835, %v834
  %v941 = vpack.c.b16 %v837, %v836
  %v942 = vpack.c.b16 %v839, %v838
  %v943 = vpack.c.b16 %v841, %v840
  %v944 = vpack.c.b16 %v843, %v842
  %v945 = vpack.c.b16 %v845, %v844
  %v946 = vpack.c.b16 %v847, %v846
  %v947 = vpack.c.b16 %v849, %v848
  %v948 = vpack.c.b16 %v851, %v850
  %v949 = vpack.c.b16 %v853, %v852
  %v950 = vpack.c.b16 %v855, %v854
  %v951 = vpack.c.b16 %v857, %v856
  %v952 = vpack.c.b16 %v859, %v858
  %v953 = vpack.c.b16 %v861, %v860
  %v954 = vpack.c.b16 %v863, %v862
  %v955 = vpack.c.b16 %v865, %v864
  %v956 = vpack.c.b16 %v867, %v866
  %v957 = vpack.c.b16 %v869, %v868
  %v958 = vpack.c.b16 %v871, %v870
  %v959 = vpack.c.b16 %v873, %v872
  %v960 = vpack.c.b16 %v875, %v874
  %v961 = vpack.c.b16 %v877, %v876
  %v962 = vpack.c.b16 %v879, %v878
  %v963 = vpack.c.b16 %v881, %v880
  %v964 = vpack.c.b16 %v883, %v882
  %v965 = vpack.c.b16 %v885, %v884
  %v966 = vpack.c.b16 %v887, %v886
  %v967 = vpack.c.b16 %v889, %v888
  %v968 = vpack.c.b16 %v891, %v890
  %v969 = vpack.c.b16 %v893, %v892
  %v970 = vpack.c.b16 %v895, %v894
  %v971 = vpack.c.b16 %v897, %v896
  %v972 = vpack.c.b16 %v899, %v898
  %v973 = vpack.c.b16 %v901, %v900
  %1046 = vmatprep.subr.bf16.mxu0 0
  %1047 = vmatpush1.bf16.msra.mxu0 %v909
  %1048 = vmatprep.subr.bf16.mxu0 0
  %1049 = vmatpush1.bf16.msra.mxu0 %v908
  %1050 = vmatprep.subr.bf16.mxu0 0
  %1051 = vmatpush1.bf16.msra.mxu0 %v907
  %1052 = vmatprep.subr.bf16.mxu0 0
  %1053 = vmatpush1.bf16.msra.mxu0 %v906
  %1054 = vmatprep.subr.bf16.mxu0 0
  %1055 = vmatpush1.bf16.msra.mxu0 %v905
  %1056 = vmatprep.subr.bf16.mxu0 0
  %1057 = vmatpush1.bf16.msra.mxu0 %v904
  %1058 = vmatprep.subr.bf16.mxu0 0
  %1059 = vmatpush1.bf16.msra.mxu0 %v903
  %1060 = vmatprep.subr.bf16.mxu0 0
  %1061 = vmatpush1.bf16.msra.mxu0 %v902
  %1062 = vmatprep.subr.bf16.mxu0 0
  %1063 = vmatpush2.bf16.msra.mxu0 %v917
  %1064 = vmatprep.subr.bf16.mxu0 0
  %1065 = vmatpush2.bf16.msra.mxu0 %v916
  %1066 = vmatprep.subr.bf16.mxu0 0
  %1067 = vmatpush2.bf16.msra.mxu0 %v915
  %1068 = vmatprep.subr.bf16.mxu0 0
  %1069 = vmatpush2.bf16.msra.mxu0 %v914
  %1070 = vmatprep.subr.bf16.mxu0 0
  %1071 = vmatpush2.bf16.msra.mxu0 %v913
  %1072 = vmatprep.subr.bf16.mxu0 0
  %1073 = vmatpush2.bf16.msra.mxu0 %v912
  %1074 = vmatprep.subr.bf16.mxu0 0
  %1075 = vmatpush2.bf16.msra.mxu0 %v911
  %1076 = vmatprep.subr.bf16.mxu0 0
  %1077 = vmatpush2.bf16.msra.mxu0 %v910
  %1078 = vmatprep.mubr.bf16.mxu0 %v471
  %1079 = vmatmul.mubr.bf16.gmra.mxu0 %v470
  %v1080 = vpop.f32.mrf.mxu0
  %v1081 = vadd.f32 %v244, %v1080
  %v1082 = vpop.f32.mrf.mxu0
  %v1083 = vpop.f32.mrf.mxu0
  %v1084 = vadd.f32 %v244, %v1083
  %v1085 = vpop.f32.mrf.mxu0
  %1086 = vmatprep.mubr.bf16.mxu0 %v480
  %1087 = vmatmul.mubr.bf16.gmra.mxu0 %v479
  %v1088 = vpop.f32.mrf.mxu0
  %v1089 = vadd.f32 %v244, %v1088
  %v1090 = vpop.f32.mrf.mxu0
  %v1091 = vpop.f32.mrf.mxu0
  %v1092 = vadd.f32 %v244, %v1091
  %v1093 = vpop.f32.mrf.mxu0
  %1094 = vmatprep.mubr.bf16.mxu0 %v489
  %1095 = vmatmul.mubr.bf16.gmra.mxu0 %v488
  %v1096 = vpop.f32.mrf.mxu0
  %v1097 = vadd.f32 %v244, %v1096
  %v1098 = vpop.f32.mrf.mxu0
  %v1099 = vpop.f32.mrf.mxu0
  %v1100 = vadd.f32 %v244, %v1099
  %v1101 = vpop.f32.mrf.mxu0
  %1102 = vmatprep.mubr.bf16.mxu0 %v498
  %1103 = vmatmul.mubr.bf16.gmra.mxu0 %v497
  %v1104 = vpop.f32.mrf.mxu0
  %v1105 = vadd.f32 %v244, %v1104
  %v1106 = vpop.f32.mrf.mxu0
  %v1107 = vpop.f32.mrf.mxu0
  %v1108 = vadd.f32 %v244, %v1107
  %v1109 = vpop.f32.mrf.mxu0
  %1110 = vmatprep.mubr.bf16.mxu0 %v507
  %1111 = vmatmul.mubr.bf16.gmra.mxu0 %v506
  %v1112 = vpop.f32.mrf.mxu0
  %v1113 = vadd.f32 %v244, %v1112
  %v1114 = vpop.f32.mrf.mxu0
  %v1115 = vpop.f32.mrf.mxu0
  %v1116 = vadd.f32 %v244, %v1115
  %v1117 = vpop.f32.mrf.mxu0
  %1118 = vmatprep.mubr.bf16.mxu0 %v516
  %1119 = vmatmul.mubr.bf16.gmra.mxu0 %v515
  %v1120 = vpop.f32.mrf.mxu0
  %v1121 = vadd.f32 %v244, %v1120
  %v1122 = vpop.f32.mrf.mxu0
  %v1123 = vpop.f32.mrf.mxu0
  %v1124 = vadd.f32 %v244, %v1123
  %v1125 = vpop.f32.mrf.mxu0
  %1126 = vmatprep.mubr.bf16.mxu0 %v525
  %1127 = vmatmul.mubr.bf16.gmra.mxu0 %v524
  %v1128 = vpop.f32.mrf.mxu0
  %v1129 = vadd.f32 %v244, %v1128
  %v1130 = vpop.f32.mrf.mxu0
  %v1131 = vpop.f32.mrf.mxu0
  %v1132 = vadd.f32 %v244, %v1131
  %v1133 = vpop.f32.mrf.mxu0
  %1134 = vmatprep.mubr.bf16.mxu0 %v534
  %1135 = vmatmul.mubr.bf16.gmra.mxu0 %v533
  %v1136 = vpop.f32.mrf.mxu0
  %v1137 = vadd.f32 %v244, %v1136
  %v1138 = vpop.f32.mrf.mxu0
  %v1139 = vpop.f32.mrf.mxu0
  %v1140 = vadd.f32 %v244, %v1139
  %v1141 = vpop.f32.mrf.mxu0
  %1142 = vdwg.mxu0
  %1143 = vmatprep.subr.bf16.mxu0 0
  %1144 = vmatpush1.bf16.msra.mxu0 %v925
  %1145 = vmatprep.subr.bf16.mxu0 0
  %1146 = vmatpush1.bf16.msra.mxu0 %v924
  %1147 = vmatprep.subr.bf16.mxu0 0
  %1148 = vmatpush1.bf16.msra.mxu0 %v923
  %1149 = vmatprep.subr.bf16.mxu0 0
  %1150 = vmatpush1.bf16.msra.mxu0 %v922
  %1151 = vmatprep.subr.bf16.mxu0 0
  %1152 = vmatpush1.bf16.msra.mxu0 %v921
  %1153 = vmatprep.subr.bf16.mxu0 0
  %1154 = vmatpush1.bf16.msra.mxu0 %v920
  %1155 = vmatprep.subr.bf16.mxu0 0
  %1156 = vmatpush1.bf16.msra.mxu0 %v919
  %1157 = vmatprep.subr.bf16.mxu0 0
  %1158 = vmatpush1.bf16.msra.mxu0 %v918
  %1159 = vmatprep.subr.bf16.mxu0 0
  %1160 = vmatpush2.bf16.msra.mxu0 %v933
  %1161 = vmatprep.subr.bf16.mxu0 0
  %1162 = vmatpush2.bf16.msra.mxu0 %v932
  %1163 = vmatprep.subr.bf16.mxu0 0
  %1164 = vmatpush2.bf16.msra.mxu0 %v931
  %1165 = vmatprep.subr.bf16.mxu0 0
  %1166 = vmatpush2.bf16.msra.mxu0 %v930
  %1167 = vmatprep.subr.bf16.mxu0 0
  %1168 = vmatpush2.bf16.msra.mxu0 %v929
  %1169 = vmatprep.subr.bf16.mxu0 0
  %1170 = vmatpush2.bf16.msra.mxu0 %v928
  %1171 = vmatprep.subr.bf16.mxu0 0
  %1172 = vmatpush2.bf16.msra.mxu0 %v927
  %1173 = vmatprep.subr.bf16.mxu0 0
  %1174 = vmatpush2.bf16.msra.mxu0 %v926
  %1175 = vmatprep.mubr.bf16.mxu0 %v473
  %1176 = vmatmul.mubr.bf16.gmra.mxu0 %v472
  %v1177 = vpop.f32.mrf.mxu0
  %v1178 = vadd.f32 %v1081, %v1177
  %v1179 = vpop.f32.mrf.mxu0
  %v1180 = vpop.f32.mrf.mxu0
  %v1181 = vadd.f32 %v1084, %v1180
  %v1182 = vpop.f32.mrf.mxu0
  %1183 = vmatprep.mubr.bf16.mxu0 %v482
  %1184 = vmatmul.mubr.bf16.gmra.mxu0 %v481
  %v1185 = vpop.f32.mrf.mxu0
  %v1186 = vadd.f32 %v1089, %v1185
  %v1187 = vpop.f32.mrf.mxu0
  %v1188 = vpop.f32.mrf.mxu0
  %v1189 = vadd.f32 %v1092, %v1188
  %v1190 = vpop.f32.mrf.mxu0
  %1191 = vmatprep.mubr.bf16.mxu0 %v491
  %1192 = vmatmul.mubr.bf16.gmra.mxu0 %v490
  %v1193 = vpop.f32.mrf.mxu0
  %v1194 = vadd.f32 %v1097, %v1193
  %v1195 = vpop.f32.mrf.mxu0
  %v1196 = vpop.f32.mrf.mxu0
  %v1197 = vadd.f32 %v1100, %v1196
  %v1198 = vpop.f32.mrf.mxu0
  %1199 = vmatprep.mubr.bf16.mxu0 %v500
  %1200 = vmatmul.mubr.bf16.gmra.mxu0 %v499
  %v1201 = vpop.f32.mrf.mxu0
  %v1202 = vadd.f32 %v1105, %v1201
  %v1203 = vpop.f32.mrf.mxu0
  %v1204 = vpop.f32.mrf.mxu0
  %v1205 = vadd.f32 %v1108, %v1204
  %v1206 = vpop.f32.mrf.mxu0
  %1207 = vmatprep.mubr.bf16.mxu0 %v509
  %1208 = vmatmul.mubr.bf16.gmra.mxu0 %v508
  %v1209 = vpop.f32.mrf.mxu0
  %v1210 = vadd.f32 %v1113, %v1209
  %v1211 = vpop.f32.mrf.mxu0
  %v1212 = vpop.f32.mrf.mxu0
  %v1213 = vadd.f32 %v1116, %v1212
  %v1214 = vpop.f32.mrf.mxu0
  %1215 = vmatprep.mubr.bf16.mxu0 %v518
  %1216 = vmatmul.mubr.bf16.gmra.mxu0 %v517
  %v1217 = vpop.f32.mrf.mxu0
  %v1218 = vadd.f32 %v1121, %v1217
  %v1219 = vpop.f32.mrf.mxu0
  %v1220 = vpop.f32.mrf.mxu0
  %v1221 = vadd.f32 %v1124, %v1220
  %v1222 = vpop.f32.mrf.mxu0
  %1223 = vmatprep.mubr.bf16.mxu0 %v527
  %1224 = vmatmul.mubr.bf16.gmra.mxu0 %v526
  %v1225 = vpop.f32.mrf.mxu0
  %v1226 = vadd.f32 %v1129, %v1225
  %v1227 = vpop.f32.mrf.mxu0
  %v1228 = vpop.f32.mrf.mxu0
  %v1229 = vadd.f32 %v1132, %v1228
  %v1230 = vpop.f32.mrf.mxu0
  %1231 = vmatprep.mubr.bf16.mxu0 %v536
  %1232 = vmatmul.mubr.bf16.gmra.mxu0 %v535
  %v1233 = vpop.f32.mrf.mxu0
  %v1234 = vadd.f32 %v1137, %v1233
  %v1235 = vpop.f32.mrf.mxu0
  %v1236 = vpop.f32.mrf.mxu0
  %v1237 = vadd.f32 %v1140, %v1236
  %v1238 = vpop.f32.mrf.mxu0
  %1239 = vdwg.mxu0
  %1240 = vmatprep.subr.bf16.mxu0 0
  %1241 = vmatpush1.bf16.msra.mxu0 %v941
  %1242 = vmatprep.subr.bf16.mxu0 0
  %1243 = vmatpush1.bf16.msra.mxu0 %v940
  %1244 = vmatprep.subr.bf16.mxu0 0
  %1245 = vmatpush1.bf16.msra.mxu0 %v939
  %1246 = vmatprep.subr.bf16.mxu0 0
  %1247 = vmatpush1.bf16.msra.mxu0 %v938
  %1248 = vmatprep.subr.bf16.mxu0 0
  %1249 = vmatpush1.bf16.msra.mxu0 %v937
  %1250 = vmatprep.subr.bf16.mxu0 0
  %1251 = vmatpush1.bf16.msra.mxu0 %v936
  %1252 = vmatprep.subr.bf16.mxu0 0
  %1253 = vmatpush1.bf16.msra.mxu0 %v935
  %1254 = vmatprep.subr.bf16.mxu0 0
  %1255 = vmatpush1.bf16.msra.mxu0 %v934
  %1256 = vmatprep.subr.bf16.mxu0 0
  %1257 = vmatpush2.bf16.msra.mxu0 %v949
  %1258 = vmatprep.subr.bf16.mxu0 0
  %1259 = vmatpush2.bf16.msra.mxu0 %v948
  %1260 = vmatprep.subr.bf16.mxu0 0
  %1261 = vmatpush2.bf16.msra.mxu0 %v947
  %1262 = vmatprep.subr.bf16.mxu0 0
  %1263 = vmatpush2.bf16.msra.mxu0 %v946
  %1264 = vmatprep.subr.bf16.mxu0 0
  %1265 = vmatpush2.bf16.msra.mxu0 %v945
  %1266 = vmatprep.subr.bf16.mxu0 0
  %1267 = vmatpush2.bf16.msra.mxu0 %v944
  %1268 = vmatprep.subr.bf16.mxu0 0
  %1269 = vmatpush2.bf16.msra.mxu0 %v943
  %1270 = vmatprep.subr.bf16.mxu0 0
  %1271 = vmatpush2.bf16.msra.mxu0 %v942
  %1272 = vmatprep.mubr.bf16.mxu0 %v475
  %1273 = vmatmul.mubr.bf16.gmra.mxu0 %v474
  %v1274 = vpop.f32.mrf.mxu0
  %v1275 = vadd.f32 %v1178, %v1274
  %v1276 = vpop.f32.mrf.mxu0
  %v1277 = vpop.f32.mrf.mxu0
  %v1278 = vadd.f32 %v1181, %v1277
  %v1279 = vpop.f32.mrf.mxu0
  %1280 = vmatprep.mubr.bf16.mxu0 %v484
  %1281 = vmatmul.mubr.bf16.gmra.mxu0 %v483
  %v1282 = vpop.f32.mrf.mxu0
  %v1283 = vadd.f32 %v1186, %v1282
  %v1284 = vpop.f32.mrf.mxu0
  %v1285 = vpop.f32.mrf.mxu0
  %v1286 = vadd.f32 %v1189, %v1285
  %v1287 = vpop.f32.mrf.mxu0
  %1288 = vmatprep.mubr.bf16.mxu0 %v493
  %1289 = vmatmul.mubr.bf16.gmra.mxu0 %v492
  %v1290 = vpop.f32.mrf.mxu0
  %v1291 = vadd.f32 %v1194, %v1290
  %v1292 = vpop.f32.mrf.mxu0
  %v1293 = vpop.f32.mrf.mxu0
  %v1294 = vadd.f32 %v1197, %v1293
  %v1295 = vpop.f32.mrf.mxu0
  %1296 = vmatprep.mubr.bf16.mxu0 %v502
  %1297 = vmatmul.mubr.bf16.gmra.mxu0 %v501
  %v1298 = vpop.f32.mrf.mxu0
  %v1299 = vadd.f32 %v1202, %v1298
  %v1300 = vpop.f32.mrf.mxu0
  %v1301 = vpop.f32.mrf.mxu0
  %v1302 = vadd.f32 %v1205, %v1301
  %v1303 = vpop.f32.mrf.mxu0
  %1304 = vmatprep.mubr.bf16.mxu0 %v511
  %1305 = vmatmul.mubr.bf16.gmra.mxu0 %v510
  %v1306 = vpop.f32.mrf.mxu0
  %v1307 = vadd.f32 %v1210, %v1306
  %v1308 = vpop.f32.mrf.mxu0
  %v1309 = vpop.f32.mrf.mxu0
  %v1310 = vadd.f32 %v1213, %v1309
  %v1311 = vpop.f32.mrf.mxu0
  %1312 = vmatprep.mubr.bf16.mxu0 %v520
  %1313 = vmatmul.mubr.bf16.gmra.mxu0 %v519
  %v1314 = vpop.f32.mrf.mxu0
  %v1315 = vadd.f32 %v1218, %v1314
  %v1316 = vpop.f32.mrf.mxu0
  %v1317 = vpop.f32.mrf.mxu0
  %v1318 = vadd.f32 %v1221, %v1317
  %v1319 = vpop.f32.mrf.mxu0
  %1320 = vmatprep.mubr.bf16.mxu0 %v529
  %1321 = vmatmul.mubr.bf16.gmra.mxu0 %v528
  %v1322 = vpop.f32.mrf.mxu0
  %v1323 = vadd.f32 %v1226, %v1322
  %v1324 = vpop.f32.mrf.mxu0
  %v1325 = vpop.f32.mrf.mxu0
  %v1326 = vadd.f32 %v1229, %v1325
  %v1327 = vpop.f32.mrf.mxu0
  %1328 = vmatprep.mubr.bf16.mxu0 %v538
  %1329 = vmatmul.mubr.bf16.gmra.mxu0 %v537
  %v1330 = vpop.f32.mrf.mxu0
  %v1331 = vadd.f32 %v1234, %v1330
  %v1332 = vpop.f32.mrf.mxu0
  %v1333 = vpop.f32.mrf.mxu0
  %v1334 = vadd.f32 %v1237, %v1333
  %v1335 = vpop.f32.mrf.mxu0
  %1336 = vdwg.mxu0
  %1337 = vmatprep.subr.bf16.mxu0 0
  %1338 = vmatpush1.bf16.msra.mxu0 %v957
  %1339 = vmatprep.subr.bf16.mxu0 0
  %1340 = vmatpush1.bf16.msra.mxu0 %v956
  %1341 = vmatprep.subr.bf16.mxu0 0
  %1342 = vmatpush1.bf16.msra.mxu0 %v955
  %1343 = vmatprep.subr.bf16.mxu0 0
  %1344 = vmatpush1.bf16.msra.mxu0 %v954
  %1345 = vmatprep.subr.bf16.mxu0 0
  %1346 = vmatpush1.bf16.msra.mxu0 %v953
  %1347 = vmatprep.subr.bf16.mxu0 0
  %1348 = vmatpush1.bf16.msra.mxu0 %v952
  %1349 = vmatprep.subr.bf16.mxu0 0
  %1350 = vmatpush1.bf16.msra.mxu0 %v951
  %1351 = vmatprep.subr.bf16.mxu0 0
  %1352 = vmatpush1.bf16.msra.mxu0 %v950
  %1353 = vmatprep.subr.bf16.mxu0 0
  %1354 = vmatpush2.bf16.msra.mxu0 %v965
  %1355 = vmatprep.subr.bf16.mxu0 0
  %1356 = vmatpush2.bf16.msra.mxu0 %v964
  %1357 = vmatprep.subr.bf16.mxu0 0
  %1358 = vmatpush2.bf16.msra.mxu0 %v963
  %1359 = vmatprep.subr.bf16.mxu0 0
  %1360 = vmatpush2.bf16.msra.mxu0 %v962
  %1361 = vmatprep.subr.bf16.mxu0 0
  %1362 = vmatpush2.bf16.msra.mxu0 %v961
  %1363 = vmatprep.subr.bf16.mxu0 0
  %1364 = vmatpush2.bf16.msra.mxu0 %v960
  %1365 = vmatprep.subr.bf16.mxu0 0
  %1366 = vmatpush2.bf16.msra.mxu0 %v959
  %1367 = vmatprep.subr.bf16.mxu0 0
  %1368 = vmatpush2.bf16.msra.mxu0 %v958
  %1369 = vmatprep.mubr.bf16.mxu0 %v477
  %1370 = vmatmul.mubr.bf16.gmra.mxu0 %v476
  %v1371 = vpop.f32.mrf.mxu0
  %v1372 = vadd.f32 %v1275, %v1371
  %v1373 = vpop.f32.mrf.mxu0
  %v1374 = vpop.f32.mrf.mxu0
  %v1375 = vadd.f32 %v1278, %v1374
  %v1376 = vpop.f32.mrf.mxu0
  %1377 = vmatprep.mubr.bf16.mxu0 %v486
  %1378 = vmatmul.mubr.bf16.gmra.mxu0 %v485
  %v1379 = vpop.f32.mrf.mxu0
  %v1380 = vadd.f32 %v1283, %v1379
  %v1381 = vpop.f32.mrf.mxu0
  %v1382 = vpop.f32.mrf.mxu0
  %v1383 = vadd.f32 %v1286, %v1382
  %v1384 = vpop.f32.mrf.mxu0
  %1385 = vmatprep.mubr.bf16.mxu0 %v495
  %1386 = vmatmul.mubr.bf16.gmra.mxu0 %v494
  %v1387 = vpop.f32.mrf.mxu0
  %v1388 = vadd.f32 %v1291, %v1387
  %v1389 = vpop.f32.mrf.mxu0
  %v1390 = vpop.f32.mrf.mxu0
  %v1391 = vadd.f32 %v1294, %v1390
  %v1392 = vpop.f32.mrf.mxu0
  %1393 = vmatprep.mubr.bf16.mxu0 %v504
  %1394 = vmatmul.mubr.bf16.gmra.mxu0 %v503
  %v1395 = vpop.f32.mrf.mxu0
  %v1396 = vadd.f32 %v1299, %v1395
  %v1397 = vpop.f32.mrf.mxu0
  %v1398 = vpop.f32.mrf.mxu0
  %v1399 = vadd.f32 %v1302, %v1398
  %v1400 = vpop.f32.mrf.mxu0
  %1401 = vmatprep.mubr.bf16.mxu0 %v513
  %1402 = vmatmul.mubr.bf16.gmra.mxu0 %v512
  %v1403 = vpop.f32.mrf.mxu0
  %v1404 = vadd.f32 %v1307, %v1403
  %v1405 = vpop.f32.mrf.mxu0
  %v1406 = vpop.f32.mrf.mxu0
  %v1407 = vadd.f32 %v1310, %v1406
  %v1408 = vpop.f32.mrf.mxu0
  %1409 = vmatprep.mubr.bf16.mxu0 %v522
  %1410 = vmatmul.mubr.bf16.gmra.mxu0 %v521
  %v1411 = vpop.f32.mrf.mxu0
  %v1412 = vadd.f32 %v1315, %v1411
  %v1413 = vpop.f32.mrf.mxu0
  %v1414 = vpop.f32.mrf.mxu0
  %v1415 = vadd.f32 %v1318, %v1414
  %v1416 = vpop.f32.mrf.mxu0
  %1417 = vmatprep.mubr.bf16.mxu0 %v531
  %1418 = vmatmul.mubr.bf16.gmra.mxu0 %v530
  %v1419 = vpop.f32.mrf.mxu0
  %v1420 = vadd.f32 %v1323, %v1419
  %v1421 = vpop.f32.mrf.mxu0
  %v1422 = vpop.f32.mrf.mxu0
  %v1423 = vadd.f32 %v1326, %v1422
  %v1424 = vpop.f32.mrf.mxu0
  %1425 = vmatprep.mubr.bf16.mxu0 %v540
  %1426 = vmatmul.mubr.bf16.gmra.mxu0 %v539
  %v1427 = vpop.f32.mrf.mxu0
  %v1428 = vadd.f32 %v1331, %v1427
  %v1429 = vpop.f32.mrf.mxu0
  %v1430 = vpop.f32.mrf.mxu0
  %v1431 = vadd.f32 %v1334, %v1430
  %v1432 = vpop.f32.mrf.mxu0
  %1433 = vdwg.mxu0
  %1434 = vmatprep.subr.bf16.mxu0 0
  %1435 = vmatpush1.bf16.msra.mxu0 %v973
  %1436 = vmatprep.subr.bf16.mxu0 0
  %1437 = vmatpush1.bf16.msra.mxu0 %v972
  %1438 = vmatprep.subr.bf16.mxu0 0
  %1439 = vmatpush1.bf16.msra.mxu0 %v971
  %1440 = vmatprep.subr.bf16.mxu0 0
  %1441 = vmatpush1.bf16.msra.mxu0 %v970
  %1442 = vmatprep.subr.bf16.mxu0 0
  %1443 = vmatpush1.bf16.msra.mxu0 %v969
  %1444 = vmatprep.subr.bf16.mxu0 0
  %1445 = vmatpush1.bf16.msra.mxu0 %v968
  %1446 = vmatprep.subr.bf16.mxu0 0
  %1447 = vmatpush1.bf16.msra.mxu0 %v967
  %1448 = vmatprep.subr.bf16.mxu0 0
  %1449 = vmatpush1.bf16.msra.mxu0 %v966
  %1450 = vmatprep.subr.bf16.mxu0 0
  %1451 = vmatpush2.bf16.msra.mxu0 0
  %1452 = vmatprep.subr.bf16.mxu0 0
  %1453 = vmatpush2.bf16.msra.mxu0 0
  %1454 = vmatprep.subr.bf16.mxu0 0
  %1455 = vmatpush2.bf16.msra.mxu0 0
  %1456 = vmatprep.subr.bf16.mxu0 0
  %1457 = vmatpush2.bf16.msra.mxu0 0
  %1458 = vmatprep.subr.bf16.mxu0 0
  %1459 = vmatpush2.bf16.msra.mxu0 0
  %1460 = vmatprep.subr.bf16.mxu0 0
  %1461 = vmatpush2.bf16.msra.mxu0 0
  %1462 = vmatprep.subr.bf16.mxu0 0
  %1463 = vmatpush2.bf16.msra.mxu0 0
  %1464 = vmatprep.subr.bf16.mxu0 0
  %1465 = vmatpush2.bf16.msra.mxu0 0
  %1466 = vmatprep.mubr.bf16.mxu0 0
  %1467 = vmatmul.mubr.bf16.gmra.mxu0 %v478
  %v1468 = vpop.f32.mrf.mxu0
  %v1469 = vadd.f32 %v1372, %v1468
  %v1470 = vpop.f32.mrf.mxu0
  %v1471 = vpop.f32.mrf.mxu0
  %v1472 = vadd.f32 %v1375, %v1471
  %v1473 = vpop.f32.mrf.mxu0
  %1474 = vmatprep.mubr.bf16.mxu0 0
  %1475 = vmatmul.mubr.bf16.gmra.mxu0 %v487
  %v1476 = vpop.f32.mrf.mxu0
  %v1477 = vadd.f32 %v1380, %v1476
  %v1478 = vpop.f32.mrf.mxu0
  %v1479 = vpop.f32.mrf.mxu0
  %v1480 = vadd.f32 %v1383, %v1479
  %v1481 = vpop.f32.mrf.mxu0
  %1482 = vmatprep.mubr.bf16.mxu0 0
  %1483 = vmatmul.mubr.bf16.gmra.mxu0 %v496
  %v1484 = vpop.f32.mrf.mxu0
  %v1485 = vadd.f32 %v1388, %v1484
  %v1486 = vpop.f32.mrf.mxu0
  %v1487 = vpop.f32.mrf.mxu0
  %v1488 = vadd.f32 %v1391, %v1487
  %v1489 = vpop.f32.mrf.mxu0
  %1490 = vmatprep.mubr.bf16.mxu0 0
  %1491 = vmatmul.mubr.bf16.gmra.mxu0 %v505
  %v1492 = vpop.f32.mrf.mxu0
  %v1493 = vadd.f32 %v1396, %v1492
  %v1494 = vpop.f32.mrf.mxu0
  %v1495 = vpop.f32.mrf.mxu0
  %v1496 = vadd.f32 %v1399, %v1495
  %v1497 = vpop.f32.mrf.mxu0
  %1498 = vmatprep.mubr.bf16.mxu0 0
  %1499 = vmatmul.mubr.bf16.gmra.mxu0 %v514
  %v1500 = vpop.f32.mrf.mxu0
  %v1501 = vadd.f32 %v1404, %v1500
  %v1502 = vpop.f32.mrf.mxu0
  %v1503 = vpop.f32.mrf.mxu0
  %v1504 = vadd.f32 %v1407, %v1503
  %v1505 = vpop.f32.mrf.mxu0
  %1506 = vmatprep.mubr.bf16.mxu0 0
  %1507 = vmatmul.mubr.bf16.gmra.mxu0 %v523
  %v1508 = vpop.f32.mrf.mxu0
  %v1509 = vadd.f32 %v1412, %v1508
  %v1510 = vpop.f32.mrf.mxu0
  %v1511 = vpop.f32.mrf.mxu0
  %v1512 = vadd.f32 %v1415, %v1511
  %v1513 = vpop.f32.mrf.mxu0
  %1514 = vmatprep.mubr.bf16.mxu0 0
  %1515 = vmatmul.mubr.bf16.gmra.mxu0 %v532
  %v1516 = vpop.f32.mrf.mxu0
  %v1517 = vadd.f32 %v1420, %v1516
  %v1518 = vpop.f32.mrf.mxu0
  %v1519 = vpop.f32.mrf.mxu0
  %v1520 = vadd.f32 %v1423, %v1519
  %v1521 = vpop.f32.mrf.mxu0
  %1522 = vmatprep.mubr.bf16.mxu0 0
  %1523 = vmatmul.mubr.bf16.gmra.mxu0 %v541
  %v1524 = vpop.f32.mrf.mxu0
  %v1525 = vadd.f32 %v1428, %v1524
  %v1526 = vpop.f32.mrf.mxu0
  %v1527 = vpop.f32.mrf.mxu0
  %v1528 = vadd.f32 %v1431, %v1527
  %v1529 = vpop.f32.mrf.mxu0
  %1530 = vdwg.mxu0
  %v1531 = vmax.f32 %v1469, 0.0
  %v1532 = vmax.f32 %v1472, 0.0
  %v1533 = vmax.f32 %v1477, 0.0
  %v1534 = vmax.f32 %v1480, 0.0
  %v1535 = vmax.f32 %v1485, 0.0
  %v1536 = vmax.f32 %v1488, 0.0
  %v1537 = vmax.f32 %v1493, 0.0
  %v1538 = vmax.f32 %v1496, 0.0
  %v1539 = vmax.f32 %v1501, 0.0
  %v1540 = vmax.f32 %v1504, 0.0
  %v1541 = vmax.f32 %v1509, 0.0
  %v1542 = vmax.f32 %v1512, 0.0
  %v1543 = vmax.f32 %v1517, 0.0
  %v1544 = vmax.f32 %v1520, 0.0
  %v1545 = vmax.f32 %v1525, 0.0
  %v1546 = vmax.f32 %v1528, 0.0
  %v1547 = vpack.c.bf16 %v1532, %v1531
  %v1548 = vpack.c.bf16 %v1534, %v1533
  %v1549 = vpack.c.bf16 %v1536, %v1535
  %v1550 = vpack.c.bf16 %v1538, %v1537
  %v1551 = vpack.c.bf16 %v1540, %v1539
  %v1552 = vpack.c.bf16 %v1542, %v1541
  %v1553 = vpack.c.bf16 %v1544, %v1543
  %v1554 = vpack.c.bf16 %v1546, %v1545
  %v1563 = vunpack.c.l.b16 %v1547
  %v1564 = vunpack.c.h.b16 %v1547
  %v1565 = vunpack.c.l.b16 %v1548
  %v1566 = vunpack.c.h.b16 %v1548
  %v1567 = vunpack.c.l.b16 %v1549
  %v1568 = vunpack.c.h.b16 %v1549
  %v1569 = vunpack.c.l.b16 %v1550
  %v1570 = vunpack.c.h.b16 %v1550
  %v1571 = vunpack.c.l.b16 %v1551
  %v1572 = vunpack.c.h.b16 %v1551
  %v1573 = vunpack.c.l.b16 %v1552
  %v1574 = vunpack.c.h.b16 %v1552
  %v1575 = vunpack.c.l.b16 %v1553
  %v1576 = vunpack.c.h.b16 %v1553
  %v1577 = vunpack.c.l.b16 %v1554
  %v1578 = vunpack.c.h.b16 %v1554
  %v1579 = vpack.c.b16 %v1563, %v1563
  %v1580 = vpack.c.b16 %v1564, %v1564
  %v1581 = vpack.c.b16 %v1565, %v1565
  %v1582 = vpack.c.b16 %v1566, %v1566
  %v1583 = vpack.c.b16 %v1567, %v1567
  %v1584 = vpack.c.b16 %v1568, %v1568
  %v1585 = vpack.c.b16 %v1569, %v1569
  %v1586 = vpack.c.b16 %v1570, %v1570
  %v1587 = vpack.c.b16 %v1571, %v1571
  %v1588 = vpack.c.b16 %v1572, %v1572
  %v1589 = vpack.c.b16 %v1573, %v1573
  %v1590 = vpack.c.b16 %v1574, %v1574
  %v1591 = vpack.c.b16 %v1575, %v1575
  %v1592 = vpack.c.b16 %v1576, %v1576
  %v1593 = vpack.c.b16 %v1577, %v1577
  %v1594 = vpack.c.b16 %v1578, %v1578
  %1611 = vst [vmem:[%s3] sm:$0xf] %v1579
  %1612 = vst [vmem:[%s3 + $0x4] sm:$0xf] %v1580
  %1613 = vst [vmem:[%s3 + $0x8] sm:$0xf] %v1581
  %1614 = vst [vmem:[%s3 + $0xc] sm:$0xf] %v1582
  %1615 = vst [vmem:[%s3 + $0x10] sm:$0xf] %v1583
  %1616 = vst [vmem:[%s3 + $0x14] sm:$0xf] %v1584
  %1617 = vst [vmem:[%s3 + $0x18] sm:$0xf] %v1585
  %1618 = vst [vmem:[%s3 + $0x1c] sm:$0xf] %v1586
  %1619 = vst [vmem:[%s3 + $0x20] sm:$0xf] %v1587
  %1620 = vst [vmem:[%s3 + $0x24] sm:$0xf] %v1588
  %1621 = vst [vmem:[%s3 + $0x28] sm:$0xf] %v1589
  %1622 = vst [vmem:[%s3 + $0x2c] sm:$0xf] %v1590
  %1623 = vst [vmem:[%s3 + $0x30] sm:$0xf] %v1591
  %1624 = vst [vmem:[%s3 + $0x34] sm:$0xf] %v1592
  %1625 = vst [vmem:[%s3 + $0x38] sm:$0xf] %v1593
  %1626 = vst [vmem:[%s3 + $0x3c] sm:$0xf] %v1594
  // Predicated region
  $region14: #{custom_googlenet_forward.11} parent=0 // pred_check
    _
  $region15: #{custom_googlenet_forward.11} parent=0 // pred_check_branch
    %1628 = sbr.rel (0) target = $region17
  $region16: #{custom_googlenet_forward.11} parent=0 // pred_region
    _
  $region17: #{custom_googlenet_forward.11} parent=0 // pred_fallthru
    _
  // Predicated region
  $region18: #{custom_googlenet_forward.11} parent=0 // pred_check
    _
  $region19: #{custom_googlenet_forward.11} parent=0 // pred_check_branch
    %1630 = sbr.rel (0) target = $region21
  $region20: #{custom_googlenet_forward.11} parent=0 // pred_region
    _
  $region21: #{custom_googlenet_forward.11} parent=0 // pred_fallthru
    _

// kernel: custom_googlenet_forward.12
$region0: #{custom_googlenet_forward.12}
  #allocation0 [shape = 'u32[]', space=smem, size = 0x4, offset = 0x4, fixed_abs, tag = 'smem constant byte address 0x4 - core index']
  #allocation1 [shape = 'u32[144,128]{1,0:T(1,128)}', space=vmem, size = 0x12000, scoped, tag = 'internal scratch']
  %s0 = inlined_call_operand.vmem [shape: bf16[9,32,128], index: 0, kind: input, shape index: {}]
  %s1 = inlined_call_operand.vmem [shape: bf16[128,128], index: 1, kind: input, shape index: {}]
  %s2 = inlined_call_operand.vmem [shape: f32[1,128], index: 2, kind: input, shape index: {}]
  %s3 = inlined_call_operand.vmem [shape: bf16[32,128], index: 3, kind: output, shape index: {0}]
  %s4 = inlined_call_operand.vmem [shape: bf16[32,128], index: 4, kind: output, shape index: {1}]
  %5 = xla_tuple %s3, %s4
  %s6 = sld [smem:[#allocation0]]
  $region30: #{custom_googlenet_forward.12} parent=0
    _
  %s8 = ssub.s32 1, %s6
  %s9 = scalar_select 0, %s8, %s6
  // Predicated region
  $region2: #{custom_googlenet_forward.12} parent=0 // pred_check
    _
  $region3: #{custom_googlenet_forward.12} parent=0 // pred_check_branch
    %11 = sbr.rel (0) target = $region5
  $region4: #{custom_googlenet_forward.12} parent=0 // pred_region
    _
  $region5: #{custom_googlenet_forward.12} parent=0 // pred_fallthru
    _
  // Predicated region
  $region6: #{custom_googlenet_forward.12} parent=0 // pred_check
    _
  $region7: #{custom_googlenet_forward.12} parent=0 // pred_check_branch
    %13 = sbr.rel (0) target = $region9
  $region8: #{custom_googlenet_forward.12} parent=0 // pred_region
    _
  $region9: #{custom_googlenet_forward.12} parent=0 // pred_fallthru
    _
  // Predicated region
  $region10: #{custom_googlenet_forward.12} parent=0 // pred_check
    _
  $region11: #{custom_googlenet_forward.12} parent=0 // pred_check_branch
    %15 = sbr.rel (0) target = $region13
  $region12: #{custom_googlenet_forward.12} parent=0 // pred_region
    _
  $region13: #{custom_googlenet_forward.12} parent=0 // pred_fallthru
    _
  %v18 = vld [vmem:[%s0] sm:$0xf]
  %v19 = vld [vmem:[%s0 + $0x4] sm:$0xf]
  %v20 = vld [vmem:[%s0 + $0x8] sm:$0xf]
  %v21 = vld [vmem:[%s0 + $0xc] sm:$0xf]
  %v22 = vld [vmem:[%s0 + $0x10] sm:$0xf]
  %v23 = vld [vmem:[%s0 + $0x14] sm:$0xf]
  %v24 = vld [vmem:[%s0 + $0x18] sm:$0xf]
  %v25 = vld [vmem:[%s0 + $0x1c] sm:$0xf]
  %v26 = vld [vmem:[%s0 + $0x20] sm:$0xf]
  %v27 = vld [vmem:[%s0 + $0x24] sm:$0xf]
  %v28 = vld [vmem:[%s0 + $0x28] sm:$0xf]
  %v29 = vld [vmem:[%s0 + $0x2c] sm:$0xf]
  %v30 = vld [vmem:[%s0 + $0x30] sm:$0xf]
  %v31 = vld [vmem:[%s0 + $0x34] sm:$0xf]
  %v32 = vld [vmem:[%s0 + $0x38] sm:$0xf]
  %v33 = vld [vmem:[%s0 + $0x3c] sm:$0xf]
  %v34 = vld [vmem:[%s0 + $0x40] sm:$0xf]
  %v35 = vld [vmem:[%s0 + $0x44] sm:$0xf]
  %v36 = vld [vmem:[%s0 + $0x48] sm:$0xf]
  %v37 = vld [vmem:[%s0 + $0x4c] sm:$0xf]
  %v38 = vld [vmem:[%s0 + $0x50] sm:$0xf]
  %v39 = vld [vmem:[%s0 + $0x54] sm:$0xf]
  %v40 = vld [vmem:[%s0 + $0x58] sm:$0xf]
  %v41 = vld [vmem:[%s0 + $0x5c] sm:$0xf]
  %v42 = vld [vmem:[%s0 + $0x60] sm:$0xf]
  %v43 = vld [vmem:[%s0 + $0x64] sm:$0xf]
  %v44 = vld [vmem:[%s0 + $0x68] sm:$0xf]
  %v45 = vld [vmem:[%s0 + $0x6c] sm:$0xf]
  %v46 = vld [vmem:[%s0 + $0x70] sm:$0xf]
  %v47 = vld [vmem:[%s0 + $0x74] sm:$0xf]
  %v48 = vld [vmem:[%s0 + $0x78] sm:$0xf]
  %v49 = vld [vmem:[%s0 + $0x7c] sm:$0xf]
  %v50 = vld [vmem:[%s0 + $0x80] sm:$0xf]
  %v51 = vld [vmem:[%s0 + $0x84] sm:$0xf]
  %v52 = vld [vmem:[%s0 + $0x88] sm:$0xf]
  %v53 = vld [vmem:[%s0 + $0x8c] sm:$0xf]
  %vm54 = vcmask 1043456
  %v57 = vsel %vm54, %v18, 4286644096
  %v60 = vsel %vm54, %v22, 4286644096
  %v62 = vmax.bf16 %v57, %v60
  %v64 = vsel %vm54, %v26, 4286644096
  %v66 = vmax.bf16 %v62, %v64
  %v68 = vsel %vm54, %v30, 4286644096
  %v70 = vmax.bf16 %v66, %v68
  %v72 = vsel %vm54, %v34, 4286644096
  %v74 = vmax.bf16 %v70, %v72
  %v76 = vsel %vm54, %v38, 4286644096
  %v78 = vmax.bf16 %v74, %v76
  %v80 = vsel %vm54, %v42, 4286644096
  %v82 = vmax.bf16 %v78, %v80
  %v84 = vsel %vm54, %v46, 4286644096
  %v86 = vmax.bf16 %v82, %v84
  %v88 = vsel %vm54, %v50, 4286644096
  %v90 = vmax.bf16 %v86, %v88
  %v92 = vsel %vm54, %v19, 4286644096
  %v95 = vsel %vm54, %v23, 4286644096
  %v97 = vmax.bf16 %v92, %v95
  %v99 = vsel %vm54, %v27, 4286644096
  %v101 = vmax.bf16 %v97, %v99
  %v103 = vsel %vm54, %v31, 4286644096
  %v105 = vmax.bf16 %v101, %v103
  %v107 = vsel %vm54, %v35, 4286644096
  %v109 = vmax.bf16 %v105, %v107
  %v111 = vsel %vm54, %v39, 4286644096
  %v113 = vmax.bf16 %v109, %v111
  %v115 = vsel %vm54, %v43, 4286644096
  %v117 = vmax.bf16 %v113, %v115
  %v119 = vsel %vm54, %v47, 4286644096
  %v121 = vmax.bf16 %v117, %v119
  %v123 = vsel %vm54, %v51, 4286644096
  %v125 = vmax.bf16 %v121, %v123
  %v127 = vsel %vm54, %v20, 4286644096
  %v130 = vsel %vm54, %v24, 4286644096
  %v132 = vmax.bf16 %v127, %v130
  %v134 = vsel %vm54, %v28, 4286644096
  %v136 = vmax.bf16 %v132, %v134
  %v138 = vsel %vm54, %v32, 4286644096
  %v140 = vmax.bf16 %v136, %v138
  %v142 = vsel %vm54, %v36, 4286644096
  %v144 = vmax.bf16 %v140, %v142
  %v146 = vsel %vm54, %v40, 4286644096
  %v148 = vmax.bf16 %v144, %v146
  %v150 = vsel %vm54, %v44, 4286644096
  %v152 = vmax.bf16 %v148, %v150
  %v154 = vsel %vm54, %v48, 4286644096
  %v156 = vmax.bf16 %v152, %v154
  %v158 = vsel %vm54, %v52, 4286644096
  %v160 = vmax.bf16 %v156, %v158
  %v162 = vsel %vm54, %v21, 4286644096
  %v165 = vsel %vm54, %v25, 4286644096
  %v167 = vmax.bf16 %v162, %v165
  %v169 = vsel %vm54, %v29, 4286644096
  %v171 = vmax.bf16 %v167, %v169
  %v173 = vsel %vm54, %v33, 4286644096
  %v175 = vmax.bf16 %v171, %v173
  %v177 = vsel %vm54, %v37, 4286644096
  %v179 = vmax.bf16 %v175, %v177
  %v181 = vsel %vm54, %v41, 4286644096
  %v183 = vmax.bf16 %v179, %v181
  %v185 = vsel %vm54, %v45, 4286644096
  %v187 = vmax.bf16 %v183, %v185
  %v189 = vsel %vm54, %v49, 4286644096
  %v191 = vmax.bf16 %v187, %v189
  %v193 = vsel %vm54, %v53, 4286644096
  %v195 = vmax.bf16 %v191, %v193
  %196 = vst [vmem:[%s3] sm:$0xf] %v90
  %197 = vst [vmem:[%s3 + $0x4] sm:$0xf] %v125
  %198 = vst [vmem:[%s3 + $0x8] sm:$0xf] %v160
  %199 = vst [vmem:[%s3 + $0xc] sm:$0xf] %v195
  %v200 = vld [vmem:[%s1] sm:$0xf]
  %v201 = vld [vmem:[%s1 + $0x4] sm:$0xf]
  %v202 = vld [vmem:[%s1 + $0x8] sm:$0xf]
  %v203 = vld [vmem:[%s1 + $0xc] sm:$0xf]
  %v204 = vld [vmem:[%s1 + $0x10] sm:$0xf]
  %v205 = vld [vmem:[%s1 + $0x14] sm:$0xf]
  %v206 = vld [vmem:[%s1 + $0x18] sm:$0xf]
  %v207 = vld [vmem:[%s1 + $0x1c] sm:$0xf]
  %v208 = vld [vmem:[%s1 + $0x20] sm:$0xf]
  %v209 = vld [vmem:[%s1 + $0x24] sm:$0xf]
  %v210 = vld [vmem:[%s1 + $0x28] sm:$0xf]
  %v211 = vld [vmem:[%s1 + $0x2c] sm:$0xf]
  %v212 = vld [vmem:[%s1 + $0x30] sm:$0xf]
  %v213 = vld [vmem:[%s1 + $0x34] sm:$0xf]
  %v214 = vld [vmem:[%s1 + $0x38] sm:$0xf]
  %v215 = vld [vmem:[%s1 + $0x3c] sm:$0xf]
  %v216 = vld [vmem:[%s2] sm:$0x1]
  %v218 = vlaneseq
  %v219 = vshrl.u32 %v218, 7
  %v220 = vsub.s32 0, %v219
  %v221 = vrot.slane %v216, %v220
  %v227 = vunpack.c.l.b16 %v90
  %v228 = vunpack.c.l.b16 %v125
  %v229 = vunpack.c.l.b16 %v160
  %v230 = vunpack.c.l.b16 %v195
  %v231 = vpack.c.b16 %v228, %v227
  %v232 = vpack.c.b16 %v230, %v229
  %v251 = vunpack.c.l.b16 %v200
  %v252 = vunpack.c.l.b16 %v201
  %v253 = vunpack.c.l.b16 %v202
  %v254 = vunpack.c.l.b16 %v203
  %v255 = vunpack.c.l.b16 %v204
  %v256 = vunpack.c.l.b16 %v205
  %v257 = vunpack.c.l.b16 %v206
  %v258 = vunpack.c.l.b16 %v207
  %v259 = vunpack.c.l.b16 %v208
  %v260 = vunpack.c.l.b16 %v209
  %v261 = vunpack.c.l.b16 %v210
  %v262 = vunpack.c.l.b16 %v211
  %v263 = vunpack.c.l.b16 %v212
  %v264 = vunpack.c.l.b16 %v213
  %v265 = vunpack.c.l.b16 %v214
  %v266 = vunpack.c.l.b16 %v215
  %v267 = vpack.c.b16 %v252, %v251
  %v268 = vpack.c.b16 %v254, %v253
  %v269 = vpack.c.b16 %v256, %v255
  %v270 = vpack.c.b16 %v258, %v257
  %v271 = vpack.c.b16 %v260, %v259
  %v272 = vpack.c.b16 %v262, %v261
  %v273 = vpack.c.b16 %v264, %v263
  %v274 = vpack.c.b16 %v266, %v265
  %283 = vmatprep.subr.bf16.mxu0 0
  %284 = vmatpush1.bf16.msra.mxu0 %v274
  %285 = vmatprep.subr.bf16.mxu0 0
  %286 = vmatpush1.bf16.msra.mxu0 %v273
  %287 = vmatprep.subr.bf16.mxu0 0
  %288 = vmatpush1.bf16.msra.mxu0 %v272
  %289 = vmatprep.subr.bf16.mxu0 0
  %290 = vmatpush1.bf16.msra.mxu0 %v271
  %291 = vmatprep.subr.bf16.mxu0 0
  %292 = vmatpush1.bf16.msra.mxu0 %v270
  %293 = vmatprep.subr.bf16.mxu0 0
  %294 = vmatpush1.bf16.msra.mxu0 %v269
  %295 = vmatprep.subr.bf16.mxu0 0
  %296 = vmatpush1.bf16.msra.mxu0 %v268
  %297 = vmatprep.subr.bf16.mxu0 0
  %298 = vmatpush1.bf16.msra.mxu0 %v267
  %299 = vmatprep.subr.bf16.mxu0 0
  %300 = vmatpush2.bf16.msra.mxu0 0
  %301 = vmatprep.subr.bf16.mxu0 0
  %302 = vmatpush2.bf16.msra.mxu0 0
  %303 = vmatprep.subr.bf16.mxu0 0
  %304 = vmatpush2.bf16.msra.mxu0 0
  %305 = vmatprep.subr.bf16.mxu0 0
  %306 = vmatpush2.bf16.msra.mxu0 0
  %307 = vmatprep.subr.bf16.mxu0 0
  %308 = vmatpush2.bf16.msra.mxu0 0
  %309 = vmatprep.subr.bf16.mxu0 0
  %310 = vmatpush2.bf16.msra.mxu0 0
  %311 = vmatprep.subr.bf16.mxu0 0
  %312 = vmatpush2.bf16.msra.mxu0 0
  %313 = vmatprep.subr.bf16.mxu0 0
  %314 = vmatpush2.bf16.msra.mxu0 0
  %315 = vmatprep.mubr.bf16.mxu0 0
  %316 = vmatmul.mubr.bf16.gmra.mxu0 %v231
  %v317 = vpop.f32.mrf.mxu0
  %v318 = vadd.f32 %v221, %v317
  %v319 = vpop.f32.mrf.mxu0
  %v320 = vpop.f32.mrf.mxu0
  %v321 = vadd.f32 %v221, %v320
  %v322 = vpop.f32.mrf.mxu0
  %323 = vmatprep.mubr.bf16.mxu0 0
  %324 = vmatmul.mubr.bf16.gmra.mxu0 %v232
  %v325 = vpop.f32.mrf.mxu0
  %v326 = vadd.f32 %v221, %v325
  %v327 = vpop.f32.mrf.mxu0
  %v328 = vpop.f32.mrf.mxu0
  %v329 = vadd.f32 %v221, %v328
  %v330 = vpop.f32.mrf.mxu0
  %331 = vdwg.mxu0
  %v332 = vmax.f32 %v318, 0.0
  %v333 = vmax.f32 %v321, 0.0
  %v334 = vmax.f32 %v326, 0.0
  %v335 = vmax.f32 %v329, 0.0
  %v336 = vpack.c.bf16 %v333, %v332
  %v337 = vpack.c.bf16 %v335, %v334
  %v340 = vunpack.c.l.b16 %v336
  %v341 = vunpack.c.h.b16 %v336
  %v342 = vunpack.c.l.b16 %v337
  %v343 = vunpack.c.h.b16 %v337
  %v344 = vpack.c.b16 %v340, %v340
  %v345 = vpack.c.b16 %v341, %v341
  %v346 = vpack.c.b16 %v342, %v342
  %v347 = vpack.c.b16 %v343, %v343
  %352 = vst [vmem:[%s4] sm:$0xf] %v344
  %353 = vst [vmem:[%s4 + $0x4] sm:$0xf] %v345
  %354 = vst [vmem:[%s4 + $0x8] sm:$0xf] %v346
  %355 = vst [vmem:[%s4 + $0xc] sm:$0xf] %v347
  // Predicated region
  $region14: #{custom_googlenet_forward.12} parent=0 // pred_check
    _
  $region15: #{custom_googlenet_forward.12} parent=0 // pred_check_branch
    %357 = sbr.rel (0) target = $region17
  $region16: #{custom_googlenet_forward.12} parent=0 // pred_region
    _
  $region17: #{custom_googlenet_forward.12} parent=0 // pred_fallthru
    _
  // Predicated region
  $region18: #{custom_googlenet_forward.12} parent=0 // pred_check
    _
  $region19: #{custom_googlenet_forward.12} parent=0 // pred_check_branch
    %359 = sbr.rel (0) target = $region21
  $region20: #{custom_googlenet_forward.12} parent=0 // pred_region
    _
  $region21: #{custom_googlenet_forward.12} parent=0 // pred_fallthru
    _
  // Predicated region
  $region22: #{custom_googlenet_forward.12} parent=0 // pred_check
    _
  $region23: #{custom_googlenet_forward.12} parent=0 // pred_check_branch
    %361 = sbr.rel (0) target = $region25
  $region24: #{custom_googlenet_forward.12} parent=0 // pred_region
    _
  $region25: #{custom_googlenet_forward.12} parent=0 // pred_fallthru
    _
  // Predicated region
  $region26: #{custom_googlenet_forward.12} parent=0 // pred_check
    _
  $region27: #{custom_googlenet_forward.12} parent=0 // pred_check_branch
    %363 = sbr.rel (0) target = $region29
  $region28: #{custom_googlenet_forward.12} parent=0 // pred_region
    _
  $region29: #{custom_googlenet_forward.12} parent=0 // pred_fallthru
    _

// kernel: custom_googlenet_forward.13
$region0: #{custom_googlenet_forward.13}
  #allocation0 [shape = 'u32[]', space=smem, size = 0x4, offset = 0x4, fixed_abs, tag = 'smem constant byte address 0x4 - core index']
  #allocation1 [shape = 'u32[144,128]{1,0:T(1,128)}', space=vmem, size = 0x12000, scoped, tag = 'internal scratch']
  %s0 = inlined_call_operand.vmem [shape: bf16[32,1152], index: 0, kind: input, shape index: {}]
  %s1 = inlined_call_operand.vmem [shape: bf16[1152,128], index: 1, kind: input, shape index: {}]
  %s2 = inlined_call_operand.vmem [shape: f32[1,128], index: 2, kind: input, shape index: {}]
  %s3 = inlined_call_operand.vmem [shape: bf16[9,32,128], index: 3, kind: input, shape index: {}]
  %s4 = inlined_call_operand.vmem [shape: bf16[128,128], index: 4, kind: input, shape index: {}]
  %s5 = inlined_call_operand.vmem [shape: f32[1,128], index: 5, kind: input, shape index: {}]
  %s6 = inlined_call_operand.vmem [shape: bf16[32,128], index: 6, kind: output, shape index: {0}]
  %s7 = inlined_call_operand.vmem [shape: bf16[32,128], index: 7, kind: output, shape index: {1}]
  %8 = xla_tuple %s6, %s7
  %s9 = sld [smem:[#allocation0]]
  $region42: #{custom_googlenet_forward.13} parent=0
    _
  %s11 = ssub.s32 1, %s9
  %s12 = scalar_select 0, %s11, %s9
  // Predicated region
  $region2: #{custom_googlenet_forward.13} parent=0 // pred_check
    _
  $region3: #{custom_googlenet_forward.13} parent=0 // pred_check_branch
    %14 = sbr.rel (0) target = $region5
  $region4: #{custom_googlenet_forward.13} parent=0 // pred_region
    _
  $region5: #{custom_googlenet_forward.13} parent=0 // pred_fallthru
    _
  // Predicated region
  $region6: #{custom_googlenet_forward.13} parent=0 // pred_check
    _
  $region7: #{custom_googlenet_forward.13} parent=0 // pred_check_branch
    %16 = sbr.rel (0) target = $region9
  $region8: #{custom_googlenet_forward.13} parent=0 // pred_region
    _
  $region9: #{custom_googlenet_forward.13} parent=0 // pred_fallthru
    _
  // Predicated region
  $region10: #{custom_googlenet_forward.13} parent=0 // pred_check
    _
  $region11: #{custom_googlenet_forward.13} parent=0 // pred_check_branch
    %18 = sbr.rel (0) target = $region13
  $region12: #{custom_googlenet_forward.13} parent=0 // pred_region
    _
  $region13: #{custom_googlenet_forward.13} parent=0 // pred_fallthru
    _
  // Predicated region
  $region14: #{custom_googlenet_forward.13} parent=0 // pred_check
    _
  $region15: #{custom_googlenet_forward.13} parent=0 // pred_check_branch
    %20 = sbr.rel (0) target = $region17
  $region16: #{custom_googlenet_forward.13} parent=0 // pred_region
    _
  $region17: #{custom_googlenet_forward.13} parent=0 // pred_fallthru
    _
  // Predicated region
  $region18: #{custom_googlenet_forward.13} parent=0 // pred_check
    _
  $region19: #{custom_googlenet_forward.13} parent=0 // pred_check_branch
    %22 = sbr.rel (0) target = $region21
  $region20: #{custom_googlenet_forward.13} parent=0 // pred_region
    _
  $region21: #{custom_googlenet_forward.13} parent=0 // pred_fallthru
    _
  // Predicated region
  $region22: #{custom_googlenet_forward.13} parent=0 // pred_check
    _
  $region23: #{custom_googlenet_forward.13} parent=0 // pred_check_branch
    %24 = sbr.rel (0) target = $region25
  $region24: #{custom_googlenet_forward.13} parent=0 // pred_region
    _
  $region25: #{custom_googlenet_forward.13} parent=0 // pred_fallthru
    _
  %v27 = vld [vmem:[%s0] sm:$0xff]
  %v28 = vld [vmem:[%s0 + $0x8] sm:$0xff]
  %v29 = vld [vmem:[%s0 + $0x10] sm:$0xff]
  %v30 = vld [vmem:[%s0 + $0x18] sm:$0xff]
  %v31 = vld [vmem:[%s0 + $0x20] sm:$0xf]
  %v32 = vld [vmem:[%s0 + $0x24] sm:$0xff]
  %v33 = vld [vmem:[%s0 + $0x2c] sm:$0xff]
  %v34 = vld [vmem:[%s0 + $0x34] sm:$0xff]
  %v35 = vld [vmem:[%s0 + $0x3c] sm:$0xff]
  %v36 = vld [vmem:[%s0 + $0x44] sm:$0xf]
  %v37 = vld [vmem:[%s0 + $0x48] sm:$0xff]
  %v38 = vld [vmem:[%s0 + $0x50] sm:$0xff]
  %v39 = vld [vmem:[%s0 + $0x58] sm:$0xff]
  %v40 = vld [vmem:[%s0 + $0x60] sm:$0xff]
  %v41 = vld [vmem:[%s0 + $0x68] sm:$0xf]
  %v42 = vld [vmem:[%s0 + $0x6c] sm:$0xff]
  %v43 = vld [vmem:[%s0 + $0x74] sm:$0xff]
  %v44 = vld [vmem:[%s0 + $0x7c] sm:$0xff]
  %v45 = vld [vmem:[%s0 + $0x84] sm:$0xff]
  %v46 = vld [vmem:[%s0 + $0x8c] sm:$0xf]
  %v47 = vld [vmem:[%s1] sm:$0xf]
  %v48 = vld [vmem:[%s1 + $0x4] sm:$0xf]
  %v49 = vld [vmem:[%s1 + $0x8] sm:$0xf]
  %v50 = vld [vmem:[%s1 + $0xc] sm:$0xf]
  %v51 = vld [vmem:[%s1 + $0x10] sm:$0xf]
  %v52 = vld [vmem:[%s1 + $0x14] sm:$0xf]
  %v53 = vld [vmem:[%s1 + $0x18] sm:$0xf]
  %v54 = vld [vmem:[%s1 + $0x1c] sm:$0xf]
  %v55 = vld [vmem:[%s1 + $0x20] sm:$0xf]
  %v56 = vld [vmem:[%s1 + $0x24] sm:$0xf]
  %v57 = vld [vmem:[%s1 + $0x28] sm:$0xf]
  %v58 = vld [vmem:[%s1 + $0x2c] sm:$0xf]
  %v59 = vld [vmem:[%s1 + $0x30] sm:$0xf]
  %v60 = vld [vmem:[%s1 + $0x34] sm:$0xf]
  %v61 = vld [vmem:[%s1 + $0x38] sm:$0xf]
  %v62 = vld [vmem:[%s1 + $0x3c] sm:$0xf]
  %v63 = vld [vmem:[%s1 + $0x40] sm:$0xf]
  %v64 = vld [vmem:[%s1 + $0x44] sm:$0xf]
  %v65 = vld [vmem:[%s1 + $0x48] sm:$0xf]
  %v66 = vld [vmem:[%s1 + $0x4c] sm:$0xf]
  %v67 = vld [vmem:[%s1 + $0x50] sm:$0xf]
  %v68 = vld [vmem:[%s1 + $0x54] sm:$0xf]
  %v69 = vld [vmem:[%s1 + $0x58] sm:$0xf]
  %v70 = vld [vmem:[%s1 + $0x5c] sm:$0xf]
  %v71 = vld [vmem:[%s1 + $0x60] sm:$0xf]
  %v72 = vld [vmem:[%s1 + $0x64] sm:$0xf]
  %v73 = vld [vmem:[%s1 + $0x68] sm:$0xf]
  %v74 = vld [vmem:[%s1 + $0x6c] sm:$0xf]
  %v75 = vld [vmem:[%s1 + $0x70] sm:$0xf]
  %v76 = vld [vmem:[%s1 + $0x74] sm:$0xf]
  %v77 = vld [vmem:[%s1 + $0x78] sm:$0xf]
  %v78 = vld [vmem:[%s1 + $0x7c] sm:$0xf]
  %v79 = vld [vmem:[%s1 + $0x80] sm:$0xf]
  %v80 = vld [vmem:[%s1 + $0x84] sm:$0xf]
  %v81 = vld [vmem:[%s1 + $0x88] sm:$0xf]
  %v82 = vld [vmem:[%s1 + $0x8c] sm:$0xf]
  %v83 = vld [vmem:[%s1 + $0x90] sm:$0xf]
  %v84 = vld [vmem:[%s1 + $0x94] sm:$0xf]
  %v85 = vld [vmem:[%s1 + $0x98] sm:$0xf]
  %v86 = vld [vmem:[%s1 + $0x9c] sm:$0xf]
  %v87 = vld [vmem:[%s1 + $0xa0] sm:$0xf]
  %v88 = vld [vmem:[%s1 + $0xa4] sm:$0xf]
  %v89 = vld [vmem:[%s1 + $0xa8] sm:$0xf]
  %v90 = vld [vmem:[%s1 + $0xac] sm:$0xf]
  %v91 = vld [vmem:[%s1 + $0xb0] sm:$0xf]
  %v92 = vld [vmem:[%s1 + $0xb4] sm:$0xf]
  %v93 = vld [vmem:[%s1 + $0xb8] sm:$0xf]
  %v94 = vld [vmem:[%s1 + $0xbc] sm:$0xf]
  %v95 = vld [vmem:[%s1 + $0xc0] sm:$0xf]
  %v96 = vld [vmem:[%s1 + $0xc4] sm:$0xf]
  %v97 = vld [vmem:[%s1 + $0xc8] sm:$0xf]
  %v98 = vld [vmem:[%s1 + $0xcc] sm:$0xf]
  %v99 = vld [vmem:[%s1 + $0xd0] sm:$0xf]
  %v100 = vld [vmem:[%s1 + $0xd4] sm:$0xf]
  %v101 = vld [vmem:[%s1 + $0xd8] sm:$0xf]
  %v102 = vld [vmem:[%s1 + $0xdc] sm:$0xf]
  %v103 = vld [vmem:[%s1 + $0xe0] sm:$0xf]
  %v104 = vld [vmem:[%s1 + $0xe4] sm:$0xf]
  %v105 = vld [vmem:[%s1 + $0xe8] sm:$0xf]
  %v106 = vld [vmem:[%s1 + $0xec] sm:$0xf]
  %v107 = vld [vmem:[%s1 + $0xf0] sm:$0xf]
  %v108 = vld [vmem:[%s1 + $0xf4] sm:$0xf]
  %v109 = vld [vmem:[%s1 + $0xf8] sm:$0xf]
  %v110 = vld [vmem:[%s1 + $0xfc] sm:$0xf]
  %v111 = vld [vmem:[%s1 + $0x100] sm:$0xf]
  %v112 = vld [vmem:[%s1 + $0x104] sm:$0xf]
  %v113 = vld [vmem:[%s1 + $0x108] sm:$0xf]
  %v114 = vld [vmem:[%s1 + $0x10c] sm:$0xf]
  %v115 = vld [vmem:[%s1 + $0x110] sm:$0xf]
  %v116 = vld [vmem:[%s1 + $0x114] sm:$0xf]
  %v117 = vld [vmem:[%s1 + $0x118] sm:$0xf]
  %v118 = vld [vmem:[%s1 + $0x11c] sm:$0xf]
  %v119 = vld [vmem:[%s1 + $0x120] sm:$0xf]
  %v120 = vld [vmem:[%s1 + $0x124] sm:$0xf]
  %v121 = vld [vmem:[%s1 + $0x128] sm:$0xf]
  %v122 = vld [vmem:[%s1 + $0x12c] sm:$0xf]
  %v123 = vld [vmem:[%s1 + $0x130] sm:$0xf]
  %v124 = vld [vmem:[%s1 + $0x134] sm:$0xf]
  %v125 = vld [vmem:[%s1 + $0x138] sm:$0xf]
  %v126 = vld [vmem:[%s1 + $0x13c] sm:$0xf]
  %v127 = vld [vmem:[%s1 + $0x140] sm:$0xf]
  %v128 = vld [vmem:[%s1 + $0x144] sm:$0xf]
  %v129 = vld [vmem:[%s1 + $0x148] sm:$0xf]
  %v130 = vld [vmem:[%s1 + $0x14c] sm:$0xf]
  %v131 = vld [vmem:[%s1 + $0x150] sm:$0xf]
  %v132 = vld [vmem:[%s1 + $0x154] sm:$0xf]
  %v133 = vld [vmem:[%s1 + $0x158] sm:$0xf]
  %v134 = vld [vmem:[%s1 + $0x15c] sm:$0xf]
  %v135 = vld [vmem:[%s1 + $0x160] sm:$0xf]
  %v136 = vld [vmem:[%s1 + $0x164] sm:$0xf]
  %v137 = vld [vmem:[%s1 + $0x168] sm:$0xf]
  %v138 = vld [vmem:[%s1 + $0x16c] sm:$0xf]
  %v139 = vld [vmem:[%s1 + $0x170] sm:$0xf]
  %v140 = vld [vmem:[%s1 + $0x174] sm:$0xf]
  %v141 = vld [vmem:[%s1 + $0x178] sm:$0xf]
  %v142 = vld [vmem:[%s1 + $0x17c] sm:$0xf]
  %v143 = vld [vmem:[%s1 + $0x180] sm:$0xf]
  %v144 = vld [vmem:[%s1 + $0x184] sm:$0xf]
  %v145 = vld [vmem:[%s1 + $0x188] sm:$0xf]
  %v146 = vld [vmem:[%s1 + $0x18c] sm:$0xf]
  %v147 = vld [vmem:[%s1 + $0x190] sm:$0xf]
  %v148 = vld [vmem:[%s1 + $0x194] sm:$0xf]
  %v149 = vld [vmem:[%s1 + $0x198] sm:$0xf]
  %v150 = vld [vmem:[%s1 + $0x19c] sm:$0xf]
  %v151 = vld [vmem:[%s1 + $0x1a0] sm:$0xf]
  %v152 = vld [vmem:[%s1 + $0x1a4] sm:$0xf]
  %v153 = vld [vmem:[%s1 + $0x1a8] sm:$0xf]
  %v154 = vld [vmem:[%s1 + $0x1ac] sm:$0xf]
  %v155 = vld [vmem:[%s1 + $0x1b0] sm:$0xf]
  %v156 = vld [vmem:[%s1 + $0x1b4] sm:$0xf]
  %v157 = vld [vmem:[%s1 + $0x1b8] sm:$0xf]
  %v158 = vld [vmem:[%s1 + $0x1bc] sm:$0xf]
  %v159 = vld [vmem:[%s1 + $0x1c0] sm:$0xf]
  %v160 = vld [vmem:[%s1 + $0x1c4] sm:$0xf]
  %v161 = vld [vmem:[%s1 + $0x1c8] sm:$0xf]
  %v162 = vld [vmem:[%s1 + $0x1cc] sm:$0xf]
  %v163 = vld [vmem:[%s1 + $0x1d0] sm:$0xf]
  %v164 = vld [vmem:[%s1 + $0x1d4] sm:$0xf]
  %v165 = vld [vmem:[%s1 + $0x1d8] sm:$0xf]
  %v166 = vld [vmem:[%s1 + $0x1dc] sm:$0xf]
  %v167 = vld [vmem:[%s1 + $0x1e0] sm:$0xf]
  %v168 = vld [vmem:[%s1 + $0x1e4] sm:$0xf]
  %v169 = vld [vmem:[%s1 + $0x1e8] sm:$0xf]
  %v170 = vld [vmem:[%s1 + $0x1ec] sm:$0xf]
  %v171 = vld [vmem:[%s1 + $0x1f0] sm:$0xf]
  %v172 = vld [vmem:[%s1 + $0x1f4] sm:$0xf]
  %v173 = vld [vmem:[%s1 + $0x1f8] sm:$0xf]
  %v174 = vld [vmem:[%s1 + $0x1fc] sm:$0xf]
  %v175 = vld [vmem:[%s1 + $0x200] sm:$0xf]
  %v176 = vld [vmem:[%s1 + $0x204] sm:$0xf]
  %v177 = vld [vmem:[%s1 + $0x208] sm:$0xf]
  %v178 = vld [vmem:[%s1 + $0x20c] sm:$0xf]
  %v179 = vld [vmem:[%s1 + $0x210] sm:$0xf]
  %v180 = vld [vmem:[%s1 + $0x214] sm:$0xf]
  %v181 = vld [vmem:[%s1 + $0x218] sm:$0xf]
  %v182 = vld [vmem:[%s1 + $0x21c] sm:$0xf]
  %v183 = vld [vmem:[%s1 + $0x220] sm:$0xf]
  %v184 = vld [vmem:[%s1 + $0x224] sm:$0xf]
  %v185 = vld [vmem:[%s1 + $0x228] sm:$0xf]
  %v186 = vld [vmem:[%s1 + $0x22c] sm:$0xf]
  %v187 = vld [vmem:[%s1 + $0x230] sm:$0xf]
  %v188 = vld [vmem:[%s1 + $0x234] sm:$0xf]
  %v189 = vld [vmem:[%s1 + $0x238] sm:$0xf]
  %v190 = vld [vmem:[%s1 + $0x23c] sm:$0xf]
  %v191 = vld [vmem:[%s2] sm:$0x1]
  %v193 = vlaneseq
  %v194 = vshrl.u32 %v193, 7
  %v195 = vsub.s32 0, %v194
  %v196 = vrot.slane %v191, %v195
  %v218 = vunpack.c.l.b16 %v27
  %v219 = vunpack.c.h.b16 %v27
  %v220 = vunpack.c.l.b16 %v28
  %v221 = vunpack.c.h.b16 %v28
  %v222 = vunpack.c.l.b16 %v29
  %v223 = vunpack.c.h.b16 %v29
  %v224 = vunpack.c.l.b16 %v30
  %v225 = vunpack.c.h.b16 %v30
  %v226 = vunpack.c.l.b16 %v31
  %v227 = vunpack.c.l.b16 %v32
  %v228 = vunpack.c.h.b16 %v32
  %v229 = vunpack.c.l.b16 %v33
  %v230 = vunpack.c.h.b16 %v33
  %v231 = vunpack.c.l.b16 %v34
  %v232 = vunpack.c.h.b16 %v34
  %v233 = vunpack.c.l.b16 %v35
  %v234 = vunpack.c.h.b16 %v35
  %v235 = vunpack.c.l.b16 %v36
  %v236 = vunpack.c.l.b16 %v37
  %v237 = vunpack.c.h.b16 %v37
  %v238 = vunpack.c.l.b16 %v38
  %v239 = vunpack.c.h.b16 %v38
  %v240 = vunpack.c.l.b16 %v39
  %v241 = vunpack.c.h.b16 %v39
  %v242 = vunpack.c.l.b16 %v40
  %v243 = vunpack.c.h.b16 %v40
  %v244 = vunpack.c.l.b16 %v41
  %v245 = vunpack.c.l.b16 %v42
  %v246 = vunpack.c.h.b16 %v42
  %v247 = vunpack.c.l.b16 %v43
  %v248 = vunpack.c.h.b16 %v43
  %v249 = vunpack.c.l.b16 %v44
  %v250 = vunpack.c.h.b16 %v44
  %v251 = vunpack.c.l.b16 %v45
  %v252 = vunpack.c.h.b16 %v45
  %v253 = vunpack.c.l.b16 %v46
  %v254 = vpack.c.b16 %v227, %v218
  %v255 = vpack.c.b16 %v228, %v219
  %v256 = vpack.c.b16 %v229, %v220
  %v257 = vpack.c.b16 %v230, %v221
  %v258 = vpack.c.b16 %v231, %v222
  %v259 = vpack.c.b16 %v232, %v223
  %v260 = vpack.c.b16 %v233, %v224
  %v261 = vpack.c.b16 %v234, %v225
  %v262 = vpack.c.b16 %v235, %v226
  %v263 = vpack.c.b16 %v245, %v236
  %v264 = vpack.c.b16 %v246, %v237
  %v265 = vpack.c.b16 %v247, %v238
  %v266 = vpack.c.b16 %v248, %v239
  %v267 = vpack.c.b16 %v249, %v240
  %v268 = vpack.c.b16 %v250, %v241
  %v269 = vpack.c.b16 %v251, %v242
  %v270 = vpack.c.b16 %v252, %v243
  %v271 = vpack.c.b16 %v253, %v244
  %v434 = vunpack.c.l.b16 %v47
  %v435 = vunpack.c.l.b16 %v48
  %v436 = vunpack.c.l.b16 %v49
  %v437 = vunpack.c.l.b16 %v50
  %v438 = vunpack.c.l.b16 %v51
  %v439 = vunpack.c.l.b16 %v52
  %v440 = vunpack.c.l.b16 %v53
  %v441 = vunpack.c.l.b16 %v54
  %v442 = vunpack.c.l.b16 %v55
  %v443 = vunpack.c.l.b16 %v56
  %v444 = vunpack.c.l.b16 %v57
  %v445 = vunpack.c.l.b16 %v58
  %v446 = vunpack.c.l.b16 %v59
  %v447 = vunpack.c.l.b16 %v60
  %v448 = vunpack.c.l.b16 %v61
  %v449 = vunpack.c.l.b16 %v62
  %v450 = vunpack.c.l.b16 %v63
  %v451 = vunpack.c.l.b16 %v64
  %v452 = vunpack.c.l.b16 %v65
  %v453 = vunpack.c.l.b16 %v66
  %v454 = vunpack.c.l.b16 %v67
  %v455 = vunpack.c.l.b16 %v68
  %v456 = vunpack.c.l.b16 %v69
  %v457 = vunpack.c.l.b16 %v70
  %v458 = vunpack.c.l.b16 %v71
  %v459 = vunpack.c.l.b16 %v72
  %v460 = vunpack.c.l.b16 %v73
  %v461 = vunpack.c.l.b16 %v74
  %v462 = vunpack.c.l.b16 %v75
  %v463 = vunpack.c.l.b16 %v76
  %v464 = vunpack.c.l.b16 %v77
  %v465 = vunpack.c.l.b16 %v78
  %v466 = vunpack.c.l.b16 %v79
  %v467 = vunpack.c.l.b16 %v80
  %v468 = vunpack.c.l.b16 %v81
  %v469 = vunpack.c.l.b16 %v82
  %v470 = vunpack.c.l.b16 %v83
  %v471 = vunpack.c.l.b16 %v84
  %v472 = vunpack.c.l.b16 %v85
  %v473 = vunpack.c.l.b16 %v86
  %v474 = vunpack.c.l.b16 %v87
  %v475 = vunpack.c.l.b16 %v88
  %v476 = vunpack.c.l.b16 %v89
  %v477 = vunpack.c.l.b16 %v90
  %v478 = vunpack.c.l.b16 %v91
  %v479 = vunpack.c.l.b16 %v92
  %v480 = vunpack.c.l.b16 %v93
  %v481 = vunpack.c.l.b16 %v94
  %v482 = vunpack.c.l.b16 %v95
  %v483 = vunpack.c.l.b16 %v96
  %v484 = vunpack.c.l.b16 %v97
  %v485 = vunpack.c.l.b16 %v98
  %v486 = vunpack.c.l.b16 %v99
  %v487 = vunpack.c.l.b16 %v100
  %v488 = vunpack.c.l.b16 %v101
  %v489 = vunpack.c.l.b16 %v102
  %v490 = vunpack.c.l.b16 %v103
  %v491 = vunpack.c.l.b16 %v104
  %v492 = vunpack.c.l.b16 %v105
  %v493 = vunpack.c.l.b16 %v106
  %v494 = vunpack.c.l.b16 %v107
  %v495 = vunpack.c.l.b16 %v108
  %v496 = vunpack.c.l.b16 %v109
  %v497 = vunpack.c.l.b16 %v110
  %v498 = vunpack.c.l.b16 %v111
  %v499 = vunpack.c.l.b16 %v112
  %v500 = vunpack.c.l.b16 %v113
  %v501 = vunpack.c.l.b16 %v114
  %v502 = vunpack.c.l.b16 %v115
  %v503 = vunpack.c.l.b16 %v116
  %v504 = vunpack.c.l.b16 %v117
  %v505 = vunpack.c.l.b16 %v118
  %v506 = vunpack.c.l.b16 %v119
  %v507 = vunpack.c.l.b16 %v120
  %v508 = vunpack.c.l.b16 %v121
  %v509 = vunpack.c.l.b16 %v122
  %v510 = vunpack.c.l.b16 %v123
  %v511 = vunpack.c.l.b16 %v124
  %v512 = vunpack.c.l.b16 %v125
  %v513 = vunpack.c.l.b16 %v126
  %v514 = vunpack.c.l.b16 %v127
  %v515 = vunpack.c.l.b16 %v128
  %v516 = vunpack.c.l.b16 %v129
  %v517 = vunpack.c.l.b16 %v130
  %v518 = vunpack.c.l.b16 %v131
  %v519 = vunpack.c.l.b16 %v132
  %v520 = vunpack.c.l.b16 %v133
  %v521 = vunpack.c.l.b16 %v134
  %v522 = vunpack.c.l.b16 %v135
  %v523 = vunpack.c.l.b16 %v136
  %v524 = vunpack.c.l.b16 %v137
  %v525 = vunpack.c.l.b16 %v138
  %v526 = vunpack.c.l.b16 %v139
  %v527 = vunpack.c.l.b16 %v140
  %v528 = vunpack.c.l.b16 %v141
  %v529 = vunpack.c.l.b16 %v142
  %v530 = vunpack.c.l.b16 %v143
  %v531 = vunpack.c.l.b16 %v144
  %v532 = vunpack.c.l.b16 %v145
  %v533 = vunpack.c.l.b16 %v146
  %v534 = vunpack.c.l.b16 %v147
  %v535 = vunpack.c.l.b16 %v148
  %v536 = vunpack.c.l.b16 %v149
  %v537 = vunpack.c.l.b16 %v150
  %v538 = vunpack.c.l.b16 %v151
  %v539 = vunpack.c.l.b16 %v152
  %v540 = vunpack.c.l.b16 %v153
  %v541 = vunpack.c.l.b16 %v154
  %v542 = vunpack.c.l.b16 %v155
  %v543 = vunpack.c.l.b16 %v156
  %v544 = vunpack.c.l.b16 %v157
  %v545 = vunpack.c.l.b16 %v158
  %v546 = vunpack.c.l.b16 %v159
  %v547 = vunpack.c.l.b16 %v160
  %v548 = vunpack.c.l.b16 %v161
  %v549 = vunpack.c.l.b16 %v162
  %v550 = vunpack.c.l.b16 %v163
  %v551 = vunpack.c.l.b16 %v164
  %v552 = vunpack.c.l.b16 %v165
  %v553 = vunpack.c.l.b16 %v166
  %v554 = vunpack.c.l.b16 %v167
  %v555 = vunpack.c.l.b16 %v168
  %v556 = vunpack.c.l.b16 %v169
  %v557 = vunpack.c.l.b16 %v170
  %v558 = vunpack.c.l.b16 %v171
  %v559 = vunpack.c.l.b16 %v172
  %v560 = vunpack.c.l.b16 %v173
  %v561 = vunpack.c.l.b16 %v174
  %v562 = vunpack.c.l.b16 %v175
  %v563 = vunpack.c.l.b16 %v176
  %v564 = vunpack.c.l.b16 %v177
  %v565 = vunpack.c.l.b16 %v178
  %v566 = vunpack.c.l.b16 %v179
  %v567 = vunpack.c.l.b16 %v180
  %v568 = vunpack.c.l.b16 %v181
  %v569 = vunpack.c.l.b16 %v182
  %v570 = vunpack.c.l.b16 %v183
  %v571 = vunpack.c.l.b16 %v184
  %v572 = vunpack.c.l.b16 %v185
  %v573 = vunpack.c.l.b16 %v186
  %v574 = vunpack.c.l.b16 %v187
  %v575 = vunpack.c.l.b16 %v188
  %v576 = vunpack.c.l.b16 %v189
  %v577 = vunpack.c.l.b16 %v190
  %v578 = vpack.c.b16 %v435, %v434
  %v579 = vpack.c.b16 %v437, %v436
  %v580 = vpack.c.b16 %v439, %v438
  %v581 = vpack.c.b16 %v441, %v440
  %v582 = vpack.c.b16 %v443, %v442
  %v583 = vpack.c.b16 %v445, %v444
  %v584 = vpack.c.b16 %v447, %v446
  %v585 = vpack.c.b16 %v449, %v448
  %v586 = vpack.c.b16 %v451, %v450
  %v587 = vpack.c.b16 %v453, %v452
  %v588 = vpack.c.b16 %v455, %v454
  %v589 = vpack.c.b16 %v457, %v456
  %v590 = vpack.c.b16 %v459, %v458
  %v591 = vpack.c.b16 %v461, %v460
  %v592 = vpack.c.b16 %v463, %v462
  %v593 = vpack.c.b16 %v465, %v464
  %v594 = vpack.c.b16 %v467, %v466
  %v595 = vpack.c.b16 %v469, %v468
  %v596 = vpack.c.b16 %v471, %v470
  %v597 = vpack.c.b16 %v473, %v472
  %v598 = vpack.c.b16 %v475, %v474
  %v599 = vpack.c.b16 %v477, %v476
  %v600 = vpack.c.b16 %v479, %v478
  %v601 = vpack.c.b16 %v481, %v480
  %v602 = vpack.c.b16 %v483, %v482
  %v603 = vpack.c.b16 %v485, %v484
  %v604 = vpack.c.b16 %v487, %v486
  %v605 = vpack.c.b16 %v489, %v488
  %v606 = vpack.c.b16 %v491, %v490
  %v607 = vpack.c.b16 %v493, %v492
  %v608 = vpack.c.b16 %v495, %v494
  %v609 = vpack.c.b16 %v497, %v496
  %v610 = vpack.c.b16 %v499, %v498
  %v611 = vpack.c.b16 %v501, %v500
  %v612 = vpack.c.b16 %v503, %v502
  %v613 = vpack.c.b16 %v505, %v504
  %v614 = vpack.c.b16 %v507, %v506
  %v615 = vpack.c.b16 %v509, %v508
  %v616 = vpack.c.b16 %v511, %v510
  %v617 = vpack.c.b16 %v513, %v512
  %v618 = vpack.c.b16 %v515, %v514
  %v619 = vpack.c.b16 %v517, %v516
  %v620 = vpack.c.b16 %v519, %v518
  %v621 = vpack.c.b16 %v521, %v520
  %v622 = vpack.c.b16 %v523, %v522
  %v623 = vpack.c.b16 %v525, %v524
  %v624 = vpack.c.b16 %v527, %v526
  %v625 = vpack.c.b16 %v529, %v528
  %v626 = vpack.c.b16 %v531, %v530
  %v627 = vpack.c.b16 %v533, %v532
  %v628 = vpack.c.b16 %v535, %v534
  %v629 = vpack.c.b16 %v537, %v536
  %v630 = vpack.c.b16 %v539, %v538
  %v631 = vpack.c.b16 %v541, %v540
  %v632 = vpack.c.b16 %v543, %v542
  %v633 = vpack.c.b16 %v545, %v544
  %v634 = vpack.c.b16 %v547, %v546
  %v635 = vpack.c.b16 %v549, %v548
  %v636 = vpack.c.b16 %v551, %v550
  %v637 = vpack.c.b16 %v553, %v552
  %v638 = vpack.c.b16 %v555, %v554
  %v639 = vpack.c.b16 %v557, %v556
  %v640 = vpack.c.b16 %v559, %v558
  %v641 = vpack.c.b16 %v561, %v560
  %v642 = vpack.c.b16 %v563, %v562
  %v643 = vpack.c.b16 %v565, %v564
  %v644 = vpack.c.b16 %v567, %v566
  %v645 = vpack.c.b16 %v569, %v568
  %v646 = vpack.c.b16 %v571, %v570
  %v647 = vpack.c.b16 %v573, %v572
  %v648 = vpack.c.b16 %v575, %v574
  %v649 = vpack.c.b16 %v577, %v576
  %722 = vmatprep.subr.bf16.mxu0 0
  %723 = vmatpush1.bf16.msra.mxu0 %v585
  %724 = vmatprep.subr.bf16.mxu0 0
  %725 = vmatpush1.bf16.msra.mxu0 %v584
  %726 = vmatprep.subr.bf16.mxu0 0
  %727 = vmatpush1.bf16.msra.mxu0 %v583
  %728 = vmatprep.subr.bf16.mxu0 0
  %729 = vmatpush1.bf16.msra.mxu0 %v582
  %730 = vmatprep.subr.bf16.mxu0 0
  %731 = vmatpush1.bf16.msra.mxu0 %v581
  %732 = vmatprep.subr.bf16.mxu0 0
  %733 = vmatpush1.bf16.msra.mxu0 %v580
  %734 = vmatprep.subr.bf16.mxu0 0
  %735 = vmatpush1.bf16.msra.mxu0 %v579
  %736 = vmatprep.subr.bf16.mxu0 0
  %737 = vmatpush1.bf16.msra.mxu0 %v578
  %738 = vmatprep.subr.bf16.mxu0 0
  %739 = vmatpush2.bf16.msra.mxu0 %v593
  %740 = vmatprep.subr.bf16.mxu0 0
  %741 = vmatpush2.bf16.msra.mxu0 %v592
  %742 = vmatprep.subr.bf16.mxu0 0
  %743 = vmatpush2.bf16.msra.mxu0 %v591
  %744 = vmatprep.subr.bf16.mxu0 0
  %745 = vmatpush2.bf16.msra.mxu0 %v590
  %746 = vmatprep.subr.bf16.mxu0 0
  %747 = vmatpush2.bf16.msra.mxu0 %v589
  %748 = vmatprep.subr.bf16.mxu0 0
  %749 = vmatpush2.bf16.msra.mxu0 %v588
  %750 = vmatprep.subr.bf16.mxu0 0
  %751 = vmatpush2.bf16.msra.mxu0 %v587
  %752 = vmatprep.subr.bf16.mxu0 0
  %753 = vmatpush2.bf16.msra.mxu0 %v586
  %754 = vmatprep.mubr.bf16.mxu0 %v255
  %755 = vmatmul.mubr.bf16.gmra.mxu0 %v254
  %v756 = vpop.f32.mrf.mxu0
  %v757 = vadd.f32 %v196, %v756
  %v758 = vpop.f32.mrf.mxu0
  %v759 = vpop.f32.mrf.mxu0
  %v760 = vadd.f32 %v196, %v759
  %v761 = vpop.f32.mrf.mxu0
  %762 = vmatprep.mubr.bf16.mxu0 %v264
  %763 = vmatmul.mubr.bf16.gmra.mxu0 %v263
  %v764 = vpop.f32.mrf.mxu0
  %v765 = vadd.f32 %v196, %v764
  %v766 = vpop.f32.mrf.mxu0
  %v767 = vpop.f32.mrf.mxu0
  %v768 = vadd.f32 %v196, %v767
  %v769 = vpop.f32.mrf.mxu0
  %770 = vdwg.mxu0
  %771 = vmatprep.subr.bf16.mxu0 0
  %772 = vmatpush1.bf16.msra.mxu0 %v601
  %773 = vmatprep.subr.bf16.mxu0 0
  %774 = vmatpush1.bf16.msra.mxu0 %v600
  %775 = vmatprep.subr.bf16.mxu0 0
  %776 = vmatpush1.bf16.msra.mxu0 %v599
  %777 = vmatprep.subr.bf16.mxu0 0
  %778 = vmatpush1.bf16.msra.mxu0 %v598
  %779 = vmatprep.subr.bf16.mxu0 0
  %780 = vmatpush1.bf16.msra.mxu0 %v597
  %781 = vmatprep.subr.bf16.mxu0 0
  %782 = vmatpush1.bf16.msra.mxu0 %v596
  %783 = vmatprep.subr.bf16.mxu0 0
  %784 = vmatpush1.bf16.msra.mxu0 %v595
  %785 = vmatprep.subr.bf16.mxu0 0
  %786 = vmatpush1.bf16.msra.mxu0 %v594
  %787 = vmatprep.subr.bf16.mxu0 0
  %788 = vmatpush2.bf16.msra.mxu0 %v609
  %789 = vmatprep.subr.bf16.mxu0 0
  %790 = vmatpush2.bf16.msra.mxu0 %v608
  %791 = vmatprep.subr.bf16.mxu0 0
  %792 = vmatpush2.bf16.msra.mxu0 %v607
  %793 = vmatprep.subr.bf16.mxu0 0
  %794 = vmatpush2.bf16.msra.mxu0 %v606
  %795 = vmatprep.subr.bf16.mxu0 0
  %796 = vmatpush2.bf16.msra.mxu0 %v605
  %797 = vmatprep.subr.bf16.mxu0 0
  %798 = vmatpush2.bf16.msra.mxu0 %v604
  %799 = vmatprep.subr.bf16.mxu0 0
  %800 = vmatpush2.bf16.msra.mxu0 %v603
  %801 = vmatprep.subr.bf16.mxu0 0
  %802 = vmatpush2.bf16.msra.mxu0 %v602
  %803 = vmatprep.mubr.bf16.mxu0 %v257
  %804 = vmatmul.mubr.bf16.gmra.mxu0 %v256
  %v805 = vpop.f32.mrf.mxu0
  %v806 = vadd.f32 %v757, %v805
  %v807 = vpop.f32.mrf.mxu0
  %v808 = vpop.f32.mrf.mxu0
  %v809 = vadd.f32 %v760, %v808
  %v810 = vpop.f32.mrf.mxu0
  %811 = vmatprep.mubr.bf16.mxu0 %v266
  %812 = vmatmul.mubr.bf16.gmra.mxu0 %v265
  %v813 = vpop.f32.mrf.mxu0
  %v814 = vadd.f32 %v765, %v813
  %v815 = vpop.f32.mrf.mxu0
  %v816 = vpop.f32.mrf.mxu0
  %v817 = vadd.f32 %v768, %v816
  %v818 = vpop.f32.mrf.mxu0
  %819 = vdwg.mxu0
  %820 = vmatprep.subr.bf16.mxu0 0
  %821 = vmatpush1.bf16.msra.mxu0 %v617
  %822 = vmatprep.subr.bf16.mxu0 0
  %823 = vmatpush1.bf16.msra.mxu0 %v616
  %824 = vmatprep.subr.bf16.mxu0 0
  %825 = vmatpush1.bf16.msra.mxu0 %v615
  %826 = vmatprep.subr.bf16.mxu0 0
  %827 = vmatpush1.bf16.msra.mxu0 %v614
  %828 = vmatprep.subr.bf16.mxu0 0
  %829 = vmatpush1.bf16.msra.mxu0 %v613
  %830 = vmatprep.subr.bf16.mxu0 0
  %831 = vmatpush1.bf16.msra.mxu0 %v612
  %832 = vmatprep.subr.bf16.mxu0 0
  %833 = vmatpush1.bf16.msra.mxu0 %v611
  %834 = vmatprep.subr.bf16.mxu0 0
  %835 = vmatpush1.bf16.msra.mxu0 %v610
  %836 = vmatprep.subr.bf16.mxu0 0
  %837 = vmatpush2.bf16.msra.mxu0 %v625
  %838 = vmatprep.subr.bf16.mxu0 0
  %839 = vmatpush2.bf16.msra.mxu0 %v624
  %840 = vmatprep.subr.bf16.mxu0 0
  %841 = vmatpush2.bf16.msra.mxu0 %v623
  %842 = vmatprep.subr.bf16.mxu0 0
  %843 = vmatpush2.bf16.msra.mxu0 %v622
  %844 = vmatprep.subr.bf16.mxu0 0
  %845 = vmatpush2.bf16.msra.mxu0 %v621
  %846 = vmatprep.subr.bf16.mxu0 0
  %847 = vmatpush2.bf16.msra.mxu0 %v620
  %848 = vmatprep.subr.bf16.mxu0 0
  %849 = vmatpush2.bf16.msra.mxu0 %v619
  %850 = vmatprep.subr.bf16.mxu0 0
  %851 = vmatpush2.bf16.msra.mxu0 %v618
  %852 = vmatprep.mubr.bf16.mxu0 %v259
  %853 = vmatmul.mubr.bf16.gmra.mxu0 %v258
  %v854 = vpop.f32.mrf.mxu0
  %v855 = vadd.f32 %v806, %v854
  %v856 = vpop.f32.mrf.mxu0
  %v857 = vpop.f32.mrf.mxu0
  %v858 = vadd.f32 %v809, %v857
  %v859 = vpop.f32.mrf.mxu0
  %860 = vmatprep.mubr.bf16.mxu0 %v268
  %861 = vmatmul.mubr.bf16.gmra.mxu0 %v267
  %v862 = vpop.f32.mrf.mxu0
  %v863 = vadd.f32 %v814, %v862
  %v864 = vpop.f32.mrf.mxu0
  %v865 = vpop.f32.mrf.mxu0
  %v866 = vadd.f32 %v817, %v865
  %v867 = vpop.f32.mrf.mxu0
  %868 = vdwg.mxu0
  %869 = vmatprep.subr.bf16.mxu0 0
  %870 = vmatpush1.bf16.msra.mxu0 %v633
  %871 = vmatprep.subr.bf16.mxu0 0
  %872 = vmatpush1.bf16.msra.mxu0 %v632
  %873 = vmatprep.subr.bf16.mxu0 0
  %874 = vmatpush1.bf16.msra.mxu0 %v631
  %875 = vmatprep.subr.bf16.mxu0 0
  %876 = vmatpush1.bf16.msra.mxu0 %v630
  %877 = vmatprep.subr.bf16.mxu0 0
  %878 = vmatpush1.bf16.msra.mxu0 %v629
  %879 = vmatprep.subr.bf16.mxu0 0
  %880 = vmatpush1.bf16.msra.mxu0 %v628
  %881 = vmatprep.subr.bf16.mxu0 0
  %882 = vmatpush1.bf16.msra.mxu0 %v627
  %883 = vmatprep.subr.bf16.mxu0 0
  %884 = vmatpush1.bf16.msra.mxu0 %v626
  %885 = vmatprep.subr.bf16.mxu0 0
  %886 = vmatpush2.bf16.msra.mxu0 %v641
  %887 = vmatprep.subr.bf16.mxu0 0
  %888 = vmatpush2.bf16.msra.mxu0 %v640
  %889 = vmatprep.subr.bf16.mxu0 0
  %890 = vmatpush2.bf16.msra.mxu0 %v639
  %891 = vmatprep.subr.bf16.mxu0 0
  %892 = vmatpush2.bf16.msra.mxu0 %v638
  %893 = vmatprep.subr.bf16.mxu0 0
  %894 = vmatpush2.bf16.msra.mxu0 %v637
  %895 = vmatprep.subr.bf16.mxu0 0
  %896 = vmatpush2.bf16.msra.mxu0 %v636
  %897 = vmatprep.subr.bf16.mxu0 0
  %898 = vmatpush2.bf16.msra.mxu0 %v635
  %899 = vmatprep.subr.bf16.mxu0 0
  %900 = vmatpush2.bf16.msra.mxu0 %v634
  %901 = vmatprep.mubr.bf16.mxu0 %v261
  %902 = vmatmul.mubr.bf16.gmra.mxu0 %v260
  %v903 = vpop.f32.mrf.mxu0
  %v904 = vadd.f32 %v855, %v903
  %v905 = vpop.f32.mrf.mxu0
  %v906 = vpop.f32.mrf.mxu0
  %v907 = vadd.f32 %v858, %v906
  %v908 = vpop.f32.mrf.mxu0
  %909 = vmatprep.mubr.bf16.mxu0 %v270
  %910 = vmatmul.mubr.bf16.gmra.mxu0 %v269
  %v911 = vpop.f32.mrf.mxu0
  %v912 = vadd.f32 %v863, %v911
  %v913 = vpop.f32.mrf.mxu0
  %v914 = vpop.f32.mrf.mxu0
  %v915 = vadd.f32 %v866, %v914
  %v916 = vpop.f32.mrf.mxu0
  %917 = vdwg.mxu0
  %918 = vmatprep.subr.bf16.mxu0 0
  %919 = vmatpush1.bf16.msra.mxu0 %v649
  %920 = vmatprep.subr.bf16.mxu0 0
  %921 = vmatpush1.bf16.msra.mxu0 %v648
  %922 = vmatprep.subr.bf16.mxu0 0
  %923 = vmatpush1.bf16.msra.mxu0 %v647
  %924 = vmatprep.subr.bf16.mxu0 0
  %925 = vmatpush1.bf16.msra.mxu0 %v646
  %926 = vmatprep.subr.bf16.mxu0 0
  %927 = vmatpush1.bf16.msra.mxu0 %v645
  %928 = vmatprep.subr.bf16.mxu0 0
  %929 = vmatpush1.bf16.msra.mxu0 %v644
  %930 = vmatprep.subr.bf16.mxu0 0
  %931 = vmatpush1.bf16.msra.mxu0 %v643
  %932 = vmatprep.subr.bf16.mxu0 0
  %933 = vmatpush1.bf16.msra.mxu0 %v642
  %934 = vmatprep.subr.bf16.mxu0 0
  %935 = vmatpush2.bf16.msra.mxu0 0
  %936 = vmatprep.subr.bf16.mxu0 0
  %937 = vmatpush2.bf16.msra.mxu0 0
  %938 = vmatprep.subr.bf16.mxu0 0
  %939 = vmatpush2.bf16.msra.mxu0 0
  %940 = vmatprep.subr.bf16.mxu0 0
  %941 = vmatpush2.bf16.msra.mxu0 0
  %942 = vmatprep.subr.bf16.mxu0 0
  %943 = vmatpush2.bf16.msra.mxu0 0
  %944 = vmatprep.subr.bf16.mxu0 0
  %945 = vmatpush2.bf16.msra.mxu0 0
  %946 = vmatprep.subr.bf16.mxu0 0
  %947 = vmatpush2.bf16.msra.mxu0 0
  %948 = vmatprep.subr.bf16.mxu0 0
  %949 = vmatpush2.bf16.msra.mxu0 0
  %950 = vmatprep.mubr.bf16.mxu0 0
  %951 = vmatmul.mubr.bf16.gmra.mxu0 %v262
  %v952 = vpop.f32.mrf.mxu0
  %v953 = vadd.f32 %v904, %v952
  %v954 = vpop.f32.mrf.mxu0
  %v955 = vpop.f32.mrf.mxu0
  %v956 = vadd.f32 %v907, %v955
  %v957 = vpop.f32.mrf.mxu0
  %958 = vmatprep.mubr.bf16.mxu0 0
  %959 = vmatmul.mubr.bf16.gmra.mxu0 %v271
  %v960 = vpop.f32.mrf.mxu0
  %v961 = vadd.f32 %v912, %v960
  %v962 = vpop.f32.mrf.mxu0
  %v963 = vpop.f32.mrf.mxu0
  %v964 = vadd.f32 %v915, %v963
  %v965 = vpop.f32.mrf.mxu0
  %966 = vdwg.mxu0
  %v967 = vmax.f32 %v953, 0.0
  %v968 = vmax.f32 %v956, 0.0
  %v969 = vmax.f32 %v961, 0.0
  %v970 = vmax.f32 %v964, 0.0
  %v971 = vpack.c.bf16 %v968, %v967
  %v972 = vpack.c.bf16 %v970, %v969
  %v975 = vunpack.c.l.b16 %v971
  %v976 = vunpack.c.h.b16 %v971
  %v977 = vunpack.c.l.b16 %v972
  %v978 = vunpack.c.h.b16 %v972
  %v979 = vpack.c.b16 %v975, %v975
  %v980 = vpack.c.b16 %v976, %v976
  %v981 = vpack.c.b16 %v977, %v977
  %v982 = vpack.c.b16 %v978, %v978
  %987 = vst [vmem:[%s6] sm:$0xf] %v979
  %988 = vst [vmem:[%s6 + $0x4] sm:$0xf] %v980
  %989 = vst [vmem:[%s6 + $0x8] sm:$0xf] %v981
  %990 = vst [vmem:[%s6 + $0xc] sm:$0xf] %v982
  %v991 = vld [vmem:[%s3] sm:$0xf]
  %v992 = vld [vmem:[%s3 + $0x4] sm:$0xf]
  %v993 = vld [vmem:[%s3 + $0x8] sm:$0xf]
  %v994 = vld [vmem:[%s3 + $0xc] sm:$0xf]
  %v995 = vld [vmem:[%s3 + $0x10] sm:$0xf]
  %v996 = vld [vmem:[%s3 + $0x14] sm:$0xf]
  %v997 = vld [vmem:[%s3 + $0x18] sm:$0xf]
  %v998 = vld [vmem:[%s3 + $0x1c] sm:$0xf]
  %v999 = vld [vmem:[%s3 + $0x20] sm:$0xf]
  %v1000 = vld [vmem:[%s3 + $0x24] sm:$0xf]
  %v1001 = vld [vmem:[%s3 + $0x28] sm:$0xf]
  %v1002 = vld [vmem:[%s3 + $0x2c] sm:$0xf]
  %v1003 = vld [vmem:[%s3 + $0x30] sm:$0xf]
  %v1004 = vld [vmem:[%s3 + $0x34] sm:$0xf]
  %v1005 = vld [vmem:[%s3 + $0x38] sm:$0xf]
  %v1006 = vld [vmem:[%s3 + $0x3c] sm:$0xf]
  %v1007 = vld [vmem:[%s3 + $0x40] sm:$0xf]
  %v1008 = vld [vmem:[%s3 + $0x44] sm:$0xf]
  %v1009 = vld [vmem:[%s3 + $0x48] sm:$0xf]
  %v1010 = vld [vmem:[%s3 + $0x4c] sm:$0xf]
  %v1011 = vld [vmem:[%s3 + $0x50] sm:$0xf]
  %v1012 = vld [vmem:[%s3 + $0x54] sm:$0xf]
  %v1013 = vld [vmem:[%s3 + $0x58] sm:$0xf]
  %v1014 = vld [vmem:[%s3 + $0x5c] sm:$0xf]
  %v1015 = vld [vmem:[%s3 + $0x60] sm:$0xf]
  %v1016 = vld [vmem:[%s3 + $0x64] sm:$0xf]
  %v1017 = vld [vmem:[%s3 + $0x68] sm:$0xf]
  %v1018 = vld [vmem:[%s3 + $0x6c] sm:$0xf]
  %v1019 = vld [vmem:[%s3 + $0x70] sm:$0xf]
  %v1020 = vld [vmem:[%s3 + $0x74] sm:$0xf]
  %v1021 = vld [vmem:[%s3 + $0x78] sm:$0xf]
  %v1022 = vld [vmem:[%s3 + $0x7c] sm:$0xf]
  %v1023 = vld [vmem:[%s3 + $0x80] sm:$0xf]
  %v1024 = vld [vmem:[%s3 + $0x84] sm:$0xf]
  %v1025 = vld [vmem:[%s3 + $0x88] sm:$0xf]
  %v1026 = vld [vmem:[%s3 + $0x8c] sm:$0xf]
  %vm1027 = vcmask 1043456
  %v1030 = vsel %vm1027, %v991, 4286644096
  %v1033 = vsel %vm1027, %v995, 4286644096
  %v1035 = vmax.bf16 %v1030, %v1033
  %v1037 = vsel %vm1027, %v999, 4286644096
  %v1039 = vmax.bf16 %v1035, %v1037
  %v1041 = vsel %vm1027, %v1003, 4286644096
  %v1043 = vmax.bf16 %v1039, %v1041
  %v1045 = vsel %vm1027, %v1007, 4286644096
  %v1047 = vmax.bf16 %v1043, %v1045
  %v1049 = vsel %vm1027, %v1011, 4286644096
  %v1051 = vmax.bf16 %v1047, %v1049
  %v1053 = vsel %vm1027, %v1015, 4286644096
  %v1055 = vmax.bf16 %v1051, %v1053
  %v1057 = vsel %vm1027, %v1019, 4286644096
  %v1059 = vmax.bf16 %v1055, %v1057
  %v1061 = vsel %vm1027, %v1023, 4286644096
  %v1063 = vmax.bf16 %v1059, %v1061
  %v1065 = vsel %vm1027, %v992, 4286644096
  %v1068 = vsel %vm1027, %v996, 4286644096
  %v1070 = vmax.bf16 %v1065, %v1068
  %v1072 = vsel %vm1027, %v1000, 4286644096
  %v1074 = vmax.bf16 %v1070, %v1072
  %v1076 = vsel %vm1027, %v1004, 4286644096
  %v1078 = vmax.bf16 %v1074, %v1076
  %v1080 = vsel %vm1027, %v1008, 4286644096
  %v1082 = vmax.bf16 %v1078, %v1080
  %v1084 = vsel %vm1027, %v1012, 4286644096
  %v1086 = vmax.bf16 %v1082, %v1084
  %v1088 = vsel %vm1027, %v1016, 4286644096
  %v1090 = vmax.bf16 %v1086, %v1088
  %v1092 = vsel %vm1027, %v1020, 4286644096
  %v1094 = vmax.bf16 %v1090, %v1092
  %v1096 = vsel %vm1027, %v1024, 4286644096
  %v1098 = vmax.bf16 %v1094, %v1096
  %v1100 = vsel %vm1027, %v993, 4286644096
  %v1103 = vsel %vm1027, %v997, 4286644096
  %v1105 = vmax.bf16 %v1100, %v1103
  %v1107 = vsel %vm1027, %v1001, 4286644096
  %v1109 = vmax.bf16 %v1105, %v1107
  %v1111 = vsel %vm1027, %v1005, 4286644096
  %v1113 = vmax.bf16 %v1109, %v1111
  %v1115 = vsel %vm1027, %v1009, 4286644096
  %v1117 = vmax.bf16 %v1113, %v1115
  %v1119 = vsel %vm1027, %v1013, 4286644096
  %v1121 = vmax.bf16 %v1117, %v1119
  %v1123 = vsel %vm1027, %v1017, 4286644096
  %v1125 = vmax.bf16 %v1121, %v1123
  %v1127 = vsel %vm1027, %v1021, 4286644096
  %v1129 = vmax.bf16 %v1125, %v1127
  %v1131 = vsel %vm1027, %v1025, 4286644096
  %v1133 = vmax.bf16 %v1129, %v1131
  %v1135 = vsel %vm1027, %v994, 4286644096
  %v1138 = vsel %vm1027, %v998, 4286644096
  %v1140 = vmax.bf16 %v1135, %v1138
  %v1142 = vsel %vm1027, %v1002, 4286644096
  %v1144 = vmax.bf16 %v1140, %v1142
  %v1146 = vsel %vm1027, %v1006, 4286644096
  %v1148 = vmax.bf16 %v1144, %v1146
  %v1150 = vsel %vm1027, %v1010, 4286644096
  %v1152 = vmax.bf16 %v1148, %v1150
  %v1154 = vsel %vm1027, %v1014, 4286644096
  %v1156 = vmax.bf16 %v1152, %v1154
  %v1158 = vsel %vm1027, %v1018, 4286644096
  %v1160 = vmax.bf16 %v1156, %v1158
  %v1162 = vsel %vm1027, %v1022, 4286644096
  %v1164 = vmax.bf16 %v1160, %v1162
  %v1166 = vsel %vm1027, %v1026, 4286644096
  %v1168 = vmax.bf16 %v1164, %v1166
  %v1169 = vld [vmem:[%s4] sm:$0xf]
  %v1170 = vld [vmem:[%s4 + $0x4] sm:$0xf]
  %v1171 = vld [vmem:[%s4 + $0x8] sm:$0xf]
  %v1172 = vld [vmem:[%s4 + $0xc] sm:$0xf]
  %v1173 = vld [vmem:[%s4 + $0x10] sm:$0xf]
  %v1174 = vld [vmem:[%s4 + $0x14] sm:$0xf]
  %v1175 = vld [vmem:[%s4 + $0x18] sm:$0xf]
  %v1176 = vld [vmem:[%s4 + $0x1c] sm:$0xf]
  %v1177 = vld [vmem:[%s4 + $0x20] sm:$0xf]
  %v1178 = vld [vmem:[%s4 + $0x24] sm:$0xf]
  %v1179 = vld [vmem:[%s4 + $0x28] sm:$0xf]
  %v1180 = vld [vmem:[%s4 + $0x2c] sm:$0xf]
  %v1181 = vld [vmem:[%s4 + $0x30] sm:$0xf]
  %v1182 = vld [vmem:[%s4 + $0x34] sm:$0xf]
  %v1183 = vld [vmem:[%s4 + $0x38] sm:$0xf]
  %v1184 = vld [vmem:[%s4 + $0x3c] sm:$0xf]
  %v1185 = vld [vmem:[%s5] sm:$0x1]
  %v1187 = vlaneseq
  %v1188 = vshrl.u32 %v1187, 7
  %v1189 = vsub.s32 0, %v1188
  %v1190 = vrot.slane %v1185, %v1189
  %v1196 = vunpack.c.l.b16 %v1063
  %v1197 = vunpack.c.l.b16 %v1098
  %v1198 = vunpack.c.l.b16 %v1133
  %v1199 = vunpack.c.l.b16 %v1168
  %v1200 = vpack.c.b16 %v1197, %v1196
  %v1201 = vpack.c.b16 %v1199, %v1198
  %v1220 = vunpack.c.l.b16 %v1169
  %v1221 = vunpack.c.l.b16 %v1170
  %v1222 = vunpack.c.l.b16 %v1171
  %v1223 = vunpack.c.l.b16 %v1172
  %v1224 = vunpack.c.l.b16 %v1173
  %v1225 = vunpack.c.l.b16 %v1174
  %v1226 = vunpack.c.l.b16 %v1175
  %v1227 = vunpack.c.l.b16 %v1176
  %v1228 = vunpack.c.l.b16 %v1177
  %v1229 = vunpack.c.l.b16 %v1178
  %v1230 = vunpack.c.l.b16 %v1179
  %v1231 = vunpack.c.l.b16 %v1180
  %v1232 = vunpack.c.l.b16 %v1181
  %v1233 = vunpack.c.l.b16 %v1182
  %v1234 = vunpack.c.l.b16 %v1183
  %v1235 = vunpack.c.l.b16 %v1184
  %v1236 = vpack.c.b16 %v1221, %v1220
  %v1237 = vpack.c.b16 %v1223, %v1222
  %v1238 = vpack.c.b16 %v1225, %v1224
  %v1239 = vpack.c.b16 %v1227, %v1226
  %v1240 = vpack.c.b16 %v1229, %v1228
  %v1241 = vpack.c.b16 %v1231, %v1230
  %v1242 = vpack.c.b16 %v1233, %v1232
  %v1243 = vpack.c.b16 %v1235, %v1234
  %1252 = vmatprep.subr.bf16.mxu0 0
  %1253 = vmatpush1.bf16.msra.mxu0 %v1243
  %1254 = vmatprep.subr.bf16.mxu0 0
  %1255 = vmatpush1.bf16.msra.mxu0 %v1242
  %1256 = vmatprep.subr.bf16.mxu0 0
  %1257 = vmatpush1.bf16.msra.mxu0 %v1241
  %1258 = vmatprep.subr.bf16.mxu0 0
  %1259 = vmatpush1.bf16.msra.mxu0 %v1240
  %1260 = vmatprep.subr.bf16.mxu0 0
  %1261 = vmatpush1.bf16.msra.mxu0 %v1239
  %1262 = vmatprep.subr.bf16.mxu0 0
  %1263 = vmatpush1.bf16.msra.mxu0 %v1238
  %1264 = vmatprep.subr.bf16.mxu0 0
  %1265 = vmatpush1.bf16.msra.mxu0 %v1237
  %1266 = vmatprep.subr.bf16.mxu0 0
  %1267 = vmatpush1.bf16.msra.mxu0 %v1236
  %1268 = vmatprep.subr.bf16.mxu0 0
  %1269 = vmatpush2.bf16.msra.mxu0 0
  %1270 = vmatprep.subr.bf16.mxu0 0
  %1271 = vmatpush2.bf16.msra.mxu0 0
  %1272 = vmatprep.subr.bf16.mxu0 0
  %1273 = vmatpush2.bf16.msra.mxu0 0
  %1274 = vmatprep.subr.bf16.mxu0 0
  %1275 = vmatpush2.bf16.msra.mxu0 0
  %1276 = vmatprep.subr.bf16.mxu0 0
  %1277 = vmatpush2.bf16.msra.mxu0 0
  %1278 = vmatprep.subr.bf16.mxu0 0
  %1279 = vmatpush2.bf16.msra.mxu0 0
  %1280 = vmatprep.subr.bf16.mxu0 0
  %1281 = vmatpush2.bf16.msra.mxu0 0
  %1282 = vmatprep.subr.bf16.mxu0 0
  %1283 = vmatpush2.bf16.msra.mxu0 0
  %1284 = vmatprep.mubr.bf16.mxu0 0
  %1285 = vmatmul.mubr.bf16.gmra.mxu0 %v1200
  %v1286 = vpop.f32.mrf.mxu0
  %v1287 = vadd.f32 %v1190, %v1286
  %v1288 = vpop.f32.mrf.mxu0
  %v1289 = vpop.f32.mrf.mxu0
  %v1290 = vadd.f32 %v1190, %v1289
  %v1291 = vpop.f32.mrf.mxu0
  %1292 = vmatprep.mubr.bf16.mxu0 0
  %1293 = vmatmul.mubr.bf16.gmra.mxu0 %v1201
  %v1294 = vpop.f32.mrf.mxu0
  %v1295 = vadd.f32 %v1190, %v1294
  %v1296 = vpop.f32.mrf.mxu0
  %v1297 = vpop.f32.mrf.mxu0
  %v1298 = vadd.f32 %v1190, %v1297
  %v1299 = vpop.f32.mrf.mxu0
  %1300 = vdwg.mxu0
  %v1301 = vmax.f32 %v1287, 0.0
  %v1302 = vmax.f32 %v1290, 0.0
  %v1303 = vmax.f32 %v1295, 0.0
  %v1304 = vmax.f32 %v1298, 0.0
  %v1305 = vpack.c.bf16 %v1302, %v1301
  %v1306 = vpack.c.bf16 %v1304, %v1303
  %v1309 = vunpack.c.l.b16 %v1305
  %v1310 = vunpack.c.h.b16 %v1305
  %v1311 = vunpack.c.l.b16 %v1306
  %v1312 = vunpack.c.h.b16 %v1306
  %v1313 = vpack.c.b16 %v1309, %v1309
  %v1314 = vpack.c.b16 %v1310, %v1310
  %v1315 = vpack.c.b16 %v1311, %v1311
  %v1316 = vpack.c.b16 %v1312, %v1312
  %1321 = vst [vmem:[%s7] sm:$0xf] %v1313
  %1322 = vst [vmem:[%s7 + $0x4] sm:$0xf] %v1314
  %1323 = vst [vmem:[%s7 + $0x8] sm:$0xf] %v1315
  %1324 = vst [vmem:[%s7 + $0xc] sm:$0xf] %v1316
  // Predicated region
  $region26: #{custom_googlenet_forward.13} parent=0 // pred_check
    _
  $region27: #{custom_googlenet_forward.13} parent=0 // pred_check_branch
    %1326 = sbr.rel (0) target = $region29
  $region28: #{custom_googlenet_forward.13} parent=0 // pred_region
    _
  $region29: #{custom_googlenet_forward.13} parent=0 // pred_fallthru
    _
  // Predicated region
  $region30: #{custom_googlenet_forward.13} parent=0 // pred_check
    _
  $region31: #{custom_googlenet_forward.13} parent=0 // pred_check_branch
    %1328 = sbr.rel (0) target = $region33
  $region32: #{custom_googlenet_forward.13} parent=0 // pred_region
    _
  $region33: #{custom_googlenet_forward.13} parent=0 // pred_fallthru
    _
  // Predicated region
  $region34: #{custom_googlenet_forward.13} parent=0 // pred_check
    _
  $region35: #{custom_googlenet_forward.13} parent=0 // pred_check_branch
    %1330 = sbr.rel (0) target = $region37
  $region36: #{custom_googlenet_forward.13} parent=0 // pred_region
    _
  $region37: #{custom_googlenet_forward.13} parent=0 // pred_fallthru
    _
  // Predicated region
  $region38: #{custom_googlenet_forward.13} parent=0 // pred_check
    _
  $region39: #{custom_googlenet_forward.13} parent=0 // pred_check_branch
    %1332 = sbr.rel (0) target = $region41
  $region40: #{custom_googlenet_forward.13} parent=0 // pred_region
    _
  $region41: #{custom_googlenet_forward.13} parent=0 // pred_fallthru
    _

// kernel: custom_googlenet_forward.14
$region0: #{custom_googlenet_forward.14}
  #allocation0 [shape = 'u32[]', space=smem, size = 0x4, offset = 0x4, fixed_abs, tag = 'smem constant byte address 0x4 - core index']
  #allocation1 [shape = 'u32[144,128]{1,0:T(1,128)}', space=vmem, size = 0x12000, scoped, tag = 'internal scratch']
  %s0 = inlined_call_operand.vmem [shape: bf16[9,8,384], index: 0, kind: input, shape index: {}]
  %s1 = inlined_call_operand.vmem [shape: bf16[384,128], index: 1, kind: input, shape index: {}]
  %s2 = inlined_call_operand.vmem [shape: f32[1,128], index: 2, kind: input, shape index: {}]
  %s3 = inlined_call_operand.vmem [shape: bf16[8,384], index: 3, kind: output, shape index: {0}]
  %s4 = inlined_call_operand.vmem [shape: bf16[8,128], index: 4, kind: output, shape index: {1}]
  %5 = xla_tuple %s3, %s4
  %s6 = sld [smem:[#allocation0]]
  $region30: #{custom_googlenet_forward.14} parent=0
    _
  %s8 = ssub.s32 1, %s6
  %s9 = scalar_select 0, %s8, %s6
  // Predicated region
  $region2: #{custom_googlenet_forward.14} parent=0 // pred_check
    _
  $region3: #{custom_googlenet_forward.14} parent=0 // pred_check_branch
    %11 = sbr.rel (0) target = $region5
  $region4: #{custom_googlenet_forward.14} parent=0 // pred_region
    _
  $region5: #{custom_googlenet_forward.14} parent=0 // pred_fallthru
    _
  // Predicated region
  $region6: #{custom_googlenet_forward.14} parent=0 // pred_check
    _
  $region7: #{custom_googlenet_forward.14} parent=0 // pred_check_branch
    %13 = sbr.rel (0) target = $region9
  $region8: #{custom_googlenet_forward.14} parent=0 // pred_region
    _
  $region9: #{custom_googlenet_forward.14} parent=0 // pred_fallthru
    _
  // Predicated region
  $region10: #{custom_googlenet_forward.14} parent=0 // pred_check
    _
  $region11: #{custom_googlenet_forward.14} parent=0 // pred_check_branch
    %15 = sbr.rel (0) target = $region13
  $region12: #{custom_googlenet_forward.14} parent=0 // pred_region
    _
  $region13: #{custom_googlenet_forward.14} parent=0 // pred_fallthru
    _
  %v18 = vld [vmem:[%s0] sm:$0xff]
  %v19 = vld [vmem:[%s0 + $0x8] sm:$0xf]
  %v20 = vld [vmem:[%s0 + $0xc] sm:$0xff]
  %v21 = vld [vmem:[%s0 + $0x14] sm:$0xf]
  %v22 = vld [vmem:[%s0 + $0x18] sm:$0xff]
  %v23 = vld [vmem:[%s0 + $0x20] sm:$0xf]
  %v24 = vld [vmem:[%s0 + $0x24] sm:$0xff]
  %v25 = vld [vmem:[%s0 + $0x2c] sm:$0xf]
  %v26 = vld [vmem:[%s0 + $0x30] sm:$0xff]
  %v27 = vld [vmem:[%s0 + $0x38] sm:$0xf]
  %v28 = vld [vmem:[%s0 + $0x3c] sm:$0xff]
  %v29 = vld [vmem:[%s0 + $0x44] sm:$0xf]
  %v30 = vld [vmem:[%s0 + $0x48] sm:$0xff]
  %v31 = vld [vmem:[%s0 + $0x50] sm:$0xf]
  %v32 = vld [vmem:[%s0 + $0x54] sm:$0xff]
  %v33 = vld [vmem:[%s0 + $0x5c] sm:$0xf]
  %v34 = vld [vmem:[%s0 + $0x60] sm:$0xff]
  %v35 = vld [vmem:[%s0 + $0x68] sm:$0xf]
  %v36 = vmax.bf16 %v18, %v22
  %v37 = vmax.bf16 %v20, %v24
  %v38 = vmax.bf16 %v36, %v26
  %v39 = vmax.bf16 %v37, %v28
  %v40 = vmax.bf16 %v38, %v30
  %v41 = vmax.bf16 %v39, %v32
  %v42 = vmax.bf16 %v40, %v34
  %v43 = vmax.bf16 %v42, %v41
  %vm44 = vcmask 1043456
  %v47 = vsel %vm44, %v19, 4286644096
  %v50 = vsel %vm44, %v21, 4286644096
  %v53 = vsel %vm44, %v23, 4286644096
  %v55 = vmax.bf16 %v47, %v53
  %v57 = vsel %vm44, %v25, 4286644096
  %v59 = vmax.bf16 %v50, %v57
  %v61 = vsel %vm44, %v27, 4286644096
  %v63 = vmax.bf16 %v55, %v61
  %v65 = vsel %vm44, %v29, 4286644096
  %v67 = vmax.bf16 %v59, %v65
  %v69 = vsel %vm44, %v31, 4286644096
  %v71 = vmax.bf16 %v63, %v69
  %v73 = vsel %vm44, %v33, 4286644096
  %v75 = vmax.bf16 %v67, %v73
  %v77 = vsel %vm44, %v35, 4286644096
  %v79 = vmax.bf16 %v71, %v77
  %v80 = vmax.bf16 %v79, %v75
  %81 = vst [vmem:[%s3] sm:$0xff] %v43
  %82 = vst [vmem:[%s3 + $0x8] sm:$0xf] %v80
  %v83 = vld [vmem:[%s1] sm:$0xf]
  %v84 = vld [vmem:[%s1 + $0x4] sm:$0xf]
  %v85 = vld [vmem:[%s1 + $0x8] sm:$0xf]
  %v86 = vld [vmem:[%s1 + $0xc] sm:$0xf]
  %v87 = vld [vmem:[%s1 + $0x10] sm:$0xf]
  %v88 = vld [vmem:[%s1 + $0x14] sm:$0xf]
  %v89 = vld [vmem:[%s1 + $0x18] sm:$0xf]
  %v90 = vld [vmem:[%s1 + $0x1c] sm:$0xf]
  %v91 = vld [vmem:[%s1 + $0x20] sm:$0xf]
  %v92 = vld [vmem:[%s1 + $0x24] sm:$0xf]
  %v93 = vld [vmem:[%s1 + $0x28] sm:$0xf]
  %v94 = vld [vmem:[%s1 + $0x2c] sm:$0xf]
  %v95 = vld [vmem:[%s1 + $0x30] sm:$0xf]
  %v96 = vld [vmem:[%s1 + $0x34] sm:$0xf]
  %v97 = vld [vmem:[%s1 + $0x38] sm:$0xf]
  %v98 = vld [vmem:[%s1 + $0x3c] sm:$0xf]
  %v99 = vld [vmem:[%s1 + $0x40] sm:$0xf]
  %v100 = vld [vmem:[%s1 + $0x44] sm:$0xf]
  %v101 = vld [vmem:[%s1 + $0x48] sm:$0xf]
  %v102 = vld [vmem:[%s1 + $0x4c] sm:$0xf]
  %v103 = vld [vmem:[%s1 + $0x50] sm:$0xf]
  %v104 = vld [vmem:[%s1 + $0x54] sm:$0xf]
  %v105 = vld [vmem:[%s1 + $0x58] sm:$0xf]
  %v106 = vld [vmem:[%s1 + $0x5c] sm:$0xf]
  %v107 = vld [vmem:[%s1 + $0x60] sm:$0xf]
  %v108 = vld [vmem:[%s1 + $0x64] sm:$0xf]
  %v109 = vld [vmem:[%s1 + $0x68] sm:$0xf]
  %v110 = vld [vmem:[%s1 + $0x6c] sm:$0xf]
  %v111 = vld [vmem:[%s1 + $0x70] sm:$0xf]
  %v112 = vld [vmem:[%s1 + $0x74] sm:$0xf]
  %v113 = vld [vmem:[%s1 + $0x78] sm:$0xf]
  %v114 = vld [vmem:[%s1 + $0x7c] sm:$0xf]
  %v115 = vld [vmem:[%s1 + $0x80] sm:$0xf]
  %v116 = vld [vmem:[%s1 + $0x84] sm:$0xf]
  %v117 = vld [vmem:[%s1 + $0x88] sm:$0xf]
  %v118 = vld [vmem:[%s1 + $0x8c] sm:$0xf]
  %v119 = vld [vmem:[%s1 + $0x90] sm:$0xf]
  %v120 = vld [vmem:[%s1 + $0x94] sm:$0xf]
  %v121 = vld [vmem:[%s1 + $0x98] sm:$0xf]
  %v122 = vld [vmem:[%s1 + $0x9c] sm:$0xf]
  %v123 = vld [vmem:[%s1 + $0xa0] sm:$0xf]
  %v124 = vld [vmem:[%s1 + $0xa4] sm:$0xf]
  %v125 = vld [vmem:[%s1 + $0xa8] sm:$0xf]
  %v126 = vld [vmem:[%s1 + $0xac] sm:$0xf]
  %v127 = vld [vmem:[%s1 + $0xb0] sm:$0xf]
  %v128 = vld [vmem:[%s1 + $0xb4] sm:$0xf]
  %v129 = vld [vmem:[%s1 + $0xb8] sm:$0xf]
  %v130 = vld [vmem:[%s1 + $0xbc] sm:$0xf]
  %v131 = vld [vmem:[%s2] sm:$0x1]
  %v133 = vlaneseq
  %v134 = vshrl.u32 %v133, 7
  %v135 = vsub.s32 0, %v134
  %v136 = vrot.slane %v131, %v135
  %v140 = vunpack.c.l.b16 %v43
  %v141 = vunpack.c.h.b16 %v43
  %v142 = vunpack.c.l.b16 %v80
  %v143 = vpack.c.b16 %v140, %v140
  %v144 = vpack.c.b16 %v141, %v141
  %v145 = vpack.c.b16 %v142, %v142
  %v197 = vunpack.c.l.b16 %v83
  %v198 = vunpack.c.l.b16 %v84
  %v199 = vunpack.c.l.b16 %v85
  %v200 = vunpack.c.l.b16 %v86
  %v201 = vunpack.c.l.b16 %v87
  %v202 = vunpack.c.l.b16 %v88
  %v203 = vunpack.c.l.b16 %v89
  %v204 = vunpack.c.l.b16 %v90
  %v205 = vunpack.c.l.b16 %v91
  %v206 = vunpack.c.l.b16 %v92
  %v207 = vunpack.c.l.b16 %v93
  %v208 = vunpack.c.l.b16 %v94
  %v209 = vunpack.c.l.b16 %v95
  %v210 = vunpack.c.l.b16 %v96
  %v211 = vunpack.c.l.b16 %v97
  %v212 = vunpack.c.l.b16 %v98
  %v213 = vunpack.c.l.b16 %v99
  %v214 = vunpack.c.l.b16 %v100
  %v215 = vunpack.c.l.b16 %v101
  %v216 = vunpack.c.l.b16 %v102
  %v217 = vunpack.c.l.b16 %v103
  %v218 = vunpack.c.l.b16 %v104
  %v219 = vunpack.c.l.b16 %v105
  %v220 = vunpack.c.l.b16 %v106
  %v221 = vunpack.c.l.b16 %v107
  %v222 = vunpack.c.l.b16 %v108
  %v223 = vunpack.c.l.b16 %v109
  %v224 = vunpack.c.l.b16 %v110
  %v225 = vunpack.c.l.b16 %v111
  %v226 = vunpack.c.l.b16 %v112
  %v227 = vunpack.c.l.b16 %v113
  %v228 = vunpack.c.l.b16 %v114
  %v229 = vunpack.c.l.b16 %v115
  %v230 = vunpack.c.l.b16 %v116
  %v231 = vunpack.c.l.b16 %v117
  %v232 = vunpack.c.l.b16 %v118
  %v233 = vunpack.c.l.b16 %v119
  %v234 = vunpack.c.l.b16 %v120
  %v235 = vunpack.c.l.b16 %v121
  %v236 = vunpack.c.l.b16 %v122
  %v237 = vunpack.c.l.b16 %v123
  %v238 = vunpack.c.l.b16 %v124
  %v239 = vunpack.c.l.b16 %v125
  %v240 = vunpack.c.l.b16 %v126
  %v241 = vunpack.c.l.b16 %v127
  %v242 = vunpack.c.l.b16 %v128
  %v243 = vunpack.c.l.b16 %v129
  %v244 = vunpack.c.l.b16 %v130
  %v245 = vpack.c.b16 %v198, %v197
  %v246 = vpack.c.b16 %v200, %v199
  %v247 = vpack.c.b16 %v202, %v201
  %v248 = vpack.c.b16 %v204, %v203
  %v249 = vpack.c.b16 %v206, %v205
  %v250 = vpack.c.b16 %v208, %v207
  %v251 = vpack.c.b16 %v210, %v209
  %v252 = vpack.c.b16 %v212, %v211
  %v253 = vpack.c.b16 %v214, %v213
  %v254 = vpack.c.b16 %v216, %v215
  %v255 = vpack.c.b16 %v218, %v217
  %v256 = vpack.c.b16 %v220, %v219
  %v257 = vpack.c.b16 %v222, %v221
  %v258 = vpack.c.b16 %v224, %v223
  %v259 = vpack.c.b16 %v226, %v225
  %v260 = vpack.c.b16 %v228, %v227
  %v261 = vpack.c.b16 %v230, %v229
  %v262 = vpack.c.b16 %v232, %v231
  %v263 = vpack.c.b16 %v234, %v233
  %v264 = vpack.c.b16 %v236, %v235
  %v265 = vpack.c.b16 %v238, %v237
  %v266 = vpack.c.b16 %v240, %v239
  %v267 = vpack.c.b16 %v242, %v241
  %v268 = vpack.c.b16 %v244, %v243
  %293 = vmatprep.subr.bf16.mxu0 0
  %294 = vmatpush1.bf16.msra.mxu0 %v252
  %295 = vmatprep.subr.bf16.mxu0 0
  %296 = vmatpush1.bf16.msra.mxu0 %v251
  %297 = vmatprep.subr.bf16.mxu0 0
  %298 = vmatpush1.bf16.msra.mxu0 %v250
  %299 = vmatprep.subr.bf16.mxu0 0
  %300 = vmatpush1.bf16.msra.mxu0 %v249
  %301 = vmatprep.subr.bf16.mxu0 0
  %302 = vmatpush1.bf16.msra.mxu0 %v248
  %303 = vmatprep.subr.bf16.mxu0 0
  %304 = vmatpush1.bf16.msra.mxu0 %v247
  %305 = vmatprep.subr.bf16.mxu0 0
  %306 = vmatpush1.bf16.msra.mxu0 %v246
  %307 = vmatprep.subr.bf16.mxu0 0
  %308 = vmatpush1.bf16.msra.mxu0 %v245
  %309 = vmatprep.subr.bf16.mxu0 0
  %310 = vmatpush2.bf16.msra.mxu0 %v260
  %311 = vmatprep.subr.bf16.mxu0 0
  %312 = vmatpush2.bf16.msra.mxu0 %v259
  %313 = vmatprep.subr.bf16.mxu0 0
  %314 = vmatpush2.bf16.msra.mxu0 %v258
  %315 = vmatprep.subr.bf16.mxu0 0
  %316 = vmatpush2.bf16.msra.mxu0 %v257
  %317 = vmatprep.subr.bf16.mxu0 0
  %318 = vmatpush2.bf16.msra.mxu0 %v256
  %319 = vmatprep.subr.bf16.mxu0 0
  %320 = vmatpush2.bf16.msra.mxu0 %v255
  %321 = vmatprep.subr.bf16.mxu0 0
  %322 = vmatpush2.bf16.msra.mxu0 %v254
  %323 = vmatprep.subr.bf16.mxu0 0
  %324 = vmatpush2.bf16.msra.mxu0 %v253
  %325 = vmatprep.mubr.bf16.mxu0 %v144
  %326 = vmatmul.mubr.bf16.gmra.mxu0 %v143
  %v327 = vpop.f32.mrf.mxu0
  %v328 = vadd.f32 %v136, %v327
  %v329 = vpop.f32.mrf.mxu0
  %v330 = vpop.f32.mrf.mxu0
  %v331 = vpop.f32.mrf.mxu0
  %332 = vdwg.mxu0
  %333 = vmatprep.subr.bf16.mxu0 0
  %334 = vmatpush1.bf16.msra.mxu0 %v268
  %335 = vmatprep.subr.bf16.mxu0 0
  %336 = vmatpush1.bf16.msra.mxu0 %v267
  %337 = vmatprep.subr.bf16.mxu0 0
  %338 = vmatpush1.bf16.msra.mxu0 %v266
  %339 = vmatprep.subr.bf16.mxu0 0
  %340 = vmatpush1.bf16.msra.mxu0 %v265
  %341 = vmatprep.subr.bf16.mxu0 0
  %342 = vmatpush1.bf16.msra.mxu0 %v264
  %343 = vmatprep.subr.bf16.mxu0 0
  %344 = vmatpush1.bf16.msra.mxu0 %v263
  %345 = vmatprep.subr.bf16.mxu0 0
  %346 = vmatpush1.bf16.msra.mxu0 %v262
  %347 = vmatprep.subr.bf16.mxu0 0
  %348 = vmatpush1.bf16.msra.mxu0 %v261
  %349 = vmatprep.subr.bf16.mxu0 0
  %350 = vmatpush2.bf16.msra.mxu0 0
  %351 = vmatprep.subr.bf16.mxu0 0
  %352 = vmatpush2.bf16.msra.mxu0 0
  %353 = vmatprep.subr.bf16.mxu0 0
  %354 = vmatpush2.bf16.msra.mxu0 0
  %355 = vmatprep.subr.bf16.mxu0 0
  %356 = vmatpush2.bf16.msra.mxu0 0
  %357 = vmatprep.subr.bf16.mxu0 0
  %358 = vmatpush2.bf16.msra.mxu0 0
  %359 = vmatprep.subr.bf16.mxu0 0
  %360 = vmatpush2.bf16.msra.mxu0 0
  %361 = vmatprep.subr.bf16.mxu0 0
  %362 = vmatpush2.bf16.msra.mxu0 0
  %363 = vmatprep.subr.bf16.mxu0 0
  %364 = vmatpush2.bf16.msra.mxu0 0
  %365 = vmatprep.mubr.bf16.mxu0 0
  %366 = vmatmul.mubr.bf16.gmra.mxu0 %v145
  %v367 = vpop.f32.mrf.mxu0
  %v368 = vadd.f32 %v328, %v367
  %v369 = vpop.f32.mrf.mxu0
  %v370 = vpop.f32.mrf.mxu0
  %v371 = vpop.f32.mrf.mxu0
  %372 = vdwg.mxu0
  %v373 = vmax.f32 %v368, 0.0
  %v374 = vpack.c.bf16 %v373, %v373
  %375 = vst [vmem:[%s4] sm:$0xf] %v374
  // Predicated region
  $region14: #{custom_googlenet_forward.14} parent=0 // pred_check
    _
  $region15: #{custom_googlenet_forward.14} parent=0 // pred_check_branch
    %377 = sbr.rel (0) target = $region17
  $region16: #{custom_googlenet_forward.14} parent=0 // pred_region
    _
  $region17: #{custom_googlenet_forward.14} parent=0 // pred_fallthru
    _
  // Predicated region
  $region18: #{custom_googlenet_forward.14} parent=0 // pred_check
    _
  $region19: #{custom_googlenet_forward.14} parent=0 // pred_check_branch
    %379 = sbr.rel (0) target = $region21
  $region20: #{custom_googlenet_forward.14} parent=0 // pred_region
    _
  $region21: #{custom_googlenet_forward.14} parent=0 // pred_fallthru
    _
  // Predicated region
  $region22: #{custom_googlenet_forward.14} parent=0 // pred_check
    _
  $region23: #{custom_googlenet_forward.14} parent=0 // pred_check_branch
    %381 = sbr.rel (0) target = $region25
  $region24: #{custom_googlenet_forward.14} parent=0 // pred_region
    _
  $region25: #{custom_googlenet_forward.14} parent=0 // pred_fallthru
    _
  // Predicated region
  $region26: #{custom_googlenet_forward.14} parent=0 // pred_check
    _
  $region27: #{custom_googlenet_forward.14} parent=0 // pred_check_branch
    %383 = sbr.rel (0) target = $region29
  $region28: #{custom_googlenet_forward.14} parent=0 // pred_region
    _
  $region29: #{custom_googlenet_forward.14} parent=0 // pred_fallthru
    _

// kernel: custom_googlenet_forward.15
$region0: #{custom_googlenet_forward.15}
  #allocation0 [shape = 'u32[]', space=smem, size = 0x4, offset = 0x4, fixed_abs, tag = 'smem constant byte address 0x4 - core index']
  #allocation1 [shape = 'u32[144,128]{1,0:T(1,128)}', space=vmem, size = 0x12000, scoped, tag = 'internal scratch']
  %s0 = inlined_call_operand.vmem [shape: bf16[8,1152], index: 0, kind: input, shape index: {}]
  %s1 = inlined_call_operand.vmem [shape: bf16[1152,128], index: 1, kind: input, shape index: {}]
  %s2 = inlined_call_operand.vmem [shape: f32[1,128], index: 2, kind: input, shape index: {}]
  %s3 = inlined_call_operand.vmem [shape: bf16[9,8,384], index: 3, kind: input, shape index: {}]
  %s4 = inlined_call_operand.vmem [shape: bf16[384,128], index: 4, kind: input, shape index: {}]
  %s5 = inlined_call_operand.vmem [shape: f32[1,128], index: 5, kind: input, shape index: {}]
  %s6 = inlined_call_operand.vmem [shape: bf16[8,128], index: 6, kind: input, shape index: {}]
  %s7 = inlined_call_operand.vmem [shape: f32[2,8], index: 7, kind: input, shape index: {}]
  %s8 = inlined_call_operand.vmem [shape: bf16[128,128], index: 8, kind: input, shape index: {}]
  %s9 = inlined_call_operand.vmem [shape: bf16[128,128], index: 9, kind: input, shape index: {}]
  %s10 = inlined_call_operand.vmem [shape: bf16[128,128], index: 10, kind: input, shape index: {}]
  %s11 = inlined_call_operand.vmem [shape: f32[1,128], index: 11, kind: input, shape index: {}]
  %s12 = inlined_call_operand.hbm [shape: f32[2,128], index: 12, kind: output, shape index: {}]
  %s13 = sld [smem:[#allocation0]]
  $region58: #{custom_googlenet_forward.15} parent=0
    _
  %s15 = ssub.s32 1, %s13
  %s16 = scalar_select 0, %s15, %s13
  $region1: #{custom_googlenet_forward.15} parent=0
    #allocation2 [shape = 'u8[1024]{0}', space=vmem, size = 0x400, scoped, tag = 'output window, operand 0, single buffered']
    #allocation3 [shape = 's32[1]{0}', space=sflag, size = 0x4, scoped, tag = 'scoped memory for custom_googlenet_forward.15']
    %17 = vsyncpa [#allocation3], 0
    // Predicated region
    $region2: #{custom_googlenet_forward.15} parent=1 // pred_check
      _
    $region3: #{custom_googlenet_forward.15} parent=1 // pred_check_branch
      %19 = sbr.rel (0) target = $region5
    $region4: #{custom_googlenet_forward.15} parent=1 // pred_region
      _
    $region5: #{custom_googlenet_forward.15} parent=1 // pred_fallthru
      _
    // Predicated region
    $region6: #{custom_googlenet_forward.15} parent=1 // pred_check
      _
    $region7: #{custom_googlenet_forward.15} parent=1 // pred_check_branch
      %21 = sbr.rel (0) target = $region9
    $region8: #{custom_googlenet_forward.15} parent=1 // pred_region
      _
    $region9: #{custom_googlenet_forward.15} parent=1 // pred_fallthru
      _
    // Predicated region
    $region10: #{custom_googlenet_forward.15} parent=1 // pred_check
      _
    $region11: #{custom_googlenet_forward.15} parent=1 // pred_check_branch
      %23 = sbr.rel (0) target = $region13
    $region12: #{custom_googlenet_forward.15} parent=1 // pred_region
      _
    $region13: #{custom_googlenet_forward.15} parent=1 // pred_fallthru
      _
    // Predicated region
    $region14: #{custom_googlenet_forward.15} parent=1 // pred_check
      _
    $region15: #{custom_googlenet_forward.15} parent=1 // pred_check_branch
      %25 = sbr.rel (0) target = $region17
    $region16: #{custom_googlenet_forward.15} parent=1 // pred_region
      _
    $region17: #{custom_googlenet_forward.15} parent=1 // pred_fallthru
      _
    // Predicated region
    $region18: #{custom_googlenet_forward.15} parent=1 // pred_check
      _
    $region19: #{custom_googlenet_forward.15} parent=1 // pred_check_branch
      %27 = sbr.rel (0) target = $region21
    $region20: #{custom_googlenet_forward.15} parent=1 // pred_region
      _
    $region21: #{custom_googlenet_forward.15} parent=1 // pred_fallthru
      _
    // Predicated region
    $region22: #{custom_googlenet_forward.15} parent=1 // pred_check
      _
    $region23: #{custom_googlenet_forward.15} parent=1 // pred_check_branch
      %29 = sbr.rel (0) target = $region25
    $region24: #{custom_googlenet_forward.15} parent=1 // pred_region
      _
    $region25: #{custom_googlenet_forward.15} parent=1 // pred_fallthru
      _
    // Predicated region
    $region26: #{custom_googlenet_forward.15} parent=1 // pred_check
      _
    $region27: #{custom_googlenet_forward.15} parent=1 // pred_check_branch
      %31 = sbr.rel (0) target = $region29
    $region28: #{custom_googlenet_forward.15} parent=1 // pred_region
      _
    $region29: #{custom_googlenet_forward.15} parent=1 // pred_fallthru
      _
    // Predicated region
    $region30: #{custom_googlenet_forward.15} parent=1 // pred_check
      _
    $region31: #{custom_googlenet_forward.15} parent=1 // pred_check_branch
      %33 = sbr.rel (0) target = $region33
    $region32: #{custom_googlenet_forward.15} parent=1 // pred_region
      _
    $region33: #{custom_googlenet_forward.15} parent=1 // pred_fallthru
      _
    // Predicated region
    $region34: #{custom_googlenet_forward.15} parent=1 // pred_check
      _
    $region35: #{custom_googlenet_forward.15} parent=1 // pred_check_branch
      %35 = sbr.rel (0) target = $region37
    $region36: #{custom_googlenet_forward.15} parent=1 // pred_region
      _
    $region37: #{custom_googlenet_forward.15} parent=1 // pred_fallthru
      _
    // Predicated region
    $region38: #{custom_googlenet_forward.15} parent=1 // pred_check
      _
    $region39: #{custom_googlenet_forward.15} parent=1 // pred_check_branch
      %37 = sbr.rel (0) target = $region41
    $region40: #{custom_googlenet_forward.15} parent=1 // pred_region
      _
    $region41: #{custom_googlenet_forward.15} parent=1 // pred_fallthru
      _
    // Predicated region
    $region42: #{custom_googlenet_forward.15} parent=1 // pred_check
      _
    $region43: #{custom_googlenet_forward.15} parent=1 // pred_check_branch
      %39 = sbr.rel (0) target = $region45
    $region44: #{custom_googlenet_forward.15} parent=1 // pred_region
      _
    $region45: #{custom_googlenet_forward.15} parent=1 // pred_fallthru
      _
    // Predicated region
    $region46: #{custom_googlenet_forward.15} parent=1 // pred_check
      _
    $region47: #{custom_googlenet_forward.15} parent=1 // pred_check_branch
      %41 = sbr.rel (0) target = $region49
    $region48: #{custom_googlenet_forward.15} parent=1 // pred_region
      _
    $region49: #{custom_googlenet_forward.15} parent=1 // pred_fallthru
      _
    %v44 = vld [vmem:[%s0] sm:$0xff]
    %v45 = vld [vmem:[%s0 + $0x8] sm:$0xff]
    %v46 = vld [vmem:[%s0 + $0x10] sm:$0xff]
    %v47 = vld [vmem:[%s0 + $0x18] sm:$0xff]
    %v48 = vld [vmem:[%s0 + $0x20] sm:$0xf]
    %v49 = vld [vmem:[%s1] sm:$0xf]
    %v50 = vld [vmem:[%s1 + $0x4] sm:$0xf]
    %v51 = vld [vmem:[%s1 + $0x8] sm:$0xf]
    %v52 = vld [vmem:[%s1 + $0xc] sm:$0xf]
    %v53 = vld [vmem:[%s1 + $0x10] sm:$0xf]
    %v54 = vld [vmem:[%s1 + $0x14] sm:$0xf]
    %v55 = vld [vmem:[%s1 + $0x18] sm:$0xf]
    %v56 = vld [vmem:[%s1 + $0x1c] sm:$0xf]
    %v57 = vld [vmem:[%s1 + $0x20] sm:$0xf]
    %v58 = vld [vmem:[%s1 + $0x24] sm:$0xf]
    %v59 = vld [vmem:[%s1 + $0x28] sm:$0xf]
    %v60 = vld [vmem:[%s1 + $0x2c] sm:$0xf]
    %v61 = vld [vmem:[%s1 + $0x30] sm:$0xf]
    %v62 = vld [vmem:[%s1 + $0x34] sm:$0xf]
    %v63 = vld [vmem:[%s1 + $0x38] sm:$0xf]
    %v64 = vld [vmem:[%s1 + $0x3c] sm:$0xf]
    %v65 = vld [vmem:[%s1 + $0x40] sm:$0xf]
    %v66 = vld [vmem:[%s1 + $0x44] sm:$0xf]
    %v67 = vld [vmem:[%s1 + $0x48] sm:$0xf]
    %v68 = vld [vmem:[%s1 + $0x4c] sm:$0xf]
    %v69 = vld [vmem:[%s1 + $0x50] sm:$0xf]
    %v70 = vld [vmem:[%s1 + $0x54] sm:$0xf]
    %v71 = vld [vmem:[%s1 + $0x58] sm:$0xf]
    %v72 = vld [vmem:[%s1 + $0x5c] sm:$0xf]
    %v73 = vld [vmem:[%s1 + $0x60] sm:$0xf]
    %v74 = vld [vmem:[%s1 + $0x64] sm:$0xf]
    %v75 = vld [vmem:[%s1 + $0x68] sm:$0xf]
    %v76 = vld [vmem:[%s1 + $0x6c] sm:$0xf]
    %v77 = vld [vmem:[%s1 + $0x70] sm:$0xf]
    %v78 = vld [vmem:[%s1 + $0x74] sm:$0xf]
    %v79 = vld [vmem:[%s1 + $0x78] sm:$0xf]
    %v80 = vld [vmem:[%s1 + $0x7c] sm:$0xf]
    %v81 = vld [vmem:[%s1 + $0x80] sm:$0xf]
    %v82 = vld [vmem:[%s1 + $0x84] sm:$0xf]
    %v83 = vld [vmem:[%s1 + $0x88] sm:$0xf]
    %v84 = vld [vmem:[%s1 + $0x8c] sm:$0xf]
    %v85 = vld [vmem:[%s1 + $0x90] sm:$0xf]
    %v86 = vld [vmem:[%s1 + $0x94] sm:$0xf]
    %v87 = vld [vmem:[%s1 + $0x98] sm:$0xf]
    %v88 = vld [vmem:[%s1 + $0x9c] sm:$0xf]
    %v89 = vld [vmem:[%s1 + $0xa0] sm:$0xf]
    %v90 = vld [vmem:[%s1 + $0xa4] sm:$0xf]
    %v91 = vld [vmem:[%s1 + $0xa8] sm:$0xf]
    %v92 = vld [vmem:[%s1 + $0xac] sm:$0xf]
    %v93 = vld [vmem:[%s1 + $0xb0] sm:$0xf]
    %v94 = vld [vmem:[%s1 + $0xb4] sm:$0xf]
    %v95 = vld [vmem:[%s1 + $0xb8] sm:$0xf]
    %v96 = vld [vmem:[%s1 + $0xbc] sm:$0xf]
    %v97 = vld [vmem:[%s1 + $0xc0] sm:$0xf]
    %v98 = vld [vmem:[%s1 + $0xc4] sm:$0xf]
    %v99 = vld [vmem:[%s1 + $0xc8] sm:$0xf]
    %v100 = vld [vmem:[%s1 + $0xcc] sm:$0xf]
    %v101 = vld [vmem:[%s1 + $0xd0] sm:$0xf]
    %v102 = vld [vmem:[%s1 + $0xd4] sm:$0xf]
    %v103 = vld [vmem:[%s1 + $0xd8] sm:$0xf]
    %v104 = vld [vmem:[%s1 + $0xdc] sm:$0xf]
    %v105 = vld [vmem:[%s1 + $0xe0] sm:$0xf]
    %v106 = vld [vmem:[%s1 + $0xe4] sm:$0xf]
    %v107 = vld [vmem:[%s1 + $0xe8] sm:$0xf]
    %v108 = vld [vmem:[%s1 + $0xec] sm:$0xf]
    %v109 = vld [vmem:[%s1 + $0xf0] sm:$0xf]
    %v110 = vld [vmem:[%s1 + $0xf4] sm:$0xf]
    %v111 = vld [vmem:[%s1 + $0xf8] sm:$0xf]
    %v112 = vld [vmem:[%s1 + $0xfc] sm:$0xf]
    %v113 = vld [vmem:[%s1 + $0x100] sm:$0xf]
    %v114 = vld [vmem:[%s1 + $0x104] sm:$0xf]
    %v115 = vld [vmem:[%s1 + $0x108] sm:$0xf]
    %v116 = vld [vmem:[%s1 + $0x10c] sm:$0xf]
    %v117 = vld [vmem:[%s1 + $0x110] sm:$0xf]
    %v118 = vld [vmem:[%s1 + $0x114] sm:$0xf]
    %v119 = vld [vmem:[%s1 + $0x118] sm:$0xf]
    %v120 = vld [vmem:[%s1 + $0x11c] sm:$0xf]
    %v121 = vld [vmem:[%s1 + $0x120] sm:$0xf]
    %v122 = vld [vmem:[%s1 + $0x124] sm:$0xf]
    %v123 = vld [vmem:[%s1 + $0x128] sm:$0xf]
    %v124 = vld [vmem:[%s1 + $0x12c] sm:$0xf]
    %v125 = vld [vmem:[%s1 + $0x130] sm:$0xf]
    %v126 = vld [vmem:[%s1 + $0x134] sm:$0xf]
    %v127 = vld [vmem:[%s1 + $0x138] sm:$0xf]
    %v128 = vld [vmem:[%s1 + $0x13c] sm:$0xf]
    %v129 = vld [vmem:[%s1 + $0x140] sm:$0xf]
    %v130 = vld [vmem:[%s1 + $0x144] sm:$0xf]
    %v131 = vld [vmem:[%s1 + $0x148] sm:$0xf]
    %v132 = vld [vmem:[%s1 + $0x14c] sm:$0xf]
    %v133 = vld [vmem:[%s1 + $0x150] sm:$0xf]
    %v134 = vld [vmem:[%s1 + $0x154] sm:$0xf]
    %v135 = vld [vmem:[%s1 + $0x158] sm:$0xf]
    %v136 = vld [vmem:[%s1 + $0x15c] sm:$0xf]
    %v137 = vld [vmem:[%s1 + $0x160] sm:$0xf]
    %v138 = vld [vmem:[%s1 + $0x164] sm:$0xf]
    %v139 = vld [vmem:[%s1 + $0x168] sm:$0xf]
    %v140 = vld [vmem:[%s1 + $0x16c] sm:$0xf]
    %v141 = vld [vmem:[%s1 + $0x170] sm:$0xf]
    %v142 = vld [vmem:[%s1 + $0x174] sm:$0xf]
    %v143 = vld [vmem:[%s1 + $0x178] sm:$0xf]
    %v144 = vld [vmem:[%s1 + $0x17c] sm:$0xf]
    %v145 = vld [vmem:[%s1 + $0x180] sm:$0xf]
    %v146 = vld [vmem:[%s1 + $0x184] sm:$0xf]
    %v147 = vld [vmem:[%s1 + $0x188] sm:$0xf]
    %v148 = vld [vmem:[%s1 + $0x18c] sm:$0xf]
    %v149 = vld [vmem:[%s1 + $0x190] sm:$0xf]
    %v150 = vld [vmem:[%s1 + $0x194] sm:$0xf]
    %v151 = vld [vmem:[%s1 + $0x198] sm:$0xf]
    %v152 = vld [vmem:[%s1 + $0x19c] sm:$0xf]
    %v153 = vld [vmem:[%s1 + $0x1a0] sm:$0xf]
    %v154 = vld [vmem:[%s1 + $0x1a4] sm:$0xf]
    %v155 = vld [vmem:[%s1 + $0x1a8] sm:$0xf]
    %v156 = vld [vmem:[%s1 + $0x1ac] sm:$0xf]
    %v157 = vld [vmem:[%s1 + $0x1b0] sm:$0xf]
    %v158 = vld [vmem:[%s1 + $0x1b4] sm:$0xf]
    %v159 = vld [vmem:[%s1 + $0x1b8] sm:$0xf]
    %v160 = vld [vmem:[%s1 + $0x1bc] sm:$0xf]
    %v161 = vld [vmem:[%s1 + $0x1c0] sm:$0xf]
    %v162 = vld [vmem:[%s1 + $0x1c4] sm:$0xf]
    %v163 = vld [vmem:[%s1 + $0x1c8] sm:$0xf]
    %v164 = vld [vmem:[%s1 + $0x1cc] sm:$0xf]
    %v165 = vld [vmem:[%s1 + $0x1d0] sm:$0xf]
    %v166 = vld [vmem:[%s1 + $0x1d4] sm:$0xf]
    %v167 = vld [vmem:[%s1 + $0x1d8] sm:$0xf]
    %v168 = vld [vmem:[%s1 + $0x1dc] sm:$0xf]
    %v169 = vld [vmem:[%s1 + $0x1e0] sm:$0xf]
    %v170 = vld [vmem:[%s1 + $0x1e4] sm:$0xf]
    %v171 = vld [vmem:[%s1 + $0x1e8] sm:$0xf]
    %v172 = vld [vmem:[%s1 + $0x1ec] sm:$0xf]
    %v173 = vld [vmem:[%s1 + $0x1f0] sm:$0xf]
    %v174 = vld [vmem:[%s1 + $0x1f4] sm:$0xf]
    %v175 = vld [vmem:[%s1 + $0x1f8] sm:$0xf]
    %v176 = vld [vmem:[%s1 + $0x1fc] sm:$0xf]
    %v177 = vld [vmem:[%s1 + $0x200] sm:$0xf]
    %v178 = vld [vmem:[%s1 + $0x204] sm:$0xf]
    %v179 = vld [vmem:[%s1 + $0x208] sm:$0xf]
    %v180 = vld [vmem:[%s1 + $0x20c] sm:$0xf]
    %v181 = vld [vmem:[%s1 + $0x210] sm:$0xf]
    %v182 = vld [vmem:[%s1 + $0x214] sm:$0xf]
    %v183 = vld [vmem:[%s1 + $0x218] sm:$0xf]
    %v184 = vld [vmem:[%s1 + $0x21c] sm:$0xf]
    %v185 = vld [vmem:[%s1 + $0x220] sm:$0xf]
    %v186 = vld [vmem:[%s1 + $0x224] sm:$0xf]
    %v187 = vld [vmem:[%s1 + $0x228] sm:$0xf]
    %v188 = vld [vmem:[%s1 + $0x22c] sm:$0xf]
    %v189 = vld [vmem:[%s1 + $0x230] sm:$0xf]
    %v190 = vld [vmem:[%s1 + $0x234] sm:$0xf]
    %v191 = vld [vmem:[%s1 + $0x238] sm:$0xf]
    %v192 = vld [vmem:[%s1 + $0x23c] sm:$0xf]
    %v193 = vld [vmem:[%s2] sm:$0x1]
    %v195 = vlaneseq
    %v196 = vshrl.u32 %v195, 7
    %v197 = vsub.s32 0, %v196
    %v198 = vrot.slane %v193, %v197
    %v205 = vunpack.c.l.b16 %v44
    %v206 = vunpack.c.h.b16 %v44
    %v207 = vunpack.c.l.b16 %v45
    %v208 = vunpack.c.h.b16 %v45
    %v209 = vunpack.c.l.b16 %v46
    %v210 = vunpack.c.h.b16 %v46
    %v211 = vunpack.c.l.b16 %v47
    %v212 = vunpack.c.h.b16 %v47
    %v213 = vunpack.c.l.b16 %v48
    %v214 = vpack.c.b16 %v205, %v205
    %v215 = vpack.c.b16 %v206, %v206
    %v216 = vpack.c.b16 %v207, %v207
    %v217 = vpack.c.b16 %v208, %v208
    %v218 = vpack.c.b16 %v209, %v209
    %v219 = vpack.c.b16 %v210, %v210
    %v220 = vpack.c.b16 %v211, %v211
    %v221 = vpack.c.b16 %v212, %v212
    %v222 = vpack.c.b16 %v213, %v213
    %v376 = vunpack.c.l.b16 %v49
    %v377 = vunpack.c.l.b16 %v50
    %v378 = vunpack.c.l.b16 %v51
    %v379 = vunpack.c.l.b16 %v52
    %v380 = vunpack.c.l.b16 %v53
    %v381 = vunpack.c.l.b16 %v54
    %v382 = vunpack.c.l.b16 %v55
    %v383 = vunpack.c.l.b16 %v56
    %v384 = vunpack.c.l.b16 %v57
    %v385 = vunpack.c.l.b16 %v58
    %v386 = vunpack.c.l.b16 %v59
    %v387 = vunpack.c.l.b16 %v60
    %v388 = vunpack.c.l.b16 %v61
    %v389 = vunpack.c.l.b16 %v62
    %v390 = vunpack.c.l.b16 %v63
    %v391 = vunpack.c.l.b16 %v64
    %v392 = vunpack.c.l.b16 %v65
    %v393 = vunpack.c.l.b16 %v66
    %v394 = vunpack.c.l.b16 %v67
    %v395 = vunpack.c.l.b16 %v68
    %v396 = vunpack.c.l.b16 %v69
    %v397 = vunpack.c.l.b16 %v70
    %v398 = vunpack.c.l.b16 %v71
    %v399 = vunpack.c.l.b16 %v72
    %v400 = vunpack.c.l.b16 %v73
    %v401 = vunpack.c.l.b16 %v74
    %v402 = vunpack.c.l.b16 %v75
    %v403 = vunpack.c.l.b16 %v76
    %v404 = vunpack.c.l.b16 %v77
    %v405 = vunpack.c.l.b16 %v78
    %v406 = vunpack.c.l.b16 %v79
    %v407 = vunpack.c.l.b16 %v80
    %v408 = vunpack.c.l.b16 %v81
    %v409 = vunpack.c.l.b16 %v82
    %v410 = vunpack.c.l.b16 %v83
    %v411 = vunpack.c.l.b16 %v84
    %v412 = vunpack.c.l.b16 %v85
    %v413 = vunpack.c.l.b16 %v86
    %v414 = vunpack.c.l.b16 %v87
    %v415 = vunpack.c.l.b16 %v88
    %v416 = vunpack.c.l.b16 %v89
    %v417 = vunpack.c.l.b16 %v90
    %v418 = vunpack.c.l.b16 %v91
    %v419 = vunpack.c.l.b16 %v92
    %v420 = vunpack.c.l.b16 %v93
    %v421 = vunpack.c.l.b16 %v94
    %v422 = vunpack.c.l.b16 %v95
    %v423 = vunpack.c.l.b16 %v96
    %v424 = vunpack.c.l.b16 %v97
    %v425 = vunpack.c.l.b16 %v98
    %v426 = vunpack.c.l.b16 %v99
    %v427 = vunpack.c.l.b16 %v100
    %v428 = vunpack.c.l.b16 %v101
    %v429 = vunpack.c.l.b16 %v102
    %v430 = vunpack.c.l.b16 %v103
    %v431 = vunpack.c.l.b16 %v104
    %v432 = vunpack.c.l.b16 %v105
    %v433 = vunpack.c.l.b16 %v106
    %v434 = vunpack.c.l.b16 %v107
    %v435 = vunpack.c.l.b16 %v108
    %v436 = vunpack.c.l.b16 %v109
    %v437 = vunpack.c.l.b16 %v110
    %v438 = vunpack.c.l.b16 %v111
    %v439 = vunpack.c.l.b16 %v112
    %v440 = vunpack.c.l.b16 %v113
    %v441 = vunpack.c.l.b16 %v114
    %v442 = vunpack.c.l.b16 %v115
    %v443 = vunpack.c.l.b16 %v116
    %v444 = vunpack.c.l.b16 %v117
    %v445 = vunpack.c.l.b16 %v118
    %v446 = vunpack.c.l.b16 %v119
    %v447 = vunpack.c.l.b16 %v120
    %v448 = vunpack.c.l.b16 %v121
    %v449 = vunpack.c.l.b16 %v122
    %v450 = vunpack.c.l.b16 %v123
    %v451 = vunpack.c.l.b16 %v124
    %v452 = vunpack.c.l.b16 %v125
    %v453 = vunpack.c.l.b16 %v126
    %v454 = vunpack.c.l.b16 %v127
    %v455 = vunpack.c.l.b16 %v128
    %v456 = vunpack.c.l.b16 %v129
    %v457 = vunpack.c.l.b16 %v130
    %v458 = vunpack.c.l.b16 %v131
    %v459 = vunpack.c.l.b16 %v132
    %v460 = vunpack.c.l.b16 %v133
    %v461 = vunpack.c.l.b16 %v134
    %v462 = vunpack.c.l.b16 %v135
    %v463 = vunpack.c.l.b16 %v136
    %v464 = vunpack.c.l.b16 %v137
    %v465 = vunpack.c.l.b16 %v138
    %v466 = vunpack.c.l.b16 %v139
    %v467 = vunpack.c.l.b16 %v140
    %v468 = vunpack.c.l.b16 %v141
    %v469 = vunpack.c.l.b16 %v142
    %v470 = vunpack.c.l.b16 %v143
    %v471 = vunpack.c.l.b16 %v144
    %v472 = vunpack.c.l.b16 %v145
    %v473 = vunpack.c.l.b16 %v146
    %v474 = vunpack.c.l.b16 %v147
    %v475 = vunpack.c.l.b16 %v148
    %v476 = vunpack.c.l.b16 %v149
    %v477 = vunpack.c.l.b16 %v150
    %v478 = vunpack.c.l.b16 %v151
    %v479 = vunpack.c.l.b16 %v152
    %v480 = vunpack.c.l.b16 %v153
    %v481 = vunpack.c.l.b16 %v154
    %v482 = vunpack.c.l.b16 %v155
    %v483 = vunpack.c.l.b16 %v156
    %v484 = vunpack.c.l.b16 %v157
    %v485 = vunpack.c.l.b16 %v158
    %v486 = vunpack.c.l.b16 %v159
    %v487 = vunpack.c.l.b16 %v160
    %v488 = vunpack.c.l.b16 %v161
    %v489 = vunpack.c.l.b16 %v162
    %v490 = vunpack.c.l.b16 %v163
    %v491 = vunpack.c.l.b16 %v164
    %v492 = vunpack.c.l.b16 %v165
    %v493 = vunpack.c.l.b16 %v166
    %v494 = vunpack.c.l.b16 %v167
    %v495 = vunpack.c.l.b16 %v168
    %v496 = vunpack.c.l.b16 %v169
    %v497 = vunpack.c.l.b16 %v170
    %v498 = vunpack.c.l.b16 %v171
    %v499 = vunpack.c.l.b16 %v172
    %v500 = vunpack.c.l.b16 %v173
    %v501 = vunpack.c.l.b16 %v174
    %v502 = vunpack.c.l.b16 %v175
    %v503 = vunpack.c.l.b16 %v176
    %v504 = vunpack.c.l.b16 %v177
    %v505 = vunpack.c.l.b16 %v178
    %v506 = vunpack.c.l.b16 %v179
    %v507 = vunpack.c.l.b16 %v180
    %v508 = vunpack.c.l.b16 %v181
    %v509 = vunpack.c.l.b16 %v182
    %v510 = vunpack.c.l.b16 %v183
    %v511 = vunpack.c.l.b16 %v184
    %v512 = vunpack.c.l.b16 %v185
    %v513 = vunpack.c.l.b16 %v186
    %v514 = vunpack.c.l.b16 %v187
    %v515 = vunpack.c.l.b16 %v188
    %v516 = vunpack.c.l.b16 %v189
    %v517 = vunpack.c.l.b16 %v190
    %v518 = vunpack.c.l.b16 %v191
    %v519 = vunpack.c.l.b16 %v192
    %v520 = vpack.c.b16 %v377, %v376
    %v521 = vpack.c.b16 %v379, %v378
    %v522 = vpack.c.b16 %v381, %v380
    %v523 = vpack.c.b16 %v383, %v382
    %v524 = vpack.c.b16 %v385, %v384
    %v525 = vpack.c.b16 %v387, %v386
    %v526 = vpack.c.b16 %v389, %v388
    %v527 = vpack.c.b16 %v391, %v390
    %v528 = vpack.c.b16 %v393, %v392
    %v529 = vpack.c.b16 %v395, %v394
    %v530 = vpack.c.b16 %v397, %v396
    %v531 = vpack.c.b16 %v399, %v398
    %v532 = vpack.c.b16 %v401, %v400
    %v533 = vpack.c.b16 %v403, %v402
    %v534 = vpack.c.b16 %v405, %v404
    %v535 = vpack.c.b16 %v407, %v406
    %v536 = vpack.c.b16 %v409, %v408
    %v537 = vpack.c.b16 %v411, %v410
    %v538 = vpack.c.b16 %v413, %v412
    %v539 = vpack.c.b16 %v415, %v414
    %v540 = vpack.c.b16 %v417, %v416
    %v541 = vpack.c.b16 %v419, %v418
    %v542 = vpack.c.b16 %v421, %v420
    %v543 = vpack.c.b16 %v423, %v422
    %v544 = vpack.c.b16 %v425, %v424
    %v545 = vpack.c.b16 %v427, %v426
    %v546 = vpack.c.b16 %v429, %v428
    %v547 = vpack.c.b16 %v431, %v430
    %v548 = vpack.c.b16 %v433, %v432
    %v549 = vpack.c.b16 %v435, %v434
    %v550 = vpack.c.b16 %v437, %v436
    %v551 = vpack.c.b16 %v439, %v438
    %v552 = vpack.c.b16 %v441, %v440
    %v553 = vpack.c.b16 %v443, %v442
    %v554 = vpack.c.b16 %v445, %v444
    %v555 = vpack.c.b16 %v447, %v446
    %v556 = vpack.c.b16 %v449, %v448
    %v557 = vpack.c.b16 %v451, %v450
    %v558 = vpack.c.b16 %v453, %v452
    %v559 = vpack.c.b16 %v455, %v454
    %v560 = vpack.c.b16 %v457, %v456
    %v561 = vpack.c.b16 %v459, %v458
    %v562 = vpack.c.b16 %v461, %v460
    %v563 = vpack.c.b16 %v463, %v462
    %v564 = vpack.c.b16 %v465, %v464
    %v565 = vpack.c.b16 %v467, %v466
    %v566 = vpack.c.b16 %v469, %v468
    %v567 = vpack.c.b16 %v471, %v470
    %v568 = vpack.c.b16 %v473, %v472
    %v569 = vpack.c.b16 %v475, %v474
    %v570 = vpack.c.b16 %v477, %v476
    %v571 = vpack.c.b16 %v479, %v478
    %v572 = vpack.c.b16 %v481, %v480
    %v573 = vpack.c.b16 %v483, %v482
    %v574 = vpack.c.b16 %v485, %v484
    %v575 = vpack.c.b16 %v487, %v486
    %v576 = vpack.c.b16 %v489, %v488
    %v577 = vpack.c.b16 %v491, %v490
    %v578 = vpack.c.b16 %v493, %v492
    %v579 = vpack.c.b16 %v495, %v494
    %v580 = vpack.c.b16 %v497, %v496
    %v581 = vpack.c.b16 %v499, %v498
    %v582 = vpack.c.b16 %v501, %v500
    %v583 = vpack.c.b16 %v503, %v502
    %v584 = vpack.c.b16 %v505, %v504
    %v585 = vpack.c.b16 %v507, %v506
    %v586 = vpack.c.b16 %v509, %v508
    %v587 = vpack.c.b16 %v511, %v510
    %v588 = vpack.c.b16 %v513, %v512
    %v589 = vpack.c.b16 %v515, %v514
    %v590 = vpack.c.b16 %v517, %v516
    %v591 = vpack.c.b16 %v519, %v518
    %664 = vmatprep.subr.bf16.mxu0 0
    %665 = vmatpush1.bf16.msra.mxu0 %v527
    %666 = vmatprep.subr.bf16.mxu0 0
    %667 = vmatpush1.bf16.msra.mxu0 %v526
    %668 = vmatprep.subr.bf16.mxu0 0
    %669 = vmatpush1.bf16.msra.mxu0 %v525
    %670 = vmatprep.subr.bf16.mxu0 0
    %671 = vmatpush1.bf16.msra.mxu0 %v524
    %672 = vmatprep.subr.bf16.mxu0 0
    %673 = vmatpush1.bf16.msra.mxu0 %v523
    %674 = vmatprep.subr.bf16.mxu0 0
    %675 = vmatpush1.bf16.msra.mxu0 %v522
    %676 = vmatprep.subr.bf16.mxu0 0
    %677 = vmatpush1.bf16.msra.mxu0 %v521
    %678 = vmatprep.subr.bf16.mxu0 0
    %679 = vmatpush1.bf16.msra.mxu0 %v520
    %680 = vmatprep.subr.bf16.mxu0 0
    %681 = vmatpush2.bf16.msra.mxu0 %v535
    %682 = vmatprep.subr.bf16.mxu0 0
    %683 = vmatpush2.bf16.msra.mxu0 %v534
    %684 = vmatprep.subr.bf16.mxu0 0
    %685 = vmatpush2.bf16.msra.mxu0 %v533
    %686 = vmatprep.subr.bf16.mxu0 0
    %687 = vmatpush2.bf16.msra.mxu0 %v532
    %688 = vmatprep.subr.bf16.mxu0 0
    %689 = vmatpush2.bf16.msra.mxu0 %v531
    %690 = vmatprep.subr.bf16.mxu0 0
    %691 = vmatpush2.bf16.msra.mxu0 %v530
    %692 = vmatprep.subr.bf16.mxu0 0
    %693 = vmatpush2.bf16.msra.mxu0 %v529
    %694 = vmatprep.subr.bf16.mxu0 0
    %695 = vmatpush2.bf16.msra.mxu0 %v528
    %696 = vmatprep.mubr.bf16.mxu0 %v215
    %697 = vmatmul.mubr.bf16.gmra.mxu0 %v214
    %v698 = vpop.f32.mrf.mxu0
    %v699 = vadd.f32 %v198, %v698
    %v700 = vpop.f32.mrf.mxu0
    %v701 = vpop.f32.mrf.mxu0
    %v702 = vpop.f32.mrf.mxu0
    %703 = vdwg.mxu0
    %704 = vmatprep.subr.bf16.mxu0 0
    %705 = vmatpush1.bf16.msra.mxu0 %v543
    %706 = vmatprep.subr.bf16.mxu0 0
    %707 = vmatpush1.bf16.msra.mxu0 %v542
    %708 = vmatprep.subr.bf16.mxu0 0
    %709 = vmatpush1.bf16.msra.mxu0 %v541
    %710 = vmatprep.subr.bf16.mxu0 0
    %711 = vmatpush1.bf16.msra.mxu0 %v540
    %712 = vmatprep.subr.bf16.mxu0 0
    %713 = vmatpush1.bf16.msra.mxu0 %v539
    %714 = vmatprep.subr.bf16.mxu0 0
    %715 = vmatpush1.bf16.msra.mxu0 %v538
    %716 = vmatprep.subr.bf16.mxu0 0
    %717 = vmatpush1.bf16.msra.mxu0 %v537
    %718 = vmatprep.subr.bf16.mxu0 0
    %719 = vmatpush1.bf16.msra.mxu0 %v536
    %720 = vmatprep.subr.bf16.mxu0 0
    %721 = vmatpush2.bf16.msra.mxu0 %v551
    %722 = vmatprep.subr.bf16.mxu0 0
    %723 = vmatpush2.bf16.msra.mxu0 %v550
    %724 = vmatprep.subr.bf16.mxu0 0
    %725 = vmatpush2.bf16.msra.mxu0 %v549
    %726 = vmatprep.subr.bf16.mxu0 0
    %727 = vmatpush2.bf16.msra.mxu0 %v548
    %728 = vmatprep.subr.bf16.mxu0 0
    %729 = vmatpush2.bf16.msra.mxu0 %v547
    %730 = vmatprep.subr.bf16.mxu0 0
    %731 = vmatpush2.bf16.msra.mxu0 %v546
    %732 = vmatprep.subr.bf16.mxu0 0
    %733 = vmatpush2.bf16.msra.mxu0 %v545
    %734 = vmatprep.subr.bf16.mxu0 0
    %735 = vmatpush2.bf16.msra.mxu0 %v544
    %736 = vmatprep.mubr.bf16.mxu0 %v217
    %737 = vmatmul.mubr.bf16.gmra.mxu0 %v216
    %v738 = vpop.f32.mrf.mxu0
    %v739 = vadd.f32 %v699, %v738
    %v740 = vpop.f32.mrf.mxu0
    %v741 = vpop.f32.mrf.mxu0
    %v742 = vpop.f32.mrf.mxu0
    %743 = vdwg.mxu0
    %744 = vmatprep.subr.bf16.mxu0 0
    %745 = vmatpush1.bf16.msra.mxu0 %v559
    %746 = vmatprep.subr.bf16.mxu0 0
    %747 = vmatpush1.bf16.msra.mxu0 %v558
    %748 = vmatprep.subr.bf16.mxu0 0
    %749 = vmatpush1.bf16.msra.mxu0 %v557
    %750 = vmatprep.subr.bf16.mxu0 0
    %751 = vmatpush1.bf16.msra.mxu0 %v556
    %752 = vmatprep.subr.bf16.mxu0 0
    %753 = vmatpush1.bf16.msra.mxu0 %v555
    %754 = vmatprep.subr.bf16.mxu0 0
    %755 = vmatpush1.bf16.msra.mxu0 %v554
    %756 = vmatprep.subr.bf16.mxu0 0
    %757 = vmatpush1.bf16.msra.mxu0 %v553
    %758 = vmatprep.subr.bf16.mxu0 0
    %759 = vmatpush1.bf16.msra.mxu0 %v552
    %760 = vmatprep.subr.bf16.mxu0 0
    %761 = vmatpush2.bf16.msra.mxu0 %v567
    %762 = vmatprep.subr.bf16.mxu0 0
    %763 = vmatpush2.bf16.msra.mxu0 %v566
    %764 = vmatprep.subr.bf16.mxu0 0
    %765 = vmatpush2.bf16.msra.mxu0 %v565
    %766 = vmatprep.subr.bf16.mxu0 0
    %767 = vmatpush2.bf16.msra.mxu0 %v564
    %768 = vmatprep.subr.bf16.mxu0 0
    %769 = vmatpush2.bf16.msra.mxu0 %v563
    %770 = vmatprep.subr.bf16.mxu0 0
    %771 = vmatpush2.bf16.msra.mxu0 %v562
    %772 = vmatprep.subr.bf16.mxu0 0
    %773 = vmatpush2.bf16.msra.mxu0 %v561
    %774 = vmatprep.subr.bf16.mxu0 0
    %775 = vmatpush2.bf16.msra.mxu0 %v560
    %776 = vmatprep.mubr.bf16.mxu0 %v219
    %777 = vmatmul.mubr.bf16.gmra.mxu0 %v218
    %v778 = vpop.f32.mrf.mxu0
    %v779 = vadd.f32 %v739, %v778
    %v780 = vpop.f32.mrf.mxu0
    %v781 = vpop.f32.mrf.mxu0
    %v782 = vpop.f32.mrf.mxu0
    %783 = vdwg.mxu0
    %784 = vmatprep.subr.bf16.mxu0 0
    %785 = vmatpush1.bf16.msra.mxu0 %v575
    %786 = vmatprep.subr.bf16.mxu0 0
    %787 = vmatpush1.bf16.msra.mxu0 %v574
    %788 = vmatprep.subr.bf16.mxu0 0
    %789 = vmatpush1.bf16.msra.mxu0 %v573
    %790 = vmatprep.subr.bf16.mxu0 0
    %791 = vmatpush1.bf16.msra.mxu0 %v572
    %792 = vmatprep.subr.bf16.mxu0 0
    %793 = vmatpush1.bf16.msra.mxu0 %v571
    %794 = vmatprep.subr.bf16.mxu0 0
    %795 = vmatpush1.bf16.msra.mxu0 %v570
    %796 = vmatprep.subr.bf16.mxu0 0
    %797 = vmatpush1.bf16.msra.mxu0 %v569
    %798 = vmatprep.subr.bf16.mxu0 0
    %799 = vmatpush1.bf16.msra.mxu0 %v568
    %800 = vmatprep.subr.bf16.mxu0 0
    %801 = vmatpush2.bf16.msra.mxu0 %v583
    %802 = vmatprep.subr.bf16.mxu0 0
    %803 = vmatpush2.bf16.msra.mxu0 %v582
    %804 = vmatprep.subr.bf16.mxu0 0
    %805 = vmatpush2.bf16.msra.mxu0 %v581
    %806 = vmatprep.subr.bf16.mxu0 0
    %807 = vmatpush2.bf16.msra.mxu0 %v580
    %808 = vmatprep.subr.bf16.mxu0 0
    %809 = vmatpush2.bf16.msra.mxu0 %v579
    %810 = vmatprep.subr.bf16.mxu0 0
    %811 = vmatpush2.bf16.msra.mxu0 %v578
    %812 = vmatprep.subr.bf16.mxu0 0
    %813 = vmatpush2.bf16.msra.mxu0 %v577
    %814 = vmatprep.subr.bf16.mxu0 0
    %815 = vmatpush2.bf16.msra.mxu0 %v576
    %816 = vmatprep.mubr.bf16.mxu0 %v221
    %817 = vmatmul.mubr.bf16.gmra.mxu0 %v220
    %v818 = vpop.f32.mrf.mxu0
    %v819 = vadd.f32 %v779, %v818
    %v820 = vpop.f32.mrf.mxu0
    %v821 = vpop.f32.mrf.mxu0
    %v822 = vpop.f32.mrf.mxu0
    %823 = vdwg.mxu0
    %824 = vmatprep.subr.bf16.mxu0 0
    %825 = vmatpush1.bf16.msra.mxu0 %v591
    %826 = vmatprep.subr.bf16.mxu0 0
    %827 = vmatpush1.bf16.msra.mxu0 %v590
    %828 = vmatprep.subr.bf16.mxu0 0
    %829 = vmatpush1.bf16.msra.mxu0 %v589
    %830 = vmatprep.subr.bf16.mxu0 0
    %831 = vmatpush1.bf16.msra.mxu0 %v588
    %832 = vmatprep.subr.bf16.mxu0 0
    %833 = vmatpush1.bf16.msra.mxu0 %v587
    %834 = vmatprep.subr.bf16.mxu0 0
    %835 = vmatpush1.bf16.msra.mxu0 %v586
    %836 = vmatprep.subr.bf16.mxu0 0
    %837 = vmatpush1.bf16.msra.mxu0 %v585
    %838 = vmatprep.subr.bf16.mxu0 0
    %839 = vmatpush1.bf16.msra.mxu0 %v584
    %840 = vmatprep.subr.bf16.mxu0 0
    %841 = vmatpush2.bf16.msra.mxu0 0
    %842 = vmatprep.subr.bf16.mxu0 0
    %843 = vmatpush2.bf16.msra.mxu0 0
    %844 = vmatprep.subr.bf16.mxu0 0
    %845 = vmatpush2.bf16.msra.mxu0 0
    %846 = vmatprep.subr.bf16.mxu0 0
    %847 = vmatpush2.bf16.msra.mxu0 0
    %848 = vmatprep.subr.bf16.mxu0 0
    %849 = vmatpush2.bf16.msra.mxu0 0
    %850 = vmatprep.subr.bf16.mxu0 0
    %851 = vmatpush2.bf16.msra.mxu0 0
    %852 = vmatprep.subr.bf16.mxu0 0
    %853 = vmatpush2.bf16.msra.mxu0 0
    %854 = vmatprep.subr.bf16.mxu0 0
    %855 = vmatpush2.bf16.msra.mxu0 0
    %856 = vmatprep.mubr.bf16.mxu0 0
    %857 = vmatmul.mubr.bf16.gmra.mxu0 %v222
    %v858 = vpop.f32.mrf.mxu0
    %v859 = vadd.f32 %v819, %v858
    %v860 = vpop.f32.mrf.mxu0
    %v861 = vpop.f32.mrf.mxu0
    %v862 = vpop.f32.mrf.mxu0
    %863 = vdwg.mxu0
    %v864 = vmax.f32 %v859, 0.0
    %v865 = vld [vmem:[%s3] sm:$0xff]
    %v866 = vld [vmem:[%s3 + $0x8] sm:$0xf]
    %v867 = vld [vmem:[%s3 + $0xc] sm:$0xff]
    %v868 = vld [vmem:[%s3 + $0x14] sm:$0xf]
    %v869 = vld [vmem:[%s3 + $0x18] sm:$0xff]
    %v870 = vld [vmem:[%s3 + $0x20] sm:$0xf]
    %v871 = vld [vmem:[%s3 + $0x24] sm:$0xff]
    %v872 = vld [vmem:[%s3 + $0x2c] sm:$0xf]
    %v873 = vld [vmem:[%s3 + $0x30] sm:$0xff]
    %v874 = vld [vmem:[%s3 + $0x38] sm:$0xf]
    %v875 = vld [vmem:[%s3 + $0x3c] sm:$0xff]
    %v876 = vld [vmem:[%s3 + $0x44] sm:$0xf]
    %v877 = vld [vmem:[%s3 + $0x48] sm:$0xff]
    %v878 = vld [vmem:[%s3 + $0x50] sm:$0xf]
    %v879 = vld [vmem:[%s3 + $0x54] sm:$0xff]
    %v880 = vld [vmem:[%s3 + $0x5c] sm:$0xf]
    %v881 = vld [vmem:[%s3 + $0x60] sm:$0xff]
    %v882 = vld [vmem:[%s3 + $0x68] sm:$0xf]
    %v883 = vmax.bf16 %v865, %v869
    %v884 = vmax.bf16 %v867, %v871
    %v885 = vmax.bf16 %v883, %v873
    %v886 = vmax.bf16 %v884, %v875
    %v887 = vmax.bf16 %v885, %v877
    %v888 = vmax.bf16 %v886, %v879
    %v889 = vmax.bf16 %v887, %v881
    %v890 = vmax.bf16 %v889, %v888
    %vm891 = vcmask 1043456
    %v894 = vsel %vm891, %v866, 4286644096
    %v897 = vsel %vm891, %v868, 4286644096
    %v900 = vsel %vm891, %v870, 4286644096
    %v902 = vmax.bf16 %v894, %v900
    %v904 = vsel %vm891, %v872, 4286644096
    %v906 = vmax.bf16 %v897, %v904
    %v908 = vsel %vm891, %v874, 4286644096
    %v910 = vmax.bf16 %v902, %v908
    %v912 = vsel %vm891, %v876, 4286644096
    %v914 = vmax.bf16 %v906, %v912
    %v916 = vsel %vm891, %v878, 4286644096
    %v918 = vmax.bf16 %v910, %v916
    %v920 = vsel %vm891, %v880, 4286644096
    %v922 = vmax.bf16 %v914, %v920
    %v924 = vsel %vm891, %v882, 4286644096
    %v926 = vmax.bf16 %v918, %v924
    %v927 = vmax.bf16 %v926, %v922
    %v928 = vld [vmem:[%s4] sm:$0xf]
    %v929 = vld [vmem:[%s4 + $0x4] sm:$0xf]
    %v930 = vld [vmem:[%s4 + $0x8] sm:$0xf]
    %v931 = vld [vmem:[%s4 + $0xc] sm:$0xf]
    %v932 = vld [vmem:[%s4 + $0x10] sm:$0xf]
    %v933 = vld [vmem:[%s4 + $0x14] sm:$0xf]
    %v934 = vld [vmem:[%s4 + $0x18] sm:$0xf]
    %v935 = vld [vmem:[%s4 + $0x1c] sm:$0xf]
    %v936 = vld [vmem:[%s4 + $0x20] sm:$0xf]
    %v937 = vld [vmem:[%s4 + $0x24] sm:$0xf]
    %v938 = vld [vmem:[%s4 + $0x28] sm:$0xf]
    %v939 = vld [vmem:[%s4 + $0x2c] sm:$0xf]
    %v940 = vld [vmem:[%s4 + $0x30] sm:$0xf]
    %v941 = vld [vmem:[%s4 + $0x34] sm:$0xf]
    %v942 = vld [vmem:[%s4 + $0x38] sm:$0xf]
    %v943 = vld [vmem:[%s4 + $0x3c] sm:$0xf]
    %v944 = vld [vmem:[%s4 + $0x40] sm:$0xf]
    %v945 = vld [vmem:[%s4 + $0x44] sm:$0xf]
    %v946 = vld [vmem:[%s4 + $0x48] sm:$0xf]
    %v947 = vld [vmem:[%s4 + $0x4c] sm:$0xf]
    %v948 = vld [vmem:[%s4 + $0x50] sm:$0xf]
    %v949 = vld [vmem:[%s4 + $0x54] sm:$0xf]
    %v950 = vld [vmem:[%s4 + $0x58] sm:$0xf]
    %v951 = vld [vmem:[%s4 + $0x5c] sm:$0xf]
    %v952 = vld [vmem:[%s4 + $0x60] sm:$0xf]
    %v953 = vld [vmem:[%s4 + $0x64] sm:$0xf]
    %v954 = vld [vmem:[%s4 + $0x68] sm:$0xf]
    %v955 = vld [vmem:[%s4 + $0x6c] sm:$0xf]
    %v956 = vld [vmem:[%s4 + $0x70] sm:$0xf]
    %v957 = vld [vmem:[%s4 + $0x74] sm:$0xf]
    %v958 = vld [vmem:[%s4 + $0x78] sm:$0xf]
    %v959 = vld [vmem:[%s4 + $0x7c] sm:$0xf]
    %v960 = vld [vmem:[%s4 + $0x80] sm:$0xf]
    %v961 = vld [vmem:[%s4 + $0x84] sm:$0xf]
    %v962 = vld [vmem:[%s4 + $0x88] sm:$0xf]
    %v963 = vld [vmem:[%s4 + $0x8c] sm:$0xf]
    %v964 = vld [vmem:[%s4 + $0x90] sm:$0xf]
    %v965 = vld [vmem:[%s4 + $0x94] sm:$0xf]
    %v966 = vld [vmem:[%s4 + $0x98] sm:$0xf]
    %v967 = vld [vmem:[%s4 + $0x9c] sm:$0xf]
    %v968 = vld [vmem:[%s4 + $0xa0] sm:$0xf]
    %v969 = vld [vmem:[%s4 + $0xa4] sm:$0xf]
    %v970 = vld [vmem:[%s4 + $0xa8] sm:$0xf]
    %v971 = vld [vmem:[%s4 + $0xac] sm:$0xf]
    %v972 = vld [vmem:[%s4 + $0xb0] sm:$0xf]
    %v973 = vld [vmem:[%s4 + $0xb4] sm:$0xf]
    %v974 = vld [vmem:[%s4 + $0xb8] sm:$0xf]
    %v975 = vld [vmem:[%s4 + $0xbc] sm:$0xf]
    %v976 = vld [vmem:[%s5] sm:$0x1]
    %v978 = vlaneseq
    %v979 = vshrl.u32 %v978, 7
    %v980 = vsub.s32 0, %v979
    %v981 = vrot.slane %v976, %v980
    %v985 = vunpack.c.l.b16 %v890
    %v986 = vunpack.c.h.b16 %v890
    %v987 = vunpack.c.l.b16 %v927
    %v988 = vpack.c.b16 %v985, %v985
    %v989 = vpack.c.b16 %v986, %v986
    %v990 = vpack.c.b16 %v987, %v987
    %v1042 = vunpack.c.l.b16 %v928
    %v1043 = vunpack.c.l.b16 %v929
    %v1044 = vunpack.c.l.b16 %v930
    %v1045 = vunpack.c.l.b16 %v931
    %v1046 = vunpack.c.l.b16 %v932
    %v1047 = vunpack.c.l.b16 %v933
    %v1048 = vunpack.c.l.b16 %v934
    %v1049 = vunpack.c.l.b16 %v935
    %v1050 = vunpack.c.l.b16 %v936
    %v1051 = vunpack.c.l.b16 %v937
    %v1052 = vunpack.c.l.b16 %v938
    %v1053 = vunpack.c.l.b16 %v939
    %v1054 = vunpack.c.l.b16 %v940
    %v1055 = vunpack.c.l.b16 %v941
    %v1056 = vunpack.c.l.b16 %v942
    %v1057 = vunpack.c.l.b16 %v943
    %v1058 = vunpack.c.l.b16 %v944
    %v1059 = vunpack.c.l.b16 %v945
    %v1060 = vunpack.c.l.b16 %v946
    %v1061 = vunpack.c.l.b16 %v947
    %v1062 = vunpack.c.l.b16 %v948
    %v1063 = vunpack.c.l.b16 %v949
    %v1064 = vunpack.c.l.b16 %v950
    %v1065 = vunpack.c.l.b16 %v951
    %v1066 = vunpack.c.l.b16 %v952
    %v1067 = vunpack.c.l.b16 %v953
    %v1068 = vunpack.c.l.b16 %v954
    %v1069 = vunpack.c.l.b16 %v955
    %v1070 = vunpack.c.l.b16 %v956
    %v1071 = vunpack.c.l.b16 %v957
    %v1072 = vunpack.c.l.b16 %v958
    %v1073 = vunpack.c.l.b16 %v959
    %v1074 = vunpack.c.l.b16 %v960
    %v1075 = vunpack.c.l.b16 %v961
    %v1076 = vunpack.c.l.b16 %v962
    %v1077 = vunpack.c.l.b16 %v963
    %v1078 = vunpack.c.l.b16 %v964
    %v1079 = vunpack.c.l.b16 %v965
    %v1080 = vunpack.c.l.b16 %v966
    %v1081 = vunpack.c.l.b16 %v967
    %v1082 = vunpack.c.l.b16 %v968
    %v1083 = vunpack.c.l.b16 %v969
    %v1084 = vunpack.c.l.b16 %v970
    %v1085 = vunpack.c.l.b16 %v971
    %v1086 = vunpack.c.l.b16 %v972
    %v1087 = vunpack.c.l.b16 %v973
    %v1088 = vunpack.c.l.b16 %v974
    %v1089 = vunpack.c.l.b16 %v975
    %v1090 = vpack.c.b16 %v1043, %v1042
    %v1091 = vpack.c.b16 %v1045, %v1044
    %v1092 = vpack.c.b16 %v1047, %v1046
    %v1093 = vpack.c.b16 %v1049, %v1048
    %v1094 = vpack.c.b16 %v1051, %v1050
    %v1095 = vpack.c.b16 %v1053, %v1052
    %v1096 = vpack.c.b16 %v1055, %v1054
    %v1097 = vpack.c.b16 %v1057, %v1056
    %v1098 = vpack.c.b16 %v1059, %v1058
    %v1099 = vpack.c.b16 %v1061, %v1060
    %v1100 = vpack.c.b16 %v1063, %v1062
    %v1101 = vpack.c.b16 %v1065, %v1064
    %v1102 = vpack.c.b16 %v1067, %v1066
    %v1103 = vpack.c.b16 %v1069, %v1068
    %v1104 = vpack.c.b16 %v1071, %v1070
    %v1105 = vpack.c.b16 %v1073, %v1072
    %v1106 = vpack.c.b16 %v1075, %v1074
    %v1107 = vpack.c.b16 %v1077, %v1076
    %v1108 = vpack.c.b16 %v1079, %v1078
    %v1109 = vpack.c.b16 %v1081, %v1080
    %v1110 = vpack.c.b16 %v1083, %v1082
    %v1111 = vpack.c.b16 %v1085, %v1084
    %v1112 = vpack.c.b16 %v1087, %v1086
    %v1113 = vpack.c.b16 %v1089, %v1088
    %1138 = vmatprep.subr.bf16.mxu0 0
    %1139 = vmatpush1.bf16.msra.mxu0 %v1097
    %1140 = vmatprep.subr.bf16.mxu0 0
    %1141 = vmatpush1.bf16.msra.mxu0 %v1096
    %1142 = vmatprep.subr.bf16.mxu0 0
    %1143 = vmatpush1.bf16.msra.mxu0 %v1095
    %1144 = vmatprep.subr.bf16.mxu0 0
    %1145 = vmatpush1.bf16.msra.mxu0 %v1094
    %1146 = vmatprep.subr.bf16.mxu0 0
    %1147 = vmatpush1.bf16.msra.mxu0 %v1093
    %1148 = vmatprep.subr.bf16.mxu0 0
    %1149 = vmatpush1.bf16.msra.mxu0 %v1092
    %1150 = vmatprep.subr.bf16.mxu0 0
    %1151 = vmatpush1.bf16.msra.mxu0 %v1091
    %1152 = vmatprep.subr.bf16.mxu0 0
    %1153 = vmatpush1.bf16.msra.mxu0 %v1090
    %1154 = vmatprep.subr.bf16.mxu0 0
    %1155 = vmatpush2.bf16.msra.mxu0 %v1105
    %1156 = vmatprep.subr.bf16.mxu0 0
    %1157 = vmatpush2.bf16.msra.mxu0 %v1104
    %1158 = vmatprep.subr.bf16.mxu0 0
    %1159 = vmatpush2.bf16.msra.mxu0 %v1103
    %1160 = vmatprep.subr.bf16.mxu0 0
    %1161 = vmatpush2.bf16.msra.mxu0 %v1102
    %1162 = vmatprep.subr.bf16.mxu0 0
    %1163 = vmatpush2.bf16.msra.mxu0 %v1101
    %1164 = vmatprep.subr.bf16.mxu0 0
    %1165 = vmatpush2.bf16.msra.mxu0 %v1100
    %1166 = vmatprep.subr.bf16.mxu0 0
    %1167 = vmatpush2.bf16.msra.mxu0 %v1099
    %1168 = vmatprep.subr.bf16.mxu0 0
    %1169 = vmatpush2.bf16.msra.mxu0 %v1098
    %1170 = vmatprep.mubr.bf16.mxu0 %v989
    %1171 = vmatmul.mubr.bf16.gmra.mxu0 %v988
    %v1172 = vpop.f32.mrf.mxu0
    %v1173 = vadd.f32 %v981, %v1172
    %v1174 = vpop.f32.mrf.mxu0
    %v1175 = vpop.f32.mrf.mxu0
    %v1176 = vpop.f32.mrf.mxu0
    %1177 = vdwg.mxu0
    %1178 = vmatprep.subr.bf16.mxu0 0
    %1179 = vmatpush1.bf16.msra.mxu0 %v1113
    %1180 = vmatprep.subr.bf16.mxu0 0
    %1181 = vmatpush1.bf16.msra.mxu0 %v1112
    %1182 = vmatprep.subr.bf16.mxu0 0
    %1183 = vmatpush1.bf16.msra.mxu0 %v1111
    %1184 = vmatprep.subr.bf16.mxu0 0
    %1185 = vmatpush1.bf16.msra.mxu0 %v1110
    %1186 = vmatprep.subr.bf16.mxu0 0
    %1187 = vmatpush1.bf16.msra.mxu0 %v1109
    %1188 = vmatprep.subr.bf16.mxu0 0
    %1189 = vmatpush1.bf16.msra.mxu0 %v1108
    %1190 = vmatprep.subr.bf16.mxu0 0
    %1191 = vmatpush1.bf16.msra.mxu0 %v1107
    %1192 = vmatprep.subr.bf16.mxu0 0
    %1193 = vmatpush1.bf16.msra.mxu0 %v1106
    %1194 = vmatprep.subr.bf16.mxu0 0
    %1195 = vmatpush2.bf16.msra.mxu0 0
    %1196 = vmatprep.subr.bf16.mxu0 0
    %1197 = vmatpush2.bf16.msra.mxu0 0
    %1198 = vmatprep.subr.bf16.mxu0 0
    %1199 = vmatpush2.bf16.msra.mxu0 0
    %1200 = vmatprep.subr.bf16.mxu0 0
    %1201 = vmatpush2.bf16.msra.mxu0 0
    %1202 = vmatprep.subr.bf16.mxu0 0
    %1203 = vmatpush2.bf16.msra.mxu0 0
    %1204 = vmatprep.subr.bf16.mxu0 0
    %1205 = vmatpush2.bf16.msra.mxu0 0
    %1206 = vmatprep.subr.bf16.mxu0 0
    %1207 = vmatpush2.bf16.msra.mxu0 0
    %1208 = vmatprep.subr.bf16.mxu0 0
    %1209 = vmatpush2.bf16.msra.mxu0 0
    %1210 = vmatprep.mubr.bf16.mxu0 0
    %1211 = vmatmul.mubr.bf16.gmra.mxu0 %v990
    %v1212 = vpop.f32.mrf.mxu0
    %v1213 = vadd.f32 %v1173, %v1212
    %v1214 = vpop.f32.mrf.mxu0
    %v1215 = vpop.f32.mrf.mxu0
    %v1216 = vpop.f32.mrf.mxu0
    %1217 = vdwg.mxu0
    %v1218 = vmax.f32 %v1213, 0.0
    %v1219 = vld [vmem:[%s7] sm:$0x3]
    %v1220 = vld [vmem:[%s6] sm:$0xf]
    %v1221 = vunpack.c.l.bf16 %v1220
    %vm1222 = vcmask 64512
    %v1224 = vsel %vm1222, %v1219, 0
    %1226 = vmatprep.subr.mxu0 0.0
    %1227 = vmatpush1.msra.mxu0 0.0
    %1228 = vmatprep.subr.mxu0 0.0
    %1229 = vmatpush1.msra.mxu0 0.0
    %1230 = vmatprep.subr.mxu0 0.0
    %1231 = vmatpush1.msra.mxu0 0.0
    %1232 = vmatprep.subr.mxu0 0.0
    %1233 = vmatpush1.msra.mxu0 0.0
    %1234 = vmatprep.subr.mxu0 0.0
    %1235 = vmatpush1.msra.mxu0 0.0
    %1236 = vmatprep.subr.mxu0 0.0
    %1237 = vmatpush1.msra.mxu0 0.0
    %1238 = vmatprep.subr.mxu0 0.0
    %1239 = vmatpush1.msra.mxu0 0.0
    %1240 = vmatprep.subr.mxu0 0.0
    %1241 = vmatpush1.msra.mxu0 0.0
    %1242 = vmatprep.subr.mxu0 0.0
    %1243 = vmatpush1.msra.mxu0 0.0
    %1244 = vmatprep.subr.mxu0 0.0
    %1245 = vmatpush1.msra.mxu0 0.0
    %1246 = vmatprep.subr.mxu0 0.0
    %1247 = vmatpush1.msra.mxu0 0.0
    %1248 = vmatprep.subr.mxu0 0.0
    %1249 = vmatpush1.msra.mxu0 0.0
    %1250 = vmatprep.subr.mxu0 0.0
    %1251 = vmatpush1.msra.mxu0 0.0
    %1252 = vmatprep.subr.mxu0 0.0
    %1253 = vmatpush1.msra.mxu0 0.0
    %1254 = vmatprep.subr.mxu0 0.0
    %1255 = vmatpush1.msra.mxu0 0.0
    %1256 = vmatprep.subr.mxu0 0.0
    %1257 = vmatpush1.msra.mxu0 %v1221
    %1258 = vmatprep.subr.mxu0 0.0
    %1259 = vmatpush2.msra.mxu0 0.0
    %1260 = vmatprep.subr.mxu0 0.0
    %1261 = vmatpush2.msra.mxu0 0.0
    %1262 = vmatprep.subr.mxu0 0.0
    %1263 = vmatpush2.msra.mxu0 0.0
    %1264 = vmatprep.subr.mxu0 0.0
    %1265 = vmatpush2.msra.mxu0 0.0
    %1266 = vmatprep.subr.mxu0 0.0
    %1267 = vmatpush2.msra.mxu0 0.0
    %1268 = vmatprep.subr.mxu0 0.0
    %1269 = vmatpush2.msra.mxu0 0.0
    %1270 = vmatprep.subr.mxu0 0.0
    %1271 = vmatpush2.msra.mxu0 0.0
    %1272 = vmatprep.subr.mxu0 0.0
    %1273 = vmatpush2.msra.mxu0 0.0
    %1274 = vmatprep.subr.mxu0 0.0
    %1275 = vmatpush2.msra.mxu0 0.0
    %1276 = vmatprep.subr.mxu0 0.0
    %1277 = vmatpush2.msra.mxu0 0.0
    %1278 = vmatprep.subr.mxu0 0.0
    %1279 = vmatpush2.msra.mxu0 0.0
    %1280 = vmatprep.subr.mxu0 0.0
    %1281 = vmatpush2.msra.mxu0 0.0
    %1282 = vmatprep.subr.mxu0 0.0
    %1283 = vmatpush2.msra.mxu0 0.0
    %1284 = vmatprep.subr.mxu0 0.0
    %1285 = vmatpush2.msra.mxu0 0.0
    %1286 = vmatprep.subr.mxu0 0.0
    %1287 = vmatpush2.msra.mxu0 0.0
    %1288 = vmatprep.subr.mxu0 0.0
    %1289 = vmatpush2.msra.mxu0 0.0
    %1290 = vmatprep.mubr.f32.mxu0 0.0
    %1291 = vmatmul.mubr.f32.gmra.mxu0 %v1224
    %v1292 = vpop.f32.mrf.mxu0
    %v1293 = vadd.f32 0.0, %v1292
    %v1294 = vpop.f32.mrf.mxu0
    %1295 = vdwg.mxu0
    %1296 = vmatprep.subr.mxu0 0.0
    %1297 = vmatpush1.msra.mxu0 0.0
    %1298 = vmatprep.subr.mxu0 0.0
    %1299 = vmatpush1.msra.mxu0 0.0
    %1300 = vmatprep.subr.mxu0 0.0
    %1301 = vmatpush1.msra.mxu0 0.0
    %1302 = vmatprep.subr.mxu0 0.0
    %1303 = vmatpush1.msra.mxu0 0.0
    %1304 = vmatprep.subr.mxu0 0.0
    %1305 = vmatpush1.msra.mxu0 0.0
    %1306 = vmatprep.subr.mxu0 0.0
    %1307 = vmatpush1.msra.mxu0 0.0
    %1308 = vmatprep.subr.mxu0 0.0
    %1309 = vmatpush1.msra.mxu0 0.0
    %1310 = vmatprep.subr.mxu0 0.0
    %1311 = vmatpush1.msra.mxu0 0.0
    %1312 = vmatprep.subr.mxu0 0.0
    %1313 = vmatpush1.msra.mxu0 0.0
    %1314 = vmatprep.subr.mxu0 0.0
    %1315 = vmatpush1.msra.mxu0 0.0
    %1316 = vmatprep.subr.mxu0 0.0
    %1317 = vmatpush1.msra.mxu0 0.0
    %1318 = vmatprep.subr.mxu0 0.0
    %1319 = vmatpush1.msra.mxu0 0.0
    %1320 = vmatprep.subr.mxu0 0.0
    %1321 = vmatpush1.msra.mxu0 0.0
    %1322 = vmatprep.subr.mxu0 0.0
    %1323 = vmatpush1.msra.mxu0 0.0
    %1324 = vmatprep.subr.mxu0 0.0
    %1325 = vmatpush1.msra.mxu0 0.0
    %1326 = vmatprep.subr.mxu0 0.0
    %1327 = vmatpush1.msra.mxu0 %v864
    %1328 = vmatprep.subr.mxu0 0.0
    %1329 = vmatpush2.msra.mxu0 0.0
    %1330 = vmatprep.subr.mxu0 0.0
    %1331 = vmatpush2.msra.mxu0 0.0
    %1332 = vmatprep.subr.mxu0 0.0
    %1333 = vmatpush2.msra.mxu0 0.0
    %1334 = vmatprep.subr.mxu0 0.0
    %1335 = vmatpush2.msra.mxu0 0.0
    %1336 = vmatprep.subr.mxu0 0.0
    %1337 = vmatpush2.msra.mxu0 0.0
    %1338 = vmatprep.subr.mxu0 0.0
    %1339 = vmatpush2.msra.mxu0 0.0
    %1340 = vmatprep.subr.mxu0 0.0
    %1341 = vmatpush2.msra.mxu0 0.0
    %1342 = vmatprep.subr.mxu0 0.0
    %1343 = vmatpush2.msra.mxu0 0.0
    %1344 = vmatprep.subr.mxu0 0.0
    %1345 = vmatpush2.msra.mxu0 0.0
    %1346 = vmatprep.subr.mxu0 0.0
    %1347 = vmatpush2.msra.mxu0 0.0
    %1348 = vmatprep.subr.mxu0 0.0
    %1349 = vmatpush2.msra.mxu0 0.0
    %1350 = vmatprep.subr.mxu0 0.0
    %1351 = vmatpush2.msra.mxu0 0.0
    %1352 = vmatprep.subr.mxu0 0.0
    %1353 = vmatpush2.msra.mxu0 0.0
    %1354 = vmatprep.subr.mxu0 0.0
    %1355 = vmatpush2.msra.mxu0 0.0
    %1356 = vmatprep.subr.mxu0 0.0
    %1357 = vmatpush2.msra.mxu0 0.0
    %1358 = vmatprep.subr.mxu0 0.0
    %1359 = vmatpush2.msra.mxu0 0.0
    %1360 = vmatprep.mubr.f32.mxu0 0.0
    %1361 = vmatmul.mubr.f32.gmra.mxu0 %v1224
    %v1362 = vpop.f32.mrf.mxu0
    %v1363 = vadd.f32 0.0, %v1362
    %v1364 = vpop.f32.mrf.mxu0
    %1365 = vdwg.mxu0
    %1366 = vmatprep.subr.mxu0 0.0
    %1367 = vmatpush1.msra.mxu0 0.0
    %1368 = vmatprep.subr.mxu0 0.0
    %1369 = vmatpush1.msra.mxu0 0.0
    %1370 = vmatprep.subr.mxu0 0.0
    %1371 = vmatpush1.msra.mxu0 0.0
    %1372 = vmatprep.subr.mxu0 0.0
    %1373 = vmatpush1.msra.mxu0 0.0
    %1374 = vmatprep.subr.mxu0 0.0
    %1375 = vmatpush1.msra.mxu0 0.0
    %1376 = vmatprep.subr.mxu0 0.0
    %1377 = vmatpush1.msra.mxu0 0.0
    %1378 = vmatprep.subr.mxu0 0.0
    %1379 = vmatpush1.msra.mxu0 0.0
    %1380 = vmatprep.subr.mxu0 0.0
    %1381 = vmatpush1.msra.mxu0 0.0
    %1382 = vmatprep.subr.mxu0 0.0
    %1383 = vmatpush1.msra.mxu0 0.0
    %1384 = vmatprep.subr.mxu0 0.0
    %1385 = vmatpush1.msra.mxu0 0.0
    %1386 = vmatprep.subr.mxu0 0.0
    %1387 = vmatpush1.msra.mxu0 0.0
    %1388 = vmatprep.subr.mxu0 0.0
    %1389 = vmatpush1.msra.mxu0 0.0
    %1390 = vmatprep.subr.mxu0 0.0
    %1391 = vmatpush1.msra.mxu0 0.0
    %1392 = vmatprep.subr.mxu0 0.0
    %1393 = vmatpush1.msra.mxu0 0.0
    %1394 = vmatprep.subr.mxu0 0.0
    %1395 = vmatpush1.msra.mxu0 0.0
    %1396 = vmatprep.subr.mxu0 0.0
    %1397 = vmatpush1.msra.mxu0 %v1218
    %1398 = vmatprep.subr.mxu0 0.0
    %1399 = vmatpush2.msra.mxu0 0.0
    %1400 = vmatprep.subr.mxu0 0.0
    %1401 = vmatpush2.msra.mxu0 0.0
    %1402 = vmatprep.subr.mxu0 0.0
    %1403 = vmatpush2.msra.mxu0 0.0
    %1404 = vmatprep.subr.mxu0 0.0
    %1405 = vmatpush2.msra.mxu0 0.0
    %1406 = vmatprep.subr.mxu0 0.0
    %1407 = vmatpush2.msra.mxu0 0.0
    %1408 = vmatprep.subr.mxu0 0.0
    %1409 = vmatpush2.msra.mxu0 0.0
    %1410 = vmatprep.subr.mxu0 0.0
    %1411 = vmatpush2.msra.mxu0 0.0
    %1412 = vmatprep.subr.mxu0 0.0
    %1413 = vmatpush2.msra.mxu0 0.0
    %1414 = vmatprep.subr.mxu0 0.0
    %1415 = vmatpush2.msra.mxu0 0.0
    %1416 = vmatprep.subr.mxu0 0.0
    %1417 = vmatpush2.msra.mxu0 0.0
    %1418 = vmatprep.subr.mxu0 0.0
    %1419 = vmatpush2.msra.mxu0 0.0
    %1420 = vmatprep.subr.mxu0 0.0
    %1421 = vmatpush2.msra.mxu0 0.0
    %1422 = vmatprep.subr.mxu0 0.0
    %1423 = vmatpush2.msra.mxu0 0.0
    %1424 = vmatprep.subr.mxu0 0.0
    %1425 = vmatpush2.msra.mxu0 0.0
    %1426 = vmatprep.subr.mxu0 0.0
    %1427 = vmatpush2.msra.mxu0 0.0
    %1428 = vmatprep.subr.mxu0 0.0
    %1429 = vmatpush2.msra.mxu0 0.0
    %1430 = vmatprep.mubr.f32.mxu0 0.0
    %1431 = vmatmul.mubr.f32.gmra.mxu0 %v1224
    %v1432 = vpop.f32.mrf.mxu0
    %v1433 = vadd.f32 0.0, %v1432
    %v1434 = vpop.f32.mrf.mxu0
    %1435 = vdwg.mxu0
    %v1436 = vpack.c.bf16 %v1293, %v1293
    %v1437 = vld [vmem:[%s8] sm:$0xf]
    %v1438 = vld [vmem:[%s8 + $0x4] sm:$0xf]
    %v1439 = vld [vmem:[%s8 + $0x8] sm:$0xf]
    %v1440 = vld [vmem:[%s8 + $0xc] sm:$0xf]
    %v1441 = vld [vmem:[%s8 + $0x10] sm:$0xf]
    %v1442 = vld [vmem:[%s8 + $0x14] sm:$0xf]
    %v1443 = vld [vmem:[%s8 + $0x18] sm:$0xf]
    %v1444 = vld [vmem:[%s8 + $0x1c] sm:$0xf]
    %v1445 = vld [vmem:[%s8 + $0x20] sm:$0xf]
    %v1446 = vld [vmem:[%s8 + $0x24] sm:$0xf]
    %v1447 = vld [vmem:[%s8 + $0x28] sm:$0xf]
    %v1448 = vld [vmem:[%s8 + $0x2c] sm:$0xf]
    %v1449 = vld [vmem:[%s8 + $0x30] sm:$0xf]
    %v1450 = vld [vmem:[%s8 + $0x34] sm:$0xf]
    %v1451 = vld [vmem:[%s8 + $0x38] sm:$0xf]
    %v1452 = vld [vmem:[%s8 + $0x3c] sm:$0xf]
    %v1453 = vpack.c.bf16 %v1363, %v1363
    %v1454 = vld [vmem:[%s9] sm:$0xf]
    %v1455 = vld [vmem:[%s9 + $0x4] sm:$0xf]
    %v1456 = vld [vmem:[%s9 + $0x8] sm:$0xf]
    %v1457 = vld [vmem:[%s9 + $0xc] sm:$0xf]
    %v1458 = vld [vmem:[%s9 + $0x10] sm:$0xf]
    %v1459 = vld [vmem:[%s9 + $0x14] sm:$0xf]
    %v1460 = vld [vmem:[%s9 + $0x18] sm:$0xf]
    %v1461 = vld [vmem:[%s9 + $0x1c] sm:$0xf]
    %v1462 = vld [vmem:[%s9 + $0x20] sm:$0xf]
    %v1463 = vld [vmem:[%s9 + $0x24] sm:$0xf]
    %v1464 = vld [vmem:[%s9 + $0x28] sm:$0xf]
    %v1465 = vld [vmem:[%s9 + $0x2c] sm:$0xf]
    %v1466 = vld [vmem:[%s9 + $0x30] sm:$0xf]
    %v1467 = vld [vmem:[%s9 + $0x34] sm:$0xf]
    %v1468 = vld [vmem:[%s9 + $0x38] sm:$0xf]
    %v1469 = vld [vmem:[%s9 + $0x3c] sm:$0xf]
    %v1486 = vunpack.c.l.b16 %v1454
    %v1487 = vunpack.c.l.b16 %v1455
    %v1488 = vunpack.c.l.b16 %v1456
    %v1489 = vunpack.c.l.b16 %v1457
    %v1490 = vunpack.c.l.b16 %v1458
    %v1491 = vunpack.c.l.b16 %v1459
    %v1492 = vunpack.c.l.b16 %v1460
    %v1493 = vunpack.c.l.b16 %v1461
    %v1494 = vunpack.c.l.b16 %v1462
    %v1495 = vunpack.c.l.b16 %v1463
    %v1496 = vunpack.c.l.b16 %v1464
    %v1497 = vunpack.c.l.b16 %v1465
    %v1498 = vunpack.c.l.b16 %v1466
    %v1499 = vunpack.c.l.b16 %v1467
    %v1500 = vunpack.c.l.b16 %v1468
    %v1501 = vunpack.c.l.b16 %v1469
    %v1502 = vpack.c.b16 %v1487, %v1486
    %v1503 = vpack.c.b16 %v1489, %v1488
    %v1504 = vpack.c.b16 %v1491, %v1490
    %v1505 = vpack.c.b16 %v1493, %v1492
    %v1506 = vpack.c.b16 %v1495, %v1494
    %v1507 = vpack.c.b16 %v1497, %v1496
    %v1508 = vpack.c.b16 %v1499, %v1498
    %v1509 = vpack.c.b16 %v1501, %v1500
    %1518 = vmatprep.subr.bf16.mxu0 0
    %1519 = vmatpush1.bf16.msra.mxu0 %v1509
    %1520 = vmatprep.subr.bf16.mxu0 0
    %1521 = vmatpush1.bf16.msra.mxu0 %v1508
    %1522 = vmatprep.subr.bf16.mxu0 0
    %1523 = vmatpush1.bf16.msra.mxu0 %v1507
    %1524 = vmatprep.subr.bf16.mxu0 0
    %1525 = vmatpush1.bf16.msra.mxu0 %v1506
    %1526 = vmatprep.subr.bf16.mxu0 0
    %1527 = vmatpush1.bf16.msra.mxu0 %v1505
    %1528 = vmatprep.subr.bf16.mxu0 0
    %1529 = vmatpush1.bf16.msra.mxu0 %v1504
    %1530 = vmatprep.subr.bf16.mxu0 0
    %1531 = vmatpush1.bf16.msra.mxu0 %v1503
    %1532 = vmatprep.subr.bf16.mxu0 0
    %1533 = vmatpush1.bf16.msra.mxu0 %v1502
    %1534 = vmatprep.subr.bf16.mxu0 0
    %1535 = vmatpush2.bf16.msra.mxu0 0
    %1536 = vmatprep.subr.bf16.mxu0 0
    %1537 = vmatpush2.bf16.msra.mxu0 0
    %1538 = vmatprep.subr.bf16.mxu0 0
    %1539 = vmatpush2.bf16.msra.mxu0 0
    %1540 = vmatprep.subr.bf16.mxu0 0
    %1541 = vmatpush2.bf16.msra.mxu0 0
    %1542 = vmatprep.subr.bf16.mxu0 0
    %1543 = vmatpush2.bf16.msra.mxu0 0
    %1544 = vmatprep.subr.bf16.mxu0 0
    %1545 = vmatpush2.bf16.msra.mxu0 0
    %1546 = vmatprep.subr.bf16.mxu0 0
    %1547 = vmatpush2.bf16.msra.mxu0 0
    %1548 = vmatprep.subr.bf16.mxu0 0
    %1549 = vmatpush2.bf16.msra.mxu0 0
    %1550 = vmatprep.mubr.bf16.mxu0 0
    %1551 = vmatmul.mubr.bf16.gmra.mxu0 %v1453
    %v1552 = vpop.f32.mrf.mxu0
    %v1553 = vadd.f32 0.0, %v1552
    %v1554 = vpop.f32.mrf.mxu0
    %v1555 = vpop.f32.mrf.mxu0
    %v1556 = vpop.f32.mrf.mxu0
    %1557 = vdwg.mxu0
    %v1574 = vunpack.c.l.b16 %v1437
    %v1575 = vunpack.c.l.b16 %v1438
    %v1576 = vunpack.c.l.b16 %v1439
    %v1577 = vunpack.c.l.b16 %v1440
    %v1578 = vunpack.c.l.b16 %v1441
    %v1579 = vunpack.c.l.b16 %v1442
    %v1580 = vunpack.c.l.b16 %v1443
    %v1581 = vunpack.c.l.b16 %v1444
    %v1582 = vunpack.c.l.b16 %v1445
    %v1583 = vunpack.c.l.b16 %v1446
    %v1584 = vunpack.c.l.b16 %v1447
    %v1585 = vunpack.c.l.b16 %v1448
    %v1586 = vunpack.c.l.b16 %v1449
    %v1587 = vunpack.c.l.b16 %v1450
    %v1588 = vunpack.c.l.b16 %v1451
    %v1589 = vunpack.c.l.b16 %v1452
    %v1590 = vpack.c.b16 %v1575, %v1574
    %v1591 = vpack.c.b16 %v1577, %v1576
    %v1592 = vpack.c.b16 %v1579, %v1578
    %v1593 = vpack.c.b16 %v1581, %v1580
    %v1594 = vpack.c.b16 %v1583, %v1582
    %v1595 = vpack.c.b16 %v1585, %v1584
    %v1596 = vpack.c.b16 %v1587, %v1586
    %v1597 = vpack.c.b16 %v1589, %v1588
    %1606 = vmatprep.subr.bf16.mxu0 0
    %1607 = vmatpush1.bf16.msra.mxu0 %v1597
    %1608 = vmatprep.subr.bf16.mxu0 0
    %1609 = vmatpush1.bf16.msra.mxu0 %v1596
    %1610 = vmatprep.subr.bf16.mxu0 0
    %1611 = vmatpush1.bf16.msra.mxu0 %v1595
    %1612 = vmatprep.subr.bf16.mxu0 0
    %1613 = vmatpush1.bf16.msra.mxu0 %v1594
    %1614 = vmatprep.subr.bf16.mxu0 0
    %1615 = vmatpush1.bf16.msra.mxu0 %v1593
    %1616 = vmatprep.subr.bf16.mxu0 0
    %1617 = vmatpush1.bf16.msra.mxu0 %v1592
    %1618 = vmatprep.subr.bf16.mxu0 0
    %1619 = vmatpush1.bf16.msra.mxu0 %v1591
    %1620 = vmatprep.subr.bf16.mxu0 0
    %1621 = vmatpush1.bf16.msra.mxu0 %v1590
    %1622 = vmatprep.subr.bf16.mxu0 0
    %1623 = vmatpush2.bf16.msra.mxu0 0
    %1624 = vmatprep.subr.bf16.mxu0 0
    %1625 = vmatpush2.bf16.msra.mxu0 0
    %1626 = vmatprep.subr.bf16.mxu0 0
    %1627 = vmatpush2.bf16.msra.mxu0 0
    %1628 = vmatprep.subr.bf16.mxu0 0
    %1629 = vmatpush2.bf16.msra.mxu0 0
    %1630 = vmatprep.subr.bf16.mxu0 0
    %1631 = vmatpush2.bf16.msra.mxu0 0
    %1632 = vmatprep.subr.bf16.mxu0 0
    %1633 = vmatpush2.bf16.msra.mxu0 0
    %1634 = vmatprep.subr.bf16.mxu0 0
    %1635 = vmatpush2.bf16.msra.mxu0 0
    %1636 = vmatprep.subr.bf16.mxu0 0
    %1637 = vmatpush2.bf16.msra.mxu0 0
    %1638 = vmatprep.mubr.bf16.mxu0 0
    %1639 = vmatmul.mubr.bf16.gmra.mxu0 %v1436
    %v1640 = vpop.f32.mrf.mxu0
    %v1641 = vadd.f32 %v1553, %v1640
    %v1642 = vpop.f32.mrf.mxu0
    %v1643 = vpop.f32.mrf.mxu0
    %v1644 = vpop.f32.mrf.mxu0
    %1645 = vdwg.mxu0
    %v1646 = vpack.c.bf16 %v1433, %v1433
    %v1647 = vld [vmem:[%s10] sm:$0xf]
    %v1648 = vld [vmem:[%s10 + $0x4] sm:$0xf]
    %v1649 = vld [vmem:[%s10 + $0x8] sm:$0xf]
    %v1650 = vld [vmem:[%s10 + $0xc] sm:$0xf]
    %v1651 = vld [vmem:[%s10 + $0x10] sm:$0xf]
    %v1652 = vld [vmem:[%s10 + $0x14] sm:$0xf]
    %v1653 = vld [vmem:[%s10 + $0x18] sm:$0xf]
    %v1654 = vld [vmem:[%s10 + $0x1c] sm:$0xf]
    %v1655 = vld [vmem:[%s10 + $0x20] sm:$0xf]
    %v1656 = vld [vmem:[%s10 + $0x24] sm:$0xf]
    %v1657 = vld [vmem:[%s10 + $0x28] sm:$0xf]
    %v1658 = vld [vmem:[%s10 + $0x2c] sm:$0xf]
    %v1659 = vld [vmem:[%s10 + $0x30] sm:$0xf]
    %v1660 = vld [vmem:[%s10 + $0x34] sm:$0xf]
    %v1661 = vld [vmem:[%s10 + $0x38] sm:$0xf]
    %v1662 = vld [vmem:[%s10 + $0x3c] sm:$0xf]
    %v1679 = vunpack.c.l.b16 %v1647
    %v1680 = vunpack.c.l.b16 %v1648
    %v1681 = vunpack.c.l.b16 %v1649
    %v1682 = vunpack.c.l.b16 %v1650
    %v1683 = vunpack.c.l.b16 %v1651
    %v1684 = vunpack.c.l.b16 %v1652
    %v1685 = vunpack.c.l.b16 %v1653
    %v1686 = vunpack.c.l.b16 %v1654
    %v1687 = vunpack.c.l.b16 %v1655
    %v1688 = vunpack.c.l.b16 %v1656
    %v1689 = vunpack.c.l.b16 %v1657
    %v1690 = vunpack.c.l.b16 %v1658
    %v1691 = vunpack.c.l.b16 %v1659
    %v1692 = vunpack.c.l.b16 %v1660
    %v1693 = vunpack.c.l.b16 %v1661
    %v1694 = vunpack.c.l.b16 %v1662
    %v1695 = vpack.c.b16 %v1680, %v1679
    %v1696 = vpack.c.b16 %v1682, %v1681
    %v1697 = vpack.c.b16 %v1684, %v1683
    %v1698 = vpack.c.b16 %v1686, %v1685
    %v1699 = vpack.c.b16 %v1688, %v1687
    %v1700 = vpack.c.b16 %v1690, %v1689
    %v1701 = vpack.c.b16 %v1692, %v1691
    %v1702 = vpack.c.b16 %v1694, %v1693
    %1711 = vmatprep.subr.bf16.mxu0 0
    %1712 = vmatpush1.bf16.msra.mxu0 %v1702
    %1713 = vmatprep.subr.bf16.mxu0 0
    %1714 = vmatpush1.bf16.msra.mxu0 %v1701
    %1715 = vmatprep.subr.bf16.mxu0 0
    %1716 = vmatpush1.bf16.msra.mxu0 %v1700
    %1717 = vmatprep.subr.bf16.mxu0 0
    %1718 = vmatpush1.bf16.msra.mxu0 %v1699
    %1719 = vmatprep.subr.bf16.mxu0 0
    %1720 = vmatpush1.bf16.msra.mxu0 %v1698
    %1721 = vmatprep.subr.bf16.mxu0 0
    %1722 = vmatpush1.bf16.msra.mxu0 %v1697
    %1723 = vmatprep.subr.bf16.mxu0 0
    %1724 = vmatpush1.bf16.msra.mxu0 %v1696
    %1725 = vmatprep.subr.bf16.mxu0 0
    %1726 = vmatpush1.bf16.msra.mxu0 %v1695
    %1727 = vmatprep.subr.bf16.mxu0 0
    %1728 = vmatpush2.bf16.msra.mxu0 0
    %1729 = vmatprep.subr.bf16.mxu0 0
    %1730 = vmatpush2.bf16.msra.mxu0 0
    %1731 = vmatprep.subr.bf16.mxu0 0
    %1732 = vmatpush2.bf16.msra.mxu0 0
    %1733 = vmatprep.subr.bf16.mxu0 0
    %1734 = vmatpush2.bf16.msra.mxu0 0
    %1735 = vmatprep.subr.bf16.mxu0 0
    %1736 = vmatpush2.bf16.msra.mxu0 0
    %1737 = vmatprep.subr.bf16.mxu0 0
    %1738 = vmatpush2.bf16.msra.mxu0 0
    %1739 = vmatprep.subr.bf16.mxu0 0
    %1740 = vmatpush2.bf16.msra.mxu0 0
    %1741 = vmatprep.subr.bf16.mxu0 0
    %1742 = vmatpush2.bf16.msra.mxu0 0
    %1743 = vmatprep.mubr.bf16.mxu0 0
    %1744 = vmatmul.mubr.bf16.gmra.mxu0 %v1646
    %v1745 = vpop.f32.mrf.mxu0
    %v1746 = vadd.f32 0.0, %v1745
    %v1747 = vpop.f32.mrf.mxu0
    %v1748 = vpop.f32.mrf.mxu0
    %v1749 = vpop.f32.mrf.mxu0
    %1750 = vdwg.mxu0
    %v1751 = vadd.f32 %v1641, %v1746
    %v1752 = vld [vmem:[%s11] sm:$0x1]
    %v1754 = vlaneseq
    %v1755 = vshrl.u32 %v1754, 7
    %v1756 = vsub.s32 0, %v1755
    %v1757 = vrot.slane %v1752, %v1756
    %v1759 = vadd.f32 %v1751, %v1757
    %1760 = vst [vmem:[#allocation2] sm:$0x3] %v1759
    // Predicated region
    $region50: #{custom_googlenet_forward.15} parent=1 // pred_check
      _
    $region51: #{custom_googlenet_forward.15} parent=1 // pred_check_branch
      %1762 = sbr.rel (0) target = $region53
    $region52: #{custom_googlenet_forward.15} parent=1 // pred_region
      %s1764 = ssub.s32 32, 32
      %1765 = vsyncadd [#allocation3], %s1764
      %s1767 = sshll.u32 [#allocation2], 4
      %s1768 = int_to_ptr.vmem [resolvable:$true] %s1767
      %1770 = dma.vmem_to_hbm [thread:$0]  %s1768, 32, %s12, [#allocation3]
    $region53: #{custom_googlenet_forward.15} parent=1 // pred_fallthru
      _
    // Predicated region
    $region54: #{custom_googlenet_forward.15} parent=1 // pred_check
      _
    $region55: #{custom_googlenet_forward.15} parent=1 // pred_check_branch
      %1772 = sbr.rel (0) target = $region57
    $region56: #{custom_googlenet_forward.15} parent=1 // pred_region
      %1773 = dma.done [#allocation3], 32
    $region57: #{custom_googlenet_forward.15} parent=1 // pred_fallthru
      _
    %1774 = vsyncpa [#allocation3], 1

</llo_original>
